<compile_context>
chip_gen: v5e
topology: v5e:2x2
jax: 0.10.0
libtpu: 0.0.40
codegen_flags: <defaults>
</compile_context>

<pallas_src>
import jax
import jax.numpy as jnp
from jax.experimental import pallas as pl
from jax.experimental.pallas import tpu as pltpu


# ---------------------------------------------------------------------------
# VMEM budgeting (generation aware: v5e/v6e 128 MiB physical, v7x 64 MiB).
# ---------------------------------------------------------------------------
def _vmem_capacity_bytes():
    try:
        return int(pltpu.get_tpu_info().vmem_capacity_bytes)
    except Exception:
        return 64 << 20           # conservative fallback (v7x per-TensorCore)


_VMEM_CAP = _vmem_capacity_bytes()
# Working-set budget for the streaming (HBM-bound) kernels, and the scoped
# VMEM limit we request from the compiler (safe on v5e / v6e / v7x).
_STREAM_BUDGET = min(int(_VMEM_CAP * 0.375), 24 << 20)
_STREAM_VMEM_LIMIT = min(int(_VMEM_CAP * 0.625), 40 << 20)


def _pick_spatial_tile(S, bytes_per_lane, budget_bytes):
    """Largest lane-dense (multiple-of-128) tile along S that divides S and
    keeps the streaming working set within `budget_bytes`."""
    max_ts = max(128, budget_bytes // max(int(bytes_per_lane), 1))
    if S <= max_ts:
        return S
    ts = (min(max_ts, S) // 128) * 128
    while ts >= 128:
        if S % ts == 0:
            return ts
        ts -= 128
    # ragged fallback: largest divisor of S that still fits the budget
    for ts in range(min(max_ts, S), 0, -1):
        if S % ts == 0:
            return ts
    return S


# ---------------------------------------------------------------------------
# Kernel 1: fused global reductions (single pass over x), packed outputs.
# ---------------------------------------------------------------------------
def _reduce_kernel(x_ref, ch_ref, sp_ref):
    # x_ref : (1, C, TS)  input tile
    # ch_ref: (1, C, 2)   [:, :, 0] running sum over S, [:, :, 1] running max
    # sp_ref: (1, 2, TS)  [0] = mean over C, [1] = max over C
    s = pl.program_id(1)
    x = x_ref[0].astype(jnp.float32)                        # (C, TS)

    @pl.when(s == 0)
    def _():
        ch_ref[...] = jnp.zeros(ch_ref.shape, ch_ref.dtype)
        ch_ref[0, :, 1:2] = jnp.full((ch_ref.shape[1], 1), -jnp.inf, ch_ref.dtype)

    # channel-attention stats: reduce over the spatial (lane) axis
    ch_ref[0, :, 0:1] += jnp.sum(x, axis=1, keepdims=True)
    ch_ref[0, :, 1:2] = jnp.maximum(ch_ref[0, :, 1:2],
                                    jnp.max(x, axis=1, keepdims=True))

    # spatial-attention stats: reduce over the channel (sublane) axis
    sp_ref[0] = jnp.concatenate(
        [jnp.mean(x, axis=0, keepdims=True),
         jnp.max(x, axis=0, keepdims=True)], axis=0)


# ---------------------------------------------------------------------------
# Kernel 2: 7x7x7 Conv3d(2 -> 1, pad=3, no bias) + sigmoid, one batch per step,
# expressed as a single lane-dense MXU matmul (im2col band over the HW plane).
# ---------------------------------------------------------------------------
def _spatial_conv_kernel(slab_ref, band_ref, o_ref):
    # slab_ref: (1, D, Kf)  kd-pre-shifted padded [mean;max] planes, Kf = 14*Hp*Wp
    # band_ref: (Kf, HW)    im2col band folding the (c, kd, kh, kw) taps
    # o_ref   : (1, D, HW)  sigmoid(conv3d(feature)), lane-dense output
    y = jnp.dot(slab_ref[0], band_ref[...], preferred_element_type=jnp.float32)
    o_ref[0] = jax.nn.sigmoid(y).astype(o_ref.dtype)


# ---------------------------------------------------------------------------
# Kernel 3: apply the two attention maps:  out = x * (ch_scale + sp_scale).
# ---------------------------------------------------------------------------
def _apply_kernel(x_ref, cs_ref, ss_ref, o_ref):
    # x_ref/o_ref: (1, C, TS)   cs_ref: (1, C, 1)   ss_ref: (1, 1, TS)
    scale = cs_ref[0].astype(jnp.float32) + ss_ref[0].astype(jnp.float32)
    o_ref[0] = (x_ref[0].astype(jnp.float32) * scale).astype(o_ref.dtype)


# ---------------------------------------------------------------------------
# Wrapper
# ---------------------------------------------------------------------------
def cbam3d(x, w1, b1, w2, b2, conv_w):
    """CBAM-3D forward.

    x:      (B, C, D, H, W)
    w1, b1: (C, Cr), (Cr,)   fc[0] of ChannelAttention3D (PyTorch weight.T)
    w2, b2: (Cr, C), (C,)    fc[2] of ChannelAttention3D (PyTorch weight.T)
    conv_w: (2, 7, 7, 7)     SpatialAttention3D Conv3d(2, 1, 7).weight[0]
    """
    B, C, D, H, W = x.shape
    S = D * H * W
    HW = H * W
    isz = x.dtype.itemsize
    xs = x.reshape(B, C, S)                                 # contiguous, free

    # keep scales in x's dtype when it is sub-32-bit to cut K3 read traffic
    scale_dtype = x.dtype if isz < 4 else jnp.float32
    scale_isz = jnp.dtype(scale_dtype).itemsize

    # ---- pass 1: all global reductions in one read of x --------------------
    # per-lane bytes: double-buffered x tile + double-buffered (2, TS) output
    ts1 = _pick_spatial_tile(S, 2 * C * isz + 2 * 2 * 4, _STREAM_BUDGET)
    n1 = S // ts1
    ch_stats, sp_stats = pl.pallas_call(
        _reduce_kernel,
        out_shape=(
            jax.ShapeDtypeStruct((B, C, 2), jnp.float32),
            jax.ShapeDtypeStruct((B, 2, S), jnp.float32),
        ),
        grid_spec=pltpu.PrefetchScalarGridSpec(
            num_scalar_prefetch=0,
            grid=(B, n1),
            in_specs=[pl.BlockSpec((1, C, ts1), lambda b, s: (b, 0, s))],
            out_specs=[
                pl.BlockSpec((1, C, 2), lambda b, s: (b, 0, 0)),
                pl.BlockSpec((1, 2, ts1), lambda b, s: (b, 0, s)),
            ],
        ),
        compiler_params=pltpu.CompilerParams(
            dimension_semantics=("parallel", "arbitrary"),
            vmem_limit_bytes=_STREAM_VMEM_LIMIT),
    )(xs)

    # ---- channel-attention MLP (tiny (B, C) op, plain JAX) ------------------
    # TODO(synk): exact-erf GELU channel MLP kept in plain JAX -- it is a
    # negligible (B, C) computation and avoids relying on an erf lowering.
    w1f, b1f = w1.astype(jnp.float32), b1.astype(jnp.float32)
    w2f, b2f = w2.astype(jnp.float32), b2.astype(jnp.float32)

    def _fc(v):
        return jax.nn.gelu(v @ w1f + b1f, approximate=False) @ w2f + b2f

    ch_avg = ch_stats[:, :, 0] / float(S)                   # (B, C)
    ch_max = ch_stats[:, :, 1]
    ch_scale = jax.nn.sigmoid(_fc(ch_avg) + _fc(ch_max))
    ch_scale = ch_scale[:, :, None].astype(scale_dtype)     # (B, C, 1)

    # ---- spatial attention: 7x7x7 conv(2 -> 1) + sigmoid --------------------
    Dp, Hp, Wp = D + 6, H + 6, W + 6
    feat = jnp.stack([sp_stats[:, 0, :].reshape(B, D, H, W),
                      sp_stats[:, 1, :].reshape(B, D, H, W)], axis=1)
    fp = jnp.pad(feat, ((0, 0), (0, 0), (3, 3), (3, 3), (3, 3)))  # (B,2,Dp,Hp,Wp)

    # Pre-shift the kd taps in the wrapper (tiny data) so the kernel never
    # slices along sublanes, then fold (c, kd, hp, wp) into one contraction.
    shifted = jnp.stack([fp[:, :, kd:kd + D] for kd in range(7)], axis=2)
    slab = shifted.transpose(0, 3, 1, 2, 4, 5).reshape(B, D, 2 * 7 * Hp * Wp)
    Kf = 2 * 7 * Hp * Wp

    # im2col band: band[(c,kd,ph,pw), (oh,ow)] = conv_w[c,kd,ph-oh,pw-ow]
    ph = jnp.arange(Hp)[:, None, None, None]
    pw = jnp.arange(Wp)[None, :, None, None]
    oh = jnp.arange(H)[None, None, :, None]
    ow = jnp.arange(W)[None, None, None, :]
    kh, kw = ph - oh, pw - ow
    valid = (kh >= 0) & (kh < 7) & (kw >= 0) & (kw < 7)
    wt = conv_w.astype(jnp.float32)
    band = jnp.where(valid[None, None],
                     wt[:, :, jnp.clip(kh, 0, 6), jnp.clip(kw, 0, 6)], 0.0)
    band = band.reshape(Kf, HW)
    # TODO(synk): for large H*W the flattened band grows O((H*W)^2); block the
    # band along the output-lane axis (128 lanes + 6-element halo) instead.

    k2_vmem = 2 * (D * Kf * 4 + Kf * HW * 4 + D * HW * scale_isz) + (4 << 20)
    sp_map = pl.pallas_call(
        _spatial_conv_kernel,
        out_shape=jax.ShapeDtypeStruct((B, D, HW), scale_dtype),
        grid_spec=pltpu.PrefetchScalarGridSpec(
            num_scalar_prefetch=0,
            grid=(B,),
            in_specs=[
                pl.BlockSpec((1, D, Kf), lambda b: (b, 0, 0)),
                pl.BlockSpec((Kf, HW), lambda b: (0, 0)),
            ],
            out_specs=pl.BlockSpec((1, D, HW), lambda b: (b, 0, 0)),
        ),
        compiler_params=pltpu.CompilerParams(
            dimension_semantics=("parallel",),
            vmem_limit_bytes=min(int(k2_vmem), int(_VMEM_CAP * 0.75))),
    )(slab, band)
    sp_scale = sp_map.reshape(B, 1, S)                      # (B, 1, S)

    # ---- pass 2: out = x * (ch_scale + sp_scale) ----------------------------
    ts3 = _pick_spatial_tile(S, 4 * C * isz + 2 * scale_isz, _STREAM_BUDGET)
    n3 = S // ts3
    out = pl.pallas_call(
        _apply_kernel,
        out_shape=jax.ShapeDtypeStruct((B, C, S), x.dtype),
        grid_spec=pltpu.PrefetchScalarGridSpec(
            num_scalar_prefetch=0,
            grid=(B, n3),
            in_specs=[
                pl.BlockSpec((1, C, ts3), lambda b, s: (b, 0, s)),
                pl.BlockSpec((1, C, 1), lambda b, s: (b, 0, 0)),
                pl.BlockSpec((1, 1, ts3), lambda b, s: (b, 0, s)),
            ],
            out_specs=pl.BlockSpec((1, C, ts3), lambda b, s: (b, 0, s)),
        ),
        compiler_params=pltpu.CompilerParams(
            dimension_semantics=("parallel", "parallel"),
            vmem_limit_bytes=_STREAM_VMEM_LIMIT),
    )(xs, ch_scale, sp_scale)

    return out.reshape(B, C, D, H, W)


# ---------------------------------------------------------------------------
# Pure-JAX reference mirroring the PyTorch forward.
# ---------------------------------------------------------------------------
def cbam3d_ref(x, w1, b1, w2, b2, conv_w):
    xf = x.astype(jnp.float32)
    avg = jnp.mean(xf, axis=(2, 3, 4))
    mx = jnp.max(xf, axis=(2, 3, 4))

    def _fc(v):
        return jax.nn.gelu(v @ w1 + b1, approximate=False) @ w2 + b2

    ch = jax.nn.sigmoid(_fc(avg) + _fc(mx))[:, :, None, None, None]
    a = jnp.mean(xf, axis=1, keepdims=True)
    m = jnp.max(xf, axis=1, keepdims=True)
    feat = jnp.concatenate([a, m], axis=1)
    y = jax.lax.conv_general_dilated(
        feat, conv_w[None].astype(jnp.float32),
        window_strides=(1, 1, 1), padding=[(3, 3), (3, 3), (3, 3)],
        dimension_numbers=("NCDHW", "OIDHW", "NCDHW"))
    sp = jax.nn.sigmoid(y)
    return ch * xf + sp * xf


if __name__ == "__main__":
    key = jax.random.PRNGKey(0)
    B, C, D, H, W = 2, 32, 8, 16, 16
    reduction = 16
    Cr = C // reduction
    kx, k1, k2, k3, k4, k5 = jax.random.split(key, 6)

    x = jax.random.normal(kx, (B, C, D, H, W), dtype=jnp.float32)

    lim1 = 1.0 / (C ** 0.5)
    w1 = jax.random.uniform(k1, (C, Cr), minval=-lim1, maxval=lim1, dtype=jnp.float32)
    b1 = jax.random.uniform(k2, (Cr,), minval=-lim1, maxval=lim1, dtype=jnp.float32)
    lim2 = 1.0 / (Cr ** 0.5)
    w2 = jax.random.uniform(k3, (Cr, C), minval=-lim2, maxval=lim2, dtype=jnp.float32)
    b2 = jax.random.uniform(k4, (C,), minval=-lim2, maxval=lim2, dtype=jnp.float32)
    limc = 1.0 / ((2 * 7 * 7 * 7) ** 0.5)
    conv_w = jax.random.uniform(
        k5, (2, 7, 7, 7), minval=-limc, maxval=limc, dtype=jnp.float32)

    out = jax.jit(cbam3d)(x, w1, b1, w2, b2, conv_w)
    out = jax.block_until_ready(out)

    ref = cbam3d_ref(x, w1, b1, w2, b2, conv_w)
    assert out.shape == (B, C, D, H, W), out.shape
    assert jnp.allclose(out, ref, atol=1e-4, rtol=1e-4), float(
        jnp.max(jnp.abs(out - ref)))

    print("KERNEL_OK")
</pallas_src>

<mosaic_0001>
module attributes {stable_mosaic.version = 11 : i64} {
  func.func @_reduce_kernel(%arg0: i32, %arg1: i32, %arg2: memref<1x32x2048xf32, #tpu.memory_space<vmem>>, %arg3: memref<1x32x2xf32, #tpu.memory_space<vmem>>, %arg4: memref<1x2x2048xf32, #tpu.memory_space<vmem>>) attributes {dimension_semantics = [#tpu.dimension_semantics<parallel>, #tpu.dimension_semantics<arbitrary>], iteration_bounds = array<i64: 2, 1>, scalar_prefetch = 0 : i64, scratch_operands = 0 : i64, tpu.core_type = #tpu.core_type<tc>, window_params = [{transform_indices = @transform_0, window_bounds = array<i64: 1, 32, 2048>}, {transform_indices = @transform_1, window_bounds = array<i64: 1, 32, 2>}, {transform_indices = @transform_2, window_bounds = array<i64: 1, 2, 2048>}]} {
    %c0 = arith.constant 0 : index
    %c0_0 = arith.constant 0 : index
    %c0_1 = arith.constant 0 : index
    %0 = vector.load %arg2[%c0, %c0_0, %c0_1] : memref<1x32x2048xf32, #tpu.memory_space<vmem>>, vector<1x32x2048xf32>
    %1 = vector.shape_cast %0 : vector<1x32x2048xf32> to vector<32x2048xf32>
    %c0_i32 = arith.constant 0 : i32
    %2 = arith.cmpi eq, %arg1, %c0_i32 : i32
    %3 = arith.extui %2 : i1 to i32
    %c0_i32_2 = arith.constant 0 : i32
    %4 = arith.cmpi ne, %3, %c0_i32_2 : i32
    scf.if %4 {
      %cst_21 = arith.constant 0.000000e+00 : f32
      %31 = vector.broadcast %cst_21 : f32 to vector<1x32x2xf32>
      %c0_22 = arith.constant 0 : index
      %c0_23 = arith.constant 0 : index
      %c0_24 = arith.constant 0 : index
      %32 = vector.load %arg3[%c0_22, %c0_23, %c0_24] : memref<1x32x2xf32, #tpu.memory_space<vmem>>, vector<1x32x2xf32>
      tpu.vector_store %arg3[%c0_22, %c0_23, %c0_24], %31 {strides = array<i32>} : memref<1x32x2xf32, #tpu.memory_space<vmem>>, vector<1x32x2xf32>,
      %cst_25 = arith.constant 0xFF800000 : f32
      %33 = vector.broadcast %cst_25 : f32 to vector<32x1xf32>
      %c0_26 = arith.constant 0 : index
      %c0_27 = arith.constant 0 : index
      %c1_28 = arith.constant 1 : index
      %34 = vector.load %arg3[%c0_26, %c0_27, %c1_28] : memref<1x32x2xf32, #tpu.memory_space<vmem>>, vector<1x32x1xf32>
      %35 = vector.shape_cast %34 : vector<1x32x1xf32> to vector<32x1xf32>
      %36 = vector.shape_cast %33 : vector<32x1xf32> to vector<1x32x1xf32>
      tpu.vector_store %arg3[%c0_26, %c0_27, %c1_28], %36 {strides = array<i32>} : memref<1x32x2xf32, #tpu.memory_space<vmem>>, vector<1x32x1xf32>,
    } else {
    }
    %c0_3 = arith.constant 0 : index
    %c0_4 = arith.constant 0 : index
    %c0_5 = arith.constant 0 : index
    %5 = vector.load %arg3[%c0_3, %c0_4, %c0_5] : memref<1x32x2xf32, #tpu.memory_space<vmem>>, vector<1x32x1xf32>
    %6 = vector.shape_cast %5 : vector<1x32x1xf32> to vector<32x1xf32>
    %cst = arith.constant dense<0.000000e+00> : vector<32xf32>
    %7 = vector.multi_reduction <add>, %1, %cst [1] : vector<32x2048xf32> to vector<32xf32>
    %8 = vector.shape_cast %7 : vector<32xf32> to vector<32x1xf32>
    %9 = arith.addf %6, %8 : vector<32x1xf32>
    %c0_6 = arith.constant 0 : index
    %c0_7 = arith.constant 0 : index
    %c0_8 = arith.constant 0 : index
    %10 = vector.load %arg3[%c0_6, %c0_7, %c0_8] : memref<1x32x2xf32, #tpu.memory_space<vmem>>, vector<1x32x1xf32>
    %11 = vector.shape_cast %10 : vector<1x32x1xf32> to vector<32x1xf32>
    %12 = vector.shape_cast %9 : vector<32x1xf32> to vector<1x32x1xf32>
    tpu.vector_store %arg3[%c0_6, %c0_7, %c0_8], %12 {strides = array<i32>} : memref<1x32x2xf32, #tpu.memory_space<vmem>>, vector<1x32x1xf32>,
    %c0_9 = arith.constant 0 : index
    %c0_10 = arith.constant 0 : index
    %c1 = arith.constant 1 : index
    %13 = vector.load %arg3[%c0_9, %c0_10, %c1] : memref<1x32x2xf32, #tpu.memory_space<vmem>>, vector<1x32x1xf32>
    %14 = vector.shape_cast %13 : vector<1x32x1xf32> to vector<32x1xf32>
    %cst_11 = arith.constant dense<0xFF800000> : vector<32xf32>
    %15 = vector.multi_reduction <maximumf>, %1, %cst_11 [1] : vector<32x2048xf32> to vector<32xf32>
    %16 = vector.shape_cast %15 : vector<32xf32> to vector<32x1xf32>
    %17 = arith.maximumf %14, %16 : vector<32x1xf32>
    %c0_12 = arith.constant 0 : index
    %c0_13 = arith.constant 0 : index
    %c1_14 = arith.constant 1 : index
    %18 = vector.load %arg3[%c0_12, %c0_13, %c1_14] : memref<1x32x2xf32, #tpu.memory_space<vmem>>, vector<1x32x1xf32>
    %19 = vector.shape_cast %18 : vector<1x32x1xf32> to vector<32x1xf32>
    %20 = vector.shape_cast %17 : vector<32x1xf32> to vector<1x32x1xf32>
    tpu.vector_store %arg3[%c0_12, %c0_13, %c1_14], %20 {strides = array<i32>} : memref<1x32x2xf32, #tpu.memory_space<vmem>>, vector<1x32x1xf32>,
    %cst_15 = arith.constant dense<0.000000e+00> : vector<2048xf32>
    %21 = vector.multi_reduction <add>, %1, %cst_15 [0] : vector<32x2048xf32> to vector<2048xf32>
    %22 = vector.shape_cast %21 : vector<2048xf32> to vector<1x2048xf32>
    %cst_16 = arith.constant 3.200000e+01 : f32
    %23 = vector.broadcast %cst_16 : f32 to vector<1x2048xf32>
    %24 = arith.divf %22, %23 : vector<1x2048xf32>
    %cst_17 = arith.constant dense<0xFF800000> : vector<2048xf32>
    %25 = vector.multi_reduction <maximumf>, %1, %cst_17 [0] : vector<32x2048xf32> to vector<2048xf32>
    %26 = vector.shape_cast %25 : vector<2048xf32> to vector<1x2048xf32>
    %27 = tpu.concatenate %24, %26 in 0 : vector<1x2048xf32>, vector<1x2048xf32> -> vector<2x2048xf32>
    %c0_18 = arith.constant 0 : index
    %c0_19 = arith.constant 0 : index
    %c0_20 = arith.constant 0 : index
    %28 = vector.load %arg4[%c0_18, %c0_19, %c0_20] : memref<1x2x2048xf32, #tpu.memory_space<vmem>>, vector<1x2x2048xf32>
    %29 = vector.shape_cast %28 : vector<1x2x2048xf32> to vector<2x2048xf32>
    %30 = vector.shape_cast %27 : vector<2x2048xf32> to vector<1x2x2048xf32>
    tpu.vector_store %arg4[%c0_18, %c0_19, %c0_20], %30 {strides = array<i32>} : memref<1x2x2048xf32, #tpu.memory_space<vmem>>, vector<1x2x2048xf32>,
    return
  }
  func.func @transform_0(%arg0: i32, %arg1: i32) -> (i32, i32, i32) {
    %c0_i32 = arith.constant 0 : i32
    %c0_i32_0 = arith.constant 0 : i32
    return %arg0, %c0_i32, %arg1 : i32, i32, i32
  }
  func.func @transform_1(%arg0: i32, %arg1: i32) -> (i32, i32, i32) {
    %c0_i32 = arith.constant 0 : i32
    %c0_i32_0 = arith.constant 0 : i32
    %c0_i32_1 = arith.constant 0 : i32
    return %arg0, %c0_i32, %c0_i32_0 : i32, i32, i32
  }
  func.func @transform_2(%arg0: i32, %arg1: i32) -> (i32, i32, i32) {
    %c0_i32 = arith.constant 0 : i32
    %c0_i32_0 = arith.constant 0 : i32
    return %arg0, %c0_i32, %arg1 : i32, i32, i32
  }
}

module attributes {stable_mosaic.version = 11 : i64} {
  func.func @_spatial_conv_kernel(%arg0: i32, %arg1: memref<1x8x6776xf32, #tpu.memory_space<vmem>>, %arg2: memref<6776x256xf32, #tpu.memory_space<vmem>>, %arg3: memref<1x8x256xf32, #tpu.memory_space<vmem>>) attributes {dimension_semantics = [#tpu.dimension_semantics<parallel>], iteration_bounds = array<i64: 2>, scalar_prefetch = 0 : i64, scratch_operands = 0 : i64, tpu.core_type = #tpu.core_type<tc>, window_params = [{transform_indices = @transform_0, window_bounds = array<i64: 1, 8, 6776>}, {pipeline_mode = #tpu.pipeline_mode<synchronous>, transform_indices = @transform_1, window_bounds = array<i64: 6776, 256>}, {transform_indices = @transform_2, window_bounds = array<i64: 1, 8, 256>}]} {
    %c0 = arith.constant 0 : index
    %c0_0 = arith.constant 0 : index
    %c0_1 = arith.constant 0 : index
    %0 = vector.load %arg1[%c0, %c0_0, %c0_1] : memref<1x8x6776xf32, #tpu.memory_space<vmem>>, vector<1x8x6776xf32>
    %1 = vector.shape_cast %0 : vector<1x8x6776xf32> to vector<8x6776xf32>
    %c0_2 = arith.constant 0 : index
    %c0_3 = arith.constant 0 : index
    %2 = vector.load %arg2[%c0_2, %c0_3] : memref<6776x256xf32, #tpu.memory_space<vmem>>, vector<6776x256xf32>
    %cst = arith.constant dense<0.000000e+00> : vector<8x256xf32>
    %3 = tpu.matmul %1, %2, %cst {dimension_numbers = #tpu.dot_dimension_numbers<[1], [0], [0], [1], [0, 0, 1, 1], [], []>} : vector<8x6776xf32>, vector<6776x256xf32>, vector<8x256xf32> -> vector<8x256xf32>
    %4 = arith.negf %3 : vector<8x256xf32>
    %5 = math.exp %4 : vector<8x256xf32>
    %cst_4 = arith.constant 1.000000e+00 : f32
    %6 = vector.broadcast %cst_4 : f32 to vector<8x256xf32>
    %7 = arith.addf %6, %5 : vector<8x256xf32>
    %8 = arith.divf %6, %7 : vector<8x256xf32>
    %c0_5 = arith.constant 0 : index
    %c0_6 = arith.constant 0 : index
    %c0_7 = arith.constant 0 : index
    %9 = vector.load %arg3[%c0_5, %c0_6, %c0_7] : memref<1x8x256xf32, #tpu.memory_space<vmem>>, vector<1x8x256xf32>
    %10 = vector.shape_cast %9 : vector<1x8x256xf32> to vector<8x256xf32>
    %11 = vector.shape_cast %8 : vector<8x256xf32> to vector<1x8x256xf32>
    tpu.vector_store %arg3[%c0_5, %c0_6, %c0_7], %11 {strides = array<i32>} : memref<1x8x256xf32, #tpu.memory_space<vmem>>, vector<1x8x256xf32>,
    return
  }
  func.func @transform_0(%arg0: i32) -> (i32, i32, i32) {
    %c0_i32 = arith.constant 0 : i32
    %c0_i32_0 = arith.constant 0 : i32
    %c0_i32_1 = arith.constant 0 : i32
    return %arg0, %c0_i32, %c0_i32_0 : i32, i32, i32
  }
  func.func @transform_1(%arg0: i32) -> (i32, i32) {
    %c0_i32 = arith.constant 0 : i32
    %c0_i32_0 = arith.constant 0 : i32
    %c0_i32_1 = arith.constant 0 : i32
    return %c0_i32, %c0_i32_0 : i32, i32
  }
  func.func @transform_2(%arg0: i32) -> (i32, i32, i32) {
    %c0_i32 = arith.constant 0 : i32
    %c0_i32_0 = arith.constant 0 : i32
    %c0_i32_1 = arith.constant 0 : i32
    return %arg0, %c0_i32, %c0_i32_0 : i32, i32, i32
  }
}

module attributes {stable_mosaic.version = 11 : i64} {
  func.func @_apply_kernel(%arg0: i32, %arg1: i32, %arg2: memref<1x32x2048xf32, #tpu.memory_space<vmem>>, %arg3: memref<1x32x1xf32, #tpu.memory_space<vmem>>, %arg4: memref<1x1x2048xf32, #tpu.memory_space<vmem>>, %arg5: memref<1x32x2048xf32, #tpu.memory_space<vmem>>) attributes {dimension_semantics = [#tpu.dimension_semantics<parallel>, #tpu.dimension_semantics<parallel>], iteration_bounds = array<i64: 2, 1>, scalar_prefetch = 0 : i64, scratch_operands = 0 : i64, tpu.core_type = #tpu.core_type<tc>, window_params = [{transform_indices = @transform_0, window_bounds = array<i64: 1, 32, 2048>}, {transform_indices = @transform_1, window_bounds = array<i64: 1, 32, 1>}, {transform_indices = @transform_2, window_bounds = array<i64: 1, 1, 2048>}, {transform_indices = @transform_3, window_bounds = array<i64: 1, 32, 2048>}]} {
    %c0 = arith.constant 0 : index
    %c0_0 = arith.constant 0 : index
    %c0_1 = arith.constant 0 : index
    %0 = vector.load %arg3[%c0, %c0_0, %c0_1] : memref<1x32x1xf32, #tpu.memory_space<vmem>>, vector<1x32x1xf32>
    %1 = vector.shape_cast %0 : vector<1x32x1xf32> to vector<32x1xf32>
    %c0_2 = arith.constant 0 : index
    %c0_3 = arith.constant 0 : index
    %c0_4 = arith.constant 0 : index
    %2 = vector.load %arg4[%c0_2, %c0_3, %c0_4] : memref<1x1x2048xf32, #tpu.memory_space<vmem>>, vector<1x1x2048xf32>
    %3 = vector.shape_cast %2 : vector<1x1x2048xf32> to vector<1x2048xf32>
    %4 = vector.broadcast %1 : vector<32x1xf32> to vector<32x2048xf32>
    %5 = vector.broadcast %3 : vector<1x2048xf32> to vector<32x2048xf32>
    %6 = arith.addf %4, %5 : vector<32x2048xf32>
    %c0_5 = arith.constant 0 : index
    %c0_6 = arith.constant 0 : index
    %c0_7 = arith.constant 0 : index
    %7 = vector.load %arg2[%c0_5, %c0_6, %c0_7] : memref<1x32x2048xf32, #tpu.memory_space<vmem>>, vector<1x32x2048xf32>
    %8 = vector.shape_cast %7 : vector<1x32x2048xf32> to vector<32x2048xf32>
    %9 = arith.mulf %8, %6 : vector<32x2048xf32>
    %c0_8 = arith.constant 0 : index
    %c0_9 = arith.constant 0 : index
    %c0_10 = arith.constant 0 : index
    %10 = vector.load %arg5[%c0_8, %c0_9, %c0_10] : memref<1x32x2048xf32, #tpu.memory_space<vmem>>, vector<1x32x2048xf32>
    %11 = vector.shape_cast %10 : vector<1x32x2048xf32> to vector<32x2048xf32>
    %12 = vector.shape_cast %9 : vector<32x2048xf32> to vector<1x32x2048xf32>
    tpu.vector_store %arg5[%c0_8, %c0_9, %c0_10], %12 {strides = array<i32>} : memref<1x32x2048xf32, #tpu.memory_space<vmem>>, vector<1x32x2048xf32>,
    return
  }
  func.func @transform_0(%arg0: i32, %arg1: i32) -> (i32, i32, i32) {
    %c0_i32 = arith.constant 0 : i32
    %c0_i32_0 = arith.constant 0 : i32
    return %arg0, %c0_i32, %arg1 : i32, i32, i32
  }
  func.func @transform_1(%arg0: i32, %arg1: i32) -> (i32, i32, i32) {
    %c0_i32 = arith.constant 0 : i32
    %c0_i32_0 = arith.constant 0 : i32
    %c0_i32_1 = arith.constant 0 : i32
    return %arg0, %c0_i32, %c0_i32_0 : i32, i32, i32
  }
  func.func @transform_2(%arg0: i32, %arg1: i32) -> (i32, i32, i32) {
    %c0_i32 = arith.constant 0 : i32
    %c0_i32_0 = arith.constant 0 : i32
    return %arg0, %c0_i32, %arg1 : i32, i32, i32
  }
  func.func @transform_3(%arg0: i32, %arg1: i32) -> (i32, i32, i32) {
    %c0_i32 = arith.constant 0 : i32
    %c0_i32_0 = arith.constant 0 : i32
    return %arg0, %c0_i32, %arg1 : i32, i32, i32
  }
}

</mosaic_0001>

<llo_original>
// kernel: squeeze.7
$region0: #{squeeze.7}
  %s0 = inlined_call_operand.vmem [shape: f32[2,2048], index: 0, kind: input, shape index: {}]
  %s1 = inlined_call_operand.vmem [shape: f32[2,1,8,16,16], index: 1, kind: output, shape index: {}]
  $region1: #{squeeze.7} parent=0
    #allocation0 [shape = 'u8[65536]{0}', space=vmem, size = 0x10000, scoped, tag = 'scoped mem for input reshape']
    %s3 = ssub.s32 4, 1
    %s4 = scalar_lea.vmem %s0, 30
    %v5 = vld [vmem:[%s4] sm:%s3]
    %s6 = scalar_lea.vmem [#allocation0], 120
    %7 = vst [vmem:[%s6] sm:%s3] %v5
    %s8 = scalar_lea.vmem %s0, 28
    %v9 = vld [vmem:[%s8] sm:%s3]
    %s10 = scalar_lea.vmem [#allocation0], 112
    %11 = vst [vmem:[%s10] sm:%s3] %v9
    %s12 = scalar_lea.vmem %s0, 26
    %v13 = vld [vmem:[%s12] sm:%s3]
    %s14 = scalar_lea.vmem [#allocation0], 104
    %15 = vst [vmem:[%s14] sm:%s3] %v13
    %s16 = scalar_lea.vmem %s0, 24
    %v17 = vld [vmem:[%s16] sm:%s3]
    %s18 = scalar_lea.vmem [#allocation0], 96
    %19 = vst [vmem:[%s18] sm:%s3] %v17
    %s20 = scalar_lea.vmem %s0, 22
    %v21 = vld [vmem:[%s20] sm:%s3]
    %s22 = scalar_lea.vmem [#allocation0], 88
    %23 = vst [vmem:[%s22] sm:%s3] %v21
    %s24 = scalar_lea.vmem %s0, 20
    %v25 = vld [vmem:[%s24] sm:%s3]
    %s26 = scalar_lea.vmem [#allocation0], 80
    %27 = vst [vmem:[%s26] sm:%s3] %v25
    %s28 = scalar_lea.vmem %s0, 18
    %v29 = vld [vmem:[%s28] sm:%s3]
    %s30 = scalar_lea.vmem [#allocation0], 72
    %31 = vst [vmem:[%s30] sm:%s3] %v29
    %s32 = scalar_lea.vmem %s0, 16
    %v33 = vld [vmem:[%s32] sm:%s3]
    %s34 = scalar_lea.vmem [#allocation0], 64
    %35 = vst [vmem:[%s34] sm:%s3] %v33
    %s36 = scalar_lea.vmem %s0, 14
    %v37 = vld [vmem:[%s36] sm:%s3]
    %s38 = scalar_lea.vmem [#allocation0], 56
    %39 = vst [vmem:[%s38] sm:%s3] %v37
    %s40 = scalar_lea.vmem %s0, 12
    %v41 = vld [vmem:[%s40] sm:%s3]
    %s42 = scalar_lea.vmem [#allocation0], 48
    %43 = vst [vmem:[%s42] sm:%s3] %v41
    %s44 = scalar_lea.vmem %s0, 10
    %v45 = vld [vmem:[%s44] sm:%s3]
    %s46 = scalar_lea.vmem [#allocation0], 40
    %47 = vst [vmem:[%s46] sm:%s3] %v45
    %s48 = scalar_lea.vmem %s0, 8
    %v49 = vld [vmem:[%s48] sm:%s3]
    %s50 = scalar_lea.vmem [#allocation0], 32
    %51 = vst [vmem:[%s50] sm:%s3] %v49
    %s52 = scalar_lea.vmem %s0, 6
    %v53 = vld [vmem:[%s52] sm:%s3]
    %s54 = scalar_lea.vmem [#allocation0], 24
    %55 = vst [vmem:[%s54] sm:%s3] %v53
    %s56 = scalar_lea.vmem %s0, 4
    %v57 = vld [vmem:[%s56] sm:%s3]
    %s58 = scalar_lea.vmem [#allocation0], 16
    %59 = vst [vmem:[%s58] sm:%s3] %v57
    %s60 = scalar_lea.vmem %s0, 2
    %v61 = vld [vmem:[%s60] sm:%s3]
    %s62 = scalar_lea.vmem [#allocation0], 8
    %63 = vst [vmem:[%s62] sm:%s3] %v61
    %v64 = vld [vmem:[%s0] sm:%s3]
    %65 = vst [vmem:[#allocation0] sm:%s3] %v64
    %v66 = vld [vmem:[#allocation0] sm:$0x3]
    %vm67 = vcmask 130048
    %68 = vst.msk [vmem:[%s1] sm:$0x1] %vm67, %v66
    %s69 = scalar_lea.vmem %s1, 127
    %70 = vst.msk [vmem:[%s69] sm:$0x2] %vm67, %v66
    %s71 = scalar_lea.vmem [#allocation0], 8
    %v72 = vld [vmem:[%s71] sm:$0x3]
    %vm73 = vcmask 130048
    %s74 = scalar_lea.vmem %s1, 8
    %75 = vst.msk [vmem:[%s74] sm:$0x1] %vm73, %v72
    %s76 = scalar_lea.vmem %s1, 135
    %77 = vst.msk [vmem:[%s76] sm:$0x2] %vm73, %v72
    %s78 = scalar_lea.vmem [#allocation0], 16
    %v79 = vld [vmem:[%s78] sm:$0x3]
    %vm80 = vcmask 130048
    %s81 = scalar_lea.vmem %s1, 16
    %82 = vst.msk [vmem:[%s81] sm:$0x1] %vm80, %v79
    %s83 = scalar_lea.vmem %s1, 143
    %84 = vst.msk [vmem:[%s83] sm:$0x2] %vm80, %v79
    %s85 = scalar_lea.vmem [#allocation0], 24
    %v86 = vld [vmem:[%s85] sm:$0x3]
    %vm87 = vcmask 130048
    %s88 = scalar_lea.vmem %s1, 24
    %89 = vst.msk [vmem:[%s88] sm:$0x1] %vm87, %v86
    %s90 = scalar_lea.vmem %s1, 151
    %91 = vst.msk [vmem:[%s90] sm:$0x2] %vm87, %v86
    %s92 = scalar_lea.vmem [#allocation0], 32
    %v93 = vld [vmem:[%s92] sm:$0x3]
    %vm94 = vcmask 130048
    %s95 = scalar_lea.vmem %s1, 32
    %96 = vst.msk [vmem:[%s95] sm:$0x1] %vm94, %v93
    %s97 = scalar_lea.vmem %s1, 159
    %98 = vst.msk [vmem:[%s97] sm:$0x2] %vm94, %v93
    %s99 = scalar_lea.vmem [#allocation0], 40
    %v100 = vld [vmem:[%s99] sm:$0x3]
    %vm101 = vcmask 130048
    %s102 = scalar_lea.vmem %s1, 40
    %103 = vst.msk [vmem:[%s102] sm:$0x1] %vm101, %v100
    %s104 = scalar_lea.vmem %s1, 167
    %105 = vst.msk [vmem:[%s104] sm:$0x2] %vm101, %v100
    %s106 = scalar_lea.vmem [#allocation0], 48
    %v107 = vld [vmem:[%s106] sm:$0x3]
    %vm108 = vcmask 130048
    %s109 = scalar_lea.vmem %s1, 48
    %110 = vst.msk [vmem:[%s109] sm:$0x1] %vm108, %v107
    %s111 = scalar_lea.vmem %s1, 175
    %112 = vst.msk [vmem:[%s111] sm:$0x2] %vm108, %v107
    %s113 = scalar_lea.vmem [#allocation0], 56
    %v114 = vld [vmem:[%s113] sm:$0x3]
    %vm115 = vcmask 130048
    %s116 = scalar_lea.vmem %s1, 56
    %117 = vst.msk [vmem:[%s116] sm:$0x1] %vm115, %v114
    %s118 = scalar_lea.vmem %s1, 183
    %119 = vst.msk [vmem:[%s118] sm:$0x2] %vm115, %v114
    %s120 = scalar_lea.vmem [#allocation0], 64
    %v121 = vld [vmem:[%s120] sm:$0x3]
    %vm122 = vcmask 130048
    %s123 = scalar_lea.vmem %s1, 64
    %124 = vst.msk [vmem:[%s123] sm:$0x1] %vm122, %v121
    %s125 = scalar_lea.vmem %s1, 191
    %126 = vst.msk [vmem:[%s125] sm:$0x2] %vm122, %v121
    %s127 = scalar_lea.vmem [#allocation0], 72
    %v128 = vld [vmem:[%s127] sm:$0x3]
    %vm129 = vcmask 130048
    %s130 = scalar_lea.vmem %s1, 72
    %131 = vst.msk [vmem:[%s130] sm:$0x1] %vm129, %v128
    %s132 = scalar_lea.vmem %s1, 199
    %133 = vst.msk [vmem:[%s132] sm:$0x2] %vm129, %v128
    %s134 = scalar_lea.vmem [#allocation0], 80
    %v135 = vld [vmem:[%s134] sm:$0x3]
    %vm136 = vcmask 130048
    %s137 = scalar_lea.vmem %s1, 80
    %138 = vst.msk [vmem:[%s137] sm:$0x1] %vm136, %v135
    %s139 = scalar_lea.vmem %s1, 207
    %140 = vst.msk [vmem:[%s139] sm:$0x2] %vm136, %v135
    %s141 = scalar_lea.vmem [#allocation0], 88
    %v142 = vld [vmem:[%s141] sm:$0x3]
    %vm143 = vcmask 130048
    %s144 = scalar_lea.vmem %s1, 88
    %145 = vst.msk [vmem:[%s144] sm:$0x1] %vm143, %v142
    %s146 = scalar_lea.vmem %s1, 215
    %147 = vst.msk [vmem:[%s146] sm:$0x2] %vm143, %v142
    %s148 = scalar_lea.vmem [#allocation0], 96
    %v149 = vld [vmem:[%s148] sm:$0x3]
    %vm150 = vcmask 130048
    %s151 = scalar_lea.vmem %s1, 96
    %152 = vst.msk [vmem:[%s151] sm:$0x1] %vm150, %v149
    %s153 = scalar_lea.vmem %s1, 223
    %154 = vst.msk [vmem:[%s153] sm:$0x2] %vm150, %v149
    %s155 = scalar_lea.vmem [#allocation0], 104
    %v156 = vld [vmem:[%s155] sm:$0x3]
    %vm157 = vcmask 130048
    %s158 = scalar_lea.vmem %s1, 104
    %159 = vst.msk [vmem:[%s158] sm:$0x1] %vm157, %v156
    %s160 = scalar_lea.vmem %s1, 231
    %161 = vst.msk [vmem:[%s160] sm:$0x2] %vm157, %v156
    %s162 = scalar_lea.vmem [#allocation0], 112
    %v163 = vld [vmem:[%s162] sm:$0x3]
    %vm164 = vcmask 130048
    %s165 = scalar_lea.vmem %s1, 112
    %166 = vst.msk [vmem:[%s165] sm:$0x1] %vm164, %v163
    %s167 = scalar_lea.vmem %s1, 239
    %168 = vst.msk [vmem:[%s167] sm:$0x2] %vm164, %v163
    %s169 = scalar_lea.vmem [#allocation0], 120
    %v170 = vld [vmem:[%s169] sm:$0x3]
    %vm171 = vcmask 130048
    %s172 = scalar_lea.vmem %s1, 120
    %173 = vst.msk [vmem:[%s172] sm:$0x1] %vm171, %v170
    %s174 = scalar_lea.vmem %s1, 247
    %175 = vst.msk [vmem:[%s174] sm:$0x2] %vm171, %v170
    %v176 = vld [vmem:[#allocation0] ss:$8 sm:$0xf]
    %s177 = scalar_lea.vmem [#allocation0], 4294967265
    %v178 = vld [vmem:[%s177] ss:$8 sm:$0xf0]
    %vm179 = vcmask 1047556
    %v180 = vsel %vm179, %v178, %v176
    %181 = vrot.lane.b32.xlu0 %v180, 112
    %v182 = vpop.permute.xlu0 %181
    %vm183 = vcmask 130048
    %s184 = scalar_lea.vmem %s1, 1
    %185 = vst.msk [vmem:[%s184] ss:$8 sm:$0xf] %vm183, %v182
    %s186 = scalar_lea.vmem %s1, 97
    %187 = vst.msk [vmem:[%s186] ss:$8 sm:$0xf0] %vm183, %v182
    %s188 = scalar_lea.vmem [#allocation0], 32
    %v189 = vld [vmem:[%s188] ss:$8 sm:$0xf]
    %s190 = scalar_lea.vmem [#allocation0], 1
    %v191 = vld [vmem:[%s190] ss:$8 sm:$0xf0]
    %vm192 = vcmask 1047556
    %v193 = vsel %vm192, %v191, %v189
    %194 = vrot.lane.b32.xlu0 %v193, 112
    %v195 = vpop.permute.xlu0 %194
    %vm196 = vcmask 130048
    %s197 = scalar_lea.vmem %s1, 33
    %198 = vst.msk [vmem:[%s197] ss:$8 sm:$0xf] %vm196, %v195
    %s199 = scalar_lea.vmem %s1, 129
    %200 = vst.msk [vmem:[%s199] ss:$8 sm:$0xf0] %vm196, %v195
    %s201 = scalar_lea.vmem [#allocation0], 64
    %v202 = vld [vmem:[%s201] ss:$8 sm:$0xf]
    %s203 = scalar_lea.vmem [#allocation0], 33
    %v204 = vld [vmem:[%s203] ss:$8 sm:$0xf0]
    %vm205 = vcmask 1047556
    %v206 = vsel %vm205, %v204, %v202
    %207 = vrot.lane.b32.xlu0 %v206, 112
    %v208 = vpop.permute.xlu0 %207
    %vm209 = vcmask 130048
    %s210 = scalar_lea.vmem %s1, 65
    %211 = vst.msk [vmem:[%s210] ss:$8 sm:$0xf] %vm209, %v208
    %s212 = scalar_lea.vmem %s1, 161
    %213 = vst.msk [vmem:[%s212] ss:$8 sm:$0xf0] %vm209, %v208
    %s214 = scalar_lea.vmem [#allocation0], 96
    %v215 = vld [vmem:[%s214] ss:$8 sm:$0xf]
    %s216 = scalar_lea.vmem [#allocation0], 65
    %v217 = vld [vmem:[%s216] ss:$8 sm:$0xf0]
    %vm218 = vcmask 1047556
    %v219 = vsel %vm218, %v217, %v215
    %220 = vrot.lane.b32.xlu0 %v219, 112
    %v221 = vpop.permute.xlu0 %220
    %vm222 = vcmask 130048
    %s223 = scalar_lea.vmem %s1, 97
    %224 = vst.msk [vmem:[%s223] ss:$8 sm:$0xf] %vm222, %v221
    %s225 = scalar_lea.vmem %s1, 193
    %226 = vst.msk [vmem:[%s225] ss:$8 sm:$0xf0] %vm222, %v221
    %v227 = vld [vmem:[#allocation0] ss:$8 sm:$0xf]
    %s228 = scalar_lea.vmem [#allocation0], 4294967265
    %v229 = vld [vmem:[%s228] ss:$8 sm:$0xf0]
    %vm230 = vcmask 1047556
    %v231 = vsel %vm230, %v229, %v227
    %232 = vrot.lane.b32.xlu0 %v231, 96
    %v233 = vpop.permute.xlu0 %232
    %vm234 = vcmask 130048
    %s235 = scalar_lea.vmem %s1, 2
    %236 = vst.msk [vmem:[%s235] ss:$8 sm:$0xf] %vm234, %v233
    %s237 = scalar_lea.vmem %s1, 98
    %238 = vst.msk [vmem:[%s237] ss:$8 sm:$0xf0] %vm234, %v233
    %s239 = scalar_lea.vmem [#allocation0], 32
    %v240 = vld [vmem:[%s239] ss:$8 sm:$0xf]
    %s241 = scalar_lea.vmem [#allocation0], 1
    %v242 = vld [vmem:[%s241] ss:$8 sm:$0xf0]
    %vm243 = vcmask 1047556
    %v244 = vsel %vm243, %v242, %v240
    %245 = vrot.lane.b32.xlu0 %v244, 96
    %v246 = vpop.permute.xlu0 %245
    %vm247 = vcmask 130048
    %s248 = scalar_lea.vmem %s1, 34
    %249 = vst.msk [vmem:[%s248] ss:$8 sm:$0xf] %vm247, %v246
    %s250 = scalar_lea.vmem %s1, 130
    %251 = vst.msk [vmem:[%s250] ss:$8 sm:$0xf0] %vm247, %v246
    %s252 = scalar_lea.vmem [#allocation0], 64
    %v253 = vld [vmem:[%s252] ss:$8 sm:$0xf]
    %s254 = scalar_lea.vmem [#allocation0], 33
    %v255 = vld [vmem:[%s254] ss:$8 sm:$0xf0]
    %vm256 = vcmask 1047556
    %v257 = vsel %vm256, %v255, %v253
    %258 = vrot.lane.b32.xlu0 %v257, 96
    %v259 = vpop.permute.xlu0 %258
    %vm260 = vcmask 130048
    %s261 = scalar_lea.vmem %s1, 66
    %262 = vst.msk [vmem:[%s261] ss:$8 sm:$0xf] %vm260, %v259
    %s263 = scalar_lea.vmem %s1, 162
    %264 = vst.msk [vmem:[%s263] ss:$8 sm:$0xf0] %vm260, %v259
    %s265 = scalar_lea.vmem [#allocation0], 96
    %v266 = vld [vmem:[%s265] ss:$8 sm:$0xf]
    %s267 = scalar_lea.vmem [#allocation0], 65
    %v268 = vld [vmem:[%s267] ss:$8 sm:$0xf0]
    %vm269 = vcmask 1047556
    %v270 = vsel %vm269, %v268, %v266
    %271 = vrot.lane.b32.xlu0 %v270, 96
    %v272 = vpop.permute.xlu0 %271
    %vm273 = vcmask 130048
    %s274 = scalar_lea.vmem %s1, 98
    %275 = vst.msk [vmem:[%s274] ss:$8 sm:$0xf] %vm273, %v272
    %s276 = scalar_lea.vmem %s1, 194
    %277 = vst.msk [vmem:[%s276] ss:$8 sm:$0xf0] %vm273, %v272
    %v278 = vld [vmem:[#allocation0] ss:$8 sm:$0xf]
    %s279 = scalar_lea.vmem [#allocation0], 4294967265
    %v280 = vld [vmem:[%s279] ss:$8 sm:$0xf0]
    %vm281 = vcmask 1047556
    %v282 = vsel %vm281, %v280, %v278
    %283 = vrot.lane.b32.xlu0 %v282, 80
    %v284 = vpop.permute.xlu0 %283
    %vm285 = vcmask 130048
    %s286 = scalar_lea.vmem %s1, 3
    %287 = vst.msk [vmem:[%s286] ss:$8 sm:$0xf] %vm285, %v284
    %s288 = scalar_lea.vmem %s1, 99
    %289 = vst.msk [vmem:[%s288] ss:$8 sm:$0xf0] %vm285, %v284
    %s290 = scalar_lea.vmem [#allocation0], 32
    %v291 = vld [vmem:[%s290] ss:$8 sm:$0xf]
    %s292 = scalar_lea.vmem [#allocation0], 1
    %v293 = vld [vmem:[%s292] ss:$8 sm:$0xf0]
    %vm294 = vcmask 1047556
    %v295 = vsel %vm294, %v293, %v291
    %296 = vrot.lane.b32.xlu0 %v295, 80
    %v297 = vpop.permute.xlu0 %296
    %vm298 = vcmask 130048
    %s299 = scalar_lea.vmem %s1, 35
    %300 = vst.msk [vmem:[%s299] ss:$8 sm:$0xf] %vm298, %v297
    %s301 = scalar_lea.vmem %s1, 131
    %302 = vst.msk [vmem:[%s301] ss:$8 sm:$0xf0] %vm298, %v297
    %s303 = scalar_lea.vmem [#allocation0], 64
    %v304 = vld [vmem:[%s303] ss:$8 sm:$0xf]
    %s305 = scalar_lea.vmem [#allocation0], 33
    %v306 = vld [vmem:[%s305] ss:$8 sm:$0xf0]
    %vm307 = vcmask 1047556
    %v308 = vsel %vm307, %v306, %v304
    %309 = vrot.lane.b32.xlu0 %v308, 80
    %v310 = vpop.permute.xlu0 %309
    %vm311 = vcmask 130048
    %s312 = scalar_lea.vmem %s1, 67
    %313 = vst.msk [vmem:[%s312] ss:$8 sm:$0xf] %vm311, %v310
    %s314 = scalar_lea.vmem %s1, 163
    %315 = vst.msk [vmem:[%s314] ss:$8 sm:$0xf0] %vm311, %v310
    %s316 = scalar_lea.vmem [#allocation0], 96
    %v317 = vld [vmem:[%s316] ss:$8 sm:$0xf]
    %s318 = scalar_lea.vmem [#allocation0], 65
    %v319 = vld [vmem:[%s318] ss:$8 sm:$0xf0]
    %vm320 = vcmask 1047556
    %v321 = vsel %vm320, %v319, %v317
    %322 = vrot.lane.b32.xlu0 %v321, 80
    %v323 = vpop.permute.xlu0 %322
    %vm324 = vcmask 130048
    %s325 = scalar_lea.vmem %s1, 99
    %326 = vst.msk [vmem:[%s325] ss:$8 sm:$0xf] %vm324, %v323
    %s327 = scalar_lea.vmem %s1, 195
    %328 = vst.msk [vmem:[%s327] ss:$8 sm:$0xf0] %vm324, %v323
    %v329 = vld [vmem:[#allocation0] ss:$8 sm:$0xf]
    %s330 = scalar_lea.vmem [#allocation0], 4294967265
    %v331 = vld [vmem:[%s330] ss:$8 sm:$0xf0]
    %vm332 = vcmask 1047556
    %v333 = vsel %vm332, %v331, %v329
    %334 = vrot.lane.b32.xlu0 %v333, 64
    %v335 = vpop.permute.xlu0 %334
    %vm336 = vcmask 130048
    %s337 = scalar_lea.vmem %s1, 4
    %338 = vst.msk [vmem:[%s337] ss:$8 sm:$0xf] %vm336, %v335
    %s339 = scalar_lea.vmem %s1, 100
    %340 = vst.msk [vmem:[%s339] ss:$8 sm:$0xf0] %vm336, %v335
    %s341 = scalar_lea.vmem [#allocation0], 32
    %v342 = vld [vmem:[%s341] ss:$8 sm:$0xf]
    %s343 = scalar_lea.vmem [#allocation0], 1
    %v344 = vld [vmem:[%s343] ss:$8 sm:$0xf0]
    %vm345 = vcmask 1047556
    %v346 = vsel %vm345, %v344, %v342
    %347 = vrot.lane.b32.xlu0 %v346, 64
    %v348 = vpop.permute.xlu0 %347
    %vm349 = vcmask 130048
    %s350 = scalar_lea.vmem %s1, 36
    %351 = vst.msk [vmem:[%s350] ss:$8 sm:$0xf] %vm349, %v348
    %s352 = scalar_lea.vmem %s1, 132
    %353 = vst.msk [vmem:[%s352] ss:$8 sm:$0xf0] %vm349, %v348
    %s354 = scalar_lea.vmem [#allocation0], 64
    %v355 = vld [vmem:[%s354] ss:$8 sm:$0xf]
    %s356 = scalar_lea.vmem [#allocation0], 33
    %v357 = vld [vmem:[%s356] ss:$8 sm:$0xf0]
    %vm358 = vcmask 1047556
    %v359 = vsel %vm358, %v357, %v355
    %360 = vrot.lane.b32.xlu0 %v359, 64
    %v361 = vpop.permute.xlu0 %360
    %vm362 = vcmask 130048
    %s363 = scalar_lea.vmem %s1, 68
    %364 = vst.msk [vmem:[%s363] ss:$8 sm:$0xf] %vm362, %v361
    %s365 = scalar_lea.vmem %s1, 164
    %366 = vst.msk [vmem:[%s365] ss:$8 sm:$0xf0] %vm362, %v361
    %s367 = scalar_lea.vmem [#allocation0], 96
    %v368 = vld [vmem:[%s367] ss:$8 sm:$0xf]
    %s369 = scalar_lea.vmem [#allocation0], 65
    %v370 = vld [vmem:[%s369] ss:$8 sm:$0xf0]
    %vm371 = vcmask 1047556
    %v372 = vsel %vm371, %v370, %v368
    %373 = vrot.lane.b32.xlu0 %v372, 64
    %v374 = vpop.permute.xlu0 %373
    %vm375 = vcmask 130048
    %s376 = scalar_lea.vmem %s1, 100
    %377 = vst.msk [vmem:[%s376] ss:$8 sm:$0xf] %vm375, %v374
    %s378 = scalar_lea.vmem %s1, 196
    %379 = vst.msk [vmem:[%s378] ss:$8 sm:$0xf0] %vm375, %v374
    %v380 = vld [vmem:[#allocation0] ss:$8 sm:$0xf]
    %s381 = scalar_lea.vmem [#allocation0], 4294967265
    %v382 = vld [vmem:[%s381] ss:$8 sm:$0xf0]
    %vm383 = vcmask 1047556
    %v384 = vsel %vm383, %v382, %v380
    %385 = vrot.lane.b32.xlu0 %v384, 48
    %v386 = vpop.permute.xlu0 %385
    %vm387 = vcmask 130048
    %s388 = scalar_lea.vmem %s1, 5
    %389 = vst.msk [vmem:[%s388] ss:$8 sm:$0xf] %vm387, %v386
    %s390 = scalar_lea.vmem %s1, 101
    %391 = vst.msk [vmem:[%s390] ss:$8 sm:$0xf0] %vm387, %v386
    %s392 = scalar_lea.vmem [#allocation0], 32
    %v393 = vld [vmem:[%s392] ss:$8 sm:$0xf]
    %s394 = scalar_lea.vmem [#allocation0], 1
    %v395 = vld [vmem:[%s394] ss:$8 sm:$0xf0]
    %vm396 = vcmask 1047556
    %v397 = vsel %vm396, %v395, %v393
    %398 = vrot.lane.b32.xlu0 %v397, 48
    %v399 = vpop.permute.xlu0 %398
    %vm400 = vcmask 130048
    %s401 = scalar_lea.vmem %s1, 37
    %402 = vst.msk [vmem:[%s401] ss:$8 sm:$0xf] %vm400, %v399
    %s403 = scalar_lea.vmem %s1, 133
    %404 = vst.msk [vmem:[%s403] ss:$8 sm:$0xf0] %vm400, %v399
    %s405 = scalar_lea.vmem [#allocation0], 64
    %v406 = vld [vmem:[%s405] ss:$8 sm:$0xf]
    %s407 = scalar_lea.vmem [#allocation0], 33
    %v408 = vld [vmem:[%s407] ss:$8 sm:$0xf0]
    %vm409 = vcmask 1047556
    %v410 = vsel %vm409, %v408, %v406
    %411 = vrot.lane.b32.xlu0 %v410, 48
    %v412 = vpop.permute.xlu0 %411
    %vm413 = vcmask 130048
    %s414 = scalar_lea.vmem %s1, 69
    %415 = vst.msk [vmem:[%s414] ss:$8 sm:$0xf] %vm413, %v412
    %s416 = scalar_lea.vmem %s1, 165
    %417 = vst.msk [vmem:[%s416] ss:$8 sm:$0xf0] %vm413, %v412
    %s418 = scalar_lea.vmem [#allocation0], 96
    %v419 = vld [vmem:[%s418] ss:$8 sm:$0xf]
    %s420 = scalar_lea.vmem [#allocation0], 65
    %v421 = vld [vmem:[%s420] ss:$8 sm:$0xf0]
    %vm422 = vcmask 1047556
    %v423 = vsel %vm422, %v421, %v419
    %424 = vrot.lane.b32.xlu0 %v423, 48
    %v425 = vpop.permute.xlu0 %424
    %vm426 = vcmask 130048
    %s427 = scalar_lea.vmem %s1, 101
    %428 = vst.msk [vmem:[%s427] ss:$8 sm:$0xf] %vm426, %v425
    %s429 = scalar_lea.vmem %s1, 197
    %430 = vst.msk [vmem:[%s429] ss:$8 sm:$0xf0] %vm426, %v425
    %v431 = vld [vmem:[#allocation0] ss:$8 sm:$0xf]
    %s432 = scalar_lea.vmem [#allocation0], 4294967265
    %v433 = vld [vmem:[%s432] ss:$8 sm:$0xf0]
    %vm434 = vcmask 1047556
    %v435 = vsel %vm434, %v433, %v431
    %436 = vrot.lane.b32.xlu0 %v435, 32
    %v437 = vpop.permute.xlu0 %436
    %vm438 = vcmask 130048
    %s439 = scalar_lea.vmem %s1, 6
    %440 = vst.msk [vmem:[%s439] ss:$8 sm:$0xf] %vm438, %v437
    %s441 = scalar_lea.vmem %s1, 102
    %442 = vst.msk [vmem:[%s441] ss:$8 sm:$0xf0] %vm438, %v437
    %s443 = scalar_lea.vmem [#allocation0], 32
    %v444 = vld [vmem:[%s443] ss:$8 sm:$0xf]
    %s445 = scalar_lea.vmem [#allocation0], 1
    %v446 = vld [vmem:[%s445] ss:$8 sm:$0xf0]
    %vm447 = vcmask 1047556
    %v448 = vsel %vm447, %v446, %v444
    %449 = vrot.lane.b32.xlu0 %v448, 32
    %v450 = vpop.permute.xlu0 %449
    %vm451 = vcmask 130048
    %s452 = scalar_lea.vmem %s1, 38
    %453 = vst.msk [vmem:[%s452] ss:$8 sm:$0xf] %vm451, %v450
    %s454 = scalar_lea.vmem %s1, 134
    %455 = vst.msk [vmem:[%s454] ss:$8 sm:$0xf0] %vm451, %v450
    %s456 = scalar_lea.vmem [#allocation0], 64
    %v457 = vld [vmem:[%s456] ss:$8 sm:$0xf]
    %s458 = scalar_lea.vmem [#allocation0], 33
    %v459 = vld [vmem:[%s458] ss:$8 sm:$0xf0]
    %vm460 = vcmask 1047556
    %v461 = vsel %vm460, %v459, %v457
    %462 = vrot.lane.b32.xlu0 %v461, 32
    %v463 = vpop.permute.xlu0 %462
    %vm464 = vcmask 130048
    %s465 = scalar_lea.vmem %s1, 70
    %466 = vst.msk [vmem:[%s465] ss:$8 sm:$0xf] %vm464, %v463
    %s467 = scalar_lea.vmem %s1, 166
    %468 = vst.msk [vmem:[%s467] ss:$8 sm:$0xf0] %vm464, %v463
    %s469 = scalar_lea.vmem [#allocation0], 96
    %v470 = vld [vmem:[%s469] ss:$8 sm:$0xf]
    %s471 = scalar_lea.vmem [#allocation0], 65
    %v472 = vld [vmem:[%s471] ss:$8 sm:$0xf0]
    %vm473 = vcmask 1047556
    %v474 = vsel %vm473, %v472, %v470
    %475 = vrot.lane.b32.xlu0 %v474, 32
    %v476 = vpop.permute.xlu0 %475
    %vm477 = vcmask 130048
    %s478 = scalar_lea.vmem %s1, 102
    %479 = vst.msk [vmem:[%s478] ss:$8 sm:$0xf] %vm477, %v476
    %s480 = scalar_lea.vmem %s1, 198
    %481 = vst.msk [vmem:[%s480] ss:$8 sm:$0xf0] %vm477, %v476
    %v482 = vld [vmem:[#allocation0] ss:$8 sm:$0xf]
    %s483 = scalar_lea.vmem [#allocation0], 4294967265
    %v484 = vld [vmem:[%s483] ss:$8 sm:$0xf0]
    %vm485 = vcmask 1047556
    %v486 = vsel %vm485, %v484, %v482
    %487 = vrot.lane.b32.xlu0 %v486, 16
    %v488 = vpop.permute.xlu0 %487
    %vm489 = vcmask 130048
    %s490 = scalar_lea.vmem %s1, 7
    %491 = vst.msk [vmem:[%s490] ss:$8 sm:$0xf] %vm489, %v488
    %s492 = scalar_lea.vmem %s1, 103
    %493 = vst.msk [vmem:[%s492] ss:$8 sm:$0xf0] %vm489, %v488
    %s494 = scalar_lea.vmem [#allocation0], 32
    %v495 = vld [vmem:[%s494] ss:$8 sm:$0xf]
    %s496 = scalar_lea.vmem [#allocation0], 1
    %v497 = vld [vmem:[%s496] ss:$8 sm:$0xf0]
    %vm498 = vcmask 1047556
    %v499 = vsel %vm498, %v497, %v495
    %500 = vrot.lane.b32.xlu0 %v499, 16
    %v501 = vpop.permute.xlu0 %500
    %vm502 = vcmask 130048
    %s503 = scalar_lea.vmem %s1, 39
    %504 = vst.msk [vmem:[%s503] ss:$8 sm:$0xf] %vm502, %v501
    %s505 = scalar_lea.vmem %s1, 135
    %506 = vst.msk [vmem:[%s505] ss:$8 sm:$0xf0] %vm502, %v501
    %s507 = scalar_lea.vmem [#allocation0], 64
    %v508 = vld [vmem:[%s507] ss:$8 sm:$0xf]
    %s509 = scalar_lea.vmem [#allocation0], 33
    %v510 = vld [vmem:[%s509] ss:$8 sm:$0xf0]
    %vm511 = vcmask 1047556
    %v512 = vsel %vm511, %v510, %v508
    %513 = vrot.lane.b32.xlu0 %v512, 16
    %v514 = vpop.permute.xlu0 %513
    %vm515 = vcmask 130048
    %s516 = scalar_lea.vmem %s1, 71
    %517 = vst.msk [vmem:[%s516] ss:$8 sm:$0xf] %vm515, %v514
    %s518 = scalar_lea.vmem %s1, 167
    %519 = vst.msk [vmem:[%s518] ss:$8 sm:$0xf0] %vm515, %v514
    %s520 = scalar_lea.vmem [#allocation0], 96
    %v521 = vld [vmem:[%s520] ss:$8 sm:$0xf]
    %s522 = scalar_lea.vmem [#allocation0], 65
    %v523 = vld [vmem:[%s522] ss:$8 sm:$0xf0]
    %vm524 = vcmask 1047556
    %v525 = vsel %vm524, %v523, %v521
    %526 = vrot.lane.b32.xlu0 %v525, 16
    %v527 = vpop.permute.xlu0 %526
    %vm528 = vcmask 130048
    %s529 = scalar_lea.vmem %s1, 103
    %530 = vst.msk [vmem:[%s529] ss:$8 sm:$0xf] %vm528, %v527
    %s531 = scalar_lea.vmem %s1, 199
    %532 = vst.msk [vmem:[%s531] ss:$8 sm:$0xf0] %vm528, %v527

// kernel: cbam3d.3
$region0: #{cbam3d.3}
  #allocation0 [shape = 'u32[]', space=smem, size = 0x4, offset = 0x4, fixed_abs, tag = 'smem constant byte address 0x4 - core index']
  #allocation1 [shape = 'u32[72,128]{1,0:T(1,128)}', space=vmem, size = 0x9000, scoped, tag = 'internal scratch']
  %s0 = inlined_call_operand.vmem [shape: f32[2,32,2048], index: 0, kind: input, shape index: {}]
  %s1 = inlined_call_operand.vmem [shape: f32[2,32,2], index: 1, kind: output, shape index: {0}]
  %s2 = inlined_call_operand.vmem [shape: f32[2,2,2048], index: 2, kind: output, shape index: {1}]
  %3 = xla_tuple %s1, %s2
  %s4 = sld [smem:[#allocation0]]
  $region49: #{cbam3d.3} parent=0
    _
  %s6 = ssub.s32 1, %s4
  %s7 = scalar_select 0, %s6, %s4
  loop: start=0, step=1, limit=4
  $region2: #{cbam3d.3} parent=0 // loop_pre_header
    _
  $region3: #{cbam3d.3} parent=0 // loop_header
    %s9 = sphi 0, %s13
    %p10 = scmp.ge.s32.totalorder %s9, 4
    %s16 = sphi 0, %s28
    %s17 = sphi 0, %s24
    %s18 = sphi 0, %s16
    %s19 = sphi 0, %s17
    %s20 = sphi 0, %s18
    %s21 = sphi 0, %s19
    %s33 = sphi 0, %s35
    %s36 = sphi 0, %s33
    %s37 = sphi 0, %s36
    %s53 = sphi 0, %s37
    %s59 = sphi 0, %s61
    %s62 = sphi 0, %s59
    %s63 = sphi 0, %s62
    %s79 = sphi 0, %s63
    %s87 = sphi 0, %s89
    %s90 = sphi 0, %s87
    %s91 = sphi 0, %s90
    %s107 = sphi 0, %s91
  $region4: #{cbam3d.3} parent=0 // loop_header_branch
    %12 = sbr.rel (%p10) target = $region8
  $region5: #{cbam3d.3} parent=0 // loop_body
    %s14 = ssub.s32 %s9, 1
    %s15 = ssub.s32 %s9, 2
    %s22 = sadd.s32 1, %s17
    %p23 = scmp.ge.s32.totalorder %s22, 1
    %s24 = scalar_select %p23, 0, %s22
    %s25 = sadd.s32 1, %s16
    %s26 = scalar_select %p23, %s25, %s16
    %p27 = scmp.ge.s32.totalorder %s26, 2
    %s28 = scalar_select %p27, 0, %s26
    %s29 = ssub.s32 %s16, %s28
    %s30 = ssub.s32 %s17, %s24
    %s31 = sor.u32 %s29, %s30
    %p32 = scmp.eq.s32.totalorder %s31, 0
    %s34 = sadd.s32 %s33, 1
    %s35 = scalar_select %p32, %s33, %s34
    %p38 = pneg %p32
    %p39 = scmp.eq.s32.totalorder %s9, 1
    %p40 = por %p38, %p39
    %p41 = scmp.ne.s32.totalorder %s33, %s36
    %p42 = scmp.eq.s32.totalorder %s9, 0
    %p43 = por %p41, %p42
    %p44 = scmp.ne.s32.totalorder %s33, %s36
    %p45 = scmp.eq.s32.totalorder %s14, 1
    %p46 = por %p44, %p45
    %p47 = scmp.ne.s32.totalorder %s36, %s37
    %p48 = scmp.eq.s32.totalorder %s14, 0
    %p49 = por %p47, %p48
    %p50 = scmp.ne.s32.totalorder %s36, %s37
    %p51 = scmp.eq.s32.totalorder %s15, 1
    %p52 = por %p50, %p51
    %p54 = scmp.ne.s32.totalorder %s37, %s53
    %p55 = scmp.eq.s32.totalorder %s15, 0
    %p56 = por %p54, %p55
    %s57 = ssub.s32 %s16, %s28
    %p58 = scmp.eq.s32.totalorder %s57, 0
    %s60 = sadd.s32 %s59, 1
    %s61 = scalar_select %p58, %s59, %s60
    %p64 = pneg %p58
    %p65 = scmp.eq.s32.totalorder %s9, 1
    %p66 = por %p64, %p65
    %p67 = scmp.ne.s32.totalorder %s59, %s62
    %p68 = scmp.eq.s32.totalorder %s9, 0
    %p69 = por %p67, %p68
    %p70 = scmp.ne.s32.totalorder %s59, %s62
    %p71 = scmp.eq.s32.totalorder %s14, 1
    %p72 = por %p70, %p71
    %p73 = scmp.ne.s32.totalorder %s62, %s63
    %p74 = scmp.eq.s32.totalorder %s14, 0
    %p75 = por %p73, %p74
    %p76 = scmp.ne.s32.totalorder %s62, %s63
    %p77 = scmp.eq.s32.totalorder %s15, 1
    %p78 = por %p76, %p77
    %p80 = scmp.ne.s32.totalorder %s63, %s79
    %p81 = scmp.eq.s32.totalorder %s15, 0
    %p82 = por %p80, %p81
    %s83 = ssub.s32 %s16, %s28
    %s84 = ssub.s32 %s17, %s24
    %s85 = sor.u32 %s83, %s84
    %p86 = scmp.eq.s32.totalorder %s85, 0
    %s88 = sadd.s32 %s87, 1
    %s89 = scalar_select %p86, %s87, %s88
    %p92 = pneg %p86
    %p93 = scmp.eq.s32.totalorder %s9, 1
    %p94 = por %p92, %p93
    %p95 = scmp.ne.s32.totalorder %s87, %s90
    %p96 = scmp.eq.s32.totalorder %s9, 0
    %p97 = por %p95, %p96
    %p98 = scmp.ne.s32.totalorder %s87, %s90
    %p99 = scmp.eq.s32.totalorder %s14, 1
    %p100 = por %p98, %p99
    %p101 = scmp.ne.s32.totalorder %s90, %s91
    %p102 = scmp.eq.s32.totalorder %s14, 0
    %p103 = por %p101, %p102
    %p104 = scmp.ne.s32.totalorder %s90, %s91
    %p105 = scmp.eq.s32.totalorder %s15, 1
    %p106 = por %p104, %p105
    %p108 = scmp.ne.s32.totalorder %s91, %s107
    %p109 = scmp.eq.s32.totalorder %s15, 0
    %p110 = por %p108, %p109
    %p111 = scmp.le.s32.totalorder 1, %s9
    %p112 = scmp.lt.s32.totalorder %s9, 3
    %p113 = pnand %p111, %p112
    %p114 = pneg %p113
    // Predicated region
    $region9: #{cbam3d.3} parent=5 // pred_check
      _
    $region10: #{cbam3d.3} parent=5 // pred_check_branch
      %116 = sbr.rel (%p113) target = $region12
    $region11: #{cbam3d.3} parent=5 // pred_region
      %s117 = ssub.s32 %s9, 1
    $region12: #{cbam3d.3} parent=5 // pred_fallthru
      _
    %p118 = scmp.lt.s32.totalorder %s9, 2
    // Predicated region
    $region13: #{cbam3d.3} parent=5 // pred_check
      %p119 = pneg %p118
    $region14: #{cbam3d.3} parent=5 // pred_check_branch
      %121 = sbr.rel (%p119) target = $region16
    $region15: #{cbam3d.3} parent=5 // pred_region
      // Predicated region
      $region17: #{cbam3d.3} parent=15 // pred_check
        %p122 = pneg %p43
      $region18: #{cbam3d.3} parent=15 // pred_check_branch
        %124 = sbr.rel (%p122) target = $region20
      $region19: #{cbam3d.3} parent=15 // pred_region
        %s125 = smul.u32 16, %s17
        %p126 = scmp.lt.s32.totalorder %s16, 1
        %s127 = scalar_select %p126, %s16, 1
        %p128 = scmp.lt.s32.totalorder %s125, 15
        %s129 = scalar_select %p128, %s125, 15
        %s130 = smul.addr %s127, 64
        %s131 = sadd.s32 %s129, %s130
        %s132 = smul.addr %s131, 8
        %s133 = scalar_lea.vmem %s0, %s132
        %s134 = smul.u32 16, %s17
      $region20: #{cbam3d.3} parent=15 // pred_fallthru
        _
    $region16: #{cbam3d.3} parent=5 // pred_fallthru
      _
    %p135 = scmp.le.s32.totalorder 1, %s9
    %p136 = scmp.lt.s32.totalorder %s9, 3
    %p137 = pnand %p135, %p136
    %p138 = pneg %p137
    // Predicated region
    $region21: #{cbam3d.3} parent=5 // pred_check
      _
    $region22: #{cbam3d.3} parent=5 // pred_check_branch
      %140 = sbr.rel (%p137) target = $region24
    $region23: #{cbam3d.3} parent=5 // pred_region
      %s141 = ssub.s32 %s9, 1
      %s142 = smul.u32 16, %s19
      %p143 = scmp.lt.s32.totalorder %s18, 1
      %s144 = scalar_select %p143, %s18, 1
      %p145 = scmp.lt.s32.totalorder %s142, 15
      %s146 = scalar_select %p145, %s142, 15
      %s147 = smul.addr %s144, 64
      %s148 = sadd.s32 %s146, %s147
      %s149 = smul.addr %s148, 8
      %s150 = scalar_lea.vmem %s0, %s149
      %p151 = pneg %p49
      %p152 = pneg %p46
      %p153 = pneg %p75
      %p154 = pneg %p72
      %p155 = scmp.lt.s32.totalorder %s18, 1
      %s156 = scalar_select %p155, %s18, 1
      %s157 = smul.addr %s156, 4
      %s158 = smul.addr %s157, 8
      %s159 = scalar_lea.vmem %s1, %s158
      %p160 = pneg %p103
      %p161 = pneg %p100
      %s162 = smul.u32 16, %s19
      %p163 = scmp.lt.s32.totalorder %s18, 1
      %s164 = scalar_select %p163, %s18, 1
      %p165 = scmp.lt.s32.totalorder %s162, 15
      %s166 = scalar_select %p165, %s162, 15
      %s167 = smul.addr %s164, 16
      %s168 = sadd.s32 %s166, %s167
      %s169 = smul.addr %s168, 2
      %s170 = scalar_lea.vmem %s2, %s169
      %s171 = smul.u32 16, %s19
      %p172 = scmp.lt.s32.totalorder %s18, 1
      %s173 = scalar_select %p172, %s18, 1
      %p174 = scmp.lt.s32.totalorder %s171, 15
      %s175 = scalar_select %p174, %s171, 15
      %s176 = smul.addr %s173, 64
      %s177 = sadd.s32 %s175, %s176
      %s178 = smul.addr %s177, 8
      %s179 = scalar_lea.vmem %s0, %s178
      %s180 = smul.u32 16, %s19
      %p181 = scmp.lt.s32.totalorder %s18, 1
      %s182 = scalar_select %p181, %s18, 1
      %s183 = smul.addr %s182, 4
      %s184 = smul.addr %s183, 8
      %s185 = scalar_lea.vmem %s1, %s184
      %s186 = smul.u32 16, %s19
      %p187 = scmp.lt.s32.totalorder %s18, 1
      %s188 = scalar_select %p187, %s18, 1
      %p189 = scmp.lt.s32.totalorder %s186, 15
      %s190 = scalar_select %p189, %s186, 15
      %s191 = smul.addr %s188, 16
      %s192 = sadd.s32 %s190, %s191
      %s193 = smul.addr %s192, 2
      %s194 = scalar_lea.vmem %s2, %s193
      %s195 = smul.u32 16, %s19
      %v196 = vld [vmem:[%s179] sm:$0xff]
      %v197 = vld [vmem:[%s179 + $0x8] sm:$0xff]
      %v198 = vld [vmem:[%s179 + $0x10] sm:$0xff]
      %v199 = vld [vmem:[%s179 + $0x18] sm:$0xff]
      %v200 = vld [vmem:[%s179 + $0x20] sm:$0xff]
      %v201 = vld [vmem:[%s179 + $0x28] sm:$0xff]
      %v202 = vld [vmem:[%s179 + $0x30] sm:$0xff]
      %v203 = vld [vmem:[%s179 + $0x38] sm:$0xff]
      %v204 = vld [vmem:[%s179 + $0x40] sm:$0xff]
      %v205 = vld [vmem:[%s179 + $0x48] sm:$0xff]
      %v206 = vld [vmem:[%s179 + $0x50] sm:$0xff]
      %v207 = vld [vmem:[%s179 + $0x58] sm:$0xff]
      %v208 = vld [vmem:[%s179 + $0x60] sm:$0xff]
      %v209 = vld [vmem:[%s179 + $0x68] sm:$0xff]
      %v210 = vld [vmem:[%s179 + $0x70] sm:$0xff]
      %v211 = vld [vmem:[%s179 + $0x78] sm:$0xff]
      %v212 = vld [vmem:[%s179 + $0x80] sm:$0xff]
      %v213 = vld [vmem:[%s179 + $0x88] sm:$0xff]
      %v214 = vld [vmem:[%s179 + $0x90] sm:$0xff]
      %v215 = vld [vmem:[%s179 + $0x98] sm:$0xff]
      %v216 = vld [vmem:[%s179 + $0xa0] sm:$0xff]
      %v217 = vld [vmem:[%s179 + $0xa8] sm:$0xff]
      %v218 = vld [vmem:[%s179 + $0xb0] sm:$0xff]
      %v219 = vld [vmem:[%s179 + $0xb8] sm:$0xff]
      %v220 = vld [vmem:[%s179 + $0xc0] sm:$0xff]
      %v221 = vld [vmem:[%s179 + $0xc8] sm:$0xff]
      %v222 = vld [vmem:[%s179 + $0xd0] sm:$0xff]
      %v223 = vld [vmem:[%s179 + $0xd8] sm:$0xff]
      %v224 = vld [vmem:[%s179 + $0xe0] sm:$0xff]
      %v225 = vld [vmem:[%s179 + $0xe8] sm:$0xff]
      %v226 = vld [vmem:[%s179 + $0xf0] sm:$0xff]
      %v227 = vld [vmem:[%s179 + $0xf8] sm:$0xff]
      %v228 = vld [vmem:[%s179 + $0x100] sm:$0xff]
      %v229 = vld [vmem:[%s179 + $0x108] sm:$0xff]
      %v230 = vld [vmem:[%s179 + $0x110] sm:$0xff]
      %v231 = vld [vmem:[%s179 + $0x118] sm:$0xff]
      %v232 = vld [vmem:[%s179 + $0x120] sm:$0xff]
      %v233 = vld [vmem:[%s179 + $0x128] sm:$0xff]
      %v234 = vld [vmem:[%s179 + $0x130] sm:$0xff]
      %v235 = vld [vmem:[%s179 + $0x138] sm:$0xff]
      %v236 = vld [vmem:[%s179 + $0x140] sm:$0xff]
      %v237 = vld [vmem:[%s179 + $0x148] sm:$0xff]
      %v238 = vld [vmem:[%s179 + $0x150] sm:$0xff]
      %v239 = vld [vmem:[%s179 + $0x158] sm:$0xff]
      %v240 = vld [vmem:[%s179 + $0x160] sm:$0xff]
      %v241 = vld [vmem:[%s179 + $0x168] sm:$0xff]
      %v242 = vld [vmem:[%s179 + $0x170] sm:$0xff]
      %v243 = vld [vmem:[%s179 + $0x178] sm:$0xff]
      %v244 = vld [vmem:[%s179 + $0x180] sm:$0xff]
      %v245 = vld [vmem:[%s179 + $0x188] sm:$0xff]
      %v246 = vld [vmem:[%s179 + $0x190] sm:$0xff]
      %v247 = vld [vmem:[%s179 + $0x198] sm:$0xff]
      %v248 = vld [vmem:[%s179 + $0x1a0] sm:$0xff]
      %v249 = vld [vmem:[%s179 + $0x1a8] sm:$0xff]
      %v250 = vld [vmem:[%s179 + $0x1b0] sm:$0xff]
      %v251 = vld [vmem:[%s179 + $0x1b8] sm:$0xff]
      %v252 = vld [vmem:[%s179 + $0x1c0] sm:$0xff]
      %v253 = vld [vmem:[%s179 + $0x1c8] sm:$0xff]
      %v254 = vld [vmem:[%s179 + $0x1d0] sm:$0xff]
      %v255 = vld [vmem:[%s179 + $0x1d8] sm:$0xff]
      %v256 = vld [vmem:[%s179 + $0x1e0] sm:$0xff]
      %v257 = vld [vmem:[%s179 + $0x1e8] sm:$0xff]
      %v258 = vld [vmem:[%s179 + $0x1f0] sm:$0xff]
      %v259 = vld [vmem:[%s179 + $0x1f8] sm:$0xff]
      %p260 = scmp.eq.s32.totalorder %s19, 0
      // Predicated region
      $region25: #{cbam3d.3} parent=23 // pred_check
        %p261 = pneg %p260
      $region26: #{cbam3d.3} parent=23 // pred_check_branch
        %263 = sbr.rel (%p261) target = $region28
      $region27: #{cbam3d.3} parent=23 // pred_region
        %vm264 = vcmask 15360
        %265 = vst.msk [vmem:[%s185] sm:$0xff] %vm264, 0.0
        %266 = vst.msk [vmem:[%s185 + $0x8] sm:$0xff] %vm264, 0.0
        %267 = vst.msk [vmem:[%s185 + $0x10] sm:$0xff] %vm264, 0.0
        %268 = vst.msk [vmem:[%s185 + $0x18] sm:$0xff] %vm264, 0.0
        %vm269 = vcmask 15368
        %270 = vst.msk [vmem:[%s185] sm:$0xff] %vm269, -inf
        %271 = vst.msk [vmem:[%s185 + $0x8] sm:$0xff] %vm269, -inf
        %272 = vst.msk [vmem:[%s185 + $0x10] sm:$0xff] %vm269, -inf
        %273 = vst.msk [vmem:[%s185 + $0x18] sm:$0xff] %vm269, -inf
      $region28: #{cbam3d.3} parent=23 // pred_fallthru
        _
      %v274 = vld [vmem:[%s185] sm:$0xff]
      %v275 = vld [vmem:[%s185 + $0x8] sm:$0xff]
      %v276 = vld [vmem:[%s185 + $0x10] sm:$0xff]
      %v277 = vld [vmem:[%s185 + $0x18] sm:$0xff]
      %v278 = vadd.f32 %v196, %v197
      %v279 = vadd.f32 %v278, %v198
      %v280 = vadd.f32 %v279, %v199
      %v281 = vadd.f32 %v280, %v200
      %v282 = vadd.f32 %v281, %v201
      %v283 = vadd.f32 %v282, %v202
      %v284 = vadd.f32 %v283, %v203
      %v285 = vadd.f32 %v284, %v204
      %v286 = vadd.f32 %v285, %v205
      %v287 = vadd.f32 %v286, %v206
      %v288 = vadd.f32 %v287, %v207
      %v289 = vadd.f32 %v288, %v208
      %v290 = vadd.f32 %v289, %v209
      %v291 = vadd.f32 %v290, %v210
      %v292 = vadd.f32 %v291, %v211
      %293 = vadd.xlane.f32.xlu0 %v292
      %v294 = vpop.xlane.xlu0 %293
      %v295 = vadd.f32 %v212, %v213
      %v296 = vadd.f32 %v295, %v214
      %v297 = vadd.f32 %v296, %v215
      %v298 = vadd.f32 %v297, %v216
      %v299 = vadd.f32 %v298, %v217
      %v300 = vadd.f32 %v299, %v218
      %v301 = vadd.f32 %v300, %v219
      %v302 = vadd.f32 %v301, %v220
      %v303 = vadd.f32 %v302, %v221
      %v304 = vadd.f32 %v303, %v222
      %v305 = vadd.f32 %v304, %v223
      %v306 = vadd.f32 %v305, %v224
      %v307 = vadd.f32 %v306, %v225
      %v308 = vadd.f32 %v307, %v226
      %v309 = vadd.f32 %v308, %v227
      %310 = vadd.xlane.f32.xlu0 %v309
      %v311 = vpop.xlane.xlu0 %310
      %v312 = vadd.f32 %v228, %v229
      %v313 = vadd.f32 %v312, %v230
      %v314 = vadd.f32 %v313, %v231
      %v315 = vadd.f32 %v314, %v232
      %v316 = vadd.f32 %v315, %v233
      %v317 = vadd.f32 %v316, %v234
      %v318 = vadd.f32 %v317, %v235
      %v319 = vadd.f32 %v318, %v236
      %v320 = vadd.f32 %v319, %v237
      %v321 = vadd.f32 %v320, %v238
      %v322 = vadd.f32 %v321, %v239
      %v323 = vadd.f32 %v322, %v240
      %v324 = vadd.f32 %v323, %v241
      %v325 = vadd.f32 %v324, %v242
      %v326 = vadd.f32 %v325, %v243
      %327 = vadd.xlane.f32.xlu0 %v326
      %v328 = vpop.xlane.xlu0 %327
      %v329 = vadd.f32 %v244, %v245
      %v330 = vadd.f32 %v329, %v246
      %v331 = vadd.f32 %v330, %v247
      %v332 = vadd.f32 %v331, %v248
      %v333 = vadd.f32 %v332, %v249
      %v334 = vadd.f32 %v333, %v250
      %v335 = vadd.f32 %v334, %v251
      %v336 = vadd.f32 %v335, %v252
      %v337 = vadd.f32 %v336, %v253
      %v338 = vadd.f32 %v337, %v254
      %v339 = vadd.f32 %v338, %v255
      %v340 = vadd.f32 %v339, %v256
      %v341 = vadd.f32 %v340, %v257
      %v342 = vadd.f32 %v341, %v258
      %v343 = vadd.f32 %v342, %v259
      %344 = vadd.xlane.f32.xlu0 %v343
      %v345 = vpop.xlane.xlu0 %344
      %v346 = vadd.f32 %v274, %v294
      %v347 = vadd.f32 %v275, %v311
      %v348 = vadd.f32 %v276, %v328
      %v349 = vadd.f32 %v277, %v345
      %vm350 = vcmask 7168
      %351 = vst.msk [vmem:[%s185] sm:$0xff] %vm350, %v346
      %352 = vst.msk [vmem:[%s185 + $0x8] sm:$0xff] %vm350, %v347
      %353 = vst.msk [vmem:[%s185 + $0x10] sm:$0xff] %vm350, %v348
      %354 = vst.msk [vmem:[%s185 + $0x18] sm:$0xff] %vm350, %v349
      %v355 = vld [vmem:[%s185] sm:$0xff]
      %v356 = vld [vmem:[%s185 + $0x8] sm:$0xff]
      %v357 = vld [vmem:[%s185 + $0x10] sm:$0xff]
      %v358 = vld [vmem:[%s185 + $0x18] sm:$0xff]
      %v359 = vmax.f32 %v196, %v197
      %v360 = vmax.f32 %v359, %v198
      %v361 = vmax.f32 %v360, %v199
      %v362 = vmax.f32 %v361, %v200
      %v363 = vmax.f32 %v362, %v201
      %v364 = vmax.f32 %v363, %v202
      %v365 = vmax.f32 %v364, %v203
      %v366 = vmax.f32 %v365, %v204
      %v367 = vmax.f32 %v366, %v205
      %v368 = vmax.f32 %v367, %v206
      %v369 = vmax.f32 %v368, %v207
      %v370 = vmax.f32 %v369, %v208
      %v371 = vmax.f32 %v370, %v209
      %v372 = vmax.f32 %v371, %v210
      %v373 = vmax.f32 %v372, %v211
      %374 = vmax.xlane.f32.xlu0 %v373
      %v375 = vpop.xlane.xlu0 %374
      %v376 = vmax.f32 %v212, %v213
      %v377 = vmax.f32 %v376, %v214
      %v378 = vmax.f32 %v377, %v215
      %v379 = vmax.f32 %v378, %v216
      %v380 = vmax.f32 %v379, %v217
      %v381 = vmax.f32 %v380, %v218
      %v382 = vmax.f32 %v381, %v219
      %v383 = vmax.f32 %v382, %v220
      %v384 = vmax.f32 %v383, %v221
      %v385 = vmax.f32 %v384, %v222
      %v386 = vmax.f32 %v385, %v223
      %v387 = vmax.f32 %v386, %v224
      %v388 = vmax.f32 %v387, %v225
      %v389 = vmax.f32 %v388, %v226
      %v390 = vmax.f32 %v389, %v227
      %391 = vmax.xlane.f32.xlu0 %v390
      %v392 = vpop.xlane.xlu0 %391
      %v393 = vmax.f32 %v228, %v229
      %v394 = vmax.f32 %v393, %v230
      %v395 = vmax.f32 %v394, %v231
      %v396 = vmax.f32 %v395, %v232
      %v397 = vmax.f32 %v396, %v233
      %v398 = vmax.f32 %v397, %v234
      %v399 = vmax.f32 %v398, %v235
      %v400 = vmax.f32 %v399, %v236
      %v401 = vmax.f32 %v400, %v237
      %v402 = vmax.f32 %v401, %v238
      %v403 = vmax.f32 %v402, %v239
      %v404 = vmax.f32 %v403, %v240
      %v405 = vmax.f32 %v404, %v241
      %v406 = vmax.f32 %v405, %v242
      %v407 = vmax.f32 %v406, %v243
      %408 = vmax.xlane.f32.xlu0 %v407
      %v409 = vpop.xlane.xlu0 %408
      %v410 = vmax.f32 %v244, %v245
      %v411 = vmax.f32 %v410, %v246
      %v412 = vmax.f32 %v411, %v247
      %v413 = vmax.f32 %v412, %v248
      %v414 = vmax.f32 %v413, %v249
      %v415 = vmax.f32 %v414, %v250
      %v416 = vmax.f32 %v415, %v251
      %v417 = vmax.f32 %v416, %v252
      %v418 = vmax.f32 %v417, %v253
      %v419 = vmax.f32 %v418, %v254
      %v420 = vmax.f32 %v419, %v255
      %v421 = vmax.f32 %v420, %v256
      %v422 = vmax.f32 %v421, %v257
      %v423 = vmax.f32 %v422, %v258
      %v424 = vmax.f32 %v423, %v259
      %425 = vmax.xlane.f32.xlu0 %v424
      %v426 = vpop.xlane.xlu0 %425
      %v427 = vmax.f32 %v355, %v375
      %v428 = vmax.f32 %v356, %v392
      %v429 = vmax.f32 %v357, %v409
      %v430 = vmax.f32 %v358, %v426
      %vm431 = vcmask 15368
      %432 = vst.msk [vmem:[%s185] sm:$0xff] %vm431, %v427
      %433 = vst.msk [vmem:[%s185 + $0x8] sm:$0xff] %vm431, %v428
      %434 = vst.msk [vmem:[%s185 + $0x10] sm:$0xff] %vm431, %v429
      %435 = vst.msk [vmem:[%s185 + $0x18] sm:$0xff] %vm431, %v430
      %v436 = vadd.f32 %v196, %v212
      %v437 = vadd.f32 %v436, %v228
      %v438 = vadd.f32 %v437, %v244
      %v439 = vrot.slane %v438, 4
      %v440 = vadd.f32 %v438, %v439
      %v441 = vrot.slane %v440, 2
      %v442 = vadd.f32 %v440, %v441
      %v443 = vrot.slane %v442, 1
      %v444 = vadd.f32 %v442, %v443
      %v445 = vadd.f32 %v197, %v213
      %v446 = vadd.f32 %v445, %v229
      %v447 = vadd.f32 %v446, %v245
      %v448 = vrot.slane %v447, 4
      %v449 = vadd.f32 %v447, %v448
      %v450 = vrot.slane %v449, 2
      %v451 = vadd.f32 %v449, %v450
      %v452 = vrot.slane %v451, 1
      %v453 = vadd.f32 %v451, %v452
      %v454 = vadd.f32 %v198, %v214
      %v455 = vadd.f32 %v454, %v230
      %v456 = vadd.f32 %v455, %v246
      %v457 = vrot.slane %v456, 4
      %v458 = vadd.f32 %v456, %v457
      %v459 = vrot.slane %v458, 2
      %v460 = vadd.f32 %v458, %v459
      %v461 = vrot.slane %v460, 1
      %v462 = vadd.f32 %v460, %v461
      %v463 = vadd.f32 %v199, %v215
      %v464 = vadd.f32 %v463, %v231
      %v465 = vadd.f32 %v464, %v247
      %v466 = vrot.slane %v465, 4
      %v467 = vadd.f32 %v465, %v466
      %v468 = vrot.slane %v467, 2
      %v469 = vadd.f32 %v467, %v468
      %v470 = vrot.slane %v469, 1
      %v471 = vadd.f32 %v469, %v470
      %v472 = vadd.f32 %v200, %v216
      %v473 = vadd.f32 %v472, %v232
      %v474 = vadd.f32 %v473, %v248
      %v475 = vrot.slane %v474, 4
      %v476 = vadd.f32 %v474, %v475
      %v477 = vrot.slane %v476, 2
      %v478 = vadd.f32 %v476, %v477
      %v479 = vrot.slane %v478, 1
      %v480 = vadd.f32 %v478, %v479
      %v481 = vadd.f32 %v201, %v217
      %v482 = vadd.f32 %v481, %v233
      %v483 = vadd.f32 %v482, %v249
      %v484 = vrot.slane %v483, 4
      %v485 = vadd.f32 %v483, %v484
      %v486 = vrot.slane %v485, 2
      %v487 = vadd.f32 %v485, %v486
      %v488 = vrot.slane %v487, 1
      %v489 = vadd.f32 %v487, %v488
      %v490 = vadd.f32 %v202, %v218
      %v491 = vadd.f32 %v490, %v234
      %v492 = vadd.f32 %v491, %v250
      %v493 = vrot.slane %v492, 4
      %v494 = vadd.f32 %v492, %v493
      %v495 = vrot.slane %v494, 2
      %v496 = vadd.f32 %v494, %v495
      %v497 = vrot.slane %v496, 1
      %v498 = vadd.f32 %v496, %v497
      %v499 = vadd.f32 %v203, %v219
      %v500 = vadd.f32 %v499, %v235
      %v501 = vadd.f32 %v500, %v251
      %v502 = vrot.slane %v501, 4
      %v503 = vadd.f32 %v501, %v502
      %v504 = vrot.slane %v503, 2
      %v505 = vadd.f32 %v503, %v504
      %v506 = vrot.slane %v505, 1
      %v507 = vadd.f32 %v505, %v506
      %v508 = vadd.f32 %v204, %v220
      %v509 = vadd.f32 %v508, %v236
      %v510 = vadd.f32 %v509, %v252
      %v511 = vrot.slane %v510, 4
      %v512 = vadd.f32 %v510, %v511
      %v513 = vrot.slane %v512, 2
      %v514 = vadd.f32 %v512, %v513
      %v515 = vrot.slane %v514, 1
      %v516 = vadd.f32 %v514, %v515
      %v517 = vadd.f32 %v205, %v221
      %v518 = vadd.f32 %v517, %v237
      %v519 = vadd.f32 %v518, %v253
      %v520 = vrot.slane %v519, 4
      %v521 = vadd.f32 %v519, %v520
      %v522 = vrot.slane %v521, 2
      %v523 = vadd.f32 %v521, %v522
      %v524 = vrot.slane %v523, 1
      %v525 = vadd.f32 %v523, %v524
      %v526 = vadd.f32 %v206, %v222
      %v527 = vadd.f32 %v526, %v238
      %v528 = vadd.f32 %v527, %v254
      %v529 = vrot.slane %v528, 4
      %v530 = vadd.f32 %v528, %v529
      %v531 = vrot.slane %v530, 2
      %v532 = vadd.f32 %v530, %v531
      %v533 = vrot.slane %v532, 1
      %v534 = vadd.f32 %v532, %v533
      %v535 = vadd.f32 %v207, %v223
      %v536 = vadd.f32 %v535, %v239
      %v537 = vadd.f32 %v536, %v255
      %v538 = vrot.slane %v537, 4
      %v539 = vadd.f32 %v537, %v538
      %v540 = vrot.slane %v539, 2
      %v541 = vadd.f32 %v539, %v540
      %v542 = vrot.slane %v541, 1
      %v543 = vadd.f32 %v541, %v542
      %v544 = vadd.f32 %v208, %v224
      %v545 = vadd.f32 %v544, %v240
      %v546 = vadd.f32 %v545, %v256
      %v547 = vrot.slane %v546, 4
      %v548 = vadd.f32 %v546, %v547
      %v549 = vrot.slane %v548, 2
      %v550 = vadd.f32 %v548, %v549
      %v551 = vrot.slane %v550, 1
      %v552 = vadd.f32 %v550, %v551
      %v553 = vadd.f32 %v209, %v225
      %v554 = vadd.f32 %v553, %v241
      %v555 = vadd.f32 %v554, %v257
      %v556 = vrot.slane %v555, 4
      %v557 = vadd.f32 %v555, %v556
      %v558 = vrot.slane %v557, 2
      %v559 = vadd.f32 %v557, %v558
      %v560 = vrot.slane %v559, 1
      %v561 = vadd.f32 %v559, %v560
      %v562 = vadd.f32 %v210, %v226
      %v563 = vadd.f32 %v562, %v242
      %v564 = vadd.f32 %v563, %v258
      %v565 = vrot.slane %v564, 4
      %v566 = vadd.f32 %v564, %v565
      %v567 = vrot.slane %v566, 2
      %v568 = vadd.f32 %v566, %v567
      %v569 = vrot.slane %v568, 1
      %v570 = vadd.f32 %v568, %v569
      %v571 = vadd.f32 %v211, %v227
      %v572 = vadd.f32 %v571, %v243
      %v573 = vadd.f32 %v572, %v259
      %v574 = vrot.slane %v573, 4
      %v575 = vadd.f32 %v573, %v574
      %v576 = vrot.slane %v575, 2
      %v577 = vadd.f32 %v575, %v576
      %v578 = vrot.slane %v577, 1
      %v579 = vadd.f32 %v577, %v578
      %v580 = vrcp.pop 32.0
      %v581 = vmul.f32 32.0, %v580
      %v582 = vsub.f32 1.0, %v581
      %v583 = vmul.f32 %v580, %v582
      %v584 = vadd.f32 %v580, %v583
      %vm585 = vweird.f32 %v580
      %v586 = vsel %vm585, %v580, %v584
      %v587 = vmul.f32 %v444, %v586
      %v588 = vmul.f32 %v453, %v586
      %v589 = vmul.f32 %v462, %v586
      %v590 = vmul.f32 %v471, %v586
      %v591 = vmul.f32 %v480, %v586
      %v592 = vmul.f32 %v489, %v586
      %v593 = vmul.f32 %v498, %v586
      %v594 = vmul.f32 %v507, %v586
      %v595 = vmul.f32 %v516, %v586
      %v596 = vmul.f32 %v525, %v586
      %v597 = vmul.f32 %v534, %v586
      %v598 = vmul.f32 %v543, %v586
      %v599 = vmul.f32 %v552, %v586
      %v600 = vmul.f32 %v561, %v586
      %v601 = vmul.f32 %v570, %v586
      %v602 = vmul.f32 %v579, %v586
      %v603 = vmax.f32 %v196, %v212
      %v604 = vmax.f32 %v603, %v228
      %v605 = vmax.f32 %v604, %v244
      %v606 = vrot.slane %v605, 4
      %v607 = vmax.f32 %v605, %v606
      %v608 = vrot.slane %v607, 2
      %v609 = vmax.f32 %v607, %v608
      %v610 = vrot.slane %v609, 1
      %v611 = vmax.f32 %v609, %v610
      %v612 = vmax.f32 %v197, %v213
      %v613 = vmax.f32 %v612, %v229
      %v614 = vmax.f32 %v613, %v245
      %v615 = vrot.slane %v614, 4
      %v616 = vmax.f32 %v614, %v615
      %v617 = vrot.slane %v616, 2
      %v618 = vmax.f32 %v616, %v617
      %v619 = vrot.slane %v618, 1
      %v620 = vmax.f32 %v618, %v619
      %v621 = vmax.f32 %v198, %v214
      %v622 = vmax.f32 %v621, %v230
      %v623 = vmax.f32 %v622, %v246
      %v624 = vrot.slane %v623, 4
      %v625 = vmax.f32 %v623, %v624
      %v626 = vrot.slane %v625, 2
      %v627 = vmax.f32 %v625, %v626
      %v628 = vrot.slane %v627, 1
      %v629 = vmax.f32 %v627, %v628
      %v630 = vmax.f32 %v199, %v215
      %v631 = vmax.f32 %v630, %v231
      %v632 = vmax.f32 %v631, %v247
      %v633 = vrot.slane %v632, 4
      %v634 = vmax.f32 %v632, %v633
      %v635 = vrot.slane %v634, 2
      %v636 = vmax.f32 %v634, %v635
      %v637 = vrot.slane %v636, 1
      %v638 = vmax.f32 %v636, %v637
      %v639 = vmax.f32 %v200, %v216
      %v640 = vmax.f32 %v639, %v232
      %v641 = vmax.f32 %v640, %v248
      %v642 = vrot.slane %v641, 4
      %v643 = vmax.f32 %v641, %v642
      %v644 = vrot.slane %v643, 2
      %v645 = vmax.f32 %v643, %v644
      %v646 = vrot.slane %v645, 1
      %v647 = vmax.f32 %v645, %v646
      %v648 = vmax.f32 %v201, %v217
      %v649 = vmax.f32 %v648, %v233
      %v650 = vmax.f32 %v649, %v249
      %v651 = vrot.slane %v650, 4
      %v652 = vmax.f32 %v650, %v651
      %v653 = vrot.slane %v652, 2
      %v654 = vmax.f32 %v652, %v653
      %v655 = vrot.slane %v654, 1
      %v656 = vmax.f32 %v654, %v655
      %v657 = vmax.f32 %v202, %v218
      %v658 = vmax.f32 %v657, %v234
      %v659 = vmax.f32 %v658, %v250
      %v660 = vrot.slane %v659, 4
      %v661 = vmax.f32 %v659, %v660
      %v662 = vrot.slane %v661, 2
      %v663 = vmax.f32 %v661, %v662
      %v664 = vrot.slane %v663, 1
      %v665 = vmax.f32 %v663, %v664
      %v666 = vmax.f32 %v203, %v219
      %v667 = vmax.f32 %v666, %v235
      %v668 = vmax.f32 %v667, %v251
      %v669 = vrot.slane %v668, 4
      %v670 = vmax.f32 %v668, %v669
      %v671 = vrot.slane %v670, 2
      %v672 = vmax.f32 %v670, %v671
      %v673 = vrot.slane %v672, 1
      %v674 = vmax.f32 %v672, %v673
      %v675 = vmax.f32 %v204, %v220
      %v676 = vmax.f32 %v675, %v236
      %v677 = vmax.f32 %v676, %v252
      %v678 = vrot.slane %v677, 4
      %v679 = vmax.f32 %v677, %v678
      %v680 = vrot.slane %v679, 2
      %v681 = vmax.f32 %v679, %v680
      %v682 = vrot.slane %v681, 1
      %v683 = vmax.f32 %v681, %v682
      %v684 = vmax.f32 %v205, %v221
      %v685 = vmax.f32 %v684, %v237
      %v686 = vmax.f32 %v685, %v253
      %v687 = vrot.slane %v686, 4
      %v688 = vmax.f32 %v686, %v687
      %v689 = vrot.slane %v688, 2
      %v690 = vmax.f32 %v688, %v689
      %v691 = vrot.slane %v690, 1
      %v692 = vmax.f32 %v690, %v691
      %v693 = vmax.f32 %v206, %v222
      %v694 = vmax.f32 %v693, %v238
      %v695 = vmax.f32 %v694, %v254
      %v696 = vrot.slane %v695, 4
      %v697 = vmax.f32 %v695, %v696
      %v698 = vrot.slane %v697, 2
      %v699 = vmax.f32 %v697, %v698
      %v700 = vrot.slane %v699, 1
      %v701 = vmax.f32 %v699, %v700
      %v702 = vmax.f32 %v207, %v223
      %v703 = vmax.f32 %v702, %v239
      %v704 = vmax.f32 %v703, %v255
      %v705 = vrot.slane %v704, 4
      %v706 = vmax.f32 %v704, %v705
      %v707 = vrot.slane %v706, 2
      %v708 = vmax.f32 %v706, %v707
      %v709 = vrot.slane %v708, 1
      %v710 = vmax.f32 %v708, %v709
      %v711 = vmax.f32 %v208, %v224
      %v712 = vmax.f32 %v711, %v240
      %v713 = vmax.f32 %v712, %v256
      %v714 = vrot.slane %v713, 4
      %v715 = vmax.f32 %v713, %v714
      %v716 = vrot.slane %v715, 2
      %v717 = vmax.f32 %v715, %v716
      %v718 = vrot.slane %v717, 1
      %v719 = vmax.f32 %v717, %v718
      %v720 = vmax.f32 %v209, %v225
      %v721 = vmax.f32 %v720, %v241
      %v722 = vmax.f32 %v721, %v257
      %v723 = vrot.slane %v722, 4
      %v724 = vmax.f32 %v722, %v723
      %v725 = vrot.slane %v724, 2
      %v726 = vmax.f32 %v724, %v725
      %v727 = vrot.slane %v726, 1
      %v728 = vmax.f32 %v726, %v727
      %v729 = vmax.f32 %v210, %v226
      %v730 = vmax.f32 %v729, %v242
      %v731 = vmax.f32 %v730, %v258
      %v732 = vrot.slane %v731, 4
      %v733 = vmax.f32 %v731, %v732
      %v734 = vrot.slane %v733, 2
      %v735 = vmax.f32 %v733, %v734
      %v736 = vrot.slane %v735, 1
      %v737 = vmax.f32 %v735, %v736
      %v738 = vmax.f32 %v211, %v227
      %v739 = vmax.f32 %v738, %v243
      %v740 = vmax.f32 %v739, %v259
      %v741 = vrot.slane %v740, 4
      %v742 = vmax.f32 %v740, %v741
      %v743 = vrot.slane %v742, 2
      %v744 = vmax.f32 %v742, %v743
      %v745 = vrot.slane %v744, 1
      %v746 = vmax.f32 %v744, %v745
      %vm747 = vcmask 1040384
      %v748 = vsel %vm747, %v587, %v611
      %v749 = vsel %vm747, %v588, %v620
      %v750 = vsel %vm747, %v589, %v629
      %v751 = vsel %vm747, %v590, %v638
      %v752 = vsel %vm747, %v591, %v647
      %v753 = vsel %vm747, %v592, %v656
      %v754 = vsel %vm747, %v593, %v665
      %v755 = vsel %vm747, %v594, %v674
      %v756 = vsel %vm747, %v595, %v683
      %v757 = vsel %vm747, %v596, %v692
      %v758 = vsel %vm747, %v597, %v701
      %v759 = vsel %vm747, %v598, %v710
      %v760 = vsel %vm747, %v599, %v719
      %v761 = vsel %vm747, %v600, %v728
      %v762 = vsel %vm747, %v601, %v737
      %v763 = vsel %vm747, %v602, %v746
      %v780 = vrot.slane %v749, 6
      %v781 = vrot.slane %v750, 4
      %v782 = vrot.slane %v751, 2
      %v783 = vrot.slane %v753, 6
      %v784 = vrot.slane %v754, 4
      %v785 = vrot.slane %v755, 2
      %v786 = vrot.slane %v757, 6
      %v787 = vrot.slane %v758, 4
      %v788 = vrot.slane %v759, 2
      %v789 = vrot.slane %v761, 6
      %v790 = vrot.slane %v762, 4
      %v791 = vrot.slane %v763, 2
      %vm792 = vcmask 1041408
      %v793 = vsel %vm792, %v748, %v780
      %vm794 = vcmask 1045508
      %v795 = vsel %vm794, %v781, %v782
      %vm796 = vcmask 1043456
      %v797 = vsel %vm796, %v793, %v795
      %v798 = vsel %vm792, %v752, %v783
      %v799 = vsel %vm794, %v784, %v785
      %v800 = vsel %vm796, %v798, %v799
      %v801 = vsel %vm792, %v756, %v786
      %v802 = vsel %vm794, %v787, %v788
      %v803 = vsel %vm796, %v801, %v802
      %v804 = vsel %vm792, %v760, %v789
      %v805 = vsel %vm794, %v790, %v791
      %v806 = vsel %vm796, %v804, %v805
      %811 = vst [vmem:[%s194] sm:$0xff] %v797
      %812 = vst [vmem:[%s194 + $0x8] sm:$0xff] %v800
      %813 = vst [vmem:[%s194 + $0x10] sm:$0xff] %v803
      %814 = vst [vmem:[%s194 + $0x18] sm:$0xff] %v806
      %p815 = scmp.lt.s32.totalorder %s18, 1
      %s816 = scalar_select %p815, %s18, 1
      %s817 = smul.addr %s816, 4
      %s818 = smul.addr %s817, 8
      %s819 = scalar_lea.vmem %s1, %s818
      %s820 = smul.u32 16, %s19
      %p821 = scmp.lt.s32.totalorder %s18, 1
      %s822 = scalar_select %p821, %s18, 1
      %p823 = scmp.lt.s32.totalorder %s820, 15
      %s824 = scalar_select %p823, %s820, 15
      %s825 = smul.addr %s822, 16
      %s826 = sadd.s32 %s824, %s825
      %s827 = smul.addr %s826, 2
      %s828 = scalar_lea.vmem %s2, %s827
      // Predicated region
      $region29: #{cbam3d.3} parent=23 // pred_check
        %p829 = pneg %p72
      $region30: #{cbam3d.3} parent=23 // pred_check_branch
        %831 = sbr.rel (%p829) target = $region32
      $region31: #{cbam3d.3} parent=23 // pred_region
        _
      $region32: #{cbam3d.3} parent=23 // pred_fallthru
        _
      // Predicated region
      $region33: #{cbam3d.3} parent=23 // pred_check
        %p832 = pneg %p100
      $region34: #{cbam3d.3} parent=23 // pred_check_branch
        %834 = sbr.rel (%p832) target = $region36
      $region35: #{cbam3d.3} parent=23 // pred_region
        %s835 = smul.u32 16, %s19
      $region36: #{cbam3d.3} parent=23 // pred_fallthru
        _
    $region24: #{cbam3d.3} parent=5 // pred_fallthru
      _
    %p836 = scmp.le.s32.totalorder 2, %s9
    // Predicated region
    $region37: #{cbam3d.3} parent=5 // pred_check
      %p837 = pneg %p836
    $region38: #{cbam3d.3} parent=5 // pred_check_branch
      %839 = sbr.rel (%p837) target = $region40
    $region39: #{cbam3d.3} parent=5 // pred_region
      %s840 = ssub.s32 %s9, 2
      // Predicated region
      $region41: #{cbam3d.3} parent=39 // pred_check
        %p841 = pneg %p78
      $region42: #{cbam3d.3} parent=39 // pred_check_branch
        %843 = sbr.rel (%p841) target = $region44
      $region43: #{cbam3d.3} parent=39 // pred_region
        %p844 = scmp.lt.s32.totalorder %s20, 1
        %s845 = scalar_select %p844, %s20, 1
        %s846 = smul.addr %s845, 4
        %s847 = smul.addr %s846, 8
        %s848 = scalar_lea.vmem %s1, %s847
      $region44: #{cbam3d.3} parent=39 // pred_fallthru
        _
      // Predicated region
      $region45: #{cbam3d.3} parent=39 // pred_check
        %p849 = pneg %p106
      $region46: #{cbam3d.3} parent=39 // pred_check_branch
        %851 = sbr.rel (%p849) target = $region48
      $region47: #{cbam3d.3} parent=39 // pred_region
        %s852 = smul.u32 16, %s21
        %p853 = scmp.lt.s32.totalorder %s20, 1
        %s854 = scalar_select %p853, %s20, 1
        %p855 = scmp.lt.s32.totalorder %s852, 15
        %s856 = scalar_select %p855, %s852, 15
        %s857 = smul.addr %s854, 16
        %s858 = sadd.s32 %s856, %s857
        %s859 = smul.addr %s858, 2
        %s860 = scalar_lea.vmem %s2, %s859
      $region48: #{cbam3d.3} parent=39 // pred_fallthru
        _
    $region40: #{cbam3d.3} parent=5 // pred_fallthru
      _
  $region6: #{cbam3d.3} parent=0 // loop_footer
    %s13 = sadd.s32 1, %s9
  $region7: #{cbam3d.3} parent=0 // loop_footer_branch
    %8 = sbr.rel target = $region3
  $region8: #{cbam3d.3} parent=0 // loop_exit
    _

// kernel: cbam3d.5
$region0: #{cbam3d.5}
  #allocation0 [shape = 'u32[]', space=smem, size = 0x4, offset = 0x4, fixed_abs, tag = 'smem constant byte address 0x4 - core index']
  #allocation1 [shape = 'u32[72,128]{1,0:T(1,128)}', space=vmem, size = 0x9000, scoped, tag = 'internal scratch']
  %s0 = inlined_call_operand.vmem [shape: f32[2,32,2048], index: 0, kind: input, shape index: {}]
  %s1 = inlined_call_operand.vmem [shape: f32[2,32,1], index: 1, kind: input, shape index: {}]
  %s2 = inlined_call_operand.vmem [shape: f32[2,1,2048], index: 2, kind: input, shape index: {}]
  %s3 = inlined_call_operand.vmem [shape: f32[2,32,2048], index: 3, kind: output, shape index: {}]
  %s4 = sld [smem:[#allocation0]]
  $region45: #{cbam3d.5} parent=0
    _
  %s6 = ssub.s32 1, %s4
  %s7 = scalar_select 0, %s6, %s4
  loop: start=0, step=1, limit=4
  $region2: #{cbam3d.5} parent=0 // loop_pre_header
    _
  $region3: #{cbam3d.5} parent=0 // loop_header
    %s9 = sphi 0, %s13
    %p10 = scmp.ge.s32.totalorder %s9, 4
    %s16 = sphi 0, %s28
    %s17 = sphi 0, %s24
    %s18 = sphi 0, %s16
    %s19 = sphi 0, %s17
    %s20 = sphi 0, %s18
    %s21 = sphi 0, %s19
    %s33 = sphi 0, %s35
    %s36 = sphi 0, %s33
    %s37 = sphi 0, %s36
    %s53 = sphi 0, %s37
    %s59 = sphi 0, %s61
    %s62 = sphi 0, %s59
    %s63 = sphi 0, %s62
    %s79 = sphi 0, %s63
    %s87 = sphi 0, %s89
    %s90 = sphi 0, %s87
    %s91 = sphi 0, %s90
    %s107 = sphi 0, %s91
    %s115 = sphi 0, %s117
    %s118 = sphi 0, %s115
    %s119 = sphi 0, %s118
    %s135 = sphi 0, %s119
  $region4: #{cbam3d.5} parent=0 // loop_header_branch
    %12 = sbr.rel (%p10) target = $region8
  $region5: #{cbam3d.5} parent=0 // loop_body
    %s14 = ssub.s32 %s9, 1
    %s15 = ssub.s32 %s9, 2
    %s22 = sadd.s32 1, %s17
    %p23 = scmp.ge.s32.totalorder %s22, 1
    %s24 = scalar_select %p23, 0, %s22
    %s25 = sadd.s32 1, %s16
    %s26 = scalar_select %p23, %s25, %s16
    %p27 = scmp.ge.s32.totalorder %s26, 2
    %s28 = scalar_select %p27, 0, %s26
    %s29 = ssub.s32 %s16, %s28
    %s30 = ssub.s32 %s17, %s24
    %s31 = sor.u32 %s29, %s30
    %p32 = scmp.eq.s32.totalorder %s31, 0
    %s34 = sadd.s32 %s33, 1
    %s35 = scalar_select %p32, %s33, %s34
    %p38 = pneg %p32
    %p39 = scmp.eq.s32.totalorder %s9, 1
    %p40 = por %p38, %p39
    %p41 = scmp.ne.s32.totalorder %s33, %s36
    %p42 = scmp.eq.s32.totalorder %s9, 0
    %p43 = por %p41, %p42
    %p44 = scmp.ne.s32.totalorder %s33, %s36
    %p45 = scmp.eq.s32.totalorder %s14, 1
    %p46 = por %p44, %p45
    %p47 = scmp.ne.s32.totalorder %s36, %s37
    %p48 = scmp.eq.s32.totalorder %s14, 0
    %p49 = por %p47, %p48
    %p50 = scmp.ne.s32.totalorder %s36, %s37
    %p51 = scmp.eq.s32.totalorder %s15, 1
    %p52 = por %p50, %p51
    %p54 = scmp.ne.s32.totalorder %s37, %s53
    %p55 = scmp.eq.s32.totalorder %s15, 0
    %p56 = por %p54, %p55
    %s57 = ssub.s32 %s16, %s28
    %p58 = scmp.eq.s32.totalorder %s57, 0
    %s60 = sadd.s32 %s59, 1
    %s61 = scalar_select %p58, %s59, %s60
    %p64 = pneg %p58
    %p65 = scmp.eq.s32.totalorder %s9, 1
    %p66 = por %p64, %p65
    %p67 = scmp.ne.s32.totalorder %s59, %s62
    %p68 = scmp.eq.s32.totalorder %s9, 0
    %p69 = por %p67, %p68
    %p70 = scmp.ne.s32.totalorder %s59, %s62
    %p71 = scmp.eq.s32.totalorder %s14, 1
    %p72 = por %p70, %p71
    %p73 = scmp.ne.s32.totalorder %s62, %s63
    %p74 = scmp.eq.s32.totalorder %s14, 0
    %p75 = por %p73, %p74
    %p76 = scmp.ne.s32.totalorder %s62, %s63
    %p77 = scmp.eq.s32.totalorder %s15, 1
    %p78 = por %p76, %p77
    %p80 = scmp.ne.s32.totalorder %s63, %s79
    %p81 = scmp.eq.s32.totalorder %s15, 0
    %p82 = por %p80, %p81
    %s83 = ssub.s32 %s16, %s28
    %s84 = ssub.s32 %s17, %s24
    %s85 = sor.u32 %s83, %s84
    %p86 = scmp.eq.s32.totalorder %s85, 0
    %s88 = sadd.s32 %s87, 1
    %s89 = scalar_select %p86, %s87, %s88
    %p92 = pneg %p86
    %p93 = scmp.eq.s32.totalorder %s9, 1
    %p94 = por %p92, %p93
    %p95 = scmp.ne.s32.totalorder %s87, %s90
    %p96 = scmp.eq.s32.totalorder %s9, 0
    %p97 = por %p95, %p96
    %p98 = scmp.ne.s32.totalorder %s87, %s90
    %p99 = scmp.eq.s32.totalorder %s14, 1
    %p100 = por %p98, %p99
    %p101 = scmp.ne.s32.totalorder %s90, %s91
    %p102 = scmp.eq.s32.totalorder %s14, 0
    %p103 = por %p101, %p102
    %p104 = scmp.ne.s32.totalorder %s90, %s91
    %p105 = scmp.eq.s32.totalorder %s15, 1
    %p106 = por %p104, %p105
    %p108 = scmp.ne.s32.totalorder %s91, %s107
    %p109 = scmp.eq.s32.totalorder %s15, 0
    %p110 = por %p108, %p109
    %s111 = ssub.s32 %s16, %s28
    %s112 = ssub.s32 %s17, %s24
    %s113 = sor.u32 %s111, %s112
    %p114 = scmp.eq.s32.totalorder %s113, 0
    %s116 = sadd.s32 %s115, 1
    %s117 = scalar_select %p114, %s115, %s116
    %p120 = pneg %p114
    %p121 = scmp.eq.s32.totalorder %s9, 1
    %p122 = por %p120, %p121
    %p123 = scmp.ne.s32.totalorder %s115, %s118
    %p124 = scmp.eq.s32.totalorder %s9, 0
    %p125 = por %p123, %p124
    %p126 = scmp.ne.s32.totalorder %s115, %s118
    %p127 = scmp.eq.s32.totalorder %s14, 1
    %p128 = por %p126, %p127
    %p129 = scmp.ne.s32.totalorder %s118, %s119
    %p130 = scmp.eq.s32.totalorder %s14, 0
    %p131 = por %p129, %p130
    %p132 = scmp.ne.s32.totalorder %s118, %s119
    %p133 = scmp.eq.s32.totalorder %s15, 1
    %p134 = por %p132, %p133
    %p136 = scmp.ne.s32.totalorder %s119, %s135
    %p137 = scmp.eq.s32.totalorder %s15, 0
    %p138 = por %p136, %p137
    %p139 = scmp.le.s32.totalorder 1, %s9
    %p140 = scmp.lt.s32.totalorder %s9, 3
    %p141 = pnand %p139, %p140
    %p142 = pneg %p141
    // Predicated region
    $region9: #{cbam3d.5} parent=5 // pred_check
      _
    $region10: #{cbam3d.5} parent=5 // pred_check_branch
      %144 = sbr.rel (%p141) target = $region12
    $region11: #{cbam3d.5} parent=5 // pred_region
      %s145 = ssub.s32 %s9, 1
    $region12: #{cbam3d.5} parent=5 // pred_fallthru
      _
    %p146 = scmp.lt.s32.totalorder %s9, 2
    // Predicated region
    $region13: #{cbam3d.5} parent=5 // pred_check
      %p147 = pneg %p146
    $region14: #{cbam3d.5} parent=5 // pred_check_branch
      %149 = sbr.rel (%p147) target = $region16
    $region15: #{cbam3d.5} parent=5 // pred_region
      // Predicated region
      $region17: #{cbam3d.5} parent=15 // pred_check
        %p150 = pneg %p43
      $region18: #{cbam3d.5} parent=15 // pred_check_branch
        %152 = sbr.rel (%p150) target = $region20
      $region19: #{cbam3d.5} parent=15 // pred_region
        %s153 = smul.u32 16, %s17
        %p154 = scmp.lt.s32.totalorder %s16, 1
        %s155 = scalar_select %p154, %s16, 1
        %p156 = scmp.lt.s32.totalorder %s153, 15
        %s157 = scalar_select %p156, %s153, 15
        %s158 = smul.addr %s155, 64
        %s159 = sadd.s32 %s157, %s158
        %s160 = smul.addr %s159, 8
        %s161 = scalar_lea.vmem %s0, %s160
        %s162 = smul.u32 16, %s17
      $region20: #{cbam3d.5} parent=15 // pred_fallthru
        _
      // Predicated region
      $region21: #{cbam3d.5} parent=15 // pred_check
        %p163 = pneg %p69
      $region22: #{cbam3d.5} parent=15 // pred_check_branch
        %165 = sbr.rel (%p163) target = $region24
      $region23: #{cbam3d.5} parent=15 // pred_region
        %p166 = scmp.lt.s32.totalorder %s16, 1
        %s167 = scalar_select %p166, %s16, 1
        %s168 = smul.addr %s167, 4
        %s169 = smul.addr %s168, 8
        %s170 = scalar_lea.vmem %s1, %s169
      $region24: #{cbam3d.5} parent=15 // pred_fallthru
        _
      // Predicated region
      $region25: #{cbam3d.5} parent=15 // pred_check
        %p171 = pneg %p97
      $region26: #{cbam3d.5} parent=15 // pred_check_branch
        %173 = sbr.rel (%p171) target = $region28
      $region27: #{cbam3d.5} parent=15 // pred_region
        %s174 = smul.u32 16, %s17
        %p175 = scmp.lt.s32.totalorder %s16, 1
        %s176 = scalar_select %p175, %s16, 1
        %p177 = scmp.lt.s32.totalorder %s174, 15
        %s178 = scalar_select %p177, %s174, 15
        %s179 = smul.addr %s176, 16
        %s180 = sadd.s32 %s178, %s179
        %s181 = scalar_lea.vmem %s2, %s180
        %s182 = smul.u32 16, %s17
      $region28: #{cbam3d.5} parent=15 // pred_fallthru
        _
    $region16: #{cbam3d.5} parent=5 // pred_fallthru
      _
    %p183 = scmp.le.s32.totalorder 1, %s9
    %p184 = scmp.lt.s32.totalorder %s9, 3
    %p185 = pnand %p183, %p184
    %p186 = pneg %p185
    // Predicated region
    $region29: #{cbam3d.5} parent=5 // pred_check
      _
    $region30: #{cbam3d.5} parent=5 // pred_check_branch
      %188 = sbr.rel (%p185) target = $region32
    $region31: #{cbam3d.5} parent=5 // pred_region
      %s189 = ssub.s32 %s9, 1
      %s190 = smul.u32 16, %s19
      %p191 = scmp.lt.s32.totalorder %s18, 1
      %s192 = scalar_select %p191, %s18, 1
      %p193 = scmp.lt.s32.totalorder %s190, 15
      %s194 = scalar_select %p193, %s190, 15
      %s195 = smul.addr %s192, 64
      %s196 = sadd.s32 %s194, %s195
      %s197 = smul.addr %s196, 8
      %s198 = scalar_lea.vmem %s0, %s197
      %p199 = pneg %p49
      %p200 = pneg %p46
      %p201 = scmp.lt.s32.totalorder %s18, 1
      %s202 = scalar_select %p201, %s18, 1
      %s203 = smul.addr %s202, 4
      %s204 = smul.addr %s203, 8
      %s205 = scalar_lea.vmem %s1, %s204
      %p206 = pneg %p75
      %p207 = pneg %p72
      %s208 = smul.u32 16, %s19
      %p209 = scmp.lt.s32.totalorder %s18, 1
      %s210 = scalar_select %p209, %s18, 1
      %p211 = scmp.lt.s32.totalorder %s208, 15
      %s212 = scalar_select %p211, %s208, 15
      %s213 = smul.addr %s210, 16
      %s214 = sadd.s32 %s212, %s213
      %s215 = scalar_lea.vmem %s2, %s214
      %p216 = pneg %p103
      %p217 = pneg %p100
      %p218 = pneg %p131
      %p219 = pneg %p128
      %s220 = smul.u32 16, %s19
      %p221 = scmp.lt.s32.totalorder %s18, 1
      %s222 = scalar_select %p221, %s18, 1
      %p223 = scmp.lt.s32.totalorder %s220, 15
      %s224 = scalar_select %p223, %s220, 15
      %s225 = smul.addr %s222, 64
      %s226 = sadd.s32 %s224, %s225
      %s227 = smul.addr %s226, 8
      %s228 = scalar_lea.vmem %s3, %s227
      %s229 = smul.u32 16, %s19
      %p230 = scmp.lt.s32.totalorder %s18, 1
      %s231 = scalar_select %p230, %s18, 1
      %p232 = scmp.lt.s32.totalorder %s229, 15
      %s233 = scalar_select %p232, %s229, 15
      %s234 = smul.addr %s231, 64
      %s235 = sadd.s32 %s233, %s234
      %s236 = smul.addr %s235, 8
      %s237 = scalar_lea.vmem %s0, %s236
      %s238 = smul.u32 16, %s19
      %p239 = scmp.lt.s32.totalorder %s18, 1
      %s240 = scalar_select %p239, %s18, 1
      %s241 = smul.addr %s240, 4
      %s242 = smul.addr %s241, 8
      %s243 = scalar_lea.vmem %s1, %s242
      %s244 = smul.u32 16, %s19
      %p245 = scmp.lt.s32.totalorder %s18, 1
      %s246 = scalar_select %p245, %s18, 1
      %p247 = scmp.lt.s32.totalorder %s244, 15
      %s248 = scalar_select %p247, %s244, 15
      %s249 = smul.addr %s246, 16
      %s250 = sadd.s32 %s248, %s249
      %s251 = scalar_lea.vmem %s2, %s250
      %s252 = smul.u32 16, %s19
      %s253 = smul.u32 16, %s19
      %p254 = scmp.lt.s32.totalorder %s18, 1
      %s255 = scalar_select %p254, %s18, 1
      %p256 = scmp.lt.s32.totalorder %s253, 15
      %s257 = scalar_select %p256, %s253, 15
      %s258 = smul.addr %s255, 64
      %s259 = sadd.s32 %s257, %s258
      %s260 = smul.addr %s259, 8
      %s261 = scalar_lea.vmem %s3, %s260
      %s262 = smul.u32 16, %s19
      %v263 = vld [vmem:[%s243] sm:$0xff]
      %v264 = vld [vmem:[%s243 + $0x8] sm:$0xff]
      %v265 = vld [vmem:[%s243 + $0x10] sm:$0xff]
      %v266 = vld [vmem:[%s243 + $0x18] sm:$0xff]
      %v267 = vld [vmem:[%s251] sm:$0xff]
      %v268 = vld [vmem:[%s251 + $0x8] sm:$0xff]
      %270 = vset.pattern.permute.xlu0 0
      %271 = vperm.xlu0 %270, %v263
      %v272 = vpop.permute.xlu0 %271
      %275 = vset.pattern.permute.xlu0 0
      %276 = vperm.xlu0 %275, %v264
      %v277 = vpop.permute.xlu0 %276
      %280 = vset.pattern.permute.xlu0 0
      %281 = vperm.xlu0 %280, %v265
      %v282 = vpop.permute.xlu0 %281
      %285 = vset.pattern.permute.xlu0 0
      %286 = vperm.xlu0 %285, %v266
      %v287 = vpop.permute.xlu0 %286
      %v291 = vperm.slane %v267, 0
      %v292 = vperm.slane %v267, 1
      %v293 = vperm.slane %v267, 2
      %v294 = vperm.slane %v267, 3
      %v295 = vperm.slane %v267, 4
      %v296 = vperm.slane %v267, 5
      %v297 = vperm.slane %v267, 6
      %v298 = vperm.slane %v267, 7
      %v299 = vperm.slane %v268, 0
      %v300 = vperm.slane %v268, 1
      %v301 = vperm.slane %v268, 2
      %v302 = vperm.slane %v268, 3
      %v303 = vperm.slane %v268, 4
      %v304 = vperm.slane %v268, 5
      %v305 = vperm.slane %v268, 6
      %v306 = vperm.slane %v268, 7
      %v323 = vadd.f32 %v272, %v291
      %v324 = vadd.f32 %v272, %v292
      %v325 = vadd.f32 %v272, %v293
      %v326 = vadd.f32 %v272, %v294
      %v327 = vadd.f32 %v272, %v295
      %v328 = vadd.f32 %v272, %v296
      %v329 = vadd.f32 %v272, %v297
      %v330 = vadd.f32 %v272, %v298
      %v331 = vadd.f32 %v272, %v299
      %v332 = vadd.f32 %v272, %v300
      %v333 = vadd.f32 %v272, %v301
      %v334 = vadd.f32 %v272, %v302
      %v335 = vadd.f32 %v272, %v303
      %v336 = vadd.f32 %v272, %v304
      %v337 = vadd.f32 %v272, %v305
      %v338 = vadd.f32 %v272, %v306
      %v339 = vadd.f32 %v277, %v291
      %v340 = vadd.f32 %v277, %v292
      %v341 = vadd.f32 %v277, %v293
      %v342 = vadd.f32 %v277, %v294
      %v343 = vadd.f32 %v277, %v295
      %v344 = vadd.f32 %v277, %v296
      %v345 = vadd.f32 %v277, %v297
      %v346 = vadd.f32 %v277, %v298
      %v347 = vadd.f32 %v277, %v299
      %v348 = vadd.f32 %v277, %v300
      %v349 = vadd.f32 %v277, %v301
      %v350 = vadd.f32 %v277, %v302
      %v351 = vadd.f32 %v277, %v303
      %v352 = vadd.f32 %v277, %v304
      %v353 = vadd.f32 %v277, %v305
      %v354 = vadd.f32 %v277, %v306
      %v355 = vadd.f32 %v282, %v291
      %v356 = vadd.f32 %v282, %v292
      %v357 = vadd.f32 %v282, %v293
      %v358 = vadd.f32 %v282, %v294
      %v359 = vadd.f32 %v282, %v295
      %v360 = vadd.f32 %v282, %v296
      %v361 = vadd.f32 %v282, %v297
      %v362 = vadd.f32 %v282, %v298
      %v363 = vadd.f32 %v282, %v299
      %v364 = vadd.f32 %v282, %v300
      %v365 = vadd.f32 %v282, %v301
      %v366 = vadd.f32 %v282, %v302
      %v367 = vadd.f32 %v282, %v303
      %v368 = vadd.f32 %v282, %v304
      %v369 = vadd.f32 %v282, %v305
      %v370 = vadd.f32 %v282, %v306
      %v371 = vadd.f32 %v287, %v291
      %v372 = vadd.f32 %v287, %v292
      %v373 = vadd.f32 %v287, %v293
      %v374 = vadd.f32 %v287, %v294
      %v375 = vadd.f32 %v287, %v295
      %v376 = vadd.f32 %v287, %v296
      %v377 = vadd.f32 %v287, %v297
      %v378 = vadd.f32 %v287, %v298
      %v379 = vadd.f32 %v287, %v299
      %v380 = vadd.f32 %v287, %v300
      %v381 = vadd.f32 %v287, %v301
      %v382 = vadd.f32 %v287, %v302
      %v383 = vadd.f32 %v287, %v303
      %v384 = vadd.f32 %v287, %v304
      %v385 = vadd.f32 %v287, %v305
      %v386 = vadd.f32 %v287, %v306
      %v387 = vld [vmem:[%s237] sm:$0xff]
      %v388 = vld [vmem:[%s237 + $0x8] sm:$0xff]
      %v389 = vld [vmem:[%s237 + $0x10] sm:$0xff]
      %v390 = vld [vmem:[%s237 + $0x18] sm:$0xff]
      %v391 = vld [vmem:[%s237 + $0x20] sm:$0xff]
      %v392 = vld [vmem:[%s237 + $0x28] sm:$0xff]
      %v393 = vld [vmem:[%s237 + $0x30] sm:$0xff]
      %v394 = vld [vmem:[%s237 + $0x38] sm:$0xff]
      %v395 = vld [vmem:[%s237 + $0x40] sm:$0xff]
      %v396 = vld [vmem:[%s237 + $0x48] sm:$0xff]
      %v397 = vld [vmem:[%s237 + $0x50] sm:$0xff]
      %v398 = vld [vmem:[%s237 + $0x58] sm:$0xff]
      %v399 = vld [vmem:[%s237 + $0x60] sm:$0xff]
      %v400 = vld [vmem:[%s237 + $0x68] sm:$0xff]
      %v401 = vld [vmem:[%s237 + $0x70] sm:$0xff]
      %v402 = vld [vmem:[%s237 + $0x78] sm:$0xff]
      %v403 = vld [vmem:[%s237 + $0x80] sm:$0xff]
      %v404 = vld [vmem:[%s237 + $0x88] sm:$0xff]
      %v405 = vld [vmem:[%s237 + $0x90] sm:$0xff]
      %v406 = vld [vmem:[%s237 + $0x98] sm:$0xff]
      %v407 = vld [vmem:[%s237 + $0xa0] sm:$0xff]
      %v408 = vld [vmem:[%s237 + $0xa8] sm:$0xff]
      %v409 = vld [vmem:[%s237 + $0xb0] sm:$0xff]
      %v410 = vld [vmem:[%s237 + $0xb8] sm:$0xff]
      %v411 = vld [vmem:[%s237 + $0xc0] sm:$0xff]
      %v412 = vld [vmem:[%s237 + $0xc8] sm:$0xff]
      %v413 = vld [vmem:[%s237 + $0xd0] sm:$0xff]
      %v414 = vld [vmem:[%s237 + $0xd8] sm:$0xff]
      %v415 = vld [vmem:[%s237 + $0xe0] sm:$0xff]
      %v416 = vld [vmem:[%s237 + $0xe8] sm:$0xff]
      %v417 = vld [vmem:[%s237 + $0xf0] sm:$0xff]
      %v418 = vld [vmem:[%s237 + $0xf8] sm:$0xff]
      %v419 = vld [vmem:[%s237 + $0x100] sm:$0xff]
      %v420 = vld [vmem:[%s237 + $0x108] sm:$0xff]
      %v421 = vld [vmem:[%s237 + $0x110] sm:$0xff]
      %v422 = vld [vmem:[%s237 + $0x118] sm:$0xff]
      %v423 = vld [vmem:[%s237 + $0x120] sm:$0xff]
      %v424 = vld [vmem:[%s237 + $0x128] sm:$0xff]
      %v425 = vld [vmem:[%s237 + $0x130] sm:$0xff]
      %v426 = vld [vmem:[%s237 + $0x138] sm:$0xff]
      %v427 = vld [vmem:[%s237 + $0x140] sm:$0xff]
      %v428 = vld [vmem:[%s237 + $0x148] sm:$0xff]
      %v429 = vld [vmem:[%s237 + $0x150] sm:$0xff]
      %v430 = vld [vmem:[%s237 + $0x158] sm:$0xff]
      %v431 = vld [vmem:[%s237 + $0x160] sm:$0xff]
      %v432 = vld [vmem:[%s237 + $0x168] sm:$0xff]
      %v433 = vld [vmem:[%s237 + $0x170] sm:$0xff]
      %v434 = vld [vmem:[%s237 + $0x178] sm:$0xff]
      %v435 = vld [vmem:[%s237 + $0x180] sm:$0xff]
      %v436 = vld [vmem:[%s237 + $0x188] sm:$0xff]
      %v437 = vld [vmem:[%s237 + $0x190] sm:$0xff]
      %v438 = vld [vmem:[%s237 + $0x198] sm:$0xff]
      %v439 = vld [vmem:[%s237 + $0x1a0] sm:$0xff]
      %v440 = vld [vmem:[%s237 + $0x1a8] sm:$0xff]
      %v441 = vld [vmem:[%s237 + $0x1b0] sm:$0xff]
      %v442 = vld [vmem:[%s237 + $0x1b8] sm:$0xff]
      %v443 = vld [vmem:[%s237 + $0x1c0] sm:$0xff]
      %v444 = vld [vmem:[%s237 + $0x1c8] sm:$0xff]
      %v445 = vld [vmem:[%s237 + $0x1d0] sm:$0xff]
      %v446 = vld [vmem:[%s237 + $0x1d8] sm:$0xff]
      %v447 = vld [vmem:[%s237 + $0x1e0] sm:$0xff]
      %v448 = vld [vmem:[%s237 + $0x1e8] sm:$0xff]
      %v449 = vld [vmem:[%s237 + $0x1f0] sm:$0xff]
      %v450 = vld [vmem:[%s237 + $0x1f8] sm:$0xff]
      %v451 = vmul.f32 %v387, %v323
      %v452 = vmul.f32 %v388, %v324
      %v453 = vmul.f32 %v389, %v325
      %v454 = vmul.f32 %v390, %v326
      %v455 = vmul.f32 %v391, %v327
      %v456 = vmul.f32 %v392, %v328
      %v457 = vmul.f32 %v393, %v329
      %v458 = vmul.f32 %v394, %v330
      %v459 = vmul.f32 %v395, %v331
      %v460 = vmul.f32 %v396, %v332
      %v461 = vmul.f32 %v397, %v333
      %v462 = vmul.f32 %v398, %v334
      %v463 = vmul.f32 %v399, %v335
      %v464 = vmul.f32 %v400, %v336
      %v465 = vmul.f32 %v401, %v337
      %v466 = vmul.f32 %v402, %v338
      %v467 = vmul.f32 %v403, %v339
      %v468 = vmul.f32 %v404, %v340
      %v469 = vmul.f32 %v405, %v341
      %v470 = vmul.f32 %v406, %v342
      %v471 = vmul.f32 %v407, %v343
      %v472 = vmul.f32 %v408, %v344
      %v473 = vmul.f32 %v409, %v345
      %v474 = vmul.f32 %v410, %v346
      %v475 = vmul.f32 %v411, %v347
      %v476 = vmul.f32 %v412, %v348
      %v477 = vmul.f32 %v413, %v349
      %v478 = vmul.f32 %v414, %v350
      %v479 = vmul.f32 %v415, %v351
      %v480 = vmul.f32 %v416, %v352
      %v481 = vmul.f32 %v417, %v353
      %v482 = vmul.f32 %v418, %v354
      %v483 = vmul.f32 %v419, %v355
      %v484 = vmul.f32 %v420, %v356
      %v485 = vmul.f32 %v421, %v357
      %v486 = vmul.f32 %v422, %v358
      %v487 = vmul.f32 %v423, %v359
      %v488 = vmul.f32 %v424, %v360
      %v489 = vmul.f32 %v425, %v361
      %v490 = vmul.f32 %v426, %v362
      %v491 = vmul.f32 %v427, %v363
      %v492 = vmul.f32 %v428, %v364
      %v493 = vmul.f32 %v429, %v365
      %v494 = vmul.f32 %v430, %v366
      %v495 = vmul.f32 %v431, %v367
      %v496 = vmul.f32 %v432, %v368
      %v497 = vmul.f32 %v433, %v369
      %v498 = vmul.f32 %v434, %v370
      %v499 = vmul.f32 %v435, %v371
      %v500 = vmul.f32 %v436, %v372
      %v501 = vmul.f32 %v437, %v373
      %v502 = vmul.f32 %v438, %v374
      %v503 = vmul.f32 %v439, %v375
      %v504 = vmul.f32 %v440, %v376
      %v505 = vmul.f32 %v441, %v377
      %v506 = vmul.f32 %v442, %v378
      %v507 = vmul.f32 %v443, %v379
      %v508 = vmul.f32 %v444, %v380
      %v509 = vmul.f32 %v445, %v381
      %v510 = vmul.f32 %v446, %v382
      %v511 = vmul.f32 %v447, %v383
      %v512 = vmul.f32 %v448, %v384
      %v513 = vmul.f32 %v449, %v385
      %v514 = vmul.f32 %v450, %v386
      %515 = vst [vmem:[%s261] sm:$0xff] %v451
      %516 = vst [vmem:[%s261 + $0x8] sm:$0xff] %v452
      %517 = vst [vmem:[%s261 + $0x10] sm:$0xff] %v453
      %518 = vst [vmem:[%s261 + $0x18] sm:$0xff] %v454
      %519 = vst [vmem:[%s261 + $0x20] sm:$0xff] %v455
      %520 = vst [vmem:[%s261 + $0x28] sm:$0xff] %v456
      %521 = vst [vmem:[%s261 + $0x30] sm:$0xff] %v457
      %522 = vst [vmem:[%s261 + $0x38] sm:$0xff] %v458
      %523 = vst [vmem:[%s261 + $0x40] sm:$0xff] %v459
      %524 = vst [vmem:[%s261 + $0x48] sm:$0xff] %v460
      %525 = vst [vmem:[%s261 + $0x50] sm:$0xff] %v461
      %526 = vst [vmem:[%s261 + $0x58] sm:$0xff] %v462
      %527 = vst [vmem:[%s261 + $0x60] sm:$0xff] %v463
      %528 = vst [vmem:[%s261 + $0x68] sm:$0xff] %v464
      %529 = vst [vmem:[%s261 + $0x70] sm:$0xff] %v465
      %530 = vst [vmem:[%s261 + $0x78] sm:$0xff] %v466
      %531 = vst [vmem:[%s261 + $0x80] sm:$0xff] %v467
      %532 = vst [vmem:[%s261 + $0x88] sm:$0xff] %v468
      %533 = vst [vmem:[%s261 + $0x90] sm:$0xff] %v469
      %534 = vst [vmem:[%s261 + $0x98] sm:$0xff] %v470
      %535 = vst [vmem:[%s261 + $0xa0] sm:$0xff] %v471
      %536 = vst [vmem:[%s261 + $0xa8] sm:$0xff] %v472
      %537 = vst [vmem:[%s261 + $0xb0] sm:$0xff] %v473
      %538 = vst [vmem:[%s261 + $0xb8] sm:$0xff] %v474
      %539 = vst [vmem:[%s261 + $0xc0] sm:$0xff] %v475
      %540 = vst [vmem:[%s261 + $0xc8] sm:$0xff] %v476
      %541 = vst [vmem:[%s261 + $0xd0] sm:$0xff] %v477
      %542 = vst [vmem:[%s261 + $0xd8] sm:$0xff] %v478
      %543 = vst [vmem:[%s261 + $0xe0] sm:$0xff] %v479
      %544 = vst [vmem:[%s261 + $0xe8] sm:$0xff] %v480
      %545 = vst [vmem:[%s261 + $0xf0] sm:$0xff] %v481
      %546 = vst [vmem:[%s261 + $0xf8] sm:$0xff] %v482
      %547 = vst [vmem:[%s261 + $0x100] sm:$0xff] %v483
      %548 = vst [vmem:[%s261 + $0x108] sm:$0xff] %v484
      %549 = vst [vmem:[%s261 + $0x110] sm:$0xff] %v485
      %550 = vst [vmem:[%s261 + $0x118] sm:$0xff] %v486
      %551 = vst [vmem:[%s261 + $0x120] sm:$0xff] %v487
      %552 = vst [vmem:[%s261 + $0x128] sm:$0xff] %v488
      %553 = vst [vmem:[%s261 + $0x130] sm:$0xff] %v489
      %554 = vst [vmem:[%s261 + $0x138] sm:$0xff] %v490
      %555 = vst [vmem:[%s261 + $0x140] sm:$0xff] %v491
      %556 = vst [vmem:[%s261 + $0x148] sm:$0xff] %v492
      %557 = vst [vmem:[%s261 + $0x150] sm:$0xff] %v493
      %558 = vst [vmem:[%s261 + $0x158] sm:$0xff] %v494
      %559 = vst [vmem:[%s261 + $0x160] sm:$0xff] %v495
      %560 = vst [vmem:[%s261 + $0x168] sm:$0xff] %v496
      %561 = vst [vmem:[%s261 + $0x170] sm:$0xff] %v497
      %562 = vst [vmem:[%s261 + $0x178] sm:$0xff] %v498
      %563 = vst [vmem:[%s261 + $0x180] sm:$0xff] %v499
      %564 = vst [vmem:[%s261 + $0x188] sm:$0xff] %v500
      %565 = vst [vmem:[%s261 + $0x190] sm:$0xff] %v501
      %566 = vst [vmem:[%s261 + $0x198] sm:$0xff] %v502
      %567 = vst [vmem:[%s261 + $0x1a0] sm:$0xff] %v503
      %568 = vst [vmem:[%s261 + $0x1a8] sm:$0xff] %v504
      %569 = vst [vmem:[%s261 + $0x1b0] sm:$0xff] %v505
      %570 = vst [vmem:[%s261 + $0x1b8] sm:$0xff] %v506
      %571 = vst [vmem:[%s261 + $0x1c0] sm:$0xff] %v507
      %572 = vst [vmem:[%s261 + $0x1c8] sm:$0xff] %v508
      %573 = vst [vmem:[%s261 + $0x1d0] sm:$0xff] %v509
      %574 = vst [vmem:[%s261 + $0x1d8] sm:$0xff] %v510
      %575 = vst [vmem:[%s261 + $0x1e0] sm:$0xff] %v511
      %576 = vst [vmem:[%s261 + $0x1e8] sm:$0xff] %v512
      %577 = vst [vmem:[%s261 + $0x1f0] sm:$0xff] %v513
      %578 = vst [vmem:[%s261 + $0x1f8] sm:$0xff] %v514
      %s579 = smul.u32 16, %s19
      %p580 = scmp.lt.s32.totalorder %s18, 1
      %s581 = scalar_select %p580, %s18, 1
      %p582 = scmp.lt.s32.totalorder %s579, 15
      %s583 = scalar_select %p582, %s579, 15
      %s584 = smul.addr %s581, 64
      %s585 = sadd.s32 %s583, %s584
      %s586 = smul.addr %s585, 8
      %s587 = scalar_lea.vmem %s3, %s586
      // Predicated region
      $region33: #{cbam3d.5} parent=31 // pred_check
        %p588 = pneg %p128
      $region34: #{cbam3d.5} parent=31 // pred_check_branch
        %590 = sbr.rel (%p588) target = $region36
      $region35: #{cbam3d.5} parent=31 // pred_region
        %s591 = smul.u32 16, %s19
      $region36: #{cbam3d.5} parent=31 // pred_fallthru
        _
    $region32: #{cbam3d.5} parent=5 // pred_fallthru
      _
    %p592 = scmp.le.s32.totalorder 2, %s9
    // Predicated region
    $region37: #{cbam3d.5} parent=5 // pred_check
      %p593 = pneg %p592
    $region38: #{cbam3d.5} parent=5 // pred_check_branch
      %595 = sbr.rel (%p593) target = $region40
    $region39: #{cbam3d.5} parent=5 // pred_region
      %s596 = ssub.s32 %s9, 2
      // Predicated region
      $region41: #{cbam3d.5} parent=39 // pred_check
        %p597 = pneg %p134
      $region42: #{cbam3d.5} parent=39 // pred_check_branch
        %599 = sbr.rel (%p597) target = $region44
      $region43: #{cbam3d.5} parent=39 // pred_region
        %s600 = smul.u32 16, %s21
        %p601 = scmp.lt.s32.totalorder %s20, 1
        %s602 = scalar_select %p601, %s20, 1
        %p603 = scmp.lt.s32.totalorder %s600, 15
        %s604 = scalar_select %p603, %s600, 15
        %s605 = smul.addr %s602, 64
        %s606 = sadd.s32 %s604, %s605
        %s607 = smul.addr %s606, 8
        %s608 = scalar_lea.vmem %s3, %s607
      $region44: #{cbam3d.5} parent=39 // pred_fallthru
        _
    $region40: #{cbam3d.5} parent=5 // pred_fallthru
      _
  $region6: #{cbam3d.5} parent=0 // loop_footer
    %s13 = sadd.s32 1, %s9
  $region7: #{cbam3d.5} parent=0 // loop_footer_branch
    %8 = sbr.rel target = $region3
  $region8: #{cbam3d.5} parent=0 // loop_exit
    _

// kernel: cbam3d.4
$region0: #{cbam3d.4}
  #allocation0 [shape = 'u32[]', space=smem, size = 0x4, offset = 0x4, fixed_abs, tag = 'smem constant byte address 0x4 - core index']
  #allocation1 [shape = 'u32[72,128]{1,0:T(1,128)}', space=vmem, size = 0x9000, scoped, tag = 'internal scratch']
  %s0 = inlined_call_operand.vmem [shape: f32[2,8,6776], index: 0, kind: input, shape index: {}]
  %s1 = inlined_call_operand.vmem [shape: f32[6776,256], index: 1, kind: input, shape index: {}]
  %s2 = inlined_call_operand.vmem [shape: f32[2,8,256], index: 2, kind: output, shape index: {}]
  %s3 = sld [smem:[#allocation0]]
  $region41: #{cbam3d.4} parent=0
    _
  %s5 = ssub.s32 1, %s3
  %s6 = scalar_select 0, %s5, %s3
  loop: start=0, step=1, limit=4
  $region2: #{cbam3d.4} parent=0 // loop_pre_header
    _
  $region3: #{cbam3d.4} parent=0 // loop_header
    %s8 = sphi 0, %s12
    %p9 = scmp.ge.s32.totalorder %s8, 4
    %s18 = sphi 0, %s20
    %s21 = sphi 0, %s18
    %s22 = sphi 0, %s21
    %s38 = sphi 0, %s22
    %s42 = sphi 0, %s42
    %s44 = sphi 0, %s42
    %s45 = sphi 0, %s44
    %s59 = sphi 0, %s45
    %s65 = sphi 0, %s67
    %s68 = sphi 0, %s65
    %s69 = sphi 0, %s68
    %s85 = sphi 0, %s69
  $region4: #{cbam3d.4} parent=0 // loop_header_branch
    %11 = sbr.rel (%p9) target = $region8
  $region5: #{cbam3d.4} parent=0 // loop_body
    %s13 = ssub.s32 %s8, 1
    %s14 = ssub.s32 %s8, 2
    %s15 = sadd.s32 %s8, 1
    %s16 = ssub.s32 %s8, %s15
    %p17 = scmp.eq.s32.totalorder %s16, 0
    %s19 = sadd.s32 %s18, 1
    %s20 = scalar_select %p17, %s18, %s19
    %p23 = pneg %p17
    %p24 = scmp.eq.s32.totalorder %s8, 1
    %p25 = por %p23, %p24
    %p26 = scmp.ne.s32.totalorder %s18, %s21
    %p27 = scmp.eq.s32.totalorder %s8, 0
    %p28 = por %p26, %p27
    %p29 = scmp.ne.s32.totalorder %s18, %s21
    %p30 = scmp.eq.s32.totalorder %s13, 1
    %p31 = por %p29, %p30
    %p32 = scmp.ne.s32.totalorder %s21, %s22
    %p33 = scmp.eq.s32.totalorder %s13, 0
    %p34 = por %p32, %p33
    %p35 = scmp.ne.s32.totalorder %s21, %s22
    %p36 = scmp.eq.s32.totalorder %s14, 1
    %p37 = por %p35, %p36
    %p39 = scmp.ne.s32.totalorder %s22, %s38
    %p40 = scmp.eq.s32.totalorder %s14, 0
    %p41 = por %p39, %p40
    %s43 = sadd.s32 %s42, 1
    %p46 = scmp.eq.s32.totalorder %s8, 1
    %p47 = scmp.ne.s32.totalorder %s42, %s44
    %p48 = scmp.eq.s32.totalorder %s8, 0
    %p49 = por %p47, %p48
    %p50 = scmp.ne.s32.totalorder %s42, %s44
    %p51 = scmp.eq.s32.totalorder %s13, 1
    %p52 = por %p50, %p51
    %p53 = scmp.ne.s32.totalorder %s44, %s45
    %p54 = scmp.eq.s32.totalorder %s13, 0
    %p55 = por %p53, %p54
    %p56 = scmp.ne.s32.totalorder %s44, %s45
    %p57 = scmp.eq.s32.totalorder %s14, 1
    %p58 = por %p56, %p57
    %p60 = scmp.ne.s32.totalorder %s45, %s59
    %p61 = scmp.eq.s32.totalorder %s14, 0
    %p62 = por %p60, %p61
    %s63 = ssub.s32 %s8, %s15
    %p64 = scmp.eq.s32.totalorder %s63, 0
    %s66 = sadd.s32 %s65, 1
    %s67 = scalar_select %p64, %s65, %s66
    %p70 = pneg %p64
    %p71 = scmp.eq.s32.totalorder %s8, 1
    %p72 = por %p70, %p71
    %p73 = scmp.ne.s32.totalorder %s65, %s68
    %p74 = scmp.eq.s32.totalorder %s8, 0
    %p75 = por %p73, %p74
    %p76 = scmp.ne.s32.totalorder %s65, %s68
    %p77 = scmp.eq.s32.totalorder %s13, 1
    %p78 = por %p76, %p77
    %p79 = scmp.ne.s32.totalorder %s68, %s69
    %p80 = scmp.eq.s32.totalorder %s13, 0
    %p81 = por %p79, %p80
    %p82 = scmp.ne.s32.totalorder %s68, %s69
    %p83 = scmp.eq.s32.totalorder %s14, 1
    %p84 = por %p82, %p83
    %p86 = scmp.ne.s32.totalorder %s69, %s85
    %p87 = scmp.eq.s32.totalorder %s14, 0
    %p88 = por %p86, %p87
    %p89 = scmp.le.s32.totalorder 1, %s8
    %p90 = scmp.lt.s32.totalorder %s8, 3
    %p91 = pnand %p89, %p90
    %p92 = pneg %p91
    // Predicated region
    $region9: #{cbam3d.4} parent=5 // pred_check
      _
    $region10: #{cbam3d.4} parent=5 // pred_check_branch
      %94 = sbr.rel (%p91) target = $region12
    $region11: #{cbam3d.4} parent=5 // pred_region
      %s95 = ssub.s32 %s8, 1
      // Predicated region
      $region13: #{cbam3d.4} parent=11 // pred_check
        %p96 = pneg %p55
      $region14: #{cbam3d.4} parent=11 // pred_check_branch
        %98 = sbr.rel (%p96) target = $region16
      $region15: #{cbam3d.4} parent=11 // pred_region
        _
      $region16: #{cbam3d.4} parent=11 // pred_fallthru
        _
    $region12: #{cbam3d.4} parent=5 // pred_fallthru
      _
    %p99 = scmp.lt.s32.totalorder %s8, 2
    // Predicated region
    $region17: #{cbam3d.4} parent=5 // pred_check
      %p100 = pneg %p99
    $region18: #{cbam3d.4} parent=5 // pred_check_branch
      %102 = sbr.rel (%p100) target = $region20
    $region19: #{cbam3d.4} parent=5 // pred_region
      // Predicated region
      $region21: #{cbam3d.4} parent=19 // pred_check
        %p103 = pneg %p28
      $region22: #{cbam3d.4} parent=19 // pred_check_branch
        %105 = sbr.rel (%p103) target = $region24
      $region23: #{cbam3d.4} parent=19 // pred_region
        %p106 = scmp.lt.s32.totalorder %s8, 1
        %s107 = scalar_select %p106, %s8, 1
        %s108 = smul.addr %s107, 53
        %s109 = smul.addr %s108, 8
        %s110 = scalar_lea.vmem %s0, %s109
      $region24: #{cbam3d.4} parent=19 // pred_fallthru
        _
    $region20: #{cbam3d.4} parent=5 // pred_fallthru
      _
    %p111 = scmp.le.s32.totalorder 1, %s8
    %p112 = scmp.lt.s32.totalorder %s8, 3
    %p113 = pnand %p111, %p112
    %p114 = pneg %p113
    // Predicated region
    $region25: #{cbam3d.4} parent=5 // pred_check
      _
    $region26: #{cbam3d.4} parent=5 // pred_check_branch
      %116 = sbr.rel (%p113) target = $region28
    $region27: #{cbam3d.4} parent=5 // pred_region
      %s117 = ssub.s32 %s8, 1
      %p118 = scmp.lt.s32.totalorder %s13, 1
      %s119 = scalar_select %p118, %s13, 1
      %s120 = smul.addr %s119, 53
      %s121 = smul.addr %s120, 8
      %s122 = scalar_lea.vmem %s0, %s121
      %p123 = pneg %p34
      %p124 = pneg %p31
      %p125 = pneg %p55
      %p126 = pneg %p52
      %p127 = pneg %p81
      %p128 = pneg %p78
      %p129 = scmp.lt.s32.totalorder %s13, 1
      %s130 = scalar_select %p129, %s13, 1
      %s131 = smul.addr %s130, 2
      %s132 = smul.addr %s131, 8
      %s133 = scalar_lea.vmem %s2, %s132
      %p134 = scmp.lt.s32.totalorder %s13, 1
      %s135 = scalar_select %p134, %s13, 1
      %s136 = smul.addr %s135, 53
      %s137 = smul.addr %s136, 8
      %s138 = scalar_lea.vmem %s0, %s137
      %p139 = scmp.lt.s32.totalorder %s13, 1
      %s140 = scalar_select %p139, %s13, 1
      %s141 = smul.addr %s140, 2
      %s142 = smul.addr %s141, 8
      %s143 = scalar_lea.vmem %s2, %s142
      %v144 = vld [vmem:[%s138] sm:$0xff]
      %v145 = vld [vmem:[%s138 + $0x8] sm:$0xff]
      %v146 = vld [vmem:[%s138 + $0x10] sm:$0xff]
      %v147 = vld [vmem:[%s138 + $0x18] sm:$0xff]
      %v148 = vld [vmem:[%s138 + $0x20] sm:$0xff]
      %v149 = vld [vmem:[%s138 + $0x28] sm:$0xff]
      %v150 = vld [vmem:[%s138 + $0x30] sm:$0xff]
      %v151 = vld [vmem:[%s138 + $0x38] sm:$0xff]
      %v152 = vld [vmem:[%s138 + $0x40] sm:$0xff]
      %v153 = vld [vmem:[%s138 + $0x48] sm:$0xff]
      %v154 = vld [vmem:[%s138 + $0x50] sm:$0xff]
      %v155 = vld [vmem:[%s138 + $0x58] sm:$0xff]
      %v156 = vld [vmem:[%s138 + $0x60] sm:$0xff]
      %v157 = vld [vmem:[%s138 + $0x68] sm:$0xff]
      %v158 = vld [vmem:[%s138 + $0x70] sm:$0xff]
      %v159 = vld [vmem:[%s138 + $0x78] sm:$0xff]
      %v160 = vld [vmem:[%s138 + $0x80] sm:$0xff]
      %v161 = vld [vmem:[%s138 + $0x88] sm:$0xff]
      %v162 = vld [vmem:[%s138 + $0x90] sm:$0xff]
      %v163 = vld [vmem:[%s138 + $0x98] sm:$0xff]
      %v164 = vld [vmem:[%s138 + $0xa0] sm:$0xff]
      %v165 = vld [vmem:[%s138 + $0xa8] sm:$0xff]
      %v166 = vld [vmem:[%s138 + $0xb0] sm:$0xff]
      %v167 = vld [vmem:[%s138 + $0xb8] sm:$0xff]
      %v168 = vld [vmem:[%s138 + $0xc0] sm:$0xff]
      %v169 = vld [vmem:[%s138 + $0xc8] sm:$0xff]
      %v170 = vld [vmem:[%s138 + $0xd0] sm:$0xff]
      %v171 = vld [vmem:[%s138 + $0xd8] sm:$0xff]
      %v172 = vld [vmem:[%s138 + $0xe0] sm:$0xff]
      %v173 = vld [vmem:[%s138 + $0xe8] sm:$0xff]
      %v174 = vld [vmem:[%s138 + $0xf0] sm:$0xff]
      %v175 = vld [vmem:[%s138 + $0xf8] sm:$0xff]
      %v176 = vld [vmem:[%s138 + $0x100] sm:$0xff]
      %v177 = vld [vmem:[%s138 + $0x108] sm:$0xff]
      %v178 = vld [vmem:[%s138 + $0x110] sm:$0xff]
      %v179 = vld [vmem:[%s138 + $0x118] sm:$0xff]
      %v180 = vld [vmem:[%s138 + $0x120] sm:$0xff]
      %v181 = vld [vmem:[%s138 + $0x128] sm:$0xff]
      %v182 = vld [vmem:[%s138 + $0x130] sm:$0xff]
      %v183 = vld [vmem:[%s138 + $0x138] sm:$0xff]
      %v184 = vld [vmem:[%s138 + $0x140] sm:$0xff]
      %v185 = vld [vmem:[%s138 + $0x148] sm:$0xff]
      %v186 = vld [vmem:[%s138 + $0x150] sm:$0xff]
      %v187 = vld [vmem:[%s138 + $0x158] sm:$0xff]
      %v188 = vld [vmem:[%s138 + $0x160] sm:$0xff]
      %v189 = vld [vmem:[%s138 + $0x168] sm:$0xff]
      %v190 = vld [vmem:[%s138 + $0x170] sm:$0xff]
      %v191 = vld [vmem:[%s138 + $0x178] sm:$0xff]
      %v192 = vld [vmem:[%s138 + $0x180] sm:$0xff]
      %v193 = vld [vmem:[%s138 + $0x188] sm:$0xff]
      %v194 = vld [vmem:[%s138 + $0x190] sm:$0xff]
      %v195 = vld [vmem:[%s138 + $0x198] sm:$0xff]
      %v196 = vld [vmem:[%s138 + $0x1a0] sm:$0xff]
      %v197 = vld [vmem:[%s1] sm:$0xff]
      %v198 = vld [vmem:[%s1 + $0x8] sm:$0xff]
      %v199 = vld [vmem:[%s1 + $0x10] sm:$0xff]
      %v200 = vld [vmem:[%s1 + $0x18] sm:$0xff]
      %v201 = vld [vmem:[%s1 + $0x20] sm:$0xff]
      %v202 = vld [vmem:[%s1 + $0x28] sm:$0xff]
      %v203 = vld [vmem:[%s1 + $0x30] sm:$0xff]
      %v204 = vld [vmem:[%s1 + $0x38] sm:$0xff]
      %v205 = vld [vmem:[%s1 + $0x40] sm:$0xff]
      %v206 = vld [vmem:[%s1 + $0x48] sm:$0xff]
      %v207 = vld [vmem:[%s1 + $0x50] sm:$0xff]
      %v208 = vld [vmem:[%s1 + $0x58] sm:$0xff]
      %v209 = vld [vmem:[%s1 + $0x60] sm:$0xff]
      %v210 = vld [vmem:[%s1 + $0x68] sm:$0xff]
      %v211 = vld [vmem:[%s1 + $0x70] sm:$0xff]
      %v212 = vld [vmem:[%s1 + $0x78] sm:$0xff]
      %v213 = vld [vmem:[%s1 + $0x80] sm:$0xff]
      %v214 = vld [vmem:[%s1 + $0x88] sm:$0xff]
      %v215 = vld [vmem:[%s1 + $0x90] sm:$0xff]
      %v216 = vld [vmem:[%s1 + $0x98] sm:$0xff]
      %v217 = vld [vmem:[%s1 + $0xa0] sm:$0xff]
      %v218 = vld [vmem:[%s1 + $0xa8] sm:$0xff]
      %v219 = vld [vmem:[%s1 + $0xb0] sm:$0xff]
      %v220 = vld [vmem:[%s1 + $0xb8] sm:$0xff]
      %v221 = vld [vmem:[%s1 + $0xc0] sm:$0xff]
      %v222 = vld [vmem:[%s1 + $0xc8] sm:$0xff]
      %v223 = vld [vmem:[%s1 + $0xd0] sm:$0xff]
      %v224 = vld [vmem:[%s1 + $0xd8] sm:$0xff]
      %v225 = vld [vmem:[%s1 + $0xe0] sm:$0xff]
      %v226 = vld [vmem:[%s1 + $0xe8] sm:$0xff]
      %v227 = vld [vmem:[%s1 + $0xf0] sm:$0xff]
      %v228 = vld [vmem:[%s1 + $0xf8] sm:$0xff]
      %v229 = vld [vmem:[%s1 + $0x100] sm:$0xff]
      %v230 = vld [vmem:[%s1 + $0x108] sm:$0xff]
      %v231 = vld [vmem:[%s1 + $0x110] sm:$0xff]
      %v232 = vld [vmem:[%s1 + $0x118] sm:$0xff]
      %v233 = vld [vmem:[%s1 + $0x120] sm:$0xff]
      %v234 = vld [vmem:[%s1 + $0x128] sm:$0xff]
      %v235 = vld [vmem:[%s1 + $0x130] sm:$0xff]
      %v236 = vld [vmem:[%s1 + $0x138] sm:$0xff]
      %v237 = vld [vmem:[%s1 + $0x140] sm:$0xff]
      %v238 = vld [vmem:[%s1 + $0x148] sm:$0xff]
      %v239 = vld [vmem:[%s1 + $0x150] sm:$0xff]
      %v240 = vld [vmem:[%s1 + $0x158] sm:$0xff]
      %v241 = vld [vmem:[%s1 + $0x160] sm:$0xff]
      %v242 = vld [vmem:[%s1 + $0x168] sm:$0xff]
      %v243 = vld [vmem:[%s1 + $0x170] sm:$0xff]
      %v244 = vld [vmem:[%s1 + $0x178] sm:$0xff]
      %v245 = vld [vmem:[%s1 + $0x180] sm:$0xff]
      %v246 = vld [vmem:[%s1 + $0x188] sm:$0xff]
      %v247 = vld [vmem:[%s1 + $0x190] sm:$0xff]
      %v248 = vld [vmem:[%s1 + $0x198] sm:$0xff]
      %v249 = vld [vmem:[%s1 + $0x1a0] sm:$0xff]
      %v250 = vld [vmem:[%s1 + $0x1a8] sm:$0xff]
      %v251 = vld [vmem:[%s1 + $0x1b0] sm:$0xff]
      %v252 = vld [vmem:[%s1 + $0x1b8] sm:$0xff]
      %v253 = vld [vmem:[%s1 + $0x1c0] sm:$0xff]
      %v254 = vld [vmem:[%s1 + $0x1c8] sm:$0xff]
      %v255 = vld [vmem:[%s1 + $0x1d0] sm:$0xff]
      %v256 = vld [vmem:[%s1 + $0x1d8] sm:$0xff]
      %v257 = vld [vmem:[%s1 + $0x1e0] sm:$0xff]
      %v258 = vld [vmem:[%s1 + $0x1e8] sm:$0xff]
      %v259 = vld [vmem:[%s1 + $0x1f0] sm:$0xff]
      %v260 = vld [vmem:[%s1 + $0x1f8] sm:$0xff]
      %v261 = vld [vmem:[%s1 + $0x200] sm:$0xff]
      %v262 = vld [vmem:[%s1 + $0x208] sm:$0xff]
      %v263 = vld [vmem:[%s1 + $0x210] sm:$0xff]
      %v264 = vld [vmem:[%s1 + $0x218] sm:$0xff]
      %v265 = vld [vmem:[%s1 + $0x220] sm:$0xff]
      %v266 = vld [vmem:[%s1 + $0x228] sm:$0xff]
      %v267 = vld [vmem:[%s1 + $0x230] sm:$0xff]
      %v268 = vld [vmem:[%s1 + $0x238] sm:$0xff]
      %v269 = vld [vmem:[%s1 + $0x240] sm:$0xff]
      %v270 = vld [vmem:[%s1 + $0x248] sm:$0xff]
      %v271 = vld [vmem:[%s1 + $0x250] sm:$0xff]
      %v272 = vld [vmem:[%s1 + $0x258] sm:$0xff]
      %v273 = vld [vmem:[%s1 + $0x260] sm:$0xff]
      %v274 = vld [vmem:[%s1 + $0x268] sm:$0xff]
      %v275 = vld [vmem:[%s1 + $0x270] sm:$0xff]
      %v276 = vld [vmem:[%s1 + $0x278] sm:$0xff]
      %v277 = vld [vmem:[%s1 + $0x280] sm:$0xff]
      %v278 = vld [vmem:[%s1 + $0x288] sm:$0xff]
      %v279 = vld [vmem:[%s1 + $0x290] sm:$0xff]
      %v280 = vld [vmem:[%s1 + $0x298] sm:$0xff]
      %v281 = vld [vmem:[%s1 + $0x2a0] sm:$0xff]
      %v282 = vld [vmem:[%s1 + $0x2a8] sm:$0xff]
      %v283 = vld [vmem:[%s1 + $0x2b0] sm:$0xff]
      %v284 = vld [vmem:[%s1 + $0x2b8] sm:$0xff]
      %v285 = vld [vmem:[%s1 + $0x2c0] sm:$0xff]
      %v286 = vld [vmem:[%s1 + $0x2c8] sm:$0xff]
      %v287 = vld [vmem:[%s1 + $0x2d0] sm:$0xff]
      %v288 = vld [vmem:[%s1 + $0x2d8] sm:$0xff]
      %v289 = vld [vmem:[%s1 + $0x2e0] sm:$0xff]
      %v290 = vld [vmem:[%s1 + $0x2e8] sm:$0xff]
      %v291 = vld [vmem:[%s1 + $0x2f0] sm:$0xff]
      %v292 = vld [vmem:[%s1 + $0x2f8] sm:$0xff]
      %v293 = vld [vmem:[%s1 + $0x300] sm:$0xff]
      %v294 = vld [vmem:[%s1 + $0x308] sm:$0xff]
      %v295 = vld [vmem:[%s1 + $0x310] sm:$0xff]
      %v296 = vld [vmem:[%s1 + $0x318] sm:$0xff]
      %v297 = vld [vmem:[%s1 + $0x320] sm:$0xff]
      %v298 = vld [vmem:[%s1 + $0x328] sm:$0xff]
      %v299 = vld [vmem:[%s1 + $0x330] sm:$0xff]
      %v300 = vld [vmem:[%s1 + $0x338] sm:$0xff]
      %v301 = vld [vmem:[%s1 + $0x340] sm:$0xff]
      %v302 = vld [vmem:[%s1 + $0x348] sm:$0xff]
      %v303 = vld [vmem:[%s1 + $0x350] sm:$0xff]
      %v304 = vld [vmem:[%s1 + $0x358] sm:$0xff]
      %v305 = vld [vmem:[%s1 + $0x360] sm:$0xff]
      %v306 = vld [vmem:[%s1 + $0x368] sm:$0xff]
      %v307 = vld [vmem:[%s1 + $0x370] sm:$0xff]
      %v308 = vld [vmem:[%s1 + $0x378] sm:$0xff]
      %v309 = vld [vmem:[%s1 + $0x380] sm:$0xff]
      %v310 = vld [vmem:[%s1 + $0x388] sm:$0xff]
      %v311 = vld [vmem:[%s1 + $0x390] sm:$0xff]
      %v312 = vld [vmem:[%s1 + $0x398] sm:$0xff]
      %v313 = vld [vmem:[%s1 + $0x3a0] sm:$0xff]
      %v314 = vld [vmem:[%s1 + $0x3a8] sm:$0xff]
      %v315 = vld [vmem:[%s1 + $0x3b0] sm:$0xff]
      %v316 = vld [vmem:[%s1 + $0x3b8] sm:$0xff]
      %v317 = vld [vmem:[%s1 + $0x3c0] sm:$0xff]
      %v318 = vld [vmem:[%s1 + $0x3c8] sm:$0xff]
      %v319 = vld [vmem:[%s1 + $0x3d0] sm:$0xff]
      %v320 = vld [vmem:[%s1 + $0x3d8] sm:$0xff]
      %v321 = vld [vmem:[%s1 + $0x3e0] sm:$0xff]
      %v322 = vld [vmem:[%s1 + $0x3e8] sm:$0xff]
      %v323 = vld [vmem:[%s1 + $0x3f0] sm:$0xff]
      %v324 = vld [vmem:[%s1 + $0x3f8] sm:$0xff]
      %v325 = vld [vmem:[%s1 + $0x400] sm:$0xff]
      %v326 = vld [vmem:[%s1 + $0x408] sm:$0xff]
      %v327 = vld [vmem:[%s1 + $0x410] sm:$0xff]
      %v328 = vld [vmem:[%s1 + $0x418] sm:$0xff]
      %v329 = vld [vmem:[%s1 + $0x420] sm:$0xff]
      %v330 = vld [vmem:[%s1 + $0x428] sm:$0xff]
      %v331 = vld [vmem:[%s1 + $0x430] sm:$0xff]
      %v332 = vld [vmem:[%s1 + $0x438] sm:$0xff]
      %v333 = vld [vmem:[%s1 + $0x440] sm:$0xff]
      %v334 = vld [vmem:[%s1 + $0x448] sm:$0xff]
      %v335 = vld [vmem:[%s1 + $0x450] sm:$0xff]
      %v336 = vld [vmem:[%s1 + $0x458] sm:$0xff]
      %v337 = vld [vmem:[%s1 + $0x460] sm:$0xff]
      %v338 = vld [vmem:[%s1 + $0x468] sm:$0xff]
      %v339 = vld [vmem:[%s1 + $0x470] sm:$0xff]
      %v340 = vld [vmem:[%s1 + $0x478] sm:$0xff]
      %v341 = vld [vmem:[%s1 + $0x480] sm:$0xff]
      %v342 = vld [vmem:[%s1 + $0x488] sm:$0xff]
      %v343 = vld [vmem:[%s1 + $0x490] sm:$0xff]
      %v344 = vld [vmem:[%s1 + $0x498] sm:$0xff]
      %v345 = vld [vmem:[%s1 + $0x4a0] sm:$0xff]
      %v346 = vld [vmem:[%s1 + $0x4a8] sm:$0xff]
      %v347 = vld [vmem:[%s1 + $0x4b0] sm:$0xff]
      %v348 = vld [vmem:[%s1 + $0x4b8] sm:$0xff]
      %v349 = vld [vmem:[%s1 + $0x4c0] sm:$0xff]
      %v350 = vld [vmem:[%s1 + $0x4c8] sm:$0xff]
      %v351 = vld [vmem:[%s1 + $0x4d0] sm:$0xff]
      %v352 = vld [vmem:[%s1 + $0x4d8] sm:$0xff]
      %v353 = vld [vmem:[%s1 + $0x4e0] sm:$0xff]
      %v354 = vld [vmem:[%s1 + $0x4e8] sm:$0xff]
      %v355 = vld [vmem:[%s1 + $0x4f0] sm:$0xff]
      %v356 = vld [vmem:[%s1 + $0x4f8] sm:$0xff]
      %v357 = vld [vmem:[%s1 + $0x500] sm:$0xff]
      %v358 = vld [vmem:[%s1 + $0x508] sm:$0xff]
      %v359 = vld [vmem:[%s1 + $0x510] sm:$0xff]
      %v360 = vld [vmem:[%s1 + $0x518] sm:$0xff]
      %v361 = vld [vmem:[%s1 + $0x520] sm:$0xff]
      %v362 = vld [vmem:[%s1 + $0x528] sm:$0xff]
      %v363 = vld [vmem:[%s1 + $0x530] sm:$0xff]
      %v364 = vld [vmem:[%s1 + $0x538] sm:$0xff]
      %v365 = vld [vmem:[%s1 + $0x540] sm:$0xff]
      %v366 = vld [vmem:[%s1 + $0x548] sm:$0xff]
      %v367 = vld [vmem:[%s1 + $0x550] sm:$0xff]
      %v368 = vld [vmem:[%s1 + $0x558] sm:$0xff]
      %v369 = vld [vmem:[%s1 + $0x560] sm:$0xff]
      %v370 = vld [vmem:[%s1 + $0x568] sm:$0xff]
      %v371 = vld [vmem:[%s1 + $0x570] sm:$0xff]
      %v372 = vld [vmem:[%s1 + $0x578] sm:$0xff]
      %v373 = vld [vmem:[%s1 + $0x580] sm:$0xff]
      %v374 = vld [vmem:[%s1 + $0x588] sm:$0xff]
      %v375 = vld [vmem:[%s1 + $0x590] sm:$0xff]
      %v376 = vld [vmem:[%s1 + $0x598] sm:$0xff]
      %v377 = vld [vmem:[%s1 + $0x5a0] sm:$0xff]
      %v378 = vld [vmem:[%s1 + $0x5a8] sm:$0xff]
      %v379 = vld [vmem:[%s1 + $0x5b0] sm:$0xff]
      %v380 = vld [vmem:[%s1 + $0x5b8] sm:$0xff]
      %v381 = vld [vmem:[%s1 + $0x5c0] sm:$0xff]
      %v382 = vld [vmem:[%s1 + $0x5c8] sm:$0xff]
      %v383 = vld [vmem:[%s1 + $0x5d0] sm:$0xff]
      %v384 = vld [vmem:[%s1 + $0x5d8] sm:$0xff]
      %v385 = vld [vmem:[%s1 + $0x5e0] sm:$0xff]
      %v386 = vld [vmem:[%s1 + $0x5e8] sm:$0xff]
      %v387 = vld [vmem:[%s1 + $0x5f0] sm:$0xff]
      %v388 = vld [vmem:[%s1 + $0x5f8] sm:$0xff]
      %v389 = vld [vmem:[%s1 + $0x600] sm:$0xff]
      %v390 = vld [vmem:[%s1 + $0x608] sm:$0xff]
      %v391 = vld [vmem:[%s1 + $0x610] sm:$0xff]
      %v392 = vld [vmem:[%s1 + $0x618] sm:$0xff]
      %v393 = vld [vmem:[%s1 + $0x620] sm:$0xff]
      %v394 = vld [vmem:[%s1 + $0x628] sm:$0xff]
      %v395 = vld [vmem:[%s1 + $0x630] sm:$0xff]
      %v396 = vld [vmem:[%s1 + $0x638] sm:$0xff]
      %v397 = vld [vmem:[%s1 + $0x640] sm:$0xff]
      %v398 = vld [vmem:[%s1 + $0x648] sm:$0xff]
      %v399 = vld [vmem:[%s1 + $0x650] sm:$0xff]
      %v400 = vld [vmem:[%s1 + $0x658] sm:$0xff]
      %v401 = vld [vmem:[%s1 + $0x660] sm:$0xff]
      %v402 = vld [vmem:[%s1 + $0x668] sm:$0xff]
      %v403 = vld [vmem:[%s1 + $0x670] sm:$0xff]
      %v404 = vld [vmem:[%s1 + $0x678] sm:$0xff]
      %v405 = vld [vmem:[%s1 + $0x680] sm:$0xff]
      %v406 = vld [vmem:[%s1 + $0x688] sm:$0xff]
      %v407 = vld [vmem:[%s1 + $0x690] sm:$0xff]
      %v408 = vld [vmem:[%s1 + $0x698] sm:$0xff]
      %v409 = vld [vmem:[%s1 + $0x6a0] sm:$0xff]
      %v410 = vld [vmem:[%s1 + $0x6a8] sm:$0xff]
      %v411 = vld [vmem:[%s1 + $0x6b0] sm:$0xff]
      %v412 = vld [vmem:[%s1 + $0x6b8] sm:$0xff]
      %v413 = vld [vmem:[%s1 + $0x6c0] sm:$0xff]
      %v414 = vld [vmem:[%s1 + $0x6c8] sm:$0xff]
      %v415 = vld [vmem:[%s1 + $0x6d0] sm:$0xff]
      %v416 = vld [vmem:[%s1 + $0x6d8] sm:$0xff]
      %v417 = vld [vmem:[%s1 + $0x6e0] sm:$0xff]
      %v418 = vld [vmem:[%s1 + $0x6e8] sm:$0xff]
      %v419 = vld [vmem:[%s1 + $0x6f0] sm:$0xff]
      %v420 = vld [vmem:[%s1 + $0x6f8] sm:$0xff]
      %v421 = vld [vmem:[%s1 + $0x700] sm:$0xff]
      %v422 = vld [vmem:[%s1 + $0x708] sm:$0xff]
      %v423 = vld [vmem:[%s1 + $0x710] sm:$0xff]
      %v424 = vld [vmem:[%s1 + $0x718] sm:$0xff]
      %v425 = vld [vmem:[%s1 + $0x720] sm:$0xff]
      %v426 = vld [vmem:[%s1 + $0x728] sm:$0xff]
      %v427 = vld [vmem:[%s1 + $0x730] sm:$0xff]
      %v428 = vld [vmem:[%s1 + $0x738] sm:$0xff]
      %v429 = vld [vmem:[%s1 + $0x740] sm:$0xff]
      %v430 = vld [vmem:[%s1 + $0x748] sm:$0xff]
      %v431 = vld [vmem:[%s1 + $0x750] sm:$0xff]
      %v432 = vld [vmem:[%s1 + $0x758] sm:$0xff]
      %v433 = vld [vmem:[%s1 + $0x760] sm:$0xff]
      %v434 = vld [vmem:[%s1 + $0x768] sm:$0xff]
      %v435 = vld [vmem:[%s1 + $0x770] sm:$0xff]
      %v436 = vld [vmem:[%s1 + $0x778] sm:$0xff]
      %v437 = vld [vmem:[%s1 + $0x780] sm:$0xff]
      %v438 = vld [vmem:[%s1 + $0x788] sm:$0xff]
      %v439 = vld [vmem:[%s1 + $0x790] sm:$0xff]
      %v440 = vld [vmem:[%s1 + $0x798] sm:$0xff]
      %v441 = vld [vmem:[%s1 + $0x7a0] sm:$0xff]
      %v442 = vld [vmem:[%s1 + $0x7a8] sm:$0xff]
      %v443 = vld [vmem:[%s1 + $0x7b0] sm:$0xff]
      %v444 = vld [vmem:[%s1 + $0x7b8] sm:$0xff]
      %v445 = vld [vmem:[%s1 + $0x7c0] sm:$0xff]
      %v446 = vld [vmem:[%s1 + $0x7c8] sm:$0xff]
      %v447 = vld [vmem:[%s1 + $0x7d0] sm:$0xff]
      %v448 = vld [vmem:[%s1 + $0x7d8] sm:$0xff]
      %v449 = vld [vmem:[%s1 + $0x7e0] sm:$0xff]
      %v450 = vld [vmem:[%s1 + $0x7e8] sm:$0xff]
      %v451 = vld [vmem:[%s1 + $0x7f0] sm:$0xff]
      %v452 = vld [vmem:[%s1 + $0x7f8] sm:$0xff]
      %v453 = vld [vmem:[%s1 + $0x800] sm:$0xff]
      %v454 = vld [vmem:[%s1 + $0x808] sm:$0xff]
      %v455 = vld [vmem:[%s1 + $0x810] sm:$0xff]
      %v456 = vld [vmem:[%s1 + $0x818] sm:$0xff]
      %v457 = vld [vmem:[%s1 + $0x820] sm:$0xff]
      %v458 = vld [vmem:[%s1 + $0x828] sm:$0xff]
      %v459 = vld [vmem:[%s1 + $0x830] sm:$0xff]
      %v460 = vld [vmem:[%s1 + $0x838] sm:$0xff]
      %v461 = vld [vmem:[%s1 + $0x840] sm:$0xff]
      %v462 = vld [vmem:[%s1 + $0x848] sm:$0xff]
      %v463 = vld [vmem:[%s1 + $0x850] sm:$0xff]
      %v464 = vld [vmem:[%s1 + $0x858] sm:$0xff]
      %v465 = vld [vmem:[%s1 + $0x860] sm:$0xff]
      %v466 = vld [vmem:[%s1 + $0x868] sm:$0xff]
      %v467 = vld [vmem:[%s1 + $0x870] sm:$0xff]
      %v468 = vld [vmem:[%s1 + $0x878] sm:$0xff]
      %v469 = vld [vmem:[%s1 + $0x880] sm:$0xff]
      %v470 = vld [vmem:[%s1 + $0x888] sm:$0xff]
      %v471 = vld [vmem:[%s1 + $0x890] sm:$0xff]
      %v472 = vld [vmem:[%s1 + $0x898] sm:$0xff]
      %v473 = vld [vmem:[%s1 + $0x8a0] sm:$0xff]
      %v474 = vld [vmem:[%s1 + $0x8a8] sm:$0xff]
      %v475 = vld [vmem:[%s1 + $0x8b0] sm:$0xff]
      %v476 = vld [vmem:[%s1 + $0x8b8] sm:$0xff]
      %v477 = vld [vmem:[%s1 + $0x8c0] sm:$0xff]
      %v478 = vld [vmem:[%s1 + $0x8c8] sm:$0xff]
      %v479 = vld [vmem:[%s1 + $0x8d0] sm:$0xff]
      %v480 = vld [vmem:[%s1 + $0x8d8] sm:$0xff]
      %v481 = vld [vmem:[%s1 + $0x8e0] sm:$0xff]
      %v482 = vld [vmem:[%s1 + $0x8e8] sm:$0xff]
      %v483 = vld [vmem:[%s1 + $0x8f0] sm:$0xff]
      %v484 = vld [vmem:[%s1 + $0x8f8] sm:$0xff]
      %v485 = vld [vmem:[%s1 + $0x900] sm:$0xff]
      %v486 = vld [vmem:[%s1 + $0x908] sm:$0xff]
      %v487 = vld [vmem:[%s1 + $0x910] sm:$0xff]
      %v488 = vld [vmem:[%s1 + $0x918] sm:$0xff]
      %v489 = vld [vmem:[%s1 + $0x920] sm:$0xff]
      %v490 = vld [vmem:[%s1 + $0x928] sm:$0xff]
      %v491 = vld [vmem:[%s1 + $0x930] sm:$0xff]
      %v492 = vld [vmem:[%s1 + $0x938] sm:$0xff]
      %v493 = vld [vmem:[%s1 + $0x940] sm:$0xff]
      %v494 = vld [vmem:[%s1 + $0x948] sm:$0xff]
      %v495 = vld [vmem:[%s1 + $0x950] sm:$0xff]
      %v496 = vld [vmem:[%s1 + $0x958] sm:$0xff]
      %v497 = vld [vmem:[%s1 + $0x960] sm:$0xff]
      %v498 = vld [vmem:[%s1 + $0x968] sm:$0xff]
      %v499 = vld [vmem:[%s1 + $0x970] sm:$0xff]
      %v500 = vld [vmem:[%s1 + $0x978] sm:$0xff]
      %v501 = vld [vmem:[%s1 + $0x980] sm:$0xff]
      %v502 = vld [vmem:[%s1 + $0x988] sm:$0xff]
      %v503 = vld [vmem:[%s1 + $0x990] sm:$0xff]
      %v504 = vld [vmem:[%s1 + $0x998] sm:$0xff]
      %v505 = vld [vmem:[%s1 + $0x9a0] sm:$0xff]
      %v506 = vld [vmem:[%s1 + $0x9a8] sm:$0xff]
      %v507 = vld [vmem:[%s1 + $0x9b0] sm:$0xff]
      %v508 = vld [vmem:[%s1 + $0x9b8] sm:$0xff]
      %v509 = vld [vmem:[%s1 + $0x9c0] sm:$0xff]
      %v510 = vld [vmem:[%s1 + $0x9c8] sm:$0xff]
      %v511 = vld [vmem:[%s1 + $0x9d0] sm:$0xff]
      %v512 = vld [vmem:[%s1 + $0x9d8] sm:$0xff]
      %v513 = vld [vmem:[%s1 + $0x9e0] sm:$0xff]
      %v514 = vld [vmem:[%s1 + $0x9e8] sm:$0xff]
      %v515 = vld [vmem:[%s1 + $0x9f0] sm:$0xff]
      %v516 = vld [vmem:[%s1 + $0x9f8] sm:$0xff]
      %v517 = vld [vmem:[%s1 + $0xa00] sm:$0xff]
      %v518 = vld [vmem:[%s1 + $0xa08] sm:$0xff]
      %v519 = vld [vmem:[%s1 + $0xa10] sm:$0xff]
      %v520 = vld [vmem:[%s1 + $0xa18] sm:$0xff]
      %v521 = vld [vmem:[%s1 + $0xa20] sm:$0xff]
      %v522 = vld [vmem:[%s1 + $0xa28] sm:$0xff]
      %v523 = vld [vmem:[%s1 + $0xa30] sm:$0xff]
      %v524 = vld [vmem:[%s1 + $0xa38] sm:$0xff]
      %v525 = vld [vmem:[%s1 + $0xa40] sm:$0xff]
      %v526 = vld [vmem:[%s1 + $0xa48] sm:$0xff]
      %v527 = vld [vmem:[%s1 + $0xa50] sm:$0xff]
      %v528 = vld [vmem:[%s1 + $0xa58] sm:$0xff]
      %v529 = vld [vmem:[%s1 + $0xa60] sm:$0xff]
      %v530 = vld [vmem:[%s1 + $0xa68] sm:$0xff]
      %v531 = vld [vmem:[%s1 + $0xa70] sm:$0xff]
      %v532 = vld [vmem:[%s1 + $0xa78] sm:$0xff]
      %v533 = vld [vmem:[%s1 + $0xa80] sm:$0xff]
      %v534 = vld [vmem:[%s1 + $0xa88] sm:$0xff]
      %v535 = vld [vmem:[%s1 + $0xa90] sm:$0xff]
      %v536 = vld [vmem:[%s1 + $0xa98] sm:$0xff]
      %v537 = vld [vmem:[%s1 + $0xaa0] sm:$0xff]
      %v538 = vld [vmem:[%s1 + $0xaa8] sm:$0xff]
      %v539 = vld [vmem:[%s1 + $0xab0] sm:$0xff]
      %v540 = vld [vmem:[%s1 + $0xab8] sm:$0xff]
      %v541 = vld [vmem:[%s1 + $0xac0] sm:$0xff]
      %v542 = vld [vmem:[%s1 + $0xac8] sm:$0xff]
      %v543 = vld [vmem:[%s1 + $0xad0] sm:$0xff]
      %v544 = vld [vmem:[%s1 + $0xad8] sm:$0xff]
      %v545 = vld [vmem:[%s1 + $0xae0] sm:$0xff]
      %v546 = vld [vmem:[%s1 + $0xae8] sm:$0xff]
      %v547 = vld [vmem:[%s1 + $0xaf0] sm:$0xff]
      %v548 = vld [vmem:[%s1 + $0xaf8] sm:$0xff]
      %v549 = vld [vmem:[%s1 + $0xb00] sm:$0xff]
      %v550 = vld [vmem:[%s1 + $0xb08] sm:$0xff]
      %v551 = vld [vmem:[%s1 + $0xb10] sm:$0xff]
      %v552 = vld [vmem:[%s1 + $0xb18] sm:$0xff]
      %v553 = vld [vmem:[%s1 + $0xb20] sm:$0xff]
      %v554 = vld [vmem:[%s1 + $0xb28] sm:$0xff]
      %v555 = vld [vmem:[%s1 + $0xb30] sm:$0xff]
      %v556 = vld [vmem:[%s1 + $0xb38] sm:$0xff]
      %v557 = vld [vmem:[%s1 + $0xb40] sm:$0xff]
      %v558 = vld [vmem:[%s1 + $0xb48] sm:$0xff]
      %v559 = vld [vmem:[%s1 + $0xb50] sm:$0xff]
      %v560 = vld [vmem:[%s1 + $0xb58] sm:$0xff]
      %v561 = vld [vmem:[%s1 + $0xb60] sm:$0xff]
      %v562 = vld [vmem:[%s1 + $0xb68] sm:$0xff]
      %v563 = vld [vmem:[%s1 + $0xb70] sm:$0xff]
      %v564 = vld [vmem:[%s1 + $0xb78] sm:$0xff]
      %v565 = vld [vmem:[%s1 + $0xb80] sm:$0xff]
      %v566 = vld [vmem:[%s1 + $0xb88] sm:$0xff]
      %v567 = vld [vmem:[%s1 + $0xb90] sm:$0xff]
      %v568 = vld [vmem:[%s1 + $0xb98] sm:$0xff]
      %v569 = vld [vmem:[%s1 + $0xba0] sm:$0xff]
      %v570 = vld [vmem:[%s1 + $0xba8] sm:$0xff]
      %v571 = vld [vmem:[%s1 + $0xbb0] sm:$0xff]
      %v572 = vld [vmem:[%s1 + $0xbb8] sm:$0xff]
      %v573 = vld [vmem:[%s1 + $0xbc0] sm:$0xff]
      %v574 = vld [vmem:[%s1 + $0xbc8] sm:$0xff]
      %v575 = vld [vmem:[%s1 + $0xbd0] sm:$0xff]
      %v576 = vld [vmem:[%s1 + $0xbd8] sm:$0xff]
      %v577 = vld [vmem:[%s1 + $0xbe0] sm:$0xff]
      %v578 = vld [vmem:[%s1 + $0xbe8] sm:$0xff]
      %v579 = vld [vmem:[%s1 + $0xbf0] sm:$0xff]
      %v580 = vld [vmem:[%s1 + $0xbf8] sm:$0xff]
      %v581 = vld [vmem:[%s1 + $0xc00] sm:$0xff]
      %v582 = vld [vmem:[%s1 + $0xc08] sm:$0xff]
      %v583 = vld [vmem:[%s1 + $0xc10] sm:$0xff]
      %v584 = vld [vmem:[%s1 + $0xc18] sm:$0xff]
      %v585 = vld [vmem:[%s1 + $0xc20] sm:$0xff]
      %v586 = vld [vmem:[%s1 + $0xc28] sm:$0xff]
      %v587 = vld [vmem:[%s1 + $0xc30] sm:$0xff]
      %v588 = vld [vmem:[%s1 + $0xc38] sm:$0xff]
      %v589 = vld [vmem:[%s1 + $0xc40] sm:$0xff]
      %v590 = vld [vmem:[%s1 + $0xc48] sm:$0xff]
      %v591 = vld [vmem:[%s1 + $0xc50] sm:$0xff]
      %v592 = vld [vmem:[%s1 + $0xc58] sm:$0xff]
      %v593 = vld [vmem:[%s1 + $0xc60] sm:$0xff]
      %v594 = vld [vmem:[%s1 + $0xc68] sm:$0xff]
      %v595 = vld [vmem:[%s1 + $0xc70] sm:$0xff]
      %v596 = vld [vmem:[%s1 + $0xc78] sm:$0xff]
      %v597 = vld [vmem:[%s1 + $0xc80] sm:$0xff]
      %v598 = vld [vmem:[%s1 + $0xc88] sm:$0xff]
      %v599 = vld [vmem:[%s1 + $0xc90] sm:$0xff]
      %v600 = vld [vmem:[%s1 + $0xc98] sm:$0xff]
      %v601 = vld [vmem:[%s1 + $0xca0] sm:$0xff]
      %v602 = vld [vmem:[%s1 + $0xca8] sm:$0xff]
      %v603 = vld [vmem:[%s1 + $0xcb0] sm:$0xff]
      %v604 = vld [vmem:[%s1 + $0xcb8] sm:$0xff]
      %v605 = vld [vmem:[%s1 + $0xcc0] sm:$0xff]
      %v606 = vld [vmem:[%s1 + $0xcc8] sm:$0xff]
      %v607 = vld [vmem:[%s1 + $0xcd0] sm:$0xff]
      %v608 = vld [vmem:[%s1 + $0xcd8] sm:$0xff]
      %v609 = vld [vmem:[%s1 + $0xce0] sm:$0xff]
      %v610 = vld [vmem:[%s1 + $0xce8] sm:$0xff]
      %v611 = vld [vmem:[%s1 + $0xcf0] sm:$0xff]
      %v612 = vld [vmem:[%s1 + $0xcf8] sm:$0xff]
      %v613 = vld [vmem:[%s1 + $0xd00] sm:$0xff]
      %v614 = vld [vmem:[%s1 + $0xd08] sm:$0xff]
      %v615 = vld [vmem:[%s1 + $0xd10] sm:$0xff]
      %v616 = vld [vmem:[%s1 + $0xd18] sm:$0xff]
      %v617 = vld [vmem:[%s1 + $0xd20] sm:$0xff]
      %v618 = vld [vmem:[%s1 + $0xd28] sm:$0xff]
      %v619 = vld [vmem:[%s1 + $0xd30] sm:$0xff]
      %v620 = vld [vmem:[%s1 + $0xd38] sm:$0xff]
      %v621 = vld [vmem:[%s1 + $0xd40] sm:$0xff]
      %v622 = vld [vmem:[%s1 + $0xd48] sm:$0xff]
      %v623 = vld [vmem:[%s1 + $0xd50] sm:$0xff]
      %v624 = vld [vmem:[%s1 + $0xd58] sm:$0xff]
      %v625 = vld [vmem:[%s1 + $0xd60] sm:$0xff]
      %v626 = vld [vmem:[%s1 + $0xd68] sm:$0xff]
      %v627 = vld [vmem:[%s1 + $0xd70] sm:$0xff]
      %v628 = vld [vmem:[%s1 + $0xd78] sm:$0xff]
      %v629 = vld [vmem:[%s1 + $0xd80] sm:$0xff]
      %v630 = vld [vmem:[%s1 + $0xd88] sm:$0xff]
      %v631 = vld [vmem:[%s1 + $0xd90] sm:$0xff]
      %v632 = vld [vmem:[%s1 + $0xd98] sm:$0xff]
      %v633 = vld [vmem:[%s1 + $0xda0] sm:$0xff]
      %v634 = vld [vmem:[%s1 + $0xda8] sm:$0xff]
      %v635 = vld [vmem:[%s1 + $0xdb0] sm:$0xff]
      %v636 = vld [vmem:[%s1 + $0xdb8] sm:$0xff]
      %v637 = vld [vmem:[%s1 + $0xdc0] sm:$0xff]
      %v638 = vld [vmem:[%s1 + $0xdc8] sm:$0xff]
      %v639 = vld [vmem:[%s1 + $0xdd0] sm:$0xff]
      %v640 = vld [vmem:[%s1 + $0xdd8] sm:$0xff]
      %v641 = vld [vmem:[%s1 + $0xde0] sm:$0xff]
      %v642 = vld [vmem:[%s1 + $0xde8] sm:$0xff]
      %v643 = vld [vmem:[%s1 + $0xdf0] sm:$0xff]
      %v644 = vld [vmem:[%s1 + $0xdf8] sm:$0xff]
      %v645 = vld [vmem:[%s1 + $0xe00] sm:$0xff]
      %v646 = vld [vmem:[%s1 + $0xe08] sm:$0xff]
      %v647 = vld [vmem:[%s1 + $0xe10] sm:$0xff]
      %v648 = vld [vmem:[%s1 + $0xe18] sm:$0xff]
      %v649 = vld [vmem:[%s1 + $0xe20] sm:$0xff]
      %v650 = vld [vmem:[%s1 + $0xe28] sm:$0xff]
      %v651 = vld [vmem:[%s1 + $0xe30] sm:$0xff]
      %v652 = vld [vmem:[%s1 + $0xe38] sm:$0xff]
      %v653 = vld [vmem:[%s1 + $0xe40] sm:$0xff]
      %v654 = vld [vmem:[%s1 + $0xe48] sm:$0xff]
      %v655 = vld [vmem:[%s1 + $0xe50] sm:$0xff]
      %v656 = vld [vmem:[%s1 + $0xe58] sm:$0xff]
      %v657 = vld [vmem:[%s1 + $0xe60] sm:$0xff]
      %v658 = vld [vmem:[%s1 + $0xe68] sm:$0xff]
      %v659 = vld [vmem:[%s1 + $0xe70] sm:$0xff]
      %v660 = vld [vmem:[%s1 + $0xe78] sm:$0xff]
      %v661 = vld [vmem:[%s1 + $0xe80] sm:$0xff]
      %v662 = vld [vmem:[%s1 + $0xe88] sm:$0xff]
      %v663 = vld [vmem:[%s1 + $0xe90] sm:$0xff]
      %v664 = vld [vmem:[%s1 + $0xe98] sm:$0xff]
      %v665 = vld [vmem:[%s1 + $0xea0] sm:$0xff]
      %v666 = vld [vmem:[%s1 + $0xea8] sm:$0xff]
      %v667 = vld [vmem:[%s1 + $0xeb0] sm:$0xff]
      %v668 = vld [vmem:[%s1 + $0xeb8] sm:$0xff]
      %v669 = vld [vmem:[%s1 + $0xec0] sm:$0xff]
      %v670 = vld [vmem:[%s1 + $0xec8] sm:$0xff]
      %v671 = vld [vmem:[%s1 + $0xed0] sm:$0xff]
      %v672 = vld [vmem:[%s1 + $0xed8] sm:$0xff]
      %v673 = vld [vmem:[%s1 + $0xee0] sm:$0xff]
      %v674 = vld [vmem:[%s1 + $0xee8] sm:$0xff]
      %v675 = vld [vmem:[%s1 + $0xef0] sm:$0xff]
      %v676 = vld [vmem:[%s1 + $0xef8] sm:$0xff]
      %v677 = vld [vmem:[%s1 + $0xf00] sm:$0xff]
      %v678 = vld [vmem:[%s1 + $0xf08] sm:$0xff]
      %v679 = vld [vmem:[%s1 + $0xf10] sm:$0xff]
      %v680 = vld [vmem:[%s1 + $0xf18] sm:$0xff]
      %v681 = vld [vmem:[%s1 + $0xf20] sm:$0xff]
      %v682 = vld [vmem:[%s1 + $0xf28] sm:$0xff]
      %v683 = vld [vmem:[%s1 + $0xf30] sm:$0xff]
      %v684 = vld [vmem:[%s1 + $0xf38] sm:$0xff]
      %v685 = vld [vmem:[%s1 + $0xf40] sm:$0xff]
      %v686 = vld [vmem:[%s1 + $0xf48] sm:$0xff]
      %v687 = vld [vmem:[%s1 + $0xf50] sm:$0xff]
      %v688 = vld [vmem:[%s1 + $0xf58] sm:$0xff]
      %v689 = vld [vmem:[%s1 + $0xf60] sm:$0xff]
      %v690 = vld [vmem:[%s1 + $0xf68] sm:$0xff]
      %v691 = vld [vmem:[%s1 + $0xf70] sm:$0xff]
      %v692 = vld [vmem:[%s1 + $0xf78] sm:$0xff]
      %v693 = vld [vmem:[%s1 + $0xf80] sm:$0xff]
      %v694 = vld [vmem:[%s1 + $0xf88] sm:$0xff]
      %v695 = vld [vmem:[%s1 + $0xf90] sm:$0xff]
      %v696 = vld [vmem:[%s1 + $0xf98] sm:$0xff]
      %v697 = vld [vmem:[%s1 + $0xfa0] sm:$0xff]
      %v698 = vld [vmem:[%s1 + $0xfa8] sm:$0xff]
      %v699 = vld [vmem:[%s1 + $0xfb0] sm:$0xff]
      %v700 = vld [vmem:[%s1 + $0xfb8] sm:$0xff]
      %v701 = vld [vmem:[%s1 + $0xfc0] sm:$0xff]
      %v702 = vld [vmem:[%s1 + $0xfc8] sm:$0xff]
      %v703 = vld [vmem:[%s1 + $0xfd0] sm:$0xff]
      %v704 = vld [vmem:[%s1 + $0xfd8] sm:$0xff]
      %v705 = vld [vmem:[%s1 + $0xfe0] sm:$0xff]
      %v706 = vld [vmem:[%s1 + $0xfe8] sm:$0xff]
      %v707 = vld [vmem:[%s1 + $0xff0] sm:$0xff]
      %v708 = vld [vmem:[%s1 + $0xff8] sm:$0xff]
      %v709 = vld [vmem:[%s1 + $0x1000] sm:$0xff]
      %v710 = vld [vmem:[%s1 + $0x1008] sm:$0xff]
      %v711 = vld [vmem:[%s1 + $0x1010] sm:$0xff]
      %v712 = vld [vmem:[%s1 + $0x1018] sm:$0xff]
      %v713 = vld [vmem:[%s1 + $0x1020] sm:$0xff]
      %v714 = vld [vmem:[%s1 + $0x1028] sm:$0xff]
      %v715 = vld [vmem:[%s1 + $0x1030] sm:$0xff]
      %v716 = vld [vmem:[%s1 + $0x1038] sm:$0xff]
      %v717 = vld [vmem:[%s1 + $0x1040] sm:$0xff]
      %v718 = vld [vmem:[%s1 + $0x1048] sm:$0xff]
      %v719 = vld [vmem:[%s1 + $0x1050] sm:$0xff]
      %v720 = vld [vmem:[%s1 + $0x1058] sm:$0xff]
      %v721 = vld [vmem:[%s1 + $0x1060] sm:$0xff]
      %v722 = vld [vmem:[%s1 + $0x1068] sm:$0xff]
      %v723 = vld [vmem:[%s1 + $0x1070] sm:$0xff]
      %v724 = vld [vmem:[%s1 + $0x1078] sm:$0xff]
      %v725 = vld [vmem:[%s1 + $0x1080] sm:$0xff]
      %v726 = vld [vmem:[%s1 + $0x1088] sm:$0xff]
      %v727 = vld [vmem:[%s1 + $0x1090] sm:$0xff]
      %v728 = vld [vmem:[%s1 + $0x1098] sm:$0xff]
      %v729 = vld [vmem:[%s1 + $0x10a0] sm:$0xff]
      %v730 = vld [vmem:[%s1 + $0x10a8] sm:$0xff]
      %v731 = vld [vmem:[%s1 + $0x10b0] sm:$0xff]
      %v732 = vld [vmem:[%s1 + $0x10b8] sm:$0xff]
      %v733 = vld [vmem:[%s1 + $0x10c0] sm:$0xff]
      %v734 = vld [vmem:[%s1 + $0x10c8] sm:$0xff]
      %v735 = vld [vmem:[%s1 + $0x10d0] sm:$0xff]
      %v736 = vld [vmem:[%s1 + $0x10d8] sm:$0xff]
      %v737 = vld [vmem:[%s1 + $0x10e0] sm:$0xff]
      %v738 = vld [vmem:[%s1 + $0x10e8] sm:$0xff]
      %v739 = vld [vmem:[%s1 + $0x10f0] sm:$0xff]
      %v740 = vld [vmem:[%s1 + $0x10f8] sm:$0xff]
      %v741 = vld [vmem:[%s1 + $0x1100] sm:$0xff]
      %v742 = vld [vmem:[%s1 + $0x1108] sm:$0xff]
      %v743 = vld [vmem:[%s1 + $0x1110] sm:$0xff]
      %v744 = vld [vmem:[%s1 + $0x1118] sm:$0xff]
      %v745 = vld [vmem:[%s1 + $0x1120] sm:$0xff]
      %v746 = vld [vmem:[%s1 + $0x1128] sm:$0xff]
      %v747 = vld [vmem:[%s1 + $0x1130] sm:$0xff]
      %v748 = vld [vmem:[%s1 + $0x1138] sm:$0xff]
      %v749 = vld [vmem:[%s1 + $0x1140] sm:$0xff]
      %v750 = vld [vmem:[%s1 + $0x1148] sm:$0xff]
      %v751 = vld [vmem:[%s1 + $0x1150] sm:$0xff]
      %v752 = vld [vmem:[%s1 + $0x1158] sm:$0xff]
      %v753 = vld [vmem:[%s1 + $0x1160] sm:$0xff]
      %v754 = vld [vmem:[%s1 + $0x1168] sm:$0xff]
      %v755 = vld [vmem:[%s1 + $0x1170] sm:$0xff]
      %v756 = vld [vmem:[%s1 + $0x1178] sm:$0xff]
      %v757 = vld [vmem:[%s1 + $0x1180] sm:$0xff]
      %v758 = vld [vmem:[%s1 + $0x1188] sm:$0xff]
      %v759 = vld [vmem:[%s1 + $0x1190] sm:$0xff]
      %v760 = vld [vmem:[%s1 + $0x1198] sm:$0xff]
      %v761 = vld [vmem:[%s1 + $0x11a0] sm:$0xff]
      %v762 = vld [vmem:[%s1 + $0x11a8] sm:$0xff]
      %v763 = vld [vmem:[%s1 + $0x11b0] sm:$0xff]
      %v764 = vld [vmem:[%s1 + $0x11b8] sm:$0xff]
      %v765 = vld [vmem:[%s1 + $0x11c0] sm:$0xff]
      %v766 = vld [vmem:[%s1 + $0x11c8] sm:$0xff]
      %v767 = vld [vmem:[%s1 + $0x11d0] sm:$0xff]
      %v768 = vld [vmem:[%s1 + $0x11d8] sm:$0xff]
      %v769 = vld [vmem:[%s1 + $0x11e0] sm:$0xff]
      %v770 = vld [vmem:[%s1 + $0x11e8] sm:$0xff]
      %v771 = vld [vmem:[%s1 + $0x11f0] sm:$0xff]
      %v772 = vld [vmem:[%s1 + $0x11f8] sm:$0xff]
      %v773 = vld [vmem:[%s1 + $0x1200] sm:$0xff]
      %v774 = vld [vmem:[%s1 + $0x1208] sm:$0xff]
      %v775 = vld [vmem:[%s1 + $0x1210] sm:$0xff]
      %v776 = vld [vmem:[%s1 + $0x1218] sm:$0xff]
      %v777 = vld [vmem:[%s1 + $0x1220] sm:$0xff]
      %v778 = vld [vmem:[%s1 + $0x1228] sm:$0xff]
      %v779 = vld [vmem:[%s1 + $0x1230] sm:$0xff]
      %v780 = vld [vmem:[%s1 + $0x1238] sm:$0xff]
      %v781 = vld [vmem:[%s1 + $0x1240] sm:$0xff]
      %v782 = vld [vmem:[%s1 + $0x1248] sm:$0xff]
      %v783 = vld [vmem:[%s1 + $0x1250] sm:$0xff]
      %v784 = vld [vmem:[%s1 + $0x1258] sm:$0xff]
      %v785 = vld [vmem:[%s1 + $0x1260] sm:$0xff]
      %v786 = vld [vmem:[%s1 + $0x1268] sm:$0xff]
      %v787 = vld [vmem:[%s1 + $0x1270] sm:$0xff]
      %v788 = vld [vmem:[%s1 + $0x1278] sm:$0xff]
      %v789 = vld [vmem:[%s1 + $0x1280] sm:$0xff]
      %v790 = vld [vmem:[%s1 + $0x1288] sm:$0xff]
      %v791 = vld [vmem:[%s1 + $0x1290] sm:$0xff]
      %v792 = vld [vmem:[%s1 + $0x1298] sm:$0xff]
      %v793 = vld [vmem:[%s1 + $0x12a0] sm:$0xff]
      %v794 = vld [vmem:[%s1 + $0x12a8] sm:$0xff]
      %v795 = vld [vmem:[%s1 + $0x12b0] sm:$0xff]
      %v796 = vld [vmem:[%s1 + $0x12b8] sm:$0xff]
      %v797 = vld [vmem:[%s1 + $0x12c0] sm:$0xff]
      %v798 = vld [vmem:[%s1 + $0x12c8] sm:$0xff]
      %v799 = vld [vmem:[%s1 + $0x12d0] sm:$0xff]
      %v800 = vld [vmem:[%s1 + $0x12d8] sm:$0xff]
      %v801 = vld [vmem:[%s1 + $0x12e0] sm:$0xff]
      %v802 = vld [vmem:[%s1 + $0x12e8] sm:$0xff]
      %v803 = vld [vmem:[%s1 + $0x12f0] sm:$0xff]
      %v804 = vld [vmem:[%s1 + $0x12f8] sm:$0xff]
      %v805 = vld [vmem:[%s1 + $0x1300] sm:$0xff]
      %v806 = vld [vmem:[%s1 + $0x1308] sm:$0xff]
      %v807 = vld [vmem:[%s1 + $0x1310] sm:$0xff]
      %v808 = vld [vmem:[%s1 + $0x1318] sm:$0xff]
      %v809 = vld [vmem:[%s1 + $0x1320] sm:$0xff]
      %v810 = vld [vmem:[%s1 + $0x1328] sm:$0xff]
      %v811 = vld [vmem:[%s1 + $0x1330] sm:$0xff]
      %v812 = vld [vmem:[%s1 + $0x1338] sm:$0xff]
      %v813 = vld [vmem:[%s1 + $0x1340] sm:$0xff]
      %v814 = vld [vmem:[%s1 + $0x1348] sm:$0xff]
      %v815 = vld [vmem:[%s1 + $0x1350] sm:$0xff]
      %v816 = vld [vmem:[%s1 + $0x1358] sm:$0xff]
      %v817 = vld [vmem:[%s1 + $0x1360] sm:$0xff]
      %v818 = vld [vmem:[%s1 + $0x1368] sm:$0xff]
      %v819 = vld [vmem:[%s1 + $0x1370] sm:$0xff]
      %v820 = vld [vmem:[%s1 + $0x1378] sm:$0xff]
      %v821 = vld [vmem:[%s1 + $0x1380] sm:$0xff]
      %v822 = vld [vmem:[%s1 + $0x1388] sm:$0xff]
      %v823 = vld [vmem:[%s1 + $0x1390] sm:$0xff]
      %v824 = vld [vmem:[%s1 + $0x1398] sm:$0xff]
      %v825 = vld [vmem:[%s1 + $0x13a0] sm:$0xff]
      %v826 = vld [vmem:[%s1 + $0x13a8] sm:$0xff]
      %v827 = vld [vmem:[%s1 + $0x13b0] sm:$0xff]
      %v828 = vld [vmem:[%s1 + $0x13b8] sm:$0xff]
      %v829 = vld [vmem:[%s1 + $0x13c0] sm:$0xff]
      %v830 = vld [vmem:[%s1 + $0x13c8] sm:$0xff]
      %v831 = vld [vmem:[%s1 + $0x13d0] sm:$0xff]
      %v832 = vld [vmem:[%s1 + $0x13d8] sm:$0xff]
      %v833 = vld [vmem:[%s1 + $0x13e0] sm:$0xff]
      %v834 = vld [vmem:[%s1 + $0x13e8] sm:$0xff]
      %v835 = vld [vmem:[%s1 + $0x13f0] sm:$0xff]
      %v836 = vld [vmem:[%s1 + $0x13f8] sm:$0xff]
      %v837 = vld [vmem:[%s1 + $0x1400] sm:$0xff]
      %v838 = vld [vmem:[%s1 + $0x1408] sm:$0xff]
      %v839 = vld [vmem:[%s1 + $0x1410] sm:$0xff]
      %v840 = vld [vmem:[%s1 + $0x1418] sm:$0xff]
      %v841 = vld [vmem:[%s1 + $0x1420] sm:$0xff]
      %v842 = vld [vmem:[%s1 + $0x1428] sm:$0xff]
      %v843 = vld [vmem:[%s1 + $0x1430] sm:$0xff]
      %v844 = vld [vmem:[%s1 + $0x1438] sm:$0xff]
      %v845 = vld [vmem:[%s1 + $0x1440] sm:$0xff]
      %v846 = vld [vmem:[%s1 + $0x1448] sm:$0xff]
      %v847 = vld [vmem:[%s1 + $0x1450] sm:$0xff]
      %v848 = vld [vmem:[%s1 + $0x1458] sm:$0xff]
      %v849 = vld [vmem:[%s1 + $0x1460] sm:$0xff]
      %v850 = vld [vmem:[%s1 + $0x1468] sm:$0xff]
      %v851 = vld [vmem:[%s1 + $0x1470] sm:$0xff]
      %v852 = vld [vmem:[%s1 + $0x1478] sm:$0xff]
      %v853 = vld [vmem:[%s1 + $0x1480] sm:$0xff]
      %v854 = vld [vmem:[%s1 + $0x1488] sm:$0xff]
      %v855 = vld [vmem:[%s1 + $0x1490] sm:$0xff]
      %v856 = vld [vmem:[%s1 + $0x1498] sm:$0xff]
      %v857 = vld [vmem:[%s1 + $0x14a0] sm:$0xff]
      %v858 = vld [vmem:[%s1 + $0x14a8] sm:$0xff]
      %v859 = vld [vmem:[%s1 + $0x14b0] sm:$0xff]
      %v860 = vld [vmem:[%s1 + $0x14b8] sm:$0xff]
      %v861 = vld [vmem:[%s1 + $0x14c0] sm:$0xff]
      %v862 = vld [vmem:[%s1 + $0x14c8] sm:$0xff]
      %v863 = vld [vmem:[%s1 + $0x14d0] sm:$0xff]
      %v864 = vld [vmem:[%s1 + $0x14d8] sm:$0xff]
      %v865 = vld [vmem:[%s1 + $0x14e0] sm:$0xff]
      %v866 = vld [vmem:[%s1 + $0x14e8] sm:$0xff]
      %v867 = vld [vmem:[%s1 + $0x14f0] sm:$0xff]
      %v868 = vld [vmem:[%s1 + $0x14f8] sm:$0xff]
      %v869 = vld [vmem:[%s1 + $0x1500] sm:$0xff]
      %v870 = vld [vmem:[%s1 + $0x1508] sm:$0xff]
      %v871 = vld [vmem:[%s1 + $0x1510] sm:$0xff]
      %v872 = vld [vmem:[%s1 + $0x1518] sm:$0xff]
      %v873 = vld [vmem:[%s1 + $0x1520] sm:$0xff]
      %v874 = vld [vmem:[%s1 + $0x1528] sm:$0xff]
      %v875 = vld [vmem:[%s1 + $0x1530] sm:$0xff]
      %v876 = vld [vmem:[%s1 + $0x1538] sm:$0xff]
      %v877 = vld [vmem:[%s1 + $0x1540] sm:$0xff]
      %v878 = vld [vmem:[%s1 + $0x1548] sm:$0xff]
      %v879 = vld [vmem:[%s1 + $0x1550] sm:$0xff]
      %v880 = vld [vmem:[%s1 + $0x1558] sm:$0xff]
      %v881 = vld [vmem:[%s1 + $0x1560] sm:$0xff]
      %v882 = vld [vmem:[%s1 + $0x1568] sm:$0xff]
      %v883 = vld [vmem:[%s1 + $0x1570] sm:$0xff]
      %v884 = vld [vmem:[%s1 + $0x1578] sm:$0xff]
      %v885 = vld [vmem:[%s1 + $0x1580] sm:$0xff]
      %v886 = vld [vmem:[%s1 + $0x1588] sm:$0xff]
      %v887 = vld [vmem:[%s1 + $0x1590] sm:$0xff]
      %v888 = vld [vmem:[%s1 + $0x1598] sm:$0xff]
      %v889 = vld [vmem:[%s1 + $0x15a0] sm:$0xff]
      %v890 = vld [vmem:[%s1 + $0x15a8] sm:$0xff]
      %v891 = vld [vmem:[%s1 + $0x15b0] sm:$0xff]
      %v892 = vld [vmem:[%s1 + $0x15b8] sm:$0xff]
      %v893 = vld [vmem:[%s1 + $0x15c0] sm:$0xff]
      %v894 = vld [vmem:[%s1 + $0x15c8] sm:$0xff]
      %v895 = vld [vmem:[%s1 + $0x15d0] sm:$0xff]
      %v896 = vld [vmem:[%s1 + $0x15d8] sm:$0xff]
      %v897 = vld [vmem:[%s1 + $0x15e0] sm:$0xff]
      %v898 = vld [vmem:[%s1 + $0x15e8] sm:$0xff]
      %v899 = vld [vmem:[%s1 + $0x15f0] sm:$0xff]
      %v900 = vld [vmem:[%s1 + $0x15f8] sm:$0xff]
      %v901 = vld [vmem:[%s1 + $0x1600] sm:$0xff]
      %v902 = vld [vmem:[%s1 + $0x1608] sm:$0xff]
      %v903 = vld [vmem:[%s1 + $0x1610] sm:$0xff]
      %v904 = vld [vmem:[%s1 + $0x1618] sm:$0xff]
      %v905 = vld [vmem:[%s1 + $0x1620] sm:$0xff]
      %v906 = vld [vmem:[%s1 + $0x1628] sm:$0xff]
      %v907 = vld [vmem:[%s1 + $0x1630] sm:$0xff]
      %v908 = vld [vmem:[%s1 + $0x1638] sm:$0xff]
      %v909 = vld [vmem:[%s1 + $0x1640] sm:$0xff]
      %v910 = vld [vmem:[%s1 + $0x1648] sm:$0xff]
      %v911 = vld [vmem:[%s1 + $0x1650] sm:$0xff]
      %v912 = vld [vmem:[%s1 + $0x1658] sm:$0xff]
      %v913 = vld [vmem:[%s1 + $0x1660] sm:$0xff]
      %v914 = vld [vmem:[%s1 + $0x1668] sm:$0xff]
      %v915 = vld [vmem:[%s1 + $0x1670] sm:$0xff]
      %v916 = vld [vmem:[%s1 + $0x1678] sm:$0xff]
      %v917 = vld [vmem:[%s1 + $0x1680] sm:$0xff]
      %v918 = vld [vmem:[%s1 + $0x1688] sm:$0xff]
      %v919 = vld [vmem:[%s1 + $0x1690] sm:$0xff]
      %v920 = vld [vmem:[%s1 + $0x1698] sm:$0xff]
      %v921 = vld [vmem:[%s1 + $0x16a0] sm:$0xff]
      %v922 = vld [vmem:[%s1 + $0x16a8] sm:$0xff]
      %v923 = vld [vmem:[%s1 + $0x16b0] sm:$0xff]
      %v924 = vld [vmem:[%s1 + $0x16b8] sm:$0xff]
      %v925 = vld [vmem:[%s1 + $0x16c0] sm:$0xff]
      %v926 = vld [vmem:[%s1 + $0x16c8] sm:$0xff]
      %v927 = vld [vmem:[%s1 + $0x16d0] sm:$0xff]
      %v928 = vld [vmem:[%s1 + $0x16d8] sm:$0xff]
      %v929 = vld [vmem:[%s1 + $0x16e0] sm:$0xff]
      %v930 = vld [vmem:[%s1 + $0x16e8] sm:$0xff]
      %v931 = vld [vmem:[%s1 + $0x16f0] sm:$0xff]
      %v932 = vld [vmem:[%s1 + $0x16f8] sm:$0xff]
      %v933 = vld [vmem:[%s1 + $0x1700] sm:$0xff]
      %v934 = vld [vmem:[%s1 + $0x1708] sm:$0xff]
      %v935 = vld [vmem:[%s1 + $0x1710] sm:$0xff]
      %v936 = vld [vmem:[%s1 + $0x1718] sm:$0xff]
      %v937 = vld [vmem:[%s1 + $0x1720] sm:$0xff]
      %v938 = vld [vmem:[%s1 + $0x1728] sm:$0xff]
      %v939 = vld [vmem:[%s1 + $0x1730] sm:$0xff]
      %v940 = vld [vmem:[%s1 + $0x1738] sm:$0xff]
      %v941 = vld [vmem:[%s1 + $0x1740] sm:$0xff]
      %v942 = vld [vmem:[%s1 + $0x1748] sm:$0xff]
      %v943 = vld [vmem:[%s1 + $0x1750] sm:$0xff]
      %v944 = vld [vmem:[%s1 + $0x1758] sm:$0xff]
      %v945 = vld [vmem:[%s1 + $0x1760] sm:$0xff]
      %v946 = vld [vmem:[%s1 + $0x1768] sm:$0xff]
      %v947 = vld [vmem:[%s1 + $0x1770] sm:$0xff]
      %v948 = vld [vmem:[%s1 + $0x1778] sm:$0xff]
      %v949 = vld [vmem:[%s1 + $0x1780] sm:$0xff]
      %v950 = vld [vmem:[%s1 + $0x1788] sm:$0xff]
      %v951 = vld [vmem:[%s1 + $0x1790] sm:$0xff]
      %v952 = vld [vmem:[%s1 + $0x1798] sm:$0xff]
      %v953 = vld [vmem:[%s1 + $0x17a0] sm:$0xff]
      %v954 = vld [vmem:[%s1 + $0x17a8] sm:$0xff]
      %v955 = vld [vmem:[%s1 + $0x17b0] sm:$0xff]
      %v956 = vld [vmem:[%s1 + $0x17b8] sm:$0xff]
      %v957 = vld [vmem:[%s1 + $0x17c0] sm:$0xff]
      %v958 = vld [vmem:[%s1 + $0x17c8] sm:$0xff]
      %v959 = vld [vmem:[%s1 + $0x17d0] sm:$0xff]
      %v960 = vld [vmem:[%s1 + $0x17d8] sm:$0xff]
      %v961 = vld [vmem:[%s1 + $0x17e0] sm:$0xff]
      %v962 = vld [vmem:[%s1 + $0x17e8] sm:$0xff]
      %v963 = vld [vmem:[%s1 + $0x17f0] sm:$0xff]
      %v964 = vld [vmem:[%s1 + $0x17f8] sm:$0xff]
      %v965 = vld [vmem:[%s1 + $0x1800] sm:$0xff]
      %v966 = vld [vmem:[%s1 + $0x1808] sm:$0xff]
      %v967 = vld [vmem:[%s1 + $0x1810] sm:$0xff]
      %v968 = vld [vmem:[%s1 + $0x1818] sm:$0xff]
      %v969 = vld [vmem:[%s1 + $0x1820] sm:$0xff]
      %v970 = vld [vmem:[%s1 + $0x1828] sm:$0xff]
      %v971 = vld [vmem:[%s1 + $0x1830] sm:$0xff]
      %v972 = vld [vmem:[%s1 + $0x1838] sm:$0xff]
      %v973 = vld [vmem:[%s1 + $0x1840] sm:$0xff]
      %v974 = vld [vmem:[%s1 + $0x1848] sm:$0xff]
      %v975 = vld [vmem:[%s1 + $0x1850] sm:$0xff]
      %v976 = vld [vmem:[%s1 + $0x1858] sm:$0xff]
      %v977 = vld [vmem:[%s1 + $0x1860] sm:$0xff]
      %v978 = vld [vmem:[%s1 + $0x1868] sm:$0xff]
      %v979 = vld [vmem:[%s1 + $0x1870] sm:$0xff]
      %v980 = vld [vmem:[%s1 + $0x1878] sm:$0xff]
      %v981 = vld [vmem:[%s1 + $0x1880] sm:$0xff]
      %v982 = vld [vmem:[%s1 + $0x1888] sm:$0xff]
      %v983 = vld [vmem:[%s1 + $0x1890] sm:$0xff]
      %v984 = vld [vmem:[%s1 + $0x1898] sm:$0xff]
      %v985 = vld [vmem:[%s1 + $0x18a0] sm:$0xff]
      %v986 = vld [vmem:[%s1 + $0x18a8] sm:$0xff]
      %v987 = vld [vmem:[%s1 + $0x18b0] sm:$0xff]
      %v988 = vld [vmem:[%s1 + $0x18b8] sm:$0xff]
      %v989 = vld [vmem:[%s1 + $0x18c0] sm:$0xff]
      %v990 = vld [vmem:[%s1 + $0x18c8] sm:$0xff]
      %v991 = vld [vmem:[%s1 + $0x18d0] sm:$0xff]
      %v992 = vld [vmem:[%s1 + $0x18d8] sm:$0xff]
      %v993 = vld [vmem:[%s1 + $0x18e0] sm:$0xff]
      %v994 = vld [vmem:[%s1 + $0x18e8] sm:$0xff]
      %v995 = vld [vmem:[%s1 + $0x18f0] sm:$0xff]
      %v996 = vld [vmem:[%s1 + $0x18f8] sm:$0xff]
      %v997 = vld [vmem:[%s1 + $0x1900] sm:$0xff]
      %v998 = vld [vmem:[%s1 + $0x1908] sm:$0xff]
      %v999 = vld [vmem:[%s1 + $0x1910] sm:$0xff]
      %v1000 = vld [vmem:[%s1 + $0x1918] sm:$0xff]
      %v1001 = vld [vmem:[%s1 + $0x1920] sm:$0xff]
      %v1002 = vld [vmem:[%s1 + $0x1928] sm:$0xff]
      %v1003 = vld [vmem:[%s1 + $0x1930] sm:$0xff]
      %v1004 = vld [vmem:[%s1 + $0x1938] sm:$0xff]
      %v1005 = vld [vmem:[%s1 + $0x1940] sm:$0xff]
      %v1006 = vld [vmem:[%s1 + $0x1948] sm:$0xff]
      %v1007 = vld [vmem:[%s1 + $0x1950] sm:$0xff]
      %v1008 = vld [vmem:[%s1 + $0x1958] sm:$0xff]
      %v1009 = vld [vmem:[%s1 + $0x1960] sm:$0xff]
      %v1010 = vld [vmem:[%s1 + $0x1968] sm:$0xff]
      %v1011 = vld [vmem:[%s1 + $0x1970] sm:$0xff]
      %v1012 = vld [vmem:[%s1 + $0x1978] sm:$0xff]
      %v1013 = vld [vmem:[%s1 + $0x1980] sm:$0xff]
      %v1014 = vld [vmem:[%s1 + $0x1988] sm:$0xff]
      %v1015 = vld [vmem:[%s1 + $0x1990] sm:$0xff]
      %v1016 = vld [vmem:[%s1 + $0x1998] sm:$0xff]
      %v1017 = vld [vmem:[%s1 + $0x19a0] sm:$0xff]
      %v1018 = vld [vmem:[%s1 + $0x19a8] sm:$0xff]
      %v1019 = vld [vmem:[%s1 + $0x19b0] sm:$0xff]
      %v1020 = vld [vmem:[%s1 + $0x19b8] sm:$0xff]
      %v1021 = vld [vmem:[%s1 + $0x19c0] sm:$0xff]
      %v1022 = vld [vmem:[%s1 + $0x19c8] sm:$0xff]
      %v1023 = vld [vmem:[%s1 + $0x19d0] sm:$0xff]
      %v1024 = vld [vmem:[%s1 + $0x19d8] sm:$0xff]
      %v1025 = vld [vmem:[%s1 + $0x19e0] sm:$0xff]
      %v1026 = vld [vmem:[%s1 + $0x19e8] sm:$0xff]
      %v1027 = vld [vmem:[%s1 + $0x19f0] sm:$0xff]
      %v1028 = vld [vmem:[%s1 + $0x19f8] sm:$0xff]
      %v1029 = vld [vmem:[%s1 + $0x1a00] sm:$0xff]
      %v1030 = vld [vmem:[%s1 + $0x1a08] sm:$0xff]
      %v1031 = vld [vmem:[%s1 + $0x1a10] sm:$0xff]
      %v1032 = vld [vmem:[%s1 + $0x1a18] sm:$0xff]
      %v1033 = vld [vmem:[%s1 + $0x1a20] sm:$0xff]
      %v1034 = vld [vmem:[%s1 + $0x1a28] sm:$0xff]
      %v1035 = vld [vmem:[%s1 + $0x1a30] sm:$0xff]
      %v1036 = vld [vmem:[%s1 + $0x1a38] sm:$0xff]
      %v1037 = vld [vmem:[%s1 + $0x1a40] sm:$0xff]
      %v1038 = vld [vmem:[%s1 + $0x1a48] sm:$0xff]
      %v1039 = vld [vmem:[%s1 + $0x1a50] sm:$0xff]
      %v1040 = vld [vmem:[%s1 + $0x1a58] sm:$0xff]
      %v1041 = vld [vmem:[%s1 + $0x1a60] sm:$0xff]
      %v1042 = vld [vmem:[%s1 + $0x1a68] sm:$0xff]
      %v1043 = vld [vmem:[%s1 + $0x1a70] sm:$0xff]
      %v1044 = vld [vmem:[%s1 + $0x1a78] sm:$0xff]
      %v1045 = vld [vmem:[%s1 + $0x1a80] sm:$0xff]
      %v1046 = vld [vmem:[%s1 + $0x1a88] sm:$0xff]
      %v1047 = vld [vmem:[%s1 + $0x1a90] sm:$0xff]
      %v1048 = vld [vmem:[%s1 + $0x1a98] sm:$0xff]
      %v1049 = vld [vmem:[%s1 + $0x1aa0] sm:$0xff]
      %v1050 = vld [vmem:[%s1 + $0x1aa8] sm:$0xff]
      %v1051 = vld [vmem:[%s1 + $0x1ab0] sm:$0xff]
      %v1052 = vld [vmem:[%s1 + $0x1ab8] sm:$0xff]
      %v1053 = vld [vmem:[%s1 + $0x1ac0] sm:$0xff]
      %v1054 = vld [vmem:[%s1 + $0x1ac8] sm:$0xff]
      %v1055 = vld [vmem:[%s1 + $0x1ad0] sm:$0xff]
      %v1056 = vld [vmem:[%s1 + $0x1ad8] sm:$0xff]
      %v1057 = vld [vmem:[%s1 + $0x1ae0] sm:$0xff]
      %v1058 = vld [vmem:[%s1 + $0x1ae8] sm:$0xff]
      %v1059 = vld [vmem:[%s1 + $0x1af0] sm:$0xff]
      %v1060 = vld [vmem:[%s1 + $0x1af8] sm:$0xff]
      %v1061 = vld [vmem:[%s1 + $0x1b00] sm:$0xff]
      %v1062 = vld [vmem:[%s1 + $0x1b08] sm:$0xff]
      %v1063 = vld [vmem:[%s1 + $0x1b10] sm:$0xff]
      %v1064 = vld [vmem:[%s1 + $0x1b18] sm:$0xff]
      %v1065 = vld [vmem:[%s1 + $0x1b20] sm:$0xff]
      %v1066 = vld [vmem:[%s1 + $0x1b28] sm:$0xff]
      %v1067 = vld [vmem:[%s1 + $0x1b30] sm:$0xff]
      %v1068 = vld [vmem:[%s1 + $0x1b38] sm:$0xff]
      %v1069 = vld [vmem:[%s1 + $0x1b40] sm:$0xff]
      %v1070 = vld [vmem:[%s1 + $0x1b48] sm:$0xff]
      %v1071 = vld [vmem:[%s1 + $0x1b50] sm:$0xff]
      %v1072 = vld [vmem:[%s1 + $0x1b58] sm:$0xff]
      %v1073 = vld [vmem:[%s1 + $0x1b60] sm:$0xff]
      %v1074 = vld [vmem:[%s1 + $0x1b68] sm:$0xff]
      %v1075 = vld [vmem:[%s1 + $0x1b70] sm:$0xff]
      %v1076 = vld [vmem:[%s1 + $0x1b78] sm:$0xff]
      %v1077 = vld [vmem:[%s1 + $0x1b80] sm:$0xff]
      %v1078 = vld [vmem:[%s1 + $0x1b88] sm:$0xff]
      %v1079 = vld [vmem:[%s1 + $0x1b90] sm:$0xff]
      %v1080 = vld [vmem:[%s1 + $0x1b98] sm:$0xff]
      %v1081 = vld [vmem:[%s1 + $0x1ba0] sm:$0xff]
      %v1082 = vld [vmem:[%s1 + $0x1ba8] sm:$0xff]
      %v1083 = vld [vmem:[%s1 + $0x1bb0] sm:$0xff]
      %v1084 = vld [vmem:[%s1 + $0x1bb8] sm:$0xff]
      %v1085 = vld [vmem:[%s1 + $0x1bc0] sm:$0xff]
      %v1086 = vld [vmem:[%s1 + $0x1bc8] sm:$0xff]
      %v1087 = vld [vmem:[%s1 + $0x1bd0] sm:$0xff]
      %v1088 = vld [vmem:[%s1 + $0x1bd8] sm:$0xff]
      %v1089 = vld [vmem:[%s1 + $0x1be0] sm:$0xff]
      %v1090 = vld [vmem:[%s1 + $0x1be8] sm:$0xff]
      %v1091 = vld [vmem:[%s1 + $0x1bf0] sm:$0xff]
      %v1092 = vld [vmem:[%s1 + $0x1bf8] sm:$0xff]
      %v1093 = vld [vmem:[%s1 + $0x1c00] sm:$0xff]
      %v1094 = vld [vmem:[%s1 + $0x1c08] sm:$0xff]
      %v1095 = vld [vmem:[%s1 + $0x1c10] sm:$0xff]
      %v1096 = vld [vmem:[%s1 + $0x1c18] sm:$0xff]
      %v1097 = vld [vmem:[%s1 + $0x1c20] sm:$0xff]
      %v1098 = vld [vmem:[%s1 + $0x1c28] sm:$0xff]
      %v1099 = vld [vmem:[%s1 + $0x1c30] sm:$0xff]
      %v1100 = vld [vmem:[%s1 + $0x1c38] sm:$0xff]
      %v1101 = vld [vmem:[%s1 + $0x1c40] sm:$0xff]
      %v1102 = vld [vmem:[%s1 + $0x1c48] sm:$0xff]
      %v1103 = vld [vmem:[%s1 + $0x1c50] sm:$0xff]
      %v1104 = vld [vmem:[%s1 + $0x1c58] sm:$0xff]
      %v1105 = vld [vmem:[%s1 + $0x1c60] sm:$0xff]
      %v1106 = vld [vmem:[%s1 + $0x1c68] sm:$0xff]
      %v1107 = vld [vmem:[%s1 + $0x1c70] sm:$0xff]
      %v1108 = vld [vmem:[%s1 + $0x1c78] sm:$0xff]
      %v1109 = vld [vmem:[%s1 + $0x1c80] sm:$0xff]
      %v1110 = vld [vmem:[%s1 + $0x1c88] sm:$0xff]
      %v1111 = vld [vmem:[%s1 + $0x1c90] sm:$0xff]
      %v1112 = vld [vmem:[%s1 + $0x1c98] sm:$0xff]
      %v1113 = vld [vmem:[%s1 + $0x1ca0] sm:$0xff]
      %v1114 = vld [vmem:[%s1 + $0x1ca8] sm:$0xff]
      %v1115 = vld [vmem:[%s1 + $0x1cb0] sm:$0xff]
      %v1116 = vld [vmem:[%s1 + $0x1cb8] sm:$0xff]
      %v1117 = vld [vmem:[%s1 + $0x1cc0] sm:$0xff]
      %v1118 = vld [vmem:[%s1 + $0x1cc8] sm:$0xff]
      %v1119 = vld [vmem:[%s1 + $0x1cd0] sm:$0xff]
      %v1120 = vld [vmem:[%s1 + $0x1cd8] sm:$0xff]
      %v1121 = vld [vmem:[%s1 + $0x1ce0] sm:$0xff]
      %v1122 = vld [vmem:[%s1 + $0x1ce8] sm:$0xff]
      %v1123 = vld [vmem:[%s1 + $0x1cf0] sm:$0xff]
      %v1124 = vld [vmem:[%s1 + $0x1cf8] sm:$0xff]
      %v1125 = vld [vmem:[%s1 + $0x1d00] sm:$0xff]
      %v1126 = vld [vmem:[%s1 + $0x1d08] sm:$0xff]
      %v1127 = vld [vmem:[%s1 + $0x1d10] sm:$0xff]
      %v1128 = vld [vmem:[%s1 + $0x1d18] sm:$0xff]
      %v1129 = vld [vmem:[%s1 + $0x1d20] sm:$0xff]
      %v1130 = vld [vmem:[%s1 + $0x1d28] sm:$0xff]
      %v1131 = vld [vmem:[%s1 + $0x1d30] sm:$0xff]
      %v1132 = vld [vmem:[%s1 + $0x1d38] sm:$0xff]
      %v1133 = vld [vmem:[%s1 + $0x1d40] sm:$0xff]
      %v1134 = vld [vmem:[%s1 + $0x1d48] sm:$0xff]
      %v1135 = vld [vmem:[%s1 + $0x1d50] sm:$0xff]
      %v1136 = vld [vmem:[%s1 + $0x1d58] sm:$0xff]
      %v1137 = vld [vmem:[%s1 + $0x1d60] sm:$0xff]
      %v1138 = vld [vmem:[%s1 + $0x1d68] sm:$0xff]
      %v1139 = vld [vmem:[%s1 + $0x1d70] sm:$0xff]
      %v1140 = vld [vmem:[%s1 + $0x1d78] sm:$0xff]
      %v1141 = vld [vmem:[%s1 + $0x1d80] sm:$0xff]
      %v1142 = vld [vmem:[%s1 + $0x1d88] sm:$0xff]
      %v1143 = vld [vmem:[%s1 + $0x1d90] sm:$0xff]
      %v1144 = vld [vmem:[%s1 + $0x1d98] sm:$0xff]
      %v1145 = vld [vmem:[%s1 + $0x1da0] sm:$0xff]
      %v1146 = vld [vmem:[%s1 + $0x1da8] sm:$0xff]
      %v1147 = vld [vmem:[%s1 + $0x1db0] sm:$0xff]
      %v1148 = vld [vmem:[%s1 + $0x1db8] sm:$0xff]
      %v1149 = vld [vmem:[%s1 + $0x1dc0] sm:$0xff]
      %v1150 = vld [vmem:[%s1 + $0x1dc8] sm:$0xff]
      %v1151 = vld [vmem:[%s1 + $0x1dd0] sm:$0xff]
      %v1152 = vld [vmem:[%s1 + $0x1dd8] sm:$0xff]
      %v1153 = vld [vmem:[%s1 + $0x1de0] sm:$0xff]
      %v1154 = vld [vmem:[%s1 + $0x1de8] sm:$0xff]
      %v1155 = vld [vmem:[%s1 + $0x1df0] sm:$0xff]
      %v1156 = vld [vmem:[%s1 + $0x1df8] sm:$0xff]
      %v1157 = vld [vmem:[%s1 + $0x1e00] sm:$0xff]
      %v1158 = vld [vmem:[%s1 + $0x1e08] sm:$0xff]
      %v1159 = vld [vmem:[%s1 + $0x1e10] sm:$0xff]
      %v1160 = vld [vmem:[%s1 + $0x1e18] sm:$0xff]
      %v1161 = vld [vmem:[%s1 + $0x1e20] sm:$0xff]
      %v1162 = vld [vmem:[%s1 + $0x1e28] sm:$0xff]
      %v1163 = vld [vmem:[%s1 + $0x1e30] sm:$0xff]
      %v1164 = vld [vmem:[%s1 + $0x1e38] sm:$0xff]
      %v1165 = vld [vmem:[%s1 + $0x1e40] sm:$0xff]
      %v1166 = vld [vmem:[%s1 + $0x1e48] sm:$0xff]
      %v1167 = vld [vmem:[%s1 + $0x1e50] sm:$0xff]
      %v1168 = vld [vmem:[%s1 + $0x1e58] sm:$0xff]
      %v1169 = vld [vmem:[%s1 + $0x1e60] sm:$0xff]
      %v1170 = vld [vmem:[%s1 + $0x1e68] sm:$0xff]
      %v1171 = vld [vmem:[%s1 + $0x1e70] sm:$0xff]
      %v1172 = vld [vmem:[%s1 + $0x1e78] sm:$0xff]
      %v1173 = vld [vmem:[%s1 + $0x1e80] sm:$0xff]
      %v1174 = vld [vmem:[%s1 + $0x1e88] sm:$0xff]
      %v1175 = vld [vmem:[%s1 + $0x1e90] sm:$0xff]
      %v1176 = vld [vmem:[%s1 + $0x1e98] sm:$0xff]
      %v1177 = vld [vmem:[%s1 + $0x1ea0] sm:$0xff]
      %v1178 = vld [vmem:[%s1 + $0x1ea8] sm:$0xff]
      %v1179 = vld [vmem:[%s1 + $0x1eb0] sm:$0xff]
      %v1180 = vld [vmem:[%s1 + $0x1eb8] sm:$0xff]
      %v1181 = vld [vmem:[%s1 + $0x1ec0] sm:$0xff]
      %v1182 = vld [vmem:[%s1 + $0x1ec8] sm:$0xff]
      %v1183 = vld [vmem:[%s1 + $0x1ed0] sm:$0xff]
      %v1184 = vld [vmem:[%s1 + $0x1ed8] sm:$0xff]
      %v1185 = vld [vmem:[%s1 + $0x1ee0] sm:$0xff]
      %v1186 = vld [vmem:[%s1 + $0x1ee8] sm:$0xff]
      %v1187 = vld [vmem:[%s1 + $0x1ef0] sm:$0xff]
      %v1188 = vld [vmem:[%s1 + $0x1ef8] sm:$0xff]
      %v1189 = vld [vmem:[%s1 + $0x1f00] sm:$0xff]
      %v1190 = vld [vmem:[%s1 + $0x1f08] sm:$0xff]
      %v1191 = vld [vmem:[%s1 + $0x1f10] sm:$0xff]
      %v1192 = vld [vmem:[%s1 + $0x1f18] sm:$0xff]
      %v1193 = vld [vmem:[%s1 + $0x1f20] sm:$0xff]
      %v1194 = vld [vmem:[%s1 + $0x1f28] sm:$0xff]
      %v1195 = vld [vmem:[%s1 + $0x1f30] sm:$0xff]
      %v1196 = vld [vmem:[%s1 + $0x1f38] sm:$0xff]
      %v1197 = vld [vmem:[%s1 + $0x1f40] sm:$0xff]
      %v1198 = vld [vmem:[%s1 + $0x1f48] sm:$0xff]
      %v1199 = vld [vmem:[%s1 + $0x1f50] sm:$0xff]
      %v1200 = vld [vmem:[%s1 + $0x1f58] sm:$0xff]
      %v1201 = vld [vmem:[%s1 + $0x1f60] sm:$0xff]
      %v1202 = vld [vmem:[%s1 + $0x1f68] sm:$0xff]
      %v1203 = vld [vmem:[%s1 + $0x1f70] sm:$0xff]
      %v1204 = vld [vmem:[%s1 + $0x1f78] sm:$0xff]
      %v1205 = vld [vmem:[%s1 + $0x1f80] sm:$0xff]
      %v1206 = vld [vmem:[%s1 + $0x1f88] sm:$0xff]
      %v1207 = vld [vmem:[%s1 + $0x1f90] sm:$0xff]
      %v1208 = vld [vmem:[%s1 + $0x1f98] sm:$0xff]
      %v1209 = vld [vmem:[%s1 + $0x1fa0] sm:$0xff]
      %v1210 = vld [vmem:[%s1 + $0x1fa8] sm:$0xff]
      %v1211 = vld [vmem:[%s1 + $0x1fb0] sm:$0xff]
      %v1212 = vld [vmem:[%s1 + $0x1fb8] sm:$0xff]
      %v1213 = vld [vmem:[%s1 + $0x1fc0] sm:$0xff]
      %v1214 = vld [vmem:[%s1 + $0x1fc8] sm:$0xff]
      %v1215 = vld [vmem:[%s1 + $0x1fd0] sm:$0xff]
      %v1216 = vld [vmem:[%s1 + $0x1fd8] sm:$0xff]
      %v1217 = vld [vmem:[%s1 + $0x1fe0] sm:$0xff]
      %v1218 = vld [vmem:[%s1 + $0x1fe8] sm:$0xff]
      %v1219 = vld [vmem:[%s1 + $0x1ff0] sm:$0xff]
      %v1220 = vld [vmem:[%s1 + $0x1ff8] sm:$0xff]
      %v1221 = vld [vmem:[%s1 + $0x2000] sm:$0xff]
      %v1222 = vld [vmem:[%s1 + $0x2008] sm:$0xff]
      %v1223 = vld [vmem:[%s1 + $0x2010] sm:$0xff]
      %v1224 = vld [vmem:[%s1 + $0x2018] sm:$0xff]
      %v1225 = vld [vmem:[%s1 + $0x2020] sm:$0xff]
      %v1226 = vld [vmem:[%s1 + $0x2028] sm:$0xff]
      %v1227 = vld [vmem:[%s1 + $0x2030] sm:$0xff]
      %v1228 = vld [vmem:[%s1 + $0x2038] sm:$0xff]
      %v1229 = vld [vmem:[%s1 + $0x2040] sm:$0xff]
      %v1230 = vld [vmem:[%s1 + $0x2048] sm:$0xff]
      %v1231 = vld [vmem:[%s1 + $0x2050] sm:$0xff]
      %v1232 = vld [vmem:[%s1 + $0x2058] sm:$0xff]
      %v1233 = vld [vmem:[%s1 + $0x2060] sm:$0xff]
      %v1234 = vld [vmem:[%s1 + $0x2068] sm:$0xff]
      %v1235 = vld [vmem:[%s1 + $0x2070] sm:$0xff]
      %v1236 = vld [vmem:[%s1 + $0x2078] sm:$0xff]
      %v1237 = vld [vmem:[%s1 + $0x2080] sm:$0xff]
      %v1238 = vld [vmem:[%s1 + $0x2088] sm:$0xff]
      %v1239 = vld [vmem:[%s1 + $0x2090] sm:$0xff]
      %v1240 = vld [vmem:[%s1 + $0x2098] sm:$0xff]
      %v1241 = vld [vmem:[%s1 + $0x20a0] sm:$0xff]
      %v1242 = vld [vmem:[%s1 + $0x20a8] sm:$0xff]
      %v1243 = vld [vmem:[%s1 + $0x20b0] sm:$0xff]
      %v1244 = vld [vmem:[%s1 + $0x20b8] sm:$0xff]
      %v1245 = vld [vmem:[%s1 + $0x20c0] sm:$0xff]
      %v1246 = vld [vmem:[%s1 + $0x20c8] sm:$0xff]
      %v1247 = vld [vmem:[%s1 + $0x20d0] sm:$0xff]
      %v1248 = vld [vmem:[%s1 + $0x20d8] sm:$0xff]
      %v1249 = vld [vmem:[%s1 + $0x20e0] sm:$0xff]
      %v1250 = vld [vmem:[%s1 + $0x20e8] sm:$0xff]
      %v1251 = vld [vmem:[%s1 + $0x20f0] sm:$0xff]
      %v1252 = vld [vmem:[%s1 + $0x20f8] sm:$0xff]
      %v1253 = vld [vmem:[%s1 + $0x2100] sm:$0xff]
      %v1254 = vld [vmem:[%s1 + $0x2108] sm:$0xff]
      %v1255 = vld [vmem:[%s1 + $0x2110] sm:$0xff]
      %v1256 = vld [vmem:[%s1 + $0x2118] sm:$0xff]
      %v1257 = vld [vmem:[%s1 + $0x2120] sm:$0xff]
      %v1258 = vld [vmem:[%s1 + $0x2128] sm:$0xff]
      %v1259 = vld [vmem:[%s1 + $0x2130] sm:$0xff]
      %v1260 = vld [vmem:[%s1 + $0x2138] sm:$0xff]
      %v1261 = vld [vmem:[%s1 + $0x2140] sm:$0xff]
      %v1262 = vld [vmem:[%s1 + $0x2148] sm:$0xff]
      %v1263 = vld [vmem:[%s1 + $0x2150] sm:$0xff]
      %v1264 = vld [vmem:[%s1 + $0x2158] sm:$0xff]
      %v1265 = vld [vmem:[%s1 + $0x2160] sm:$0xff]
      %v1266 = vld [vmem:[%s1 + $0x2168] sm:$0xff]
      %v1267 = vld [vmem:[%s1 + $0x2170] sm:$0xff]
      %v1268 = vld [vmem:[%s1 + $0x2178] sm:$0xff]
      %v1269 = vld [vmem:[%s1 + $0x2180] sm:$0xff]
      %v1270 = vld [vmem:[%s1 + $0x2188] sm:$0xff]
      %v1271 = vld [vmem:[%s1 + $0x2190] sm:$0xff]
      %v1272 = vld [vmem:[%s1 + $0x2198] sm:$0xff]
      %v1273 = vld [vmem:[%s1 + $0x21a0] sm:$0xff]
      %v1274 = vld [vmem:[%s1 + $0x21a8] sm:$0xff]
      %v1275 = vld [vmem:[%s1 + $0x21b0] sm:$0xff]
      %v1276 = vld [vmem:[%s1 + $0x21b8] sm:$0xff]
      %v1277 = vld [vmem:[%s1 + $0x21c0] sm:$0xff]
      %v1278 = vld [vmem:[%s1 + $0x21c8] sm:$0xff]
      %v1279 = vld [vmem:[%s1 + $0x21d0] sm:$0xff]
      %v1280 = vld [vmem:[%s1 + $0x21d8] sm:$0xff]
      %v1281 = vld [vmem:[%s1 + $0x21e0] sm:$0xff]
      %v1282 = vld [vmem:[%s1 + $0x21e8] sm:$0xff]
      %v1283 = vld [vmem:[%s1 + $0x21f0] sm:$0xff]
      %v1284 = vld [vmem:[%s1 + $0x21f8] sm:$0xff]
      %v1285 = vld [vmem:[%s1 + $0x2200] sm:$0xff]
      %v1286 = vld [vmem:[%s1 + $0x2208] sm:$0xff]
      %v1287 = vld [vmem:[%s1 + $0x2210] sm:$0xff]
      %v1288 = vld [vmem:[%s1 + $0x2218] sm:$0xff]
      %v1289 = vld [vmem:[%s1 + $0x2220] sm:$0xff]
      %v1290 = vld [vmem:[%s1 + $0x2228] sm:$0xff]
      %v1291 = vld [vmem:[%s1 + $0x2230] sm:$0xff]
      %v1292 = vld [vmem:[%s1 + $0x2238] sm:$0xff]
      %v1293 = vld [vmem:[%s1 + $0x2240] sm:$0xff]
      %v1294 = vld [vmem:[%s1 + $0x2248] sm:$0xff]
      %v1295 = vld [vmem:[%s1 + $0x2250] sm:$0xff]
      %v1296 = vld [vmem:[%s1 + $0x2258] sm:$0xff]
      %v1297 = vld [vmem:[%s1 + $0x2260] sm:$0xff]
      %v1298 = vld [vmem:[%s1 + $0x2268] sm:$0xff]
      %v1299 = vld [vmem:[%s1 + $0x2270] sm:$0xff]
      %v1300 = vld [vmem:[%s1 + $0x2278] sm:$0xff]
      %v1301 = vld [vmem:[%s1 + $0x2280] sm:$0xff]
      %v1302 = vld [vmem:[%s1 + $0x2288] sm:$0xff]
      %v1303 = vld [vmem:[%s1 + $0x2290] sm:$0xff]
      %v1304 = vld [vmem:[%s1 + $0x2298] sm:$0xff]
      %v1305 = vld [vmem:[%s1 + $0x22a0] sm:$0xff]
      %v1306 = vld [vmem:[%s1 + $0x22a8] sm:$0xff]
      %v1307 = vld [vmem:[%s1 + $0x22b0] sm:$0xff]
      %v1308 = vld [vmem:[%s1 + $0x22b8] sm:$0xff]
      %v1309 = vld [vmem:[%s1 + $0x22c0] sm:$0xff]
      %v1310 = vld [vmem:[%s1 + $0x22c8] sm:$0xff]
      %v1311 = vld [vmem:[%s1 + $0x22d0] sm:$0xff]
      %v1312 = vld [vmem:[%s1 + $0x22d8] sm:$0xff]
      %v1313 = vld [vmem:[%s1 + $0x22e0] sm:$0xff]
      %v1314 = vld [vmem:[%s1 + $0x22e8] sm:$0xff]
      %v1315 = vld [vmem:[%s1 + $0x22f0] sm:$0xff]
      %v1316 = vld [vmem:[%s1 + $0x22f8] sm:$0xff]
      %v1317 = vld [vmem:[%s1 + $0x2300] sm:$0xff]
      %v1318 = vld [vmem:[%s1 + $0x2308] sm:$0xff]
      %v1319 = vld [vmem:[%s1 + $0x2310] sm:$0xff]
      %v1320 = vld [vmem:[%s1 + $0x2318] sm:$0xff]
      %v1321 = vld [vmem:[%s1 + $0x2320] sm:$0xff]
      %v1322 = vld [vmem:[%s1 + $0x2328] sm:$0xff]
      %v1323 = vld [vmem:[%s1 + $0x2330] sm:$0xff]
      %v1324 = vld [vmem:[%s1 + $0x2338] sm:$0xff]
      %v1325 = vld [vmem:[%s1 + $0x2340] sm:$0xff]
      %v1326 = vld [vmem:[%s1 + $0x2348] sm:$0xff]
      %v1327 = vld [vmem:[%s1 + $0x2350] sm:$0xff]
      %v1328 = vld [vmem:[%s1 + $0x2358] sm:$0xff]
      %v1329 = vld [vmem:[%s1 + $0x2360] sm:$0xff]
      %v1330 = vld [vmem:[%s1 + $0x2368] sm:$0xff]
      %v1331 = vld [vmem:[%s1 + $0x2370] sm:$0xff]
      %v1332 = vld [vmem:[%s1 + $0x2378] sm:$0xff]
      %v1333 = vld [vmem:[%s1 + $0x2380] sm:$0xff]
      %v1334 = vld [vmem:[%s1 + $0x2388] sm:$0xff]
      %v1335 = vld [vmem:[%s1 + $0x2390] sm:$0xff]
      %v1336 = vld [vmem:[%s1 + $0x2398] sm:$0xff]
      %v1337 = vld [vmem:[%s1 + $0x23a0] sm:$0xff]
      %v1338 = vld [vmem:[%s1 + $0x23a8] sm:$0xff]
      %v1339 = vld [vmem:[%s1 + $0x23b0] sm:$0xff]
      %v1340 = vld [vmem:[%s1 + $0x23b8] sm:$0xff]
      %v1341 = vld [vmem:[%s1 + $0x23c0] sm:$0xff]
      %v1342 = vld [vmem:[%s1 + $0x23c8] sm:$0xff]
      %v1343 = vld [vmem:[%s1 + $0x23d0] sm:$0xff]
      %v1344 = vld [vmem:[%s1 + $0x23d8] sm:$0xff]
      %v1345 = vld [vmem:[%s1 + $0x23e0] sm:$0xff]
      %v1346 = vld [vmem:[%s1 + $0x23e8] sm:$0xff]
      %v1347 = vld [vmem:[%s1 + $0x23f0] sm:$0xff]
      %v1348 = vld [vmem:[%s1 + $0x23f8] sm:$0xff]
      %v1349 = vld [vmem:[%s1 + $0x2400] sm:$0xff]
      %v1350 = vld [vmem:[%s1 + $0x2408] sm:$0xff]
      %v1351 = vld [vmem:[%s1 + $0x2410] sm:$0xff]
      %v1352 = vld [vmem:[%s1 + $0x2418] sm:$0xff]
      %v1353 = vld [vmem:[%s1 + $0x2420] sm:$0xff]
      %v1354 = vld [vmem:[%s1 + $0x2428] sm:$0xff]
      %v1355 = vld [vmem:[%s1 + $0x2430] sm:$0xff]
      %v1356 = vld [vmem:[%s1 + $0x2438] sm:$0xff]
      %v1357 = vld [vmem:[%s1 + $0x2440] sm:$0xff]
      %v1358 = vld [vmem:[%s1 + $0x2448] sm:$0xff]
      %v1359 = vld [vmem:[%s1 + $0x2450] sm:$0xff]
      %v1360 = vld [vmem:[%s1 + $0x2458] sm:$0xff]
      %v1361 = vld [vmem:[%s1 + $0x2460] sm:$0xff]
      %v1362 = vld [vmem:[%s1 + $0x2468] sm:$0xff]
      %v1363 = vld [vmem:[%s1 + $0x2470] sm:$0xff]
      %v1364 = vld [vmem:[%s1 + $0x2478] sm:$0xff]
      %v1365 = vld [vmem:[%s1 + $0x2480] sm:$0xff]
      %v1366 = vld [vmem:[%s1 + $0x2488] sm:$0xff]
      %v1367 = vld [vmem:[%s1 + $0x2490] sm:$0xff]
      %v1368 = vld [vmem:[%s1 + $0x2498] sm:$0xff]
      %v1369 = vld [vmem:[%s1 + $0x24a0] sm:$0xff]
      %v1370 = vld [vmem:[%s1 + $0x24a8] sm:$0xff]
      %v1371 = vld [vmem:[%s1 + $0x24b0] sm:$0xff]
      %v1372 = vld [vmem:[%s1 + $0x24b8] sm:$0xff]
      %v1373 = vld [vmem:[%s1 + $0x24c0] sm:$0xff]
      %v1374 = vld [vmem:[%s1 + $0x24c8] sm:$0xff]
      %v1375 = vld [vmem:[%s1 + $0x24d0] sm:$0xff]
      %v1376 = vld [vmem:[%s1 + $0x24d8] sm:$0xff]
      %v1377 = vld [vmem:[%s1 + $0x24e0] sm:$0xff]
      %v1378 = vld [vmem:[%s1 + $0x24e8] sm:$0xff]
      %v1379 = vld [vmem:[%s1 + $0x24f0] sm:$0xff]
      %v1380 = vld [vmem:[%s1 + $0x24f8] sm:$0xff]
      %v1381 = vld [vmem:[%s1 + $0x2500] sm:$0xff]
      %v1382 = vld [vmem:[%s1 + $0x2508] sm:$0xff]
      %v1383 = vld [vmem:[%s1 + $0x2510] sm:$0xff]
      %v1384 = vld [vmem:[%s1 + $0x2518] sm:$0xff]
      %v1385 = vld [vmem:[%s1 + $0x2520] sm:$0xff]
      %v1386 = vld [vmem:[%s1 + $0x2528] sm:$0xff]
      %v1387 = vld [vmem:[%s1 + $0x2530] sm:$0xff]
      %v1388 = vld [vmem:[%s1 + $0x2538] sm:$0xff]
      %v1389 = vld [vmem:[%s1 + $0x2540] sm:$0xff]
      %v1390 = vld [vmem:[%s1 + $0x2548] sm:$0xff]
      %v1391 = vld [vmem:[%s1 + $0x2550] sm:$0xff]
      %v1392 = vld [vmem:[%s1 + $0x2558] sm:$0xff]
      %v1393 = vld [vmem:[%s1 + $0x2560] sm:$0xff]
      %v1394 = vld [vmem:[%s1 + $0x2568] sm:$0xff]
      %v1395 = vld [vmem:[%s1 + $0x2570] sm:$0xff]
      %v1396 = vld [vmem:[%s1 + $0x2578] sm:$0xff]
      %v1397 = vld [vmem:[%s1 + $0x2580] sm:$0xff]
      %v1398 = vld [vmem:[%s1 + $0x2588] sm:$0xff]
      %v1399 = vld [vmem:[%s1 + $0x2590] sm:$0xff]
      %v1400 = vld [vmem:[%s1 + $0x2598] sm:$0xff]
      %v1401 = vld [vmem:[%s1 + $0x25a0] sm:$0xff]
      %v1402 = vld [vmem:[%s1 + $0x25a8] sm:$0xff]
      %v1403 = vld [vmem:[%s1 + $0x25b0] sm:$0xff]
      %v1404 = vld [vmem:[%s1 + $0x25b8] sm:$0xff]
      %v1405 = vld [vmem:[%s1 + $0x25c0] sm:$0xff]
      %v1406 = vld [vmem:[%s1 + $0x25c8] sm:$0xff]
      %v1407 = vld [vmem:[%s1 + $0x25d0] sm:$0xff]
      %v1408 = vld [vmem:[%s1 + $0x25d8] sm:$0xff]
      %v1409 = vld [vmem:[%s1 + $0x25e0] sm:$0xff]
      %v1410 = vld [vmem:[%s1 + $0x25e8] sm:$0xff]
      %v1411 = vld [vmem:[%s1 + $0x25f0] sm:$0xff]
      %v1412 = vld [vmem:[%s1 + $0x25f8] sm:$0xff]
      %v1413 = vld [vmem:[%s1 + $0x2600] sm:$0xff]
      %v1414 = vld [vmem:[%s1 + $0x2608] sm:$0xff]
      %v1415 = vld [vmem:[%s1 + $0x2610] sm:$0xff]
      %v1416 = vld [vmem:[%s1 + $0x2618] sm:$0xff]
      %v1417 = vld [vmem:[%s1 + $0x2620] sm:$0xff]
      %v1418 = vld [vmem:[%s1 + $0x2628] sm:$0xff]
      %v1419 = vld [vmem:[%s1 + $0x2630] sm:$0xff]
      %v1420 = vld [vmem:[%s1 + $0x2638] sm:$0xff]
      %v1421 = vld [vmem:[%s1 + $0x2640] sm:$0xff]
      %v1422 = vld [vmem:[%s1 + $0x2648] sm:$0xff]
      %v1423 = vld [vmem:[%s1 + $0x2650] sm:$0xff]
      %v1424 = vld [vmem:[%s1 + $0x2658] sm:$0xff]
      %v1425 = vld [vmem:[%s1 + $0x2660] sm:$0xff]
      %v1426 = vld [vmem:[%s1 + $0x2668] sm:$0xff]
      %v1427 = vld [vmem:[%s1 + $0x2670] sm:$0xff]
      %v1428 = vld [vmem:[%s1 + $0x2678] sm:$0xff]
      %v1429 = vld [vmem:[%s1 + $0x2680] sm:$0xff]
      %v1430 = vld [vmem:[%s1 + $0x2688] sm:$0xff]
      %v1431 = vld [vmem:[%s1 + $0x2690] sm:$0xff]
      %v1432 = vld [vmem:[%s1 + $0x2698] sm:$0xff]
      %v1433 = vld [vmem:[%s1 + $0x26a0] sm:$0xff]
      %v1434 = vld [vmem:[%s1 + $0x26a8] sm:$0xff]
      %v1435 = vld [vmem:[%s1 + $0x26b0] sm:$0xff]
      %v1436 = vld [vmem:[%s1 + $0x26b8] sm:$0xff]
      %v1437 = vld [vmem:[%s1 + $0x26c0] sm:$0xff]
      %v1438 = vld [vmem:[%s1 + $0x26c8] sm:$0xff]
      %v1439 = vld [vmem:[%s1 + $0x26d0] sm:$0xff]
      %v1440 = vld [vmem:[%s1 + $0x26d8] sm:$0xff]
      %v1441 = vld [vmem:[%s1 + $0x26e0] sm:$0xff]
      %v1442 = vld [vmem:[%s1 + $0x26e8] sm:$0xff]
      %v1443 = vld [vmem:[%s1 + $0x26f0] sm:$0xff]
      %v1444 = vld [vmem:[%s1 + $0x26f8] sm:$0xff]
      %v1445 = vld [vmem:[%s1 + $0x2700] sm:$0xff]
      %v1446 = vld [vmem:[%s1 + $0x2708] sm:$0xff]
      %v1447 = vld [vmem:[%s1 + $0x2710] sm:$0xff]
      %v1448 = vld [vmem:[%s1 + $0x2718] sm:$0xff]
      %v1449 = vld [vmem:[%s1 + $0x2720] sm:$0xff]
      %v1450 = vld [vmem:[%s1 + $0x2728] sm:$0xff]
      %v1451 = vld [vmem:[%s1 + $0x2730] sm:$0xff]
      %v1452 = vld [vmem:[%s1 + $0x2738] sm:$0xff]
      %v1453 = vld [vmem:[%s1 + $0x2740] sm:$0xff]
      %v1454 = vld [vmem:[%s1 + $0x2748] sm:$0xff]
      %v1455 = vld [vmem:[%s1 + $0x2750] sm:$0xff]
      %v1456 = vld [vmem:[%s1 + $0x2758] sm:$0xff]
      %v1457 = vld [vmem:[%s1 + $0x2760] sm:$0xff]
      %v1458 = vld [vmem:[%s1 + $0x2768] sm:$0xff]
      %v1459 = vld [vmem:[%s1 + $0x2770] sm:$0xff]
      %v1460 = vld [vmem:[%s1 + $0x2778] sm:$0xff]
      %v1461 = vld [vmem:[%s1 + $0x2780] sm:$0xff]
      %v1462 = vld [vmem:[%s1 + $0x2788] sm:$0xff]
      %v1463 = vld [vmem:[%s1 + $0x2790] sm:$0xff]
      %v1464 = vld [vmem:[%s1 + $0x2798] sm:$0xff]
      %v1465 = vld [vmem:[%s1 + $0x27a0] sm:$0xff]
      %v1466 = vld [vmem:[%s1 + $0x27a8] sm:$0xff]
      %v1467 = vld [vmem:[%s1 + $0x27b0] sm:$0xff]
      %v1468 = vld [vmem:[%s1 + $0x27b8] sm:$0xff]
      %v1469 = vld [vmem:[%s1 + $0x27c0] sm:$0xff]
      %v1470 = vld [vmem:[%s1 + $0x27c8] sm:$0xff]
      %v1471 = vld [vmem:[%s1 + $0x27d0] sm:$0xff]
      %v1472 = vld [vmem:[%s1 + $0x27d8] sm:$0xff]
      %v1473 = vld [vmem:[%s1 + $0x27e0] sm:$0xff]
      %v1474 = vld [vmem:[%s1 + $0x27e8] sm:$0xff]
      %v1475 = vld [vmem:[%s1 + $0x27f0] sm:$0xff]
      %v1476 = vld [vmem:[%s1 + $0x27f8] sm:$0xff]
      %v1477 = vld [vmem:[%s1 + $0x2800] sm:$0xff]
      %v1478 = vld [vmem:[%s1 + $0x2808] sm:$0xff]
      %v1479 = vld [vmem:[%s1 + $0x2810] sm:$0xff]
      %v1480 = vld [vmem:[%s1 + $0x2818] sm:$0xff]
      %v1481 = vld [vmem:[%s1 + $0x2820] sm:$0xff]
      %v1482 = vld [vmem:[%s1 + $0x2828] sm:$0xff]
      %v1483 = vld [vmem:[%s1 + $0x2830] sm:$0xff]
      %v1484 = vld [vmem:[%s1 + $0x2838] sm:$0xff]
      %v1485 = vld [vmem:[%s1 + $0x2840] sm:$0xff]
      %v1486 = vld [vmem:[%s1 + $0x2848] sm:$0xff]
      %v1487 = vld [vmem:[%s1 + $0x2850] sm:$0xff]
      %v1488 = vld [vmem:[%s1 + $0x2858] sm:$0xff]
      %v1489 = vld [vmem:[%s1 + $0x2860] sm:$0xff]
      %v1490 = vld [vmem:[%s1 + $0x2868] sm:$0xff]
      %v1491 = vld [vmem:[%s1 + $0x2870] sm:$0xff]
      %v1492 = vld [vmem:[%s1 + $0x2878] sm:$0xff]
      %v1493 = vld [vmem:[%s1 + $0x2880] sm:$0xff]
      %v1494 = vld [vmem:[%s1 + $0x2888] sm:$0xff]
      %v1495 = vld [vmem:[%s1 + $0x2890] sm:$0xff]
      %v1496 = vld [vmem:[%s1 + $0x2898] sm:$0xff]
      %v1497 = vld [vmem:[%s1 + $0x28a0] sm:$0xff]
      %v1498 = vld [vmem:[%s1 + $0x28a8] sm:$0xff]
      %v1499 = vld [vmem:[%s1 + $0x28b0] sm:$0xff]
      %v1500 = vld [vmem:[%s1 + $0x28b8] sm:$0xff]
      %v1501 = vld [vmem:[%s1 + $0x28c0] sm:$0xff]
      %v1502 = vld [vmem:[%s1 + $0x28c8] sm:$0xff]
      %v1503 = vld [vmem:[%s1 + $0x28d0] sm:$0xff]
      %v1504 = vld [vmem:[%s1 + $0x28d8] sm:$0xff]
      %v1505 = vld [vmem:[%s1 + $0x28e0] sm:$0xff]
      %v1506 = vld [vmem:[%s1 + $0x28e8] sm:$0xff]
      %v1507 = vld [vmem:[%s1 + $0x28f0] sm:$0xff]
      %v1508 = vld [vmem:[%s1 + $0x28f8] sm:$0xff]
      %v1509 = vld [vmem:[%s1 + $0x2900] sm:$0xff]
      %v1510 = vld [vmem:[%s1 + $0x2908] sm:$0xff]
      %v1511 = vld [vmem:[%s1 + $0x2910] sm:$0xff]
      %v1512 = vld [vmem:[%s1 + $0x2918] sm:$0xff]
      %v1513 = vld [vmem:[%s1 + $0x2920] sm:$0xff]
      %v1514 = vld [vmem:[%s1 + $0x2928] sm:$0xff]
      %v1515 = vld [vmem:[%s1 + $0x2930] sm:$0xff]
      %v1516 = vld [vmem:[%s1 + $0x2938] sm:$0xff]
      %v1517 = vld [vmem:[%s1 + $0x2940] sm:$0xff]
      %v1518 = vld [vmem:[%s1 + $0x2948] sm:$0xff]
      %v1519 = vld [vmem:[%s1 + $0x2950] sm:$0xff]
      %v1520 = vld [vmem:[%s1 + $0x2958] sm:$0xff]
      %v1521 = vld [vmem:[%s1 + $0x2960] sm:$0xff]
      %v1522 = vld [vmem:[%s1 + $0x2968] sm:$0xff]
      %v1523 = vld [vmem:[%s1 + $0x2970] sm:$0xff]
      %v1524 = vld [vmem:[%s1 + $0x2978] sm:$0xff]
      %v1525 = vld [vmem:[%s1 + $0x2980] sm:$0xff]
      %v1526 = vld [vmem:[%s1 + $0x2988] sm:$0xff]
      %v1527 = vld [vmem:[%s1 + $0x2990] sm:$0xff]
      %v1528 = vld [vmem:[%s1 + $0x2998] sm:$0xff]
      %v1529 = vld [vmem:[%s1 + $0x29a0] sm:$0xff]
      %v1530 = vld [vmem:[%s1 + $0x29a8] sm:$0xff]
      %v1531 = vld [vmem:[%s1 + $0x29b0] sm:$0xff]
      %v1532 = vld [vmem:[%s1 + $0x29b8] sm:$0xff]
      %v1533 = vld [vmem:[%s1 + $0x29c0] sm:$0xff]
      %v1534 = vld [vmem:[%s1 + $0x29c8] sm:$0xff]
      %v1535 = vld [vmem:[%s1 + $0x29d0] sm:$0xff]
      %v1536 = vld [vmem:[%s1 + $0x29d8] sm:$0xff]
      %v1537 = vld [vmem:[%s1 + $0x29e0] sm:$0xff]
      %v1538 = vld [vmem:[%s1 + $0x29e8] sm:$0xff]
      %v1539 = vld [vmem:[%s1 + $0x29f0] sm:$0xff]
      %v1540 = vld [vmem:[%s1 + $0x29f8] sm:$0xff]
      %v1541 = vld [vmem:[%s1 + $0x2a00] sm:$0xff]
      %v1542 = vld [vmem:[%s1 + $0x2a08] sm:$0xff]
      %v1543 = vld [vmem:[%s1 + $0x2a10] sm:$0xff]
      %v1544 = vld [vmem:[%s1 + $0x2a18] sm:$0xff]
      %v1545 = vld [vmem:[%s1 + $0x2a20] sm:$0xff]
      %v1546 = vld [vmem:[%s1 + $0x2a28] sm:$0xff]
      %v1547 = vld [vmem:[%s1 + $0x2a30] sm:$0xff]
      %v1548 = vld [vmem:[%s1 + $0x2a38] sm:$0xff]
      %v1549 = vld [vmem:[%s1 + $0x2a40] sm:$0xff]
      %v1550 = vld [vmem:[%s1 + $0x2a48] sm:$0xff]
      %v1551 = vld [vmem:[%s1 + $0x2a50] sm:$0xff]
      %v1552 = vld [vmem:[%s1 + $0x2a58] sm:$0xff]
      %v1553 = vld [vmem:[%s1 + $0x2a60] sm:$0xff]
      %v1554 = vld [vmem:[%s1 + $0x2a68] sm:$0xff]
      %v1555 = vld [vmem:[%s1 + $0x2a70] sm:$0xff]
      %v1556 = vld [vmem:[%s1 + $0x2a78] sm:$0xff]
      %v1557 = vld [vmem:[%s1 + $0x2a80] sm:$0xff]
      %v1558 = vld [vmem:[%s1 + $0x2a88] sm:$0xff]
      %v1559 = vld [vmem:[%s1 + $0x2a90] sm:$0xff]
      %v1560 = vld [vmem:[%s1 + $0x2a98] sm:$0xff]
      %v1561 = vld [vmem:[%s1 + $0x2aa0] sm:$0xff]
      %v1562 = vld [vmem:[%s1 + $0x2aa8] sm:$0xff]
      %v1563 = vld [vmem:[%s1 + $0x2ab0] sm:$0xff]
      %v1564 = vld [vmem:[%s1 + $0x2ab8] sm:$0xff]
      %v1565 = vld [vmem:[%s1 + $0x2ac0] sm:$0xff]
      %v1566 = vld [vmem:[%s1 + $0x2ac8] sm:$0xff]
      %v1567 = vld [vmem:[%s1 + $0x2ad0] sm:$0xff]
      %v1568 = vld [vmem:[%s1 + $0x2ad8] sm:$0xff]
      %v1569 = vld [vmem:[%s1 + $0x2ae0] sm:$0xff]
      %v1570 = vld [vmem:[%s1 + $0x2ae8] sm:$0xff]
      %v1571 = vld [vmem:[%s1 + $0x2af0] sm:$0xff]
      %v1572 = vld [vmem:[%s1 + $0x2af8] sm:$0xff]
      %v1573 = vld [vmem:[%s1 + $0x2b00] sm:$0xff]
      %v1574 = vld [vmem:[%s1 + $0x2b08] sm:$0xff]
      %v1575 = vld [vmem:[%s1 + $0x2b10] sm:$0xff]
      %v1576 = vld [vmem:[%s1 + $0x2b18] sm:$0xff]
      %v1577 = vld [vmem:[%s1 + $0x2b20] sm:$0xff]
      %v1578 = vld [vmem:[%s1 + $0x2b28] sm:$0xff]
      %v1579 = vld [vmem:[%s1 + $0x2b30] sm:$0xff]
      %v1580 = vld [vmem:[%s1 + $0x2b38] sm:$0xff]
      %v1581 = vld [vmem:[%s1 + $0x2b40] sm:$0xff]
      %v1582 = vld [vmem:[%s1 + $0x2b48] sm:$0xff]
      %v1583 = vld [vmem:[%s1 + $0x2b50] sm:$0xff]
      %v1584 = vld [vmem:[%s1 + $0x2b58] sm:$0xff]
      %v1585 = vld [vmem:[%s1 + $0x2b60] sm:$0xff]
      %v1586 = vld [vmem:[%s1 + $0x2b68] sm:$0xff]
      %v1587 = vld [vmem:[%s1 + $0x2b70] sm:$0xff]
      %v1588 = vld [vmem:[%s1 + $0x2b78] sm:$0xff]
      %v1589 = vld [vmem:[%s1 + $0x2b80] sm:$0xff]
      %v1590 = vld [vmem:[%s1 + $0x2b88] sm:$0xff]
      %v1591 = vld [vmem:[%s1 + $0x2b90] sm:$0xff]
      %v1592 = vld [vmem:[%s1 + $0x2b98] sm:$0xff]
      %v1593 = vld [vmem:[%s1 + $0x2ba0] sm:$0xff]
      %v1594 = vld [vmem:[%s1 + $0x2ba8] sm:$0xff]
      %v1595 = vld [vmem:[%s1 + $0x2bb0] sm:$0xff]
      %v1596 = vld [vmem:[%s1 + $0x2bb8] sm:$0xff]
      %v1597 = vld [vmem:[%s1 + $0x2bc0] sm:$0xff]
      %v1598 = vld [vmem:[%s1 + $0x2bc8] sm:$0xff]
      %v1599 = vld [vmem:[%s1 + $0x2bd0] sm:$0xff]
      %v1600 = vld [vmem:[%s1 + $0x2bd8] sm:$0xff]
      %v1601 = vld [vmem:[%s1 + $0x2be0] sm:$0xff]
      %v1602 = vld [vmem:[%s1 + $0x2be8] sm:$0xff]
      %v1603 = vld [vmem:[%s1 + $0x2bf0] sm:$0xff]
      %v1604 = vld [vmem:[%s1 + $0x2bf8] sm:$0xff]
      %v1605 = vld [vmem:[%s1 + $0x2c00] sm:$0xff]
      %v1606 = vld [vmem:[%s1 + $0x2c08] sm:$0xff]
      %v1607 = vld [vmem:[%s1 + $0x2c10] sm:$0xff]
      %v1608 = vld [vmem:[%s1 + $0x2c18] sm:$0xff]
      %v1609 = vld [vmem:[%s1 + $0x2c20] sm:$0xff]
      %v1610 = vld [vmem:[%s1 + $0x2c28] sm:$0xff]
      %v1611 = vld [vmem:[%s1 + $0x2c30] sm:$0xff]
      %v1612 = vld [vmem:[%s1 + $0x2c38] sm:$0xff]
      %v1613 = vld [vmem:[%s1 + $0x2c40] sm:$0xff]
      %v1614 = vld [vmem:[%s1 + $0x2c48] sm:$0xff]
      %v1615 = vld [vmem:[%s1 + $0x2c50] sm:$0xff]
      %v1616 = vld [vmem:[%s1 + $0x2c58] sm:$0xff]
      %v1617 = vld [vmem:[%s1 + $0x2c60] sm:$0xff]
      %v1618 = vld [vmem:[%s1 + $0x2c68] sm:$0xff]
      %v1619 = vld [vmem:[%s1 + $0x2c70] sm:$0xff]
      %v1620 = vld [vmem:[%s1 + $0x2c78] sm:$0xff]
      %v1621 = vld [vmem:[%s1 + $0x2c80] sm:$0xff]
      %v1622 = vld [vmem:[%s1 + $0x2c88] sm:$0xff]
      %v1623 = vld [vmem:[%s1 + $0x2c90] sm:$0xff]
      %v1624 = vld [vmem:[%s1 + $0x2c98] sm:$0xff]
      %v1625 = vld [vmem:[%s1 + $0x2ca0] sm:$0xff]
      %v1626 = vld [vmem:[%s1 + $0x2ca8] sm:$0xff]
      %v1627 = vld [vmem:[%s1 + $0x2cb0] sm:$0xff]
      %v1628 = vld [vmem:[%s1 + $0x2cb8] sm:$0xff]
      %v1629 = vld [vmem:[%s1 + $0x2cc0] sm:$0xff]
      %v1630 = vld [vmem:[%s1 + $0x2cc8] sm:$0xff]
      %v1631 = vld [vmem:[%s1 + $0x2cd0] sm:$0xff]
      %v1632 = vld [vmem:[%s1 + $0x2cd8] sm:$0xff]
      %v1633 = vld [vmem:[%s1 + $0x2ce0] sm:$0xff]
      %v1634 = vld [vmem:[%s1 + $0x2ce8] sm:$0xff]
      %v1635 = vld [vmem:[%s1 + $0x2cf0] sm:$0xff]
      %v1636 = vld [vmem:[%s1 + $0x2cf8] sm:$0xff]
      %v1637 = vld [vmem:[%s1 + $0x2d00] sm:$0xff]
      %v1638 = vld [vmem:[%s1 + $0x2d08] sm:$0xff]
      %v1639 = vld [vmem:[%s1 + $0x2d10] sm:$0xff]
      %v1640 = vld [vmem:[%s1 + $0x2d18] sm:$0xff]
      %v1641 = vld [vmem:[%s1 + $0x2d20] sm:$0xff]
      %v1642 = vld [vmem:[%s1 + $0x2d28] sm:$0xff]
      %v1643 = vld [vmem:[%s1 + $0x2d30] sm:$0xff]
      %v1644 = vld [vmem:[%s1 + $0x2d38] sm:$0xff]
      %v1645 = vld [vmem:[%s1 + $0x2d40] sm:$0xff]
      %v1646 = vld [vmem:[%s1 + $0x2d48] sm:$0xff]
      %v1647 = vld [vmem:[%s1 + $0x2d50] sm:$0xff]
      %v1648 = vld [vmem:[%s1 + $0x2d58] sm:$0xff]
      %v1649 = vld [vmem:[%s1 + $0x2d60] sm:$0xff]
      %v1650 = vld [vmem:[%s1 + $0x2d68] sm:$0xff]
      %v1651 = vld [vmem:[%s1 + $0x2d70] sm:$0xff]
      %v1652 = vld [vmem:[%s1 + $0x2d78] sm:$0xff]
      %v1653 = vld [vmem:[%s1 + $0x2d80] sm:$0xff]
      %v1654 = vld [vmem:[%s1 + $0x2d88] sm:$0xff]
      %v1655 = vld [vmem:[%s1 + $0x2d90] sm:$0xff]
      %v1656 = vld [vmem:[%s1 + $0x2d98] sm:$0xff]
      %v1657 = vld [vmem:[%s1 + $0x2da0] sm:$0xff]
      %v1658 = vld [vmem:[%s1 + $0x2da8] sm:$0xff]
      %v1659 = vld [vmem:[%s1 + $0x2db0] sm:$0xff]
      %v1660 = vld [vmem:[%s1 + $0x2db8] sm:$0xff]
      %v1661 = vld [vmem:[%s1 + $0x2dc0] sm:$0xff]
      %v1662 = vld [vmem:[%s1 + $0x2dc8] sm:$0xff]
      %v1663 = vld [vmem:[%s1 + $0x2dd0] sm:$0xff]
      %v1664 = vld [vmem:[%s1 + $0x2dd8] sm:$0xff]
      %v1665 = vld [vmem:[%s1 + $0x2de0] sm:$0xff]
      %v1666 = vld [vmem:[%s1 + $0x2de8] sm:$0xff]
      %v1667 = vld [vmem:[%s1 + $0x2df0] sm:$0xff]
      %v1668 = vld [vmem:[%s1 + $0x2df8] sm:$0xff]
      %v1669 = vld [vmem:[%s1 + $0x2e00] sm:$0xff]
      %v1670 = vld [vmem:[%s1 + $0x2e08] sm:$0xff]
      %v1671 = vld [vmem:[%s1 + $0x2e10] sm:$0xff]
      %v1672 = vld [vmem:[%s1 + $0x2e18] sm:$0xff]
      %v1673 = vld [vmem:[%s1 + $0x2e20] sm:$0xff]
      %v1674 = vld [vmem:[%s1 + $0x2e28] sm:$0xff]
      %v1675 = vld [vmem:[%s1 + $0x2e30] sm:$0xff]
      %v1676 = vld [vmem:[%s1 + $0x2e38] sm:$0xff]
      %v1677 = vld [vmem:[%s1 + $0x2e40] sm:$0xff]
      %v1678 = vld [vmem:[%s1 + $0x2e48] sm:$0xff]
      %v1679 = vld [vmem:[%s1 + $0x2e50] sm:$0xff]
      %v1680 = vld [vmem:[%s1 + $0x2e58] sm:$0xff]
      %v1681 = vld [vmem:[%s1 + $0x2e60] sm:$0xff]
      %v1682 = vld [vmem:[%s1 + $0x2e68] sm:$0xff]
      %v1683 = vld [vmem:[%s1 + $0x2e70] sm:$0xff]
      %v1684 = vld [vmem:[%s1 + $0x2e78] sm:$0xff]
      %v1685 = vld [vmem:[%s1 + $0x2e80] sm:$0xff]
      %v1686 = vld [vmem:[%s1 + $0x2e88] sm:$0xff]
      %v1687 = vld [vmem:[%s1 + $0x2e90] sm:$0xff]
      %v1688 = vld [vmem:[%s1 + $0x2e98] sm:$0xff]
      %v1689 = vld [vmem:[%s1 + $0x2ea0] sm:$0xff]
      %v1690 = vld [vmem:[%s1 + $0x2ea8] sm:$0xff]
      %v1691 = vld [vmem:[%s1 + $0x2eb0] sm:$0xff]
      %v1692 = vld [vmem:[%s1 + $0x2eb8] sm:$0xff]
      %v1693 = vld [vmem:[%s1 + $0x2ec0] sm:$0xff]
      %v1694 = vld [vmem:[%s1 + $0x2ec8] sm:$0xff]
      %v1695 = vld [vmem:[%s1 + $0x2ed0] sm:$0xff]
      %v1696 = vld [vmem:[%s1 + $0x2ed8] sm:$0xff]
      %v1697 = vld [vmem:[%s1 + $0x2ee0] sm:$0xff]
      %v1698 = vld [vmem:[%s1 + $0x2ee8] sm:$0xff]
      %v1699 = vld [vmem:[%s1 + $0x2ef0] sm:$0xff]
      %v1700 = vld [vmem:[%s1 + $0x2ef8] sm:$0xff]
      %v1701 = vld [vmem:[%s1 + $0x2f00] sm:$0xff]
      %v1702 = vld [vmem:[%s1 + $0x2f08] sm:$0xff]
      %v1703 = vld [vmem:[%s1 + $0x2f10] sm:$0xff]
      %v1704 = vld [vmem:[%s1 + $0x2f18] sm:$0xff]
      %v1705 = vld [vmem:[%s1 + $0x2f20] sm:$0xff]
      %v1706 = vld [vmem:[%s1 + $0x2f28] sm:$0xff]
      %v1707 = vld [vmem:[%s1 + $0x2f30] sm:$0xff]
      %v1708 = vld [vmem:[%s1 + $0x2f38] sm:$0xff]
      %v1709 = vld [vmem:[%s1 + $0x2f40] sm:$0xff]
      %v1710 = vld [vmem:[%s1 + $0x2f48] sm:$0xff]
      %v1711 = vld [vmem:[%s1 + $0x2f50] sm:$0xff]
      %v1712 = vld [vmem:[%s1 + $0x2f58] sm:$0xff]
      %v1713 = vld [vmem:[%s1 + $0x2f60] sm:$0xff]
      %v1714 = vld [vmem:[%s1 + $0x2f68] sm:$0xff]
      %v1715 = vld [vmem:[%s1 + $0x2f70] sm:$0xff]
      %v1716 = vld [vmem:[%s1 + $0x2f78] sm:$0xff]
      %v1717 = vld [vmem:[%s1 + $0x2f80] sm:$0xff]
      %v1718 = vld [vmem:[%s1 + $0x2f88] sm:$0xff]
      %v1719 = vld [vmem:[%s1 + $0x2f90] sm:$0xff]
      %v1720 = vld [vmem:[%s1 + $0x2f98] sm:$0xff]
      %v1721 = vld [vmem:[%s1 + $0x2fa0] sm:$0xff]
      %v1722 = vld [vmem:[%s1 + $0x2fa8] sm:$0xff]
      %v1723 = vld [vmem:[%s1 + $0x2fb0] sm:$0xff]
      %v1724 = vld [vmem:[%s1 + $0x2fb8] sm:$0xff]
      %v1725 = vld [vmem:[%s1 + $0x2fc0] sm:$0xff]
      %v1726 = vld [vmem:[%s1 + $0x2fc8] sm:$0xff]
      %v1727 = vld [vmem:[%s1 + $0x2fd0] sm:$0xff]
      %v1728 = vld [vmem:[%s1 + $0x2fd8] sm:$0xff]
      %v1729 = vld [vmem:[%s1 + $0x2fe0] sm:$0xff]
      %v1730 = vld [vmem:[%s1 + $0x2fe8] sm:$0xff]
      %v1731 = vld [vmem:[%s1 + $0x2ff0] sm:$0xff]
      %v1732 = vld [vmem:[%s1 + $0x2ff8] sm:$0xff]
      %v1733 = vld [vmem:[%s1 + $0x3000] sm:$0xff]
      %v1734 = vld [vmem:[%s1 + $0x3008] sm:$0xff]
      %v1735 = vld [vmem:[%s1 + $0x3010] sm:$0xff]
      %v1736 = vld [vmem:[%s1 + $0x3018] sm:$0xff]
      %v1737 = vld [vmem:[%s1 + $0x3020] sm:$0xff]
      %v1738 = vld [vmem:[%s1 + $0x3028] sm:$0xff]
      %v1739 = vld [vmem:[%s1 + $0x3030] sm:$0xff]
      %v1740 = vld [vmem:[%s1 + $0x3038] sm:$0xff]
      %v1741 = vld [vmem:[%s1 + $0x3040] sm:$0xff]
      %v1742 = vld [vmem:[%s1 + $0x3048] sm:$0xff]
      %v1743 = vld [vmem:[%s1 + $0x3050] sm:$0xff]
      %v1744 = vld [vmem:[%s1 + $0x3058] sm:$0xff]
      %v1745 = vld [vmem:[%s1 + $0x3060] sm:$0xff]
      %v1746 = vld [vmem:[%s1 + $0x3068] sm:$0xff]
      %v1747 = vld [vmem:[%s1 + $0x3070] sm:$0xff]
      %v1748 = vld [vmem:[%s1 + $0x3078] sm:$0xff]
      %v1749 = vld [vmem:[%s1 + $0x3080] sm:$0xff]
      %v1750 = vld [vmem:[%s1 + $0x3088] sm:$0xff]
      %v1751 = vld [vmem:[%s1 + $0x3090] sm:$0xff]
      %v1752 = vld [vmem:[%s1 + $0x3098] sm:$0xff]
      %v1753 = vld [vmem:[%s1 + $0x30a0] sm:$0xff]
      %v1754 = vld [vmem:[%s1 + $0x30a8] sm:$0xff]
      %v1755 = vld [vmem:[%s1 + $0x30b0] sm:$0xff]
      %v1756 = vld [vmem:[%s1 + $0x30b8] sm:$0xff]
      %v1757 = vld [vmem:[%s1 + $0x30c0] sm:$0xff]
      %v1758 = vld [vmem:[%s1 + $0x30c8] sm:$0xff]
      %v1759 = vld [vmem:[%s1 + $0x30d0] sm:$0xff]
      %v1760 = vld [vmem:[%s1 + $0x30d8] sm:$0xff]
      %v1761 = vld [vmem:[%s1 + $0x30e0] sm:$0xff]
      %v1762 = vld [vmem:[%s1 + $0x30e8] sm:$0xff]
      %v1763 = vld [vmem:[%s1 + $0x30f0] sm:$0xff]
      %v1764 = vld [vmem:[%s1 + $0x30f8] sm:$0xff]
      %v1765 = vld [vmem:[%s1 + $0x3100] sm:$0xff]
      %v1766 = vld [vmem:[%s1 + $0x3108] sm:$0xff]
      %v1767 = vld [vmem:[%s1 + $0x3110] sm:$0xff]
      %v1768 = vld [vmem:[%s1 + $0x3118] sm:$0xff]
      %v1769 = vld [vmem:[%s1 + $0x3120] sm:$0xff]
      %v1770 = vld [vmem:[%s1 + $0x3128] sm:$0xff]
      %v1771 = vld [vmem:[%s1 + $0x3130] sm:$0xff]
      %v1772 = vld [vmem:[%s1 + $0x3138] sm:$0xff]
      %v1773 = vld [vmem:[%s1 + $0x3140] sm:$0xff]
      %v1774 = vld [vmem:[%s1 + $0x3148] sm:$0xff]
      %v1775 = vld [vmem:[%s1 + $0x3150] sm:$0xff]
      %v1776 = vld [vmem:[%s1 + $0x3158] sm:$0xff]
      %v1777 = vld [vmem:[%s1 + $0x3160] sm:$0xff]
      %v1778 = vld [vmem:[%s1 + $0x3168] sm:$0xff]
      %v1779 = vld [vmem:[%s1 + $0x3170] sm:$0xff]
      %v1780 = vld [vmem:[%s1 + $0x3178] sm:$0xff]
      %v1781 = vld [vmem:[%s1 + $0x3180] sm:$0xff]
      %v1782 = vld [vmem:[%s1 + $0x3188] sm:$0xff]
      %v1783 = vld [vmem:[%s1 + $0x3190] sm:$0xff]
      %v1784 = vld [vmem:[%s1 + $0x3198] sm:$0xff]
      %v1785 = vld [vmem:[%s1 + $0x31a0] sm:$0xff]
      %v1786 = vld [vmem:[%s1 + $0x31a8] sm:$0xff]
      %v1787 = vld [vmem:[%s1 + $0x31b0] sm:$0xff]
      %v1788 = vld [vmem:[%s1 + $0x31b8] sm:$0xff]
      %v1789 = vld [vmem:[%s1 + $0x31c0] sm:$0xff]
      %v1790 = vld [vmem:[%s1 + $0x31c8] sm:$0xff]
      %v1791 = vld [vmem:[%s1 + $0x31d0] sm:$0xff]
      %v1792 = vld [vmem:[%s1 + $0x31d8] sm:$0xff]
      %v1793 = vld [vmem:[%s1 + $0x31e0] sm:$0xff]
      %v1794 = vld [vmem:[%s1 + $0x31e8] sm:$0xff]
      %v1795 = vld [vmem:[%s1 + $0x31f0] sm:$0xff]
      %v1796 = vld [vmem:[%s1 + $0x31f8] sm:$0xff]
      %v1797 = vld [vmem:[%s1 + $0x3200] sm:$0xff]
      %v1798 = vld [vmem:[%s1 + $0x3208] sm:$0xff]
      %v1799 = vld [vmem:[%s1 + $0x3210] sm:$0xff]
      %v1800 = vld [vmem:[%s1 + $0x3218] sm:$0xff]
      %v1801 = vld [vmem:[%s1 + $0x3220] sm:$0xff]
      %v1802 = vld [vmem:[%s1 + $0x3228] sm:$0xff]
      %v1803 = vld [vmem:[%s1 + $0x3230] sm:$0xff]
      %v1804 = vld [vmem:[%s1 + $0x3238] sm:$0xff]
      %v1805 = vld [vmem:[%s1 + $0x3240] sm:$0xff]
      %v1806 = vld [vmem:[%s1 + $0x3248] sm:$0xff]
      %v1807 = vld [vmem:[%s1 + $0x3250] sm:$0xff]
      %v1808 = vld [vmem:[%s1 + $0x3258] sm:$0xff]
      %v1809 = vld [vmem:[%s1 + $0x3260] sm:$0xff]
      %v1810 = vld [vmem:[%s1 + $0x3268] sm:$0xff]
      %v1811 = vld [vmem:[%s1 + $0x3270] sm:$0xff]
      %v1812 = vld [vmem:[%s1 + $0x3278] sm:$0xff]
      %v1813 = vld [vmem:[%s1 + $0x3280] sm:$0xff]
      %v1814 = vld [vmem:[%s1 + $0x3288] sm:$0xff]
      %v1815 = vld [vmem:[%s1 + $0x3290] sm:$0xff]
      %v1816 = vld [vmem:[%s1 + $0x3298] sm:$0xff]
      %v1817 = vld [vmem:[%s1 + $0x32a0] sm:$0xff]
      %v1818 = vld [vmem:[%s1 + $0x32a8] sm:$0xff]
      %v1819 = vld [vmem:[%s1 + $0x32b0] sm:$0xff]
      %v1820 = vld [vmem:[%s1 + $0x32b8] sm:$0xff]
      %v1821 = vld [vmem:[%s1 + $0x32c0] sm:$0xff]
      %v1822 = vld [vmem:[%s1 + $0x32c8] sm:$0xff]
      %v1823 = vld [vmem:[%s1 + $0x32d0] sm:$0xff]
      %v1824 = vld [vmem:[%s1 + $0x32d8] sm:$0xff]
      %v1825 = vld [vmem:[%s1 + $0x32e0] sm:$0xff]
      %v1826 = vld [vmem:[%s1 + $0x32e8] sm:$0xff]
      %v1827 = vld [vmem:[%s1 + $0x32f0] sm:$0xff]
      %v1828 = vld [vmem:[%s1 + $0x32f8] sm:$0xff]
      %v1829 = vld [vmem:[%s1 + $0x3300] sm:$0xff]
      %v1830 = vld [vmem:[%s1 + $0x3308] sm:$0xff]
      %v1831 = vld [vmem:[%s1 + $0x3310] sm:$0xff]
      %v1832 = vld [vmem:[%s1 + $0x3318] sm:$0xff]
      %v1833 = vld [vmem:[%s1 + $0x3320] sm:$0xff]
      %v1834 = vld [vmem:[%s1 + $0x3328] sm:$0xff]
      %v1835 = vld [vmem:[%s1 + $0x3330] sm:$0xff]
      %v1836 = vld [vmem:[%s1 + $0x3338] sm:$0xff]
      %v1837 = vld [vmem:[%s1 + $0x3340] sm:$0xff]
      %v1838 = vld [vmem:[%s1 + $0x3348] sm:$0xff]
      %v1839 = vld [vmem:[%s1 + $0x3350] sm:$0xff]
      %v1840 = vld [vmem:[%s1 + $0x3358] sm:$0xff]
      %v1841 = vld [vmem:[%s1 + $0x3360] sm:$0xff]
      %v1842 = vld [vmem:[%s1 + $0x3368] sm:$0xff]
      %v1843 = vld [vmem:[%s1 + $0x3370] sm:$0xff]
      %v1844 = vld [vmem:[%s1 + $0x3378] sm:$0xff]
      %v1845 = vld [vmem:[%s1 + $0x3380] sm:$0xff]
      %v1846 = vld [vmem:[%s1 + $0x3388] sm:$0xff]
      %v1847 = vld [vmem:[%s1 + $0x3390] sm:$0xff]
      %v1848 = vld [vmem:[%s1 + $0x3398] sm:$0xff]
      %v1849 = vld [vmem:[%s1 + $0x33a0] sm:$0xff]
      %v1850 = vld [vmem:[%s1 + $0x33a8] sm:$0xff]
      %v1851 = vld [vmem:[%s1 + $0x33b0] sm:$0xff]
      %v1852 = vld [vmem:[%s1 + $0x33b8] sm:$0xff]
      %v1853 = vld [vmem:[%s1 + $0x33c0] sm:$0xff]
      %v1854 = vld [vmem:[%s1 + $0x33c8] sm:$0xff]
      %v1855 = vld [vmem:[%s1 + $0x33d0] sm:$0xff]
      %v1856 = vld [vmem:[%s1 + $0x33d8] sm:$0xff]
      %v1857 = vld [vmem:[%s1 + $0x33e0] sm:$0xff]
      %v1858 = vld [vmem:[%s1 + $0x33e8] sm:$0xff]
      %v1859 = vld [vmem:[%s1 + $0x33f0] sm:$0xff]
      %v1860 = vld [vmem:[%s1 + $0x33f8] sm:$0xff]
      %v1861 = vld [vmem:[%s1 + $0x3400] sm:$0xff]
      %v1862 = vld [vmem:[%s1 + $0x3408] sm:$0xff]
      %v1863 = vld [vmem:[%s1 + $0x3410] sm:$0xff]
      %v1864 = vld [vmem:[%s1 + $0x3418] sm:$0xff]
      %v1865 = vld [vmem:[%s1 + $0x3420] sm:$0xff]
      %v1866 = vld [vmem:[%s1 + $0x3428] sm:$0xff]
      %v1867 = vld [vmem:[%s1 + $0x3430] sm:$0xff]
      %v1868 = vld [vmem:[%s1 + $0x3438] sm:$0xff]
      %v1869 = vld [vmem:[%s1 + $0x3440] sm:$0xff]
      %v1870 = vld [vmem:[%s1 + $0x3448] sm:$0xff]
      %v1871 = vld [vmem:[%s1 + $0x3450] sm:$0xff]
      %v1872 = vld [vmem:[%s1 + $0x3458] sm:$0xff]
      %v1873 = vld [vmem:[%s1 + $0x3460] sm:$0xff]
      %v1874 = vld [vmem:[%s1 + $0x3468] sm:$0xff]
      %v1875 = vld [vmem:[%s1 + $0x3470] sm:$0xff]
      %v1876 = vld [vmem:[%s1 + $0x3478] sm:$0xff]
      %v1877 = vld [vmem:[%s1 + $0x3480] sm:$0xff]
      %v1878 = vld [vmem:[%s1 + $0x3488] sm:$0xff]
      %v1879 = vld [vmem:[%s1 + $0x3490] sm:$0xff]
      %v1880 = vld [vmem:[%s1 + $0x3498] sm:$0xff]
      %v1881 = vld [vmem:[%s1 + $0x34a0] sm:$0xff]
      %v1882 = vld [vmem:[%s1 + $0x34a8] sm:$0xff]
      %v1883 = vld [vmem:[%s1 + $0x34b0] sm:$0xff]
      %v1884 = vld [vmem:[%s1 + $0x34b8] sm:$0xff]
      %v1885 = vld [vmem:[%s1 + $0x34c0] sm:$0xff]
      %v1886 = vld [vmem:[%s1 + $0x34c8] sm:$0xff]
      %v1887 = vld [vmem:[%s1 + $0x34d0] sm:$0xff]
      %v1888 = vld [vmem:[%s1 + $0x34d8] sm:$0xff]
      %v1889 = vld [vmem:[%s1 + $0x34e0] sm:$0xff]
      %v1890 = vld [vmem:[%s1 + $0x34e8] sm:$0xff]
      %vm1891 = vcmask 982016
      %v1893 = vsel %vm1891, %v196, 0
      %1895 = vmatpush.msra.mxu0 %v227
      %1896 = vmatpush.msra.mxu0 %v225
      %1897 = vmatpush.msra.mxu0 %v223
      %1898 = vmatpush.msra.mxu0 %v221
      %1899 = vmatpush.msra.mxu0 %v219
      %1900 = vmatpush.msra.mxu0 %v217
      %1901 = vmatpush.msra.mxu0 %v215
      %1902 = vmatpush.msra.mxu0 %v213
      %1903 = vmatpush.msra.mxu0 %v211
      %1904 = vmatpush.msra.mxu0 %v209
      %1905 = vmatpush.msra.mxu0 %v207
      %1906 = vmatpush.msra.mxu0 %v205
      %1907 = vmatpush.msra.mxu0 %v203
      %1908 = vmatpush.msra.mxu0 %v201
      %1909 = vmatpush.msra.mxu0 %v199
      %1910 = vmatpush.msra.mxu0 %v197
      %1911 = vmatmul.f32.gmra.mxu0 %v144
      %v1912 = vpop.f32.mrf.mxu0
      %v1913 = vadd.f32 0.0, %v1912
      %1914 = vdwg.mxu0
      %1915 = vmatpush.msra.mxu0 %v259
      %1916 = vmatpush.msra.mxu0 %v257
      %1917 = vmatpush.msra.mxu0 %v255
      %1918 = vmatpush.msra.mxu0 %v253
      %1919 = vmatpush.msra.mxu0 %v251
      %1920 = vmatpush.msra.mxu0 %v249
      %1921 = vmatpush.msra.mxu0 %v247
      %1922 = vmatpush.msra.mxu0 %v245
      %1923 = vmatpush.msra.mxu0 %v243
      %1924 = vmatpush.msra.mxu0 %v241
      %1925 = vmatpush.msra.mxu0 %v239
      %1926 = vmatpush.msra.mxu0 %v237
      %1927 = vmatpush.msra.mxu0 %v235
      %1928 = vmatpush.msra.mxu0 %v233
      %1929 = vmatpush.msra.mxu0 %v231
      %1930 = vmatpush.msra.mxu0 %v229
      %1931 = vmatmul.f32.gmra.mxu0 %v145
      %v1932 = vpop.f32.mrf.mxu0
      %v1933 = vadd.f32 %v1913, %v1932
      %1934 = vdwg.mxu0
      %1935 = vmatpush.msra.mxu0 %v291
      %1936 = vmatpush.msra.mxu0 %v289
      %1937 = vmatpush.msra.mxu0 %v287
      %1938 = vmatpush.msra.mxu0 %v285
      %1939 = vmatpush.msra.mxu0 %v283
      %1940 = vmatpush.msra.mxu0 %v281
      %1941 = vmatpush.msra.mxu0 %v279
      %1942 = vmatpush.msra.mxu0 %v277
      %1943 = vmatpush.msra.mxu0 %v275
      %1944 = vmatpush.msra.mxu0 %v273
      %1945 = vmatpush.msra.mxu0 %v271
      %1946 = vmatpush.msra.mxu0 %v269
      %1947 = vmatpush.msra.mxu0 %v267
      %1948 = vmatpush.msra.mxu0 %v265
      %1949 = vmatpush.msra.mxu0 %v263
      %1950 = vmatpush.msra.mxu0 %v261
      %1951 = vmatmul.f32.gmra.mxu0 %v146
      %v1952 = vpop.f32.mrf.mxu0
      %v1953 = vadd.f32 %v1933, %v1952
      %1954 = vdwg.mxu0
      %1955 = vmatpush.msra.mxu0 %v323
      %1956 = vmatpush.msra.mxu0 %v321
      %1957 = vmatpush.msra.mxu0 %v319
      %1958 = vmatpush.msra.mxu0 %v317
      %1959 = vmatpush.msra.mxu0 %v315
      %1960 = vmatpush.msra.mxu0 %v313
      %1961 = vmatpush.msra.mxu0 %v311
      %1962 = vmatpush.msra.mxu0 %v309
      %1963 = vmatpush.msra.mxu0 %v307
      %1964 = vmatpush.msra.mxu0 %v305
      %1965 = vmatpush.msra.mxu0 %v303
      %1966 = vmatpush.msra.mxu0 %v301
      %1967 = vmatpush.msra.mxu0 %v299
      %1968 = vmatpush.msra.mxu0 %v297
      %1969 = vmatpush.msra.mxu0 %v295
      %1970 = vmatpush.msra.mxu0 %v293
      %1971 = vmatmul.f32.gmra.mxu0 %v147
      %v1972 = vpop.f32.mrf.mxu0
      %v1973 = vadd.f32 %v1953, %v1972
      %1974 = vdwg.mxu0
      %1975 = vmatpush.msra.mxu0 %v355
      %1976 = vmatpush.msra.mxu0 %v353
      %1977 = vmatpush.msra.mxu0 %v351
      %1978 = vmatpush.msra.mxu0 %v349
      %1979 = vmatpush.msra.mxu0 %v347
      %1980 = vmatpush.msra.mxu0 %v345
      %1981 = vmatpush.msra.mxu0 %v343
      %1982 = vmatpush.msra.mxu0 %v341
      %1983 = vmatpush.msra.mxu0 %v339
      %1984 = vmatpush.msra.mxu0 %v337
      %1985 = vmatpush.msra.mxu0 %v335
      %1986 = vmatpush.msra.mxu0 %v333
      %1987 = vmatpush.msra.mxu0 %v331
      %1988 = vmatpush.msra.mxu0 %v329
      %1989 = vmatpush.msra.mxu0 %v327
      %1990 = vmatpush.msra.mxu0 %v325
      %1991 = vmatmul.f32.gmra.mxu0 %v148
      %v1992 = vpop.f32.mrf.mxu0
      %v1993 = vadd.f32 %v1973, %v1992
      %1994 = vdwg.mxu0
      %1995 = vmatpush.msra.mxu0 %v387
      %1996 = vmatpush.msra.mxu0 %v385
      %1997 = vmatpush.msra.mxu0 %v383
      %1998 = vmatpush.msra.mxu0 %v381
      %1999 = vmatpush.msra.mxu0 %v379
      %2000 = vmatpush.msra.mxu0 %v377
      %2001 = vmatpush.msra.mxu0 %v375
      %2002 = vmatpush.msra.mxu0 %v373
      %2003 = vmatpush.msra.mxu0 %v371
      %2004 = vmatpush.msra.mxu0 %v369
      %2005 = vmatpush.msra.mxu0 %v367
      %2006 = vmatpush.msra.mxu0 %v365
      %2007 = vmatpush.msra.mxu0 %v363
      %2008 = vmatpush.msra.mxu0 %v361
      %2009 = vmatpush.msra.mxu0 %v359
      %2010 = vmatpush.msra.mxu0 %v357
      %2011 = vmatmul.f32.gmra.mxu0 %v149
      %v2012 = vpop.f32.mrf.mxu0
      %v2013 = vadd.f32 %v1993, %v2012
      %2014 = vdwg.mxu0
      %2015 = vmatpush.msra.mxu0 %v419
      %2016 = vmatpush.msra.mxu0 %v417
      %2017 = vmatpush.msra.mxu0 %v415
      %2018 = vmatpush.msra.mxu0 %v413
      %2019 = vmatpush.msra.mxu0 %v411
      %2020 = vmatpush.msra.mxu0 %v409
      %2021 = vmatpush.msra.mxu0 %v407
      %2022 = vmatpush.msra.mxu0 %v405
      %2023 = vmatpush.msra.mxu0 %v403
      %2024 = vmatpush.msra.mxu0 %v401
      %2025 = vmatpush.msra.mxu0 %v399
      %2026 = vmatpush.msra.mxu0 %v397
      %2027 = vmatpush.msra.mxu0 %v395
      %2028 = vmatpush.msra.mxu0 %v393
      %2029 = vmatpush.msra.mxu0 %v391
      %2030 = vmatpush.msra.mxu0 %v389
      %2031 = vmatmul.f32.gmra.mxu0 %v150
      %v2032 = vpop.f32.mrf.mxu0
      %v2033 = vadd.f32 %v2013, %v2032
      %2034 = vdwg.mxu0
      %2035 = vmatpush.msra.mxu0 %v451
      %2036 = vmatpush.msra.mxu0 %v449
      %2037 = vmatpush.msra.mxu0 %v447
      %2038 = vmatpush.msra.mxu0 %v445
      %2039 = vmatpush.msra.mxu0 %v443
      %2040 = vmatpush.msra.mxu0 %v441
      %2041 = vmatpush.msra.mxu0 %v439
      %2042 = vmatpush.msra.mxu0 %v437
      %2043 = vmatpush.msra.mxu0 %v435
      %2044 = vmatpush.msra.mxu0 %v433
      %2045 = vmatpush.msra.mxu0 %v431
      %2046 = vmatpush.msra.mxu0 %v429
      %2047 = vmatpush.msra.mxu0 %v427
      %2048 = vmatpush.msra.mxu0 %v425
      %2049 = vmatpush.msra.mxu0 %v423
      %2050 = vmatpush.msra.mxu0 %v421
      %2051 = vmatmul.f32.gmra.mxu0 %v151
      %v2052 = vpop.f32.mrf.mxu0
      %v2053 = vadd.f32 %v2033, %v2052
      %2054 = vdwg.mxu0
      %2055 = vmatpush.msra.mxu0 %v483
      %2056 = vmatpush.msra.mxu0 %v481
      %2057 = vmatpush.msra.mxu0 %v479
      %2058 = vmatpush.msra.mxu0 %v477
      %2059 = vmatpush.msra.mxu0 %v475
      %2060 = vmatpush.msra.mxu0 %v473
      %2061 = vmatpush.msra.mxu0 %v471
      %2062 = vmatpush.msra.mxu0 %v469
      %2063 = vmatpush.msra.mxu0 %v467
      %2064 = vmatpush.msra.mxu0 %v465
      %2065 = vmatpush.msra.mxu0 %v463
      %2066 = vmatpush.msra.mxu0 %v461
      %2067 = vmatpush.msra.mxu0 %v459
      %2068 = vmatpush.msra.mxu0 %v457
      %2069 = vmatpush.msra.mxu0 %v455
      %2070 = vmatpush.msra.mxu0 %v453
      %2071 = vmatmul.f32.gmra.mxu0 %v152
      %v2072 = vpop.f32.mrf.mxu0
      %v2073 = vadd.f32 %v2053, %v2072
      %2074 = vdwg.mxu0
      %2075 = vmatpush.msra.mxu0 %v515
      %2076 = vmatpush.msra.mxu0 %v513
      %2077 = vmatpush.msra.mxu0 %v511
      %2078 = vmatpush.msra.mxu0 %v509
      %2079 = vmatpush.msra.mxu0 %v507
      %2080 = vmatpush.msra.mxu0 %v505
      %2081 = vmatpush.msra.mxu0 %v503
      %2082 = vmatpush.msra.mxu0 %v501
      %2083 = vmatpush.msra.mxu0 %v499
      %2084 = vmatpush.msra.mxu0 %v497
      %2085 = vmatpush.msra.mxu0 %v495
      %2086 = vmatpush.msra.mxu0 %v493
      %2087 = vmatpush.msra.mxu0 %v491
      %2088 = vmatpush.msra.mxu0 %v489
      %2089 = vmatpush.msra.mxu0 %v487
      %2090 = vmatpush.msra.mxu0 %v485
      %2091 = vmatmul.f32.gmra.mxu0 %v153
      %v2092 = vpop.f32.mrf.mxu0
      %v2093 = vadd.f32 %v2073, %v2092
      %2094 = vdwg.mxu0
      %2095 = vmatpush.msra.mxu0 %v547
      %2096 = vmatpush.msra.mxu0 %v545
      %2097 = vmatpush.msra.mxu0 %v543
      %2098 = vmatpush.msra.mxu0 %v541
      %2099 = vmatpush.msra.mxu0 %v539
      %2100 = vmatpush.msra.mxu0 %v537
      %2101 = vmatpush.msra.mxu0 %v535
      %2102 = vmatpush.msra.mxu0 %v533
      %2103 = vmatpush.msra.mxu0 %v531
      %2104 = vmatpush.msra.mxu0 %v529
      %2105 = vmatpush.msra.mxu0 %v527
      %2106 = vmatpush.msra.mxu0 %v525
      %2107 = vmatpush.msra.mxu0 %v523
      %2108 = vmatpush.msra.mxu0 %v521
      %2109 = vmatpush.msra.mxu0 %v519
      %2110 = vmatpush.msra.mxu0 %v517
      %2111 = vmatmul.f32.gmra.mxu0 %v154
      %v2112 = vpop.f32.mrf.mxu0
      %v2113 = vadd.f32 %v2093, %v2112
      %2114 = vdwg.mxu0
      %2115 = vmatpush.msra.mxu0 %v579
      %2116 = vmatpush.msra.mxu0 %v577
      %2117 = vmatpush.msra.mxu0 %v575
      %2118 = vmatpush.msra.mxu0 %v573
      %2119 = vmatpush.msra.mxu0 %v571
      %2120 = vmatpush.msra.mxu0 %v569
      %2121 = vmatpush.msra.mxu0 %v567
      %2122 = vmatpush.msra.mxu0 %v565
      %2123 = vmatpush.msra.mxu0 %v563
      %2124 = vmatpush.msra.mxu0 %v561
      %2125 = vmatpush.msra.mxu0 %v559
      %2126 = vmatpush.msra.mxu0 %v557
      %2127 = vmatpush.msra.mxu0 %v555
      %2128 = vmatpush.msra.mxu0 %v553
      %2129 = vmatpush.msra.mxu0 %v551
      %2130 = vmatpush.msra.mxu0 %v549
      %2131 = vmatmul.f32.gmra.mxu0 %v155
      %v2132 = vpop.f32.mrf.mxu0
      %v2133 = vadd.f32 %v2113, %v2132
      %2134 = vdwg.mxu0
      %2135 = vmatpush.msra.mxu0 %v611
      %2136 = vmatpush.msra.mxu0 %v609
      %2137 = vmatpush.msra.mxu0 %v607
      %2138 = vmatpush.msra.mxu0 %v605
      %2139 = vmatpush.msra.mxu0 %v603
      %2140 = vmatpush.msra.mxu0 %v601
      %2141 = vmatpush.msra.mxu0 %v599
      %2142 = vmatpush.msra.mxu0 %v597
      %2143 = vmatpush.msra.mxu0 %v595
      %2144 = vmatpush.msra.mxu0 %v593
      %2145 = vmatpush.msra.mxu0 %v591
      %2146 = vmatpush.msra.mxu0 %v589
      %2147 = vmatpush.msra.mxu0 %v587
      %2148 = vmatpush.msra.mxu0 %v585
      %2149 = vmatpush.msra.mxu0 %v583
      %2150 = vmatpush.msra.mxu0 %v581
      %2151 = vmatmul.f32.gmra.mxu0 %v156
      %v2152 = vpop.f32.mrf.mxu0
      %v2153 = vadd.f32 %v2133, %v2152
      %2154 = vdwg.mxu0
      %2155 = vmatpush.msra.mxu0 %v643
      %2156 = vmatpush.msra.mxu0 %v641
      %2157 = vmatpush.msra.mxu0 %v639
      %2158 = vmatpush.msra.mxu0 %v637
      %2159 = vmatpush.msra.mxu0 %v635
      %2160 = vmatpush.msra.mxu0 %v633
      %2161 = vmatpush.msra.mxu0 %v631
      %2162 = vmatpush.msra.mxu0 %v629
      %2163 = vmatpush.msra.mxu0 %v627
      %2164 = vmatpush.msra.mxu0 %v625
      %2165 = vmatpush.msra.mxu0 %v623
      %2166 = vmatpush.msra.mxu0 %v621
      %2167 = vmatpush.msra.mxu0 %v619
      %2168 = vmatpush.msra.mxu0 %v617
      %2169 = vmatpush.msra.mxu0 %v615
      %2170 = vmatpush.msra.mxu0 %v613
      %2171 = vmatmul.f32.gmra.mxu0 %v157
      %v2172 = vpop.f32.mrf.mxu0
      %v2173 = vadd.f32 %v2153, %v2172
      %2174 = vdwg.mxu0
      %2175 = vmatpush.msra.mxu0 %v675
      %2176 = vmatpush.msra.mxu0 %v673
      %2177 = vmatpush.msra.mxu0 %v671
      %2178 = vmatpush.msra.mxu0 %v669
      %2179 = vmatpush.msra.mxu0 %v667
      %2180 = vmatpush.msra.mxu0 %v665
      %2181 = vmatpush.msra.mxu0 %v663
      %2182 = vmatpush.msra.mxu0 %v661
      %2183 = vmatpush.msra.mxu0 %v659
      %2184 = vmatpush.msra.mxu0 %v657
      %2185 = vmatpush.msra.mxu0 %v655
      %2186 = vmatpush.msra.mxu0 %v653
      %2187 = vmatpush.msra.mxu0 %v651
      %2188 = vmatpush.msra.mxu0 %v649
      %2189 = vmatpush.msra.mxu0 %v647
      %2190 = vmatpush.msra.mxu0 %v645
      %2191 = vmatmul.f32.gmra.mxu0 %v158
      %v2192 = vpop.f32.mrf.mxu0
      %v2193 = vadd.f32 %v2173, %v2192
      %2194 = vdwg.mxu0
      %2195 = vmatpush.msra.mxu0 %v707
      %2196 = vmatpush.msra.mxu0 %v705
      %2197 = vmatpush.msra.mxu0 %v703
      %2198 = vmatpush.msra.mxu0 %v701
      %2199 = vmatpush.msra.mxu0 %v699
      %2200 = vmatpush.msra.mxu0 %v697
      %2201 = vmatpush.msra.mxu0 %v695
      %2202 = vmatpush.msra.mxu0 %v693
      %2203 = vmatpush.msra.mxu0 %v691
      %2204 = vmatpush.msra.mxu0 %v689
      %2205 = vmatpush.msra.mxu0 %v687
      %2206 = vmatpush.msra.mxu0 %v685
      %2207 = vmatpush.msra.mxu0 %v683
      %2208 = vmatpush.msra.mxu0 %v681
      %2209 = vmatpush.msra.mxu0 %v679
      %2210 = vmatpush.msra.mxu0 %v677
      %2211 = vmatmul.f32.gmra.mxu0 %v159
      %v2212 = vpop.f32.mrf.mxu0
      %v2213 = vadd.f32 %v2193, %v2212
      %2214 = vdwg.mxu0
      %2215 = vmatpush.msra.mxu0 %v739
      %2216 = vmatpush.msra.mxu0 %v737
      %2217 = vmatpush.msra.mxu0 %v735
      %2218 = vmatpush.msra.mxu0 %v733
      %2219 = vmatpush.msra.mxu0 %v731
      %2220 = vmatpush.msra.mxu0 %v729
      %2221 = vmatpush.msra.mxu0 %v727
      %2222 = vmatpush.msra.mxu0 %v725
      %2223 = vmatpush.msra.mxu0 %v723
      %2224 = vmatpush.msra.mxu0 %v721
      %2225 = vmatpush.msra.mxu0 %v719
      %2226 = vmatpush.msra.mxu0 %v717
      %2227 = vmatpush.msra.mxu0 %v715
      %2228 = vmatpush.msra.mxu0 %v713
      %2229 = vmatpush.msra.mxu0 %v711
      %2230 = vmatpush.msra.mxu0 %v709
      %2231 = vmatmul.f32.gmra.mxu0 %v160
      %v2232 = vpop.f32.mrf.mxu0
      %v2233 = vadd.f32 %v2213, %v2232
      %2234 = vdwg.mxu0
      %2235 = vmatpush.msra.mxu0 %v771
      %2236 = vmatpush.msra.mxu0 %v769
      %2237 = vmatpush.msra.mxu0 %v767
      %2238 = vmatpush.msra.mxu0 %v765
      %2239 = vmatpush.msra.mxu0 %v763
      %2240 = vmatpush.msra.mxu0 %v761
      %2241 = vmatpush.msra.mxu0 %v759
      %2242 = vmatpush.msra.mxu0 %v757
      %2243 = vmatpush.msra.mxu0 %v755
      %2244 = vmatpush.msra.mxu0 %v753
      %2245 = vmatpush.msra.mxu0 %v751
      %2246 = vmatpush.msra.mxu0 %v749
      %2247 = vmatpush.msra.mxu0 %v747
      %2248 = vmatpush.msra.mxu0 %v745
      %2249 = vmatpush.msra.mxu0 %v743
      %2250 = vmatpush.msra.mxu0 %v741
      %2251 = vmatmul.f32.gmra.mxu0 %v161
      %v2252 = vpop.f32.mrf.mxu0
      %v2253 = vadd.f32 %v2233, %v2252
      %2254 = vdwg.mxu0
      %2255 = vmatpush.msra.mxu0 %v803
      %2256 = vmatpush.msra.mxu0 %v801
      %2257 = vmatpush.msra.mxu0 %v799
      %2258 = vmatpush.msra.mxu0 %v797
      %2259 = vmatpush.msra.mxu0 %v795
      %2260 = vmatpush.msra.mxu0 %v793
      %2261 = vmatpush.msra.mxu0 %v791
      %2262 = vmatpush.msra.mxu0 %v789
      %2263 = vmatpush.msra.mxu0 %v787
      %2264 = vmatpush.msra.mxu0 %v785
      %2265 = vmatpush.msra.mxu0 %v783
      %2266 = vmatpush.msra.mxu0 %v781
      %2267 = vmatpush.msra.mxu0 %v779
      %2268 = vmatpush.msra.mxu0 %v777
      %2269 = vmatpush.msra.mxu0 %v775
      %2270 = vmatpush.msra.mxu0 %v773
      %2271 = vmatmul.f32.gmra.mxu0 %v162
      %v2272 = vpop.f32.mrf.mxu0
      %v2273 = vadd.f32 %v2253, %v2272
      %2274 = vdwg.mxu0
      %2275 = vmatpush.msra.mxu0 %v835
      %2276 = vmatpush.msra.mxu0 %v833
      %2277 = vmatpush.msra.mxu0 %v831
      %2278 = vmatpush.msra.mxu0 %v829
      %2279 = vmatpush.msra.mxu0 %v827
      %2280 = vmatpush.msra.mxu0 %v825
      %2281 = vmatpush.msra.mxu0 %v823
      %2282 = vmatpush.msra.mxu0 %v821
      %2283 = vmatpush.msra.mxu0 %v819
      %2284 = vmatpush.msra.mxu0 %v817
      %2285 = vmatpush.msra.mxu0 %v815
      %2286 = vmatpush.msra.mxu0 %v813
      %2287 = vmatpush.msra.mxu0 %v811
      %2288 = vmatpush.msra.mxu0 %v809
      %2289 = vmatpush.msra.mxu0 %v807
      %2290 = vmatpush.msra.mxu0 %v805
      %2291 = vmatmul.f32.gmra.mxu0 %v163
      %v2292 = vpop.f32.mrf.mxu0
      %v2293 = vadd.f32 %v2273, %v2292
      %2294 = vdwg.mxu0
      %2295 = vmatpush.msra.mxu0 %v867
      %2296 = vmatpush.msra.mxu0 %v865
      %2297 = vmatpush.msra.mxu0 %v863
      %2298 = vmatpush.msra.mxu0 %v861
      %2299 = vmatpush.msra.mxu0 %v859
      %2300 = vmatpush.msra.mxu0 %v857
      %2301 = vmatpush.msra.mxu0 %v855
      %2302 = vmatpush.msra.mxu0 %v853
      %2303 = vmatpush.msra.mxu0 %v851
      %2304 = vmatpush.msra.mxu0 %v849
      %2305 = vmatpush.msra.mxu0 %v847
      %2306 = vmatpush.msra.mxu0 %v845
      %2307 = vmatpush.msra.mxu0 %v843
      %2308 = vmatpush.msra.mxu0 %v841
      %2309 = vmatpush.msra.mxu0 %v839
      %2310 = vmatpush.msra.mxu0 %v837
      %2311 = vmatmul.f32.gmra.mxu0 %v164
      %v2312 = vpop.f32.mrf.mxu0
      %v2313 = vadd.f32 %v2293, %v2312
      %2314 = vdwg.mxu0
      %2315 = vmatpush.msra.mxu0 %v899
      %2316 = vmatpush.msra.mxu0 %v897
      %2317 = vmatpush.msra.mxu0 %v895
      %2318 = vmatpush.msra.mxu0 %v893
      %2319 = vmatpush.msra.mxu0 %v891
      %2320 = vmatpush.msra.mxu0 %v889
      %2321 = vmatpush.msra.mxu0 %v887
      %2322 = vmatpush.msra.mxu0 %v885
      %2323 = vmatpush.msra.mxu0 %v883
      %2324 = vmatpush.msra.mxu0 %v881
      %2325 = vmatpush.msra.mxu0 %v879
      %2326 = vmatpush.msra.mxu0 %v877
      %2327 = vmatpush.msra.mxu0 %v875
      %2328 = vmatpush.msra.mxu0 %v873
      %2329 = vmatpush.msra.mxu0 %v871
      %2330 = vmatpush.msra.mxu0 %v869
      %2331 = vmatmul.f32.gmra.mxu0 %v165
      %v2332 = vpop.f32.mrf.mxu0
      %v2333 = vadd.f32 %v2313, %v2332
      %2334 = vdwg.mxu0
      %2335 = vmatpush.msra.mxu0 %v931
      %2336 = vmatpush.msra.mxu0 %v929
      %2337 = vmatpush.msra.mxu0 %v927
      %2338 = vmatpush.msra.mxu0 %v925
      %2339 = vmatpush.msra.mxu0 %v923
      %2340 = vmatpush.msra.mxu0 %v921
      %2341 = vmatpush.msra.mxu0 %v919
      %2342 = vmatpush.msra.mxu0 %v917
      %2343 = vmatpush.msra.mxu0 %v915
      %2344 = vmatpush.msra.mxu0 %v913
      %2345 = vmatpush.msra.mxu0 %v911
      %2346 = vmatpush.msra.mxu0 %v909
      %2347 = vmatpush.msra.mxu0 %v907
      %2348 = vmatpush.msra.mxu0 %v905
      %2349 = vmatpush.msra.mxu0 %v903
      %2350 = vmatpush.msra.mxu0 %v901
      %2351 = vmatmul.f32.gmra.mxu0 %v166
      %v2352 = vpop.f32.mrf.mxu0
      %v2353 = vadd.f32 %v2333, %v2352
      %2354 = vdwg.mxu0
      %2355 = vmatpush.msra.mxu0 %v963
      %2356 = vmatpush.msra.mxu0 %v961
      %2357 = vmatpush.msra.mxu0 %v959
      %2358 = vmatpush.msra.mxu0 %v957
      %2359 = vmatpush.msra.mxu0 %v955
      %2360 = vmatpush.msra.mxu0 %v953
      %2361 = vmatpush.msra.mxu0 %v951
      %2362 = vmatpush.msra.mxu0 %v949
      %2363 = vmatpush.msra.mxu0 %v947
      %2364 = vmatpush.msra.mxu0 %v945
      %2365 = vmatpush.msra.mxu0 %v943
      %2366 = vmatpush.msra.mxu0 %v941
      %2367 = vmatpush.msra.mxu0 %v939
      %2368 = vmatpush.msra.mxu0 %v937
      %2369 = vmatpush.msra.mxu0 %v935
      %2370 = vmatpush.msra.mxu0 %v933
      %2371 = vmatmul.f32.gmra.mxu0 %v167
      %v2372 = vpop.f32.mrf.mxu0
      %v2373 = vadd.f32 %v2353, %v2372
      %2374 = vdwg.mxu0
      %2375 = vmatpush.msra.mxu0 %v995
      %2376 = vmatpush.msra.mxu0 %v993
      %2377 = vmatpush.msra.mxu0 %v991
      %2378 = vmatpush.msra.mxu0 %v989
      %2379 = vmatpush.msra.mxu0 %v987
      %2380 = vmatpush.msra.mxu0 %v985
      %2381 = vmatpush.msra.mxu0 %v983
      %2382 = vmatpush.msra.mxu0 %v981
      %2383 = vmatpush.msra.mxu0 %v979
      %2384 = vmatpush.msra.mxu0 %v977
      %2385 = vmatpush.msra.mxu0 %v975
      %2386 = vmatpush.msra.mxu0 %v973
      %2387 = vmatpush.msra.mxu0 %v971
      %2388 = vmatpush.msra.mxu0 %v969
      %2389 = vmatpush.msra.mxu0 %v967
      %2390 = vmatpush.msra.mxu0 %v965
      %2391 = vmatmul.f32.gmra.mxu0 %v168
      %v2392 = vpop.f32.mrf.mxu0
      %v2393 = vadd.f32 %v2373, %v2392
      %2394 = vdwg.mxu0
      %2395 = vmatpush.msra.mxu0 %v1027
      %2396 = vmatpush.msra.mxu0 %v1025
      %2397 = vmatpush.msra.mxu0 %v1023
      %2398 = vmatpush.msra.mxu0 %v1021
      %2399 = vmatpush.msra.mxu0 %v1019
      %2400 = vmatpush.msra.mxu0 %v1017
      %2401 = vmatpush.msra.mxu0 %v1015
      %2402 = vmatpush.msra.mxu0 %v1013
      %2403 = vmatpush.msra.mxu0 %v1011
      %2404 = vmatpush.msra.mxu0 %v1009
      %2405 = vmatpush.msra.mxu0 %v1007
      %2406 = vmatpush.msra.mxu0 %v1005
      %2407 = vmatpush.msra.mxu0 %v1003
      %2408 = vmatpush.msra.mxu0 %v1001
      %2409 = vmatpush.msra.mxu0 %v999
      %2410 = vmatpush.msra.mxu0 %v997
      %2411 = vmatmul.f32.gmra.mxu0 %v169
      %v2412 = vpop.f32.mrf.mxu0
      %v2413 = vadd.f32 %v2393, %v2412
      %2414 = vdwg.mxu0
      %2415 = vmatpush.msra.mxu0 %v1059
      %2416 = vmatpush.msra.mxu0 %v1057
      %2417 = vmatpush.msra.mxu0 %v1055
      %2418 = vmatpush.msra.mxu0 %v1053
      %2419 = vmatpush.msra.mxu0 %v1051
      %2420 = vmatpush.msra.mxu0 %v1049
      %2421 = vmatpush.msra.mxu0 %v1047
      %2422 = vmatpush.msra.mxu0 %v1045
      %2423 = vmatpush.msra.mxu0 %v1043
      %2424 = vmatpush.msra.mxu0 %v1041
      %2425 = vmatpush.msra.mxu0 %v1039
      %2426 = vmatpush.msra.mxu0 %v1037
      %2427 = vmatpush.msra.mxu0 %v1035
      %2428 = vmatpush.msra.mxu0 %v1033
      %2429 = vmatpush.msra.mxu0 %v1031
      %2430 = vmatpush.msra.mxu0 %v1029
      %2431 = vmatmul.f32.gmra.mxu0 %v170
      %v2432 = vpop.f32.mrf.mxu0
      %v2433 = vadd.f32 %v2413, %v2432
      %2434 = vdwg.mxu0
      %2435 = vmatpush.msra.mxu0 %v1091
      %2436 = vmatpush.msra.mxu0 %v1089
      %2437 = vmatpush.msra.mxu0 %v1087
      %2438 = vmatpush.msra.mxu0 %v1085
      %2439 = vmatpush.msra.mxu0 %v1083
      %2440 = vmatpush.msra.mxu0 %v1081
      %2441 = vmatpush.msra.mxu0 %v1079
      %2442 = vmatpush.msra.mxu0 %v1077
      %2443 = vmatpush.msra.mxu0 %v1075
      %2444 = vmatpush.msra.mxu0 %v1073
      %2445 = vmatpush.msra.mxu0 %v1071
      %2446 = vmatpush.msra.mxu0 %v1069
      %2447 = vmatpush.msra.mxu0 %v1067
      %2448 = vmatpush.msra.mxu0 %v1065
      %2449 = vmatpush.msra.mxu0 %v1063
      %2450 = vmatpush.msra.mxu0 %v1061
      %2451 = vmatmul.f32.gmra.mxu0 %v171
      %v2452 = vpop.f32.mrf.mxu0
      %v2453 = vadd.f32 %v2433, %v2452
      %2454 = vdwg.mxu0
      %2455 = vmatpush.msra.mxu0 %v1123
      %2456 = vmatpush.msra.mxu0 %v1121
      %2457 = vmatpush.msra.mxu0 %v1119
      %2458 = vmatpush.msra.mxu0 %v1117
      %2459 = vmatpush.msra.mxu0 %v1115
      %2460 = vmatpush.msra.mxu0 %v1113
      %2461 = vmatpush.msra.mxu0 %v1111
      %2462 = vmatpush.msra.mxu0 %v1109
      %2463 = vmatpush.msra.mxu0 %v1107
      %2464 = vmatpush.msra.mxu0 %v1105
      %2465 = vmatpush.msra.mxu0 %v1103
      %2466 = vmatpush.msra.mxu0 %v1101
      %2467 = vmatpush.msra.mxu0 %v1099
      %2468 = vmatpush.msra.mxu0 %v1097
      %2469 = vmatpush.msra.mxu0 %v1095
      %2470 = vmatpush.msra.mxu0 %v1093
      %2471 = vmatmul.f32.gmra.mxu0 %v172
      %v2472 = vpop.f32.mrf.mxu0
      %v2473 = vadd.f32 %v2453, %v2472
      %2474 = vdwg.mxu0
      %2475 = vmatpush.msra.mxu0 %v1155
      %2476 = vmatpush.msra.mxu0 %v1153
      %2477 = vmatpush.msra.mxu0 %v1151
      %2478 = vmatpush.msra.mxu0 %v1149
      %2479 = vmatpush.msra.mxu0 %v1147
      %2480 = vmatpush.msra.mxu0 %v1145
      %2481 = vmatpush.msra.mxu0 %v1143
      %2482 = vmatpush.msra.mxu0 %v1141
      %2483 = vmatpush.msra.mxu0 %v1139
      %2484 = vmatpush.msra.mxu0 %v1137
      %2485 = vmatpush.msra.mxu0 %v1135
      %2486 = vmatpush.msra.mxu0 %v1133
      %2487 = vmatpush.msra.mxu0 %v1131
      %2488 = vmatpush.msra.mxu0 %v1129
      %2489 = vmatpush.msra.mxu0 %v1127
      %2490 = vmatpush.msra.mxu0 %v1125
      %2491 = vmatmul.f32.gmra.mxu0 %v173
      %v2492 = vpop.f32.mrf.mxu0
      %v2493 = vadd.f32 %v2473, %v2492
      %2494 = vdwg.mxu0
      %2495 = vmatpush.msra.mxu0 %v1187
      %2496 = vmatpush.msra.mxu0 %v1185
      %2497 = vmatpush.msra.mxu0 %v1183
      %2498 = vmatpush.msra.mxu0 %v1181
      %2499 = vmatpush.msra.mxu0 %v1179
      %2500 = vmatpush.msra.mxu0 %v1177
      %2501 = vmatpush.msra.mxu0 %v1175
      %2502 = vmatpush.msra.mxu0 %v1173
      %2503 = vmatpush.msra.mxu0 %v1171
      %2504 = vmatpush.msra.mxu0 %v1169
      %2505 = vmatpush.msra.mxu0 %v1167
      %2506 = vmatpush.msra.mxu0 %v1165
      %2507 = vmatpush.msra.mxu0 %v1163
      %2508 = vmatpush.msra.mxu0 %v1161
      %2509 = vmatpush.msra.mxu0 %v1159
      %2510 = vmatpush.msra.mxu0 %v1157
      %2511 = vmatmul.f32.gmra.mxu0 %v174
      %v2512 = vpop.f32.mrf.mxu0
      %v2513 = vadd.f32 %v2493, %v2512
      %2514 = vdwg.mxu0
      %2515 = vmatpush.msra.mxu0 %v1219
      %2516 = vmatpush.msra.mxu0 %v1217
      %2517 = vmatpush.msra.mxu0 %v1215
      %2518 = vmatpush.msra.mxu0 %v1213
      %2519 = vmatpush.msra.mxu0 %v1211
      %2520 = vmatpush.msra.mxu0 %v1209
      %2521 = vmatpush.msra.mxu0 %v1207
      %2522 = vmatpush.msra.mxu0 %v1205
      %2523 = vmatpush.msra.mxu0 %v1203
      %2524 = vmatpush.msra.mxu0 %v1201
      %2525 = vmatpush.msra.mxu0 %v1199
      %2526 = vmatpush.msra.mxu0 %v1197
      %2527 = vmatpush.msra.mxu0 %v1195
      %2528 = vmatpush.msra.mxu0 %v1193
      %2529 = vmatpush.msra.mxu0 %v1191
      %2530 = vmatpush.msra.mxu0 %v1189
      %2531 = vmatmul.f32.gmra.mxu0 %v175
      %v2532 = vpop.f32.mrf.mxu0
      %v2533 = vadd.f32 %v2513, %v2532
      %2534 = vdwg.mxu0
      %2535 = vmatpush.msra.mxu0 %v1251
      %2536 = vmatpush.msra.mxu0 %v1249
      %2537 = vmatpush.msra.mxu0 %v1247
      %2538 = vmatpush.msra.mxu0 %v1245
      %2539 = vmatpush.msra.mxu0 %v1243
      %2540 = vmatpush.msra.mxu0 %v1241
      %2541 = vmatpush.msra.mxu0 %v1239
      %2542 = vmatpush.msra.mxu0 %v1237
      %2543 = vmatpush.msra.mxu0 %v1235
      %2544 = vmatpush.msra.mxu0 %v1233
      %2545 = vmatpush.msra.mxu0 %v1231
      %2546 = vmatpush.msra.mxu0 %v1229
      %2547 = vmatpush.msra.mxu0 %v1227
      %2548 = vmatpush.msra.mxu0 %v1225
      %2549 = vmatpush.msra.mxu0 %v1223
      %2550 = vmatpush.msra.mxu0 %v1221
      %2551 = vmatmul.f32.gmra.mxu0 %v176
      %v2552 = vpop.f32.mrf.mxu0
      %v2553 = vadd.f32 %v2533, %v2552
      %2554 = vdwg.mxu0
      %2555 = vmatpush.msra.mxu0 %v1283
      %2556 = vmatpush.msra.mxu0 %v1281
      %2557 = vmatpush.msra.mxu0 %v1279
      %2558 = vmatpush.msra.mxu0 %v1277
      %2559 = vmatpush.msra.mxu0 %v1275
      %2560 = vmatpush.msra.mxu0 %v1273
      %2561 = vmatpush.msra.mxu0 %v1271
      %2562 = vmatpush.msra.mxu0 %v1269
      %2563 = vmatpush.msra.mxu0 %v1267
      %2564 = vmatpush.msra.mxu0 %v1265
      %2565 = vmatpush.msra.mxu0 %v1263
      %2566 = vmatpush.msra.mxu0 %v1261
      %2567 = vmatpush.msra.mxu0 %v1259
      %2568 = vmatpush.msra.mxu0 %v1257
      %2569 = vmatpush.msra.mxu0 %v1255
      %2570 = vmatpush.msra.mxu0 %v1253
      %2571 = vmatmul.f32.gmra.mxu0 %v177
      %v2572 = vpop.f32.mrf.mxu0
      %v2573 = vadd.f32 %v2553, %v2572
      %2574 = vdwg.mxu0
      %2575 = vmatpush.msra.mxu0 %v1315
      %2576 = vmatpush.msra.mxu0 %v1313
      %2577 = vmatpush.msra.mxu0 %v1311
      %2578 = vmatpush.msra.mxu0 %v1309
      %2579 = vmatpush.msra.mxu0 %v1307
      %2580 = vmatpush.msra.mxu0 %v1305
      %2581 = vmatpush.msra.mxu0 %v1303
      %2582 = vmatpush.msra.mxu0 %v1301
      %2583 = vmatpush.msra.mxu0 %v1299
      %2584 = vmatpush.msra.mxu0 %v1297
      %2585 = vmatpush.msra.mxu0 %v1295
      %2586 = vmatpush.msra.mxu0 %v1293
      %2587 = vmatpush.msra.mxu0 %v1291
      %2588 = vmatpush.msra.mxu0 %v1289
      %2589 = vmatpush.msra.mxu0 %v1287
      %2590 = vmatpush.msra.mxu0 %v1285
      %2591 = vmatmul.f32.gmra.mxu0 %v178
      %v2592 = vpop.f32.mrf.mxu0
      %v2593 = vadd.f32 %v2573, %v2592
      %2594 = vdwg.mxu0
      %2595 = vmatpush.msra.mxu0 %v1347
      %2596 = vmatpush.msra.mxu0 %v1345
      %2597 = vmatpush.msra.mxu0 %v1343
      %2598 = vmatpush.msra.mxu0 %v1341
      %2599 = vmatpush.msra.mxu0 %v1339
      %2600 = vmatpush.msra.mxu0 %v1337
      %2601 = vmatpush.msra.mxu0 %v1335
      %2602 = vmatpush.msra.mxu0 %v1333
      %2603 = vmatpush.msra.mxu0 %v1331
      %2604 = vmatpush.msra.mxu0 %v1329
      %2605 = vmatpush.msra.mxu0 %v1327
      %2606 = vmatpush.msra.mxu0 %v1325
      %2607 = vmatpush.msra.mxu0 %v1323
      %2608 = vmatpush.msra.mxu0 %v1321
      %2609 = vmatpush.msra.mxu0 %v1319
      %2610 = vmatpush.msra.mxu0 %v1317
      %2611 = vmatmul.f32.gmra.mxu0 %v179
      %v2612 = vpop.f32.mrf.mxu0
      %v2613 = vadd.f32 %v2593, %v2612
      %2614 = vdwg.mxu0
      %2615 = vmatpush.msra.mxu0 %v1379
      %2616 = vmatpush.msra.mxu0 %v1377
      %2617 = vmatpush.msra.mxu0 %v1375
      %2618 = vmatpush.msra.mxu0 %v1373
      %2619 = vmatpush.msra.mxu0 %v1371
      %2620 = vmatpush.msra.mxu0 %v1369
      %2621 = vmatpush.msra.mxu0 %v1367
      %2622 = vmatpush.msra.mxu0 %v1365
      %2623 = vmatpush.msra.mxu0 %v1363
      %2624 = vmatpush.msra.mxu0 %v1361
      %2625 = vmatpush.msra.mxu0 %v1359
      %2626 = vmatpush.msra.mxu0 %v1357
      %2627 = vmatpush.msra.mxu0 %v1355
      %2628 = vmatpush.msra.mxu0 %v1353
      %2629 = vmatpush.msra.mxu0 %v1351
      %2630 = vmatpush.msra.mxu0 %v1349
      %2631 = vmatmul.f32.gmra.mxu0 %v180
      %v2632 = vpop.f32.mrf.mxu0
      %v2633 = vadd.f32 %v2613, %v2632
      %2634 = vdwg.mxu0
      %2635 = vmatpush.msra.mxu0 %v1411
      %2636 = vmatpush.msra.mxu0 %v1409
      %2637 = vmatpush.msra.mxu0 %v1407
      %2638 = vmatpush.msra.mxu0 %v1405
      %2639 = vmatpush.msra.mxu0 %v1403
      %2640 = vmatpush.msra.mxu0 %v1401
      %2641 = vmatpush.msra.mxu0 %v1399
      %2642 = vmatpush.msra.mxu0 %v1397
      %2643 = vmatpush.msra.mxu0 %v1395
      %2644 = vmatpush.msra.mxu0 %v1393
      %2645 = vmatpush.msra.mxu0 %v1391
      %2646 = vmatpush.msra.mxu0 %v1389
      %2647 = vmatpush.msra.mxu0 %v1387
      %2648 = vmatpush.msra.mxu0 %v1385
      %2649 = vmatpush.msra.mxu0 %v1383
      %2650 = vmatpush.msra.mxu0 %v1381
      %2651 = vmatmul.f32.gmra.mxu0 %v181
      %v2652 = vpop.f32.mrf.mxu0
      %v2653 = vadd.f32 %v2633, %v2652
      %2654 = vdwg.mxu0
      %2655 = vmatpush.msra.mxu0 %v1443
      %2656 = vmatpush.msra.mxu0 %v1441
      %2657 = vmatpush.msra.mxu0 %v1439
      %2658 = vmatpush.msra.mxu0 %v1437
      %2659 = vmatpush.msra.mxu0 %v1435
      %2660 = vmatpush.msra.mxu0 %v1433
      %2661 = vmatpush.msra.mxu0 %v1431
      %2662 = vmatpush.msra.mxu0 %v1429
      %2663 = vmatpush.msra.mxu0 %v1427
      %2664 = vmatpush.msra.mxu0 %v1425
      %2665 = vmatpush.msra.mxu0 %v1423
      %2666 = vmatpush.msra.mxu0 %v1421
      %2667 = vmatpush.msra.mxu0 %v1419
      %2668 = vmatpush.msra.mxu0 %v1417
      %2669 = vmatpush.msra.mxu0 %v1415
      %2670 = vmatpush.msra.mxu0 %v1413
      %2671 = vmatmul.f32.gmra.mxu0 %v182
      %v2672 = vpop.f32.mrf.mxu0
      %v2673 = vadd.f32 %v2653, %v2672
      %2674 = vdwg.mxu0
      %2675 = vmatpush.msra.mxu0 %v1475
      %2676 = vmatpush.msra.mxu0 %v1473
      %2677 = vmatpush.msra.mxu0 %v1471
      %2678 = vmatpush.msra.mxu0 %v1469
      %2679 = vmatpush.msra.mxu0 %v1467
      %2680 = vmatpush.msra.mxu0 %v1465
      %2681 = vmatpush.msra.mxu0 %v1463
      %2682 = vmatpush.msra.mxu0 %v1461
      %2683 = vmatpush.msra.mxu0 %v1459
      %2684 = vmatpush.msra.mxu0 %v1457
      %2685 = vmatpush.msra.mxu0 %v1455
      %2686 = vmatpush.msra.mxu0 %v1453
      %2687 = vmatpush.msra.mxu0 %v1451
      %2688 = vmatpush.msra.mxu0 %v1449
      %2689 = vmatpush.msra.mxu0 %v1447
      %2690 = vmatpush.msra.mxu0 %v1445
      %2691 = vmatmul.f32.gmra.mxu0 %v183
      %v2692 = vpop.f32.mrf.mxu0
      %v2693 = vadd.f32 %v2673, %v2692
      %2694 = vdwg.mxu0
      %2695 = vmatpush.msra.mxu0 %v1507
      %2696 = vmatpush.msra.mxu0 %v1505
      %2697 = vmatpush.msra.mxu0 %v1503
      %2698 = vmatpush.msra.mxu0 %v1501
      %2699 = vmatpush.msra.mxu0 %v1499
      %2700 = vmatpush.msra.mxu0 %v1497
      %2701 = vmatpush.msra.mxu0 %v1495
      %2702 = vmatpush.msra.mxu0 %v1493
      %2703 = vmatpush.msra.mxu0 %v1491
      %2704 = vmatpush.msra.mxu0 %v1489
      %2705 = vmatpush.msra.mxu0 %v1487
      %2706 = vmatpush.msra.mxu0 %v1485
      %2707 = vmatpush.msra.mxu0 %v1483
      %2708 = vmatpush.msra.mxu0 %v1481
      %2709 = vmatpush.msra.mxu0 %v1479
      %2710 = vmatpush.msra.mxu0 %v1477
      %2711 = vmatmul.f32.gmra.mxu0 %v184
      %v2712 = vpop.f32.mrf.mxu0
      %v2713 = vadd.f32 %v2693, %v2712
      %2714 = vdwg.mxu0
      %2715 = vmatpush.msra.mxu0 %v1539
      %2716 = vmatpush.msra.mxu0 %v1537
      %2717 = vmatpush.msra.mxu0 %v1535
      %2718 = vmatpush.msra.mxu0 %v1533
      %2719 = vmatpush.msra.mxu0 %v1531
      %2720 = vmatpush.msra.mxu0 %v1529
      %2721 = vmatpush.msra.mxu0 %v1527
      %2722 = vmatpush.msra.mxu0 %v1525
      %2723 = vmatpush.msra.mxu0 %v1523
      %2724 = vmatpush.msra.mxu0 %v1521
      %2725 = vmatpush.msra.mxu0 %v1519
      %2726 = vmatpush.msra.mxu0 %v1517
      %2727 = vmatpush.msra.mxu0 %v1515
      %2728 = vmatpush.msra.mxu0 %v1513
      %2729 = vmatpush.msra.mxu0 %v1511
      %2730 = vmatpush.msra.mxu0 %v1509
      %2731 = vmatmul.f32.gmra.mxu0 %v185
      %v2732 = vpop.f32.mrf.mxu0
      %v2733 = vadd.f32 %v2713, %v2732
      %2734 = vdwg.mxu0
      %2735 = vmatpush.msra.mxu0 %v1571
      %2736 = vmatpush.msra.mxu0 %v1569
      %2737 = vmatpush.msra.mxu0 %v1567
      %2738 = vmatpush.msra.mxu0 %v1565
      %2739 = vmatpush.msra.mxu0 %v1563
      %2740 = vmatpush.msra.mxu0 %v1561
      %2741 = vmatpush.msra.mxu0 %v1559
      %2742 = vmatpush.msra.mxu0 %v1557
      %2743 = vmatpush.msra.mxu0 %v1555
      %2744 = vmatpush.msra.mxu0 %v1553
      %2745 = vmatpush.msra.mxu0 %v1551
      %2746 = vmatpush.msra.mxu0 %v1549
      %2747 = vmatpush.msra.mxu0 %v1547
      %2748 = vmatpush.msra.mxu0 %v1545
      %2749 = vmatpush.msra.mxu0 %v1543
      %2750 = vmatpush.msra.mxu0 %v1541
      %2751 = vmatmul.f32.gmra.mxu0 %v186
      %v2752 = vpop.f32.mrf.mxu0
      %v2753 = vadd.f32 %v2733, %v2752
      %2754 = vdwg.mxu0
      %2755 = vmatpush.msra.mxu0 %v1603
      %2756 = vmatpush.msra.mxu0 %v1601
      %2757 = vmatpush.msra.mxu0 %v1599
      %2758 = vmatpush.msra.mxu0 %v1597
      %2759 = vmatpush.msra.mxu0 %v1595
      %2760 = vmatpush.msra.mxu0 %v1593
      %2761 = vmatpush.msra.mxu0 %v1591
      %2762 = vmatpush.msra.mxu0 %v1589
      %2763 = vmatpush.msra.mxu0 %v1587
      %2764 = vmatpush.msra.mxu0 %v1585
      %2765 = vmatpush.msra.mxu0 %v1583
      %2766 = vmatpush.msra.mxu0 %v1581
      %2767 = vmatpush.msra.mxu0 %v1579
      %2768 = vmatpush.msra.mxu0 %v1577
      %2769 = vmatpush.msra.mxu0 %v1575
      %2770 = vmatpush.msra.mxu0 %v1573
      %2771 = vmatmul.f32.gmra.mxu0 %v187
      %v2772 = vpop.f32.mrf.mxu0
      %v2773 = vadd.f32 %v2753, %v2772
      %2774 = vdwg.mxu0
      %2775 = vmatpush.msra.mxu0 %v1635
      %2776 = vmatpush.msra.mxu0 %v1633
      %2777 = vmatpush.msra.mxu0 %v1631
      %2778 = vmatpush.msra.mxu0 %v1629
      %2779 = vmatpush.msra.mxu0 %v1627
      %2780 = vmatpush.msra.mxu0 %v1625
      %2781 = vmatpush.msra.mxu0 %v1623
      %2782 = vmatpush.msra.mxu0 %v1621
      %2783 = vmatpush.msra.mxu0 %v1619
      %2784 = vmatpush.msra.mxu0 %v1617
      %2785 = vmatpush.msra.mxu0 %v1615
      %2786 = vmatpush.msra.mxu0 %v1613
      %2787 = vmatpush.msra.mxu0 %v1611
      %2788 = vmatpush.msra.mxu0 %v1609
      %2789 = vmatpush.msra.mxu0 %v1607
      %2790 = vmatpush.msra.mxu0 %v1605
      %2791 = vmatmul.f32.gmra.mxu0 %v188
      %v2792 = vpop.f32.mrf.mxu0
      %v2793 = vadd.f32 %v2773, %v2792
      %2794 = vdwg.mxu0
      %2795 = vmatpush.msra.mxu0 %v1667
      %2796 = vmatpush.msra.mxu0 %v1665
      %2797 = vmatpush.msra.mxu0 %v1663
      %2798 = vmatpush.msra.mxu0 %v1661
      %2799 = vmatpush.msra.mxu0 %v1659
      %2800 = vmatpush.msra.mxu0 %v1657
      %2801 = vmatpush.msra.mxu0 %v1655
      %2802 = vmatpush.msra.mxu0 %v1653
      %2803 = vmatpush.msra.mxu0 %v1651
      %2804 = vmatpush.msra.mxu0 %v1649
      %2805 = vmatpush.msra.mxu0 %v1647
      %2806 = vmatpush.msra.mxu0 %v1645
      %2807 = vmatpush.msra.mxu0 %v1643
      %2808 = vmatpush.msra.mxu0 %v1641
      %2809 = vmatpush.msra.mxu0 %v1639
      %2810 = vmatpush.msra.mxu0 %v1637
      %2811 = vmatmul.f32.gmra.mxu0 %v189
      %v2812 = vpop.f32.mrf.mxu0
      %v2813 = vadd.f32 %v2793, %v2812
      %2814 = vdwg.mxu0
      %2815 = vmatpush.msra.mxu0 %v1699
      %2816 = vmatpush.msra.mxu0 %v1697
      %2817 = vmatpush.msra.mxu0 %v1695
      %2818 = vmatpush.msra.mxu0 %v1693
      %2819 = vmatpush.msra.mxu0 %v1691
      %2820 = vmatpush.msra.mxu0 %v1689
      %2821 = vmatpush.msra.mxu0 %v1687
      %2822 = vmatpush.msra.mxu0 %v1685
      %2823 = vmatpush.msra.mxu0 %v1683
      %2824 = vmatpush.msra.mxu0 %v1681
      %2825 = vmatpush.msra.mxu0 %v1679
      %2826 = vmatpush.msra.mxu0 %v1677
      %2827 = vmatpush.msra.mxu0 %v1675
      %2828 = vmatpush.msra.mxu0 %v1673
      %2829 = vmatpush.msra.mxu0 %v1671
      %2830 = vmatpush.msra.mxu0 %v1669
      %2831 = vmatmul.f32.gmra.mxu0 %v190
      %v2832 = vpop.f32.mrf.mxu0
      %v2833 = vadd.f32 %v2813, %v2832
      %2834 = vdwg.mxu0
      %2835 = vmatpush.msra.mxu0 %v1731
      %2836 = vmatpush.msra.mxu0 %v1729
      %2837 = vmatpush.msra.mxu0 %v1727
      %2838 = vmatpush.msra.mxu0 %v1725
      %2839 = vmatpush.msra.mxu0 %v1723
      %2840 = vmatpush.msra.mxu0 %v1721
      %2841 = vmatpush.msra.mxu0 %v1719
      %2842 = vmatpush.msra.mxu0 %v1717
      %2843 = vmatpush.msra.mxu0 %v1715
      %2844 = vmatpush.msra.mxu0 %v1713
      %2845 = vmatpush.msra.mxu0 %v1711
      %2846 = vmatpush.msra.mxu0 %v1709
      %2847 = vmatpush.msra.mxu0 %v1707
      %2848 = vmatpush.msra.mxu0 %v1705
      %2849 = vmatpush.msra.mxu0 %v1703
      %2850 = vmatpush.msra.mxu0 %v1701
      %2851 = vmatmul.f32.gmra.mxu0 %v191
      %v2852 = vpop.f32.mrf.mxu0
      %v2853 = vadd.f32 %v2833, %v2852
      %2854 = vdwg.mxu0
      %2855 = vmatpush.msra.mxu0 %v1763
      %2856 = vmatpush.msra.mxu0 %v1761
      %2857 = vmatpush.msra.mxu0 %v1759
      %2858 = vmatpush.msra.mxu0 %v1757
      %2859 = vmatpush.msra.mxu0 %v1755
      %2860 = vmatpush.msra.mxu0 %v1753
      %2861 = vmatpush.msra.mxu0 %v1751
      %2862 = vmatpush.msra.mxu0 %v1749
      %2863 = vmatpush.msra.mxu0 %v1747
      %2864 = vmatpush.msra.mxu0 %v1745
      %2865 = vmatpush.msra.mxu0 %v1743
      %2866 = vmatpush.msra.mxu0 %v1741
      %2867 = vmatpush.msra.mxu0 %v1739
      %2868 = vmatpush.msra.mxu0 %v1737
      %2869 = vmatpush.msra.mxu0 %v1735
      %2870 = vmatpush.msra.mxu0 %v1733
      %2871 = vmatmul.f32.gmra.mxu0 %v192
      %v2872 = vpop.f32.mrf.mxu0
      %v2873 = vadd.f32 %v2853, %v2872
      %2874 = vdwg.mxu0
      %2875 = vmatpush.msra.mxu0 %v1795
      %2876 = vmatpush.msra.mxu0 %v1793
      %2877 = vmatpush.msra.mxu0 %v1791
      %2878 = vmatpush.msra.mxu0 %v1789
      %2879 = vmatpush.msra.mxu0 %v1787
      %2880 = vmatpush.msra.mxu0 %v1785
      %2881 = vmatpush.msra.mxu0 %v1783
      %2882 = vmatpush.msra.mxu0 %v1781
      %2883 = vmatpush.msra.mxu0 %v1779
      %2884 = vmatpush.msra.mxu0 %v1777
      %2885 = vmatpush.msra.mxu0 %v1775
      %2886 = vmatpush.msra.mxu0 %v1773
      %2887 = vmatpush.msra.mxu0 %v1771
      %2888 = vmatpush.msra.mxu0 %v1769
      %2889 = vmatpush.msra.mxu0 %v1767
      %2890 = vmatpush.msra.mxu0 %v1765
      %2891 = vmatmul.f32.gmra.mxu0 %v193
      %v2892 = vpop.f32.mrf.mxu0
      %v2893 = vadd.f32 %v2873, %v2892
      %2894 = vdwg.mxu0
      %2895 = vmatpush.msra.mxu0 %v1827
      %2896 = vmatpush.msra.mxu0 %v1825
      %2897 = vmatpush.msra.mxu0 %v1823
      %2898 = vmatpush.msra.mxu0 %v1821
      %2899 = vmatpush.msra.mxu0 %v1819
      %2900 = vmatpush.msra.mxu0 %v1817
      %2901 = vmatpush.msra.mxu0 %v1815
      %2902 = vmatpush.msra.mxu0 %v1813
      %2903 = vmatpush.msra.mxu0 %v1811
      %2904 = vmatpush.msra.mxu0 %v1809
      %2905 = vmatpush.msra.mxu0 %v1807
      %2906 = vmatpush.msra.mxu0 %v1805
      %2907 = vmatpush.msra.mxu0 %v1803
      %2908 = vmatpush.msra.mxu0 %v1801
      %2909 = vmatpush.msra.mxu0 %v1799
      %2910 = vmatpush.msra.mxu0 %v1797
      %2911 = vmatmul.f32.gmra.mxu0 %v194
      %v2912 = vpop.f32.mrf.mxu0
      %v2913 = vadd.f32 %v2893, %v2912
      %2914 = vdwg.mxu0
      %2915 = vmatpush.msra.mxu0 %v1859
      %2916 = vmatpush.msra.mxu0 %v1857
      %2917 = vmatpush.msra.mxu0 %v1855
      %2918 = vmatpush.msra.mxu0 %v1853
      %2919 = vmatpush.msra.mxu0 %v1851
      %2920 = vmatpush.msra.mxu0 %v1849
      %2921 = vmatpush.msra.mxu0 %v1847
      %2922 = vmatpush.msra.mxu0 %v1845
      %2923 = vmatpush.msra.mxu0 %v1843
      %2924 = vmatpush.msra.mxu0 %v1841
      %2925 = vmatpush.msra.mxu0 %v1839
      %2926 = vmatpush.msra.mxu0 %v1837
      %2927 = vmatpush.msra.mxu0 %v1835
      %2928 = vmatpush.msra.mxu0 %v1833
      %2929 = vmatpush.msra.mxu0 %v1831
      %2930 = vmatpush.msra.mxu0 %v1829
      %2931 = vmatmul.f32.gmra.mxu0 %v195
      %v2932 = vpop.f32.mrf.mxu0
      %v2933 = vadd.f32 %v2913, %v2932
      %2934 = vdwg.mxu0
      %2935 = vmatpush.msra.mxu0 0.0
      %2936 = vmatpush.msra.mxu0 %v1889
      %2937 = vmatpush.msra.mxu0 %v1887
      %2938 = vmatpush.msra.mxu0 %v1885
      %2939 = vmatpush.msra.mxu0 %v1883
      %2940 = vmatpush.msra.mxu0 %v1881
      %2941 = vmatpush.msra.mxu0 %v1879
      %2942 = vmatpush.msra.mxu0 %v1877
      %2943 = vmatpush.msra.mxu0 %v1875
      %2944 = vmatpush.msra.mxu0 %v1873
      %2945 = vmatpush.msra.mxu0 %v1871
      %2946 = vmatpush.msra.mxu0 %v1869
      %2947 = vmatpush.msra.mxu0 %v1867
      %2948 = vmatpush.msra.mxu0 %v1865
      %2949 = vmatpush.msra.mxu0 %v1863
      %2950 = vmatpush.msra.mxu0 %v1861
      %2951 = vmatmul.f32.gmra.mxu0 %v1893
      %v2952 = vpop.f32.mrf.mxu0
      %v2953 = vadd.f32 %v2933, %v2952
      %2954 = vdwg.mxu0
      %2955 = vmatpush.msra.mxu0 %v228
      %2956 = vmatpush.msra.mxu0 %v226
      %2957 = vmatpush.msra.mxu0 %v224
      %2958 = vmatpush.msra.mxu0 %v222
      %2959 = vmatpush.msra.mxu0 %v220
      %2960 = vmatpush.msra.mxu0 %v218
      %2961 = vmatpush.msra.mxu0 %v216
      %2962 = vmatpush.msra.mxu0 %v214
      %2963 = vmatpush.msra.mxu0 %v212
      %2964 = vmatpush.msra.mxu0 %v210
      %2965 = vmatpush.msra.mxu0 %v208
      %2966 = vmatpush.msra.mxu0 %v206
      %2967 = vmatpush.msra.mxu0 %v204
      %2968 = vmatpush.msra.mxu0 %v202
      %2969 = vmatpush.msra.mxu0 %v200
      %2970 = vmatpush.msra.mxu0 %v198
      %2971 = vmatmul.f32.gmra.mxu0 %v144
      %v2972 = vpop.f32.mrf.mxu0
      %v2973 = vadd.f32 0.0, %v2972
      %2974 = vdwg.mxu0
      %2975 = vmatpush.msra.mxu0 %v260
      %2976 = vmatpush.msra.mxu0 %v258
      %2977 = vmatpush.msra.mxu0 %v256
      %2978 = vmatpush.msra.mxu0 %v254
      %2979 = vmatpush.msra.mxu0 %v252
      %2980 = vmatpush.msra.mxu0 %v250
      %2981 = vmatpush.msra.mxu0 %v248
      %2982 = vmatpush.msra.mxu0 %v246
      %2983 = vmatpush.msra.mxu0 %v244
      %2984 = vmatpush.msra.mxu0 %v242
      %2985 = vmatpush.msra.mxu0 %v240
      %2986 = vmatpush.msra.mxu0 %v238
      %2987 = vmatpush.msra.mxu0 %v236
      %2988 = vmatpush.msra.mxu0 %v234
      %2989 = vmatpush.msra.mxu0 %v232
      %2990 = vmatpush.msra.mxu0 %v230
      %2991 = vmatmul.f32.gmra.mxu0 %v145
      %v2992 = vpop.f32.mrf.mxu0
      %v2993 = vadd.f32 %v2973, %v2992
      %2994 = vdwg.mxu0
      %2995 = vmatpush.msra.mxu0 %v292
      %2996 = vmatpush.msra.mxu0 %v290
      %2997 = vmatpush.msra.mxu0 %v288
      %2998 = vmatpush.msra.mxu0 %v286
      %2999 = vmatpush.msra.mxu0 %v284
      %3000 = vmatpush.msra.mxu0 %v282
      %3001 = vmatpush.msra.mxu0 %v280
      %3002 = vmatpush.msra.mxu0 %v278
      %3003 = vmatpush.msra.mxu0 %v276
      %3004 = vmatpush.msra.mxu0 %v274
      %3005 = vmatpush.msra.mxu0 %v272
      %3006 = vmatpush.msra.mxu0 %v270
      %3007 = vmatpush.msra.mxu0 %v268
      %3008 = vmatpush.msra.mxu0 %v266
      %3009 = vmatpush.msra.mxu0 %v264
      %3010 = vmatpush.msra.mxu0 %v262
      %3011 = vmatmul.f32.gmra.mxu0 %v146
      %v3012 = vpop.f32.mrf.mxu0
      %v3013 = vadd.f32 %v2993, %v3012
      %3014 = vdwg.mxu0
      %3015 = vmatpush.msra.mxu0 %v324
      %3016 = vmatpush.msra.mxu0 %v322
      %3017 = vmatpush.msra.mxu0 %v320
      %3018 = vmatpush.msra.mxu0 %v318
      %3019 = vmatpush.msra.mxu0 %v316
      %3020 = vmatpush.msra.mxu0 %v314
      %3021 = vmatpush.msra.mxu0 %v312
      %3022 = vmatpush.msra.mxu0 %v310
      %3023 = vmatpush.msra.mxu0 %v308
      %3024 = vmatpush.msra.mxu0 %v306
      %3025 = vmatpush.msra.mxu0 %v304
      %3026 = vmatpush.msra.mxu0 %v302
      %3027 = vmatpush.msra.mxu0 %v300
      %3028 = vmatpush.msra.mxu0 %v298
      %3029 = vmatpush.msra.mxu0 %v296
      %3030 = vmatpush.msra.mxu0 %v294
      %3031 = vmatmul.f32.gmra.mxu0 %v147
      %v3032 = vpop.f32.mrf.mxu0
      %v3033 = vadd.f32 %v3013, %v3032
      %3034 = vdwg.mxu0
      %3035 = vmatpush.msra.mxu0 %v356
      %3036 = vmatpush.msra.mxu0 %v354
      %3037 = vmatpush.msra.mxu0 %v352
      %3038 = vmatpush.msra.mxu0 %v350
      %3039 = vmatpush.msra.mxu0 %v348
      %3040 = vmatpush.msra.mxu0 %v346
      %3041 = vmatpush.msra.mxu0 %v344
      %3042 = vmatpush.msra.mxu0 %v342
      %3043 = vmatpush.msra.mxu0 %v340
      %3044 = vmatpush.msra.mxu0 %v338
      %3045 = vmatpush.msra.mxu0 %v336
      %3046 = vmatpush.msra.mxu0 %v334
      %3047 = vmatpush.msra.mxu0 %v332
      %3048 = vmatpush.msra.mxu0 %v330
      %3049 = vmatpush.msra.mxu0 %v328
      %3050 = vmatpush.msra.mxu0 %v326
      %3051 = vmatmul.f32.gmra.mxu0 %v148
      %v3052 = vpop.f32.mrf.mxu0
      %v3053 = vadd.f32 %v3033, %v3052
      %3054 = vdwg.mxu0
      %3055 = vmatpush.msra.mxu0 %v388
      %3056 = vmatpush.msra.mxu0 %v386
      %3057 = vmatpush.msra.mxu0 %v384
      %3058 = vmatpush.msra.mxu0 %v382
      %3059 = vmatpush.msra.mxu0 %v380
      %3060 = vmatpush.msra.mxu0 %v378
      %3061 = vmatpush.msra.mxu0 %v376
      %3062 = vmatpush.msra.mxu0 %v374
      %3063 = vmatpush.msra.mxu0 %v372
      %3064 = vmatpush.msra.mxu0 %v370
      %3065 = vmatpush.msra.mxu0 %v368
      %3066 = vmatpush.msra.mxu0 %v366
      %3067 = vmatpush.msra.mxu0 %v364
      %3068 = vmatpush.msra.mxu0 %v362
      %3069 = vmatpush.msra.mxu0 %v360
      %3070 = vmatpush.msra.mxu0 %v358
      %3071 = vmatmul.f32.gmra.mxu0 %v149
      %v3072 = vpop.f32.mrf.mxu0
      %v3073 = vadd.f32 %v3053, %v3072
      %3074 = vdwg.mxu0
      %3075 = vmatpush.msra.mxu0 %v420
      %3076 = vmatpush.msra.mxu0 %v418
      %3077 = vmatpush.msra.mxu0 %v416
      %3078 = vmatpush.msra.mxu0 %v414
      %3079 = vmatpush.msra.mxu0 %v412
      %3080 = vmatpush.msra.mxu0 %v410
      %3081 = vmatpush.msra.mxu0 %v408
      %3082 = vmatpush.msra.mxu0 %v406
      %3083 = vmatpush.msra.mxu0 %v404
      %3084 = vmatpush.msra.mxu0 %v402
      %3085 = vmatpush.msra.mxu0 %v400
      %3086 = vmatpush.msra.mxu0 %v398
      %3087 = vmatpush.msra.mxu0 %v396
      %3088 = vmatpush.msra.mxu0 %v394
      %3089 = vmatpush.msra.mxu0 %v392
      %3090 = vmatpush.msra.mxu0 %v390
      %3091 = vmatmul.f32.gmra.mxu0 %v150
      %v3092 = vpop.f32.mrf.mxu0
      %v3093 = vadd.f32 %v3073, %v3092
      %3094 = vdwg.mxu0
      %3095 = vmatpush.msra.mxu0 %v452
      %3096 = vmatpush.msra.mxu0 %v450
      %3097 = vmatpush.msra.mxu0 %v448
      %3098 = vmatpush.msra.mxu0 %v446
      %3099 = vmatpush.msra.mxu0 %v444
      %3100 = vmatpush.msra.mxu0 %v442
      %3101 = vmatpush.msra.mxu0 %v440
      %3102 = vmatpush.msra.mxu0 %v438
      %3103 = vmatpush.msra.mxu0 %v436
      %3104 = vmatpush.msra.mxu0 %v434
      %3105 = vmatpush.msra.mxu0 %v432
      %3106 = vmatpush.msra.mxu0 %v430
      %3107 = vmatpush.msra.mxu0 %v428
      %3108 = vmatpush.msra.mxu0 %v426
      %3109 = vmatpush.msra.mxu0 %v424
      %3110 = vmatpush.msra.mxu0 %v422
      %3111 = vmatmul.f32.gmra.mxu0 %v151
      %v3112 = vpop.f32.mrf.mxu0
      %v3113 = vadd.f32 %v3093, %v3112
      %3114 = vdwg.mxu0
      %3115 = vmatpush.msra.mxu0 %v484
      %3116 = vmatpush.msra.mxu0 %v482
      %3117 = vmatpush.msra.mxu0 %v480
      %3118 = vmatpush.msra.mxu0 %v478
      %3119 = vmatpush.msra.mxu0 %v476
      %3120 = vmatpush.msra.mxu0 %v474
      %3121 = vmatpush.msra.mxu0 %v472
      %3122 = vmatpush.msra.mxu0 %v470
      %3123 = vmatpush.msra.mxu0 %v468
      %3124 = vmatpush.msra.mxu0 %v466
      %3125 = vmatpush.msra.mxu0 %v464
      %3126 = vmatpush.msra.mxu0 %v462
      %3127 = vmatpush.msra.mxu0 %v460
      %3128 = vmatpush.msra.mxu0 %v458
      %3129 = vmatpush.msra.mxu0 %v456
      %3130 = vmatpush.msra.mxu0 %v454
      %3131 = vmatmul.f32.gmra.mxu0 %v152
      %v3132 = vpop.f32.mrf.mxu0
      %v3133 = vadd.f32 %v3113, %v3132
      %3134 = vdwg.mxu0
      %3135 = vmatpush.msra.mxu0 %v516
      %3136 = vmatpush.msra.mxu0 %v514
      %3137 = vmatpush.msra.mxu0 %v512
      %3138 = vmatpush.msra.mxu0 %v510
      %3139 = vmatpush.msra.mxu0 %v508
      %3140 = vmatpush.msra.mxu0 %v506
      %3141 = vmatpush.msra.mxu0 %v504
      %3142 = vmatpush.msra.mxu0 %v502
      %3143 = vmatpush.msra.mxu0 %v500
      %3144 = vmatpush.msra.mxu0 %v498
      %3145 = vmatpush.msra.mxu0 %v496
      %3146 = vmatpush.msra.mxu0 %v494
      %3147 = vmatpush.msra.mxu0 %v492
      %3148 = vmatpush.msra.mxu0 %v490
      %3149 = vmatpush.msra.mxu0 %v488
      %3150 = vmatpush.msra.mxu0 %v486
      %3151 = vmatmul.f32.gmra.mxu0 %v153
      %v3152 = vpop.f32.mrf.mxu0
      %v3153 = vadd.f32 %v3133, %v3152
      %3154 = vdwg.mxu0
      %3155 = vmatpush.msra.mxu0 %v548
      %3156 = vmatpush.msra.mxu0 %v546
      %3157 = vmatpush.msra.mxu0 %v544
      %3158 = vmatpush.msra.mxu0 %v542
      %3159 = vmatpush.msra.mxu0 %v540
      %3160 = vmatpush.msra.mxu0 %v538
      %3161 = vmatpush.msra.mxu0 %v536
      %3162 = vmatpush.msra.mxu0 %v534
      %3163 = vmatpush.msra.mxu0 %v532
      %3164 = vmatpush.msra.mxu0 %v530
      %3165 = vmatpush.msra.mxu0 %v528
      %3166 = vmatpush.msra.mxu0 %v526
      %3167 = vmatpush.msra.mxu0 %v524
      %3168 = vmatpush.msra.mxu0 %v522
      %3169 = vmatpush.msra.mxu0 %v520
      %3170 = vmatpush.msra.mxu0 %v518
      %3171 = vmatmul.f32.gmra.mxu0 %v154
      %v3172 = vpop.f32.mrf.mxu0
      %v3173 = vadd.f32 %v3153, %v3172
      %3174 = vdwg.mxu0
      %3175 = vmatpush.msra.mxu0 %v580
      %3176 = vmatpush.msra.mxu0 %v578
      %3177 = vmatpush.msra.mxu0 %v576
      %3178 = vmatpush.msra.mxu0 %v574
      %3179 = vmatpush.msra.mxu0 %v572
      %3180 = vmatpush.msra.mxu0 %v570
      %3181 = vmatpush.msra.mxu0 %v568
      %3182 = vmatpush.msra.mxu0 %v566
      %3183 = vmatpush.msra.mxu0 %v564
      %3184 = vmatpush.msra.mxu0 %v562
      %3185 = vmatpush.msra.mxu0 %v560
      %3186 = vmatpush.msra.mxu0 %v558
      %3187 = vmatpush.msra.mxu0 %v556
      %3188 = vmatpush.msra.mxu0 %v554
      %3189 = vmatpush.msra.mxu0 %v552
      %3190 = vmatpush.msra.mxu0 %v550
      %3191 = vmatmul.f32.gmra.mxu0 %v155
      %v3192 = vpop.f32.mrf.mxu0
      %v3193 = vadd.f32 %v3173, %v3192
      %3194 = vdwg.mxu0
      %3195 = vmatpush.msra.mxu0 %v612
      %3196 = vmatpush.msra.mxu0 %v610
      %3197 = vmatpush.msra.mxu0 %v608
      %3198 = vmatpush.msra.mxu0 %v606
      %3199 = vmatpush.msra.mxu0 %v604
      %3200 = vmatpush.msra.mxu0 %v602
      %3201 = vmatpush.msra.mxu0 %v600
      %3202 = vmatpush.msra.mxu0 %v598
      %3203 = vmatpush.msra.mxu0 %v596
      %3204 = vmatpush.msra.mxu0 %v594
      %3205 = vmatpush.msra.mxu0 %v592
      %3206 = vmatpush.msra.mxu0 %v590
      %3207 = vmatpush.msra.mxu0 %v588
      %3208 = vmatpush.msra.mxu0 %v586
      %3209 = vmatpush.msra.mxu0 %v584
      %3210 = vmatpush.msra.mxu0 %v582
      %3211 = vmatmul.f32.gmra.mxu0 %v156
      %v3212 = vpop.f32.mrf.mxu0
      %v3213 = vadd.f32 %v3193, %v3212
      %3214 = vdwg.mxu0
      %3215 = vmatpush.msra.mxu0 %v644
      %3216 = vmatpush.msra.mxu0 %v642
      %3217 = vmatpush.msra.mxu0 %v640
      %3218 = vmatpush.msra.mxu0 %v638
      %3219 = vmatpush.msra.mxu0 %v636
      %3220 = vmatpush.msra.mxu0 %v634
      %3221 = vmatpush.msra.mxu0 %v632
      %3222 = vmatpush.msra.mxu0 %v630
      %3223 = vmatpush.msra.mxu0 %v628
      %3224 = vmatpush.msra.mxu0 %v626
      %3225 = vmatpush.msra.mxu0 %v624
      %3226 = vmatpush.msra.mxu0 %v622
      %3227 = vmatpush.msra.mxu0 %v620
      %3228 = vmatpush.msra.mxu0 %v618
      %3229 = vmatpush.msra.mxu0 %v616
      %3230 = vmatpush.msra.mxu0 %v614
      %3231 = vmatmul.f32.gmra.mxu0 %v157
      %v3232 = vpop.f32.mrf.mxu0
      %v3233 = vadd.f32 %v3213, %v3232
      %3234 = vdwg.mxu0
      %3235 = vmatpush.msra.mxu0 %v676
      %3236 = vmatpush.msra.mxu0 %v674
      %3237 = vmatpush.msra.mxu0 %v672
      %3238 = vmatpush.msra.mxu0 %v670
      %3239 = vmatpush.msra.mxu0 %v668
      %3240 = vmatpush.msra.mxu0 %v666
      %3241 = vmatpush.msra.mxu0 %v664
      %3242 = vmatpush.msra.mxu0 %v662
      %3243 = vmatpush.msra.mxu0 %v660
      %3244 = vmatpush.msra.mxu0 %v658
      %3245 = vmatpush.msra.mxu0 %v656
      %3246 = vmatpush.msra.mxu0 %v654
      %3247 = vmatpush.msra.mxu0 %v652
      %3248 = vmatpush.msra.mxu0 %v650
      %3249 = vmatpush.msra.mxu0 %v648
      %3250 = vmatpush.msra.mxu0 %v646
      %3251 = vmatmul.f32.gmra.mxu0 %v158
      %v3252 = vpop.f32.mrf.mxu0
      %v3253 = vadd.f32 %v3233, %v3252
      %3254 = vdwg.mxu0
      %3255 = vmatpush.msra.mxu0 %v708
      %3256 = vmatpush.msra.mxu0 %v706
      %3257 = vmatpush.msra.mxu0 %v704
      %3258 = vmatpush.msra.mxu0 %v702
      %3259 = vmatpush.msra.mxu0 %v700
      %3260 = vmatpush.msra.mxu0 %v698
      %3261 = vmatpush.msra.mxu0 %v696
      %3262 = vmatpush.msra.mxu0 %v694
      %3263 = vmatpush.msra.mxu0 %v692
      %3264 = vmatpush.msra.mxu0 %v690
      %3265 = vmatpush.msra.mxu0 %v688
      %3266 = vmatpush.msra.mxu0 %v686
      %3267 = vmatpush.msra.mxu0 %v684
      %3268 = vmatpush.msra.mxu0 %v682
      %3269 = vmatpush.msra.mxu0 %v680
      %3270 = vmatpush.msra.mxu0 %v678
      %3271 = vmatmul.f32.gmra.mxu0 %v159
      %v3272 = vpop.f32.mrf.mxu0
      %v3273 = vadd.f32 %v3253, %v3272
      %3274 = vdwg.mxu0
      %3275 = vmatpush.msra.mxu0 %v740
      %3276 = vmatpush.msra.mxu0 %v738
      %3277 = vmatpush.msra.mxu0 %v736
      %3278 = vmatpush.msra.mxu0 %v734
      %3279 = vmatpush.msra.mxu0 %v732
      %3280 = vmatpush.msra.mxu0 %v730
      %3281 = vmatpush.msra.mxu0 %v728
      %3282 = vmatpush.msra.mxu0 %v726
      %3283 = vmatpush.msra.mxu0 %v724
      %3284 = vmatpush.msra.mxu0 %v722
      %3285 = vmatpush.msra.mxu0 %v720
      %3286 = vmatpush.msra.mxu0 %v718
      %3287 = vmatpush.msra.mxu0 %v716
      %3288 = vmatpush.msra.mxu0 %v714
      %3289 = vmatpush.msra.mxu0 %v712
      %3290 = vmatpush.msra.mxu0 %v710
      %3291 = vmatmul.f32.gmra.mxu0 %v160
      %v3292 = vpop.f32.mrf.mxu0
      %v3293 = vadd.f32 %v3273, %v3292
      %3294 = vdwg.mxu0
      %3295 = vmatpush.msra.mxu0 %v772
      %3296 = vmatpush.msra.mxu0 %v770
      %3297 = vmatpush.msra.mxu0 %v768
      %3298 = vmatpush.msra.mxu0 %v766
      %3299 = vmatpush.msra.mxu0 %v764
      %3300 = vmatpush.msra.mxu0 %v762
      %3301 = vmatpush.msra.mxu0 %v760
      %3302 = vmatpush.msra.mxu0 %v758
      %3303 = vmatpush.msra.mxu0 %v756
      %3304 = vmatpush.msra.mxu0 %v754
      %3305 = vmatpush.msra.mxu0 %v752
      %3306 = vmatpush.msra.mxu0 %v750
      %3307 = vmatpush.msra.mxu0 %v748
      %3308 = vmatpush.msra.mxu0 %v746
      %3309 = vmatpush.msra.mxu0 %v744
      %3310 = vmatpush.msra.mxu0 %v742
      %3311 = vmatmul.f32.gmra.mxu0 %v161
      %v3312 = vpop.f32.mrf.mxu0
      %v3313 = vadd.f32 %v3293, %v3312
      %3314 = vdwg.mxu0
      %3315 = vmatpush.msra.mxu0 %v804
      %3316 = vmatpush.msra.mxu0 %v802
      %3317 = vmatpush.msra.mxu0 %v800
      %3318 = vmatpush.msra.mxu0 %v798
      %3319 = vmatpush.msra.mxu0 %v796
      %3320 = vmatpush.msra.mxu0 %v794
      %3321 = vmatpush.msra.mxu0 %v792
      %3322 = vmatpush.msra.mxu0 %v790
      %3323 = vmatpush.msra.mxu0 %v788
      %3324 = vmatpush.msra.mxu0 %v786
      %3325 = vmatpush.msra.mxu0 %v784
      %3326 = vmatpush.msra.mxu0 %v782
      %3327 = vmatpush.msra.mxu0 %v780
      %3328 = vmatpush.msra.mxu0 %v778
      %3329 = vmatpush.msra.mxu0 %v776
      %3330 = vmatpush.msra.mxu0 %v774
      %3331 = vmatmul.f32.gmra.mxu0 %v162
      %v3332 = vpop.f32.mrf.mxu0
      %v3333 = vadd.f32 %v3313, %v3332
      %3334 = vdwg.mxu0
      %3335 = vmatpush.msra.mxu0 %v836
      %3336 = vmatpush.msra.mxu0 %v834
      %3337 = vmatpush.msra.mxu0 %v832
      %3338 = vmatpush.msra.mxu0 %v830
      %3339 = vmatpush.msra.mxu0 %v828
      %3340 = vmatpush.msra.mxu0 %v826
      %3341 = vmatpush.msra.mxu0 %v824
      %3342 = vmatpush.msra.mxu0 %v822
      %3343 = vmatpush.msra.mxu0 %v820
      %3344 = vmatpush.msra.mxu0 %v818
      %3345 = vmatpush.msra.mxu0 %v816
      %3346 = vmatpush.msra.mxu0 %v814
      %3347 = vmatpush.msra.mxu0 %v812
      %3348 = vmatpush.msra.mxu0 %v810
      %3349 = vmatpush.msra.mxu0 %v808
      %3350 = vmatpush.msra.mxu0 %v806
      %3351 = vmatmul.f32.gmra.mxu0 %v163
      %v3352 = vpop.f32.mrf.mxu0
      %v3353 = vadd.f32 %v3333, %v3352
      %3354 = vdwg.mxu0
      %3355 = vmatpush.msra.mxu0 %v868
      %3356 = vmatpush.msra.mxu0 %v866
      %3357 = vmatpush.msra.mxu0 %v864
      %3358 = vmatpush.msra.mxu0 %v862
      %3359 = vmatpush.msra.mxu0 %v860
      %3360 = vmatpush.msra.mxu0 %v858
      %3361 = vmatpush.msra.mxu0 %v856
      %3362 = vmatpush.msra.mxu0 %v854
      %3363 = vmatpush.msra.mxu0 %v852
      %3364 = vmatpush.msra.mxu0 %v850
      %3365 = vmatpush.msra.mxu0 %v848
      %3366 = vmatpush.msra.mxu0 %v846
      %3367 = vmatpush.msra.mxu0 %v844
      %3368 = vmatpush.msra.mxu0 %v842
      %3369 = vmatpush.msra.mxu0 %v840
      %3370 = vmatpush.msra.mxu0 %v838
      %3371 = vmatmul.f32.gmra.mxu0 %v164
      %v3372 = vpop.f32.mrf.mxu0
      %v3373 = vadd.f32 %v3353, %v3372
      %3374 = vdwg.mxu0
      %3375 = vmatpush.msra.mxu0 %v900
      %3376 = vmatpush.msra.mxu0 %v898
      %3377 = vmatpush.msra.mxu0 %v896
      %3378 = vmatpush.msra.mxu0 %v894
      %3379 = vmatpush.msra.mxu0 %v892
      %3380 = vmatpush.msra.mxu0 %v890
      %3381 = vmatpush.msra.mxu0 %v888
      %3382 = vmatpush.msra.mxu0 %v886
      %3383 = vmatpush.msra.mxu0 %v884
      %3384 = vmatpush.msra.mxu0 %v882
      %3385 = vmatpush.msra.mxu0 %v880
      %3386 = vmatpush.msra.mxu0 %v878
      %3387 = vmatpush.msra.mxu0 %v876
      %3388 = vmatpush.msra.mxu0 %v874
      %3389 = vmatpush.msra.mxu0 %v872
      %3390 = vmatpush.msra.mxu0 %v870
      %3391 = vmatmul.f32.gmra.mxu0 %v165
      %v3392 = vpop.f32.mrf.mxu0
      %v3393 = vadd.f32 %v3373, %v3392
      %3394 = vdwg.mxu0
      %3395 = vmatpush.msra.mxu0 %v932
      %3396 = vmatpush.msra.mxu0 %v930
      %3397 = vmatpush.msra.mxu0 %v928
      %3398 = vmatpush.msra.mxu0 %v926
      %3399 = vmatpush.msra.mxu0 %v924
      %3400 = vmatpush.msra.mxu0 %v922
      %3401 = vmatpush.msra.mxu0 %v920
      %3402 = vmatpush.msra.mxu0 %v918
      %3403 = vmatpush.msra.mxu0 %v916
      %3404 = vmatpush.msra.mxu0 %v914
      %3405 = vmatpush.msra.mxu0 %v912
      %3406 = vmatpush.msra.mxu0 %v910
      %3407 = vmatpush.msra.mxu0 %v908
      %3408 = vmatpush.msra.mxu0 %v906
      %3409 = vmatpush.msra.mxu0 %v904
      %3410 = vmatpush.msra.mxu0 %v902
      %3411 = vmatmul.f32.gmra.mxu0 %v166
      %v3412 = vpop.f32.mrf.mxu0
      %v3413 = vadd.f32 %v3393, %v3412
      %3414 = vdwg.mxu0
      %3415 = vmatpush.msra.mxu0 %v964
      %3416 = vmatpush.msra.mxu0 %v962
      %3417 = vmatpush.msra.mxu0 %v960
      %3418 = vmatpush.msra.mxu0 %v958
      %3419 = vmatpush.msra.mxu0 %v956
      %3420 = vmatpush.msra.mxu0 %v954
      %3421 = vmatpush.msra.mxu0 %v952
      %3422 = vmatpush.msra.mxu0 %v950
      %3423 = vmatpush.msra.mxu0 %v948
      %3424 = vmatpush.msra.mxu0 %v946
      %3425 = vmatpush.msra.mxu0 %v944
      %3426 = vmatpush.msra.mxu0 %v942
      %3427 = vmatpush.msra.mxu0 %v940
      %3428 = vmatpush.msra.mxu0 %v938
      %3429 = vmatpush.msra.mxu0 %v936
      %3430 = vmatpush.msra.mxu0 %v934
      %3431 = vmatmul.f32.gmra.mxu0 %v167
      %v3432 = vpop.f32.mrf.mxu0
      %v3433 = vadd.f32 %v3413, %v3432
      %3434 = vdwg.mxu0
      %3435 = vmatpush.msra.mxu0 %v996
      %3436 = vmatpush.msra.mxu0 %v994
      %3437 = vmatpush.msra.mxu0 %v992
      %3438 = vmatpush.msra.mxu0 %v990
      %3439 = vmatpush.msra.mxu0 %v988
      %3440 = vmatpush.msra.mxu0 %v986
      %3441 = vmatpush.msra.mxu0 %v984
      %3442 = vmatpush.msra.mxu0 %v982
      %3443 = vmatpush.msra.mxu0 %v980
      %3444 = vmatpush.msra.mxu0 %v978
      %3445 = vmatpush.msra.mxu0 %v976
      %3446 = vmatpush.msra.mxu0 %v974
      %3447 = vmatpush.msra.mxu0 %v972
      %3448 = vmatpush.msra.mxu0 %v970
      %3449 = vmatpush.msra.mxu0 %v968
      %3450 = vmatpush.msra.mxu0 %v966
      %3451 = vmatmul.f32.gmra.mxu0 %v168
      %v3452 = vpop.f32.mrf.mxu0
      %v3453 = vadd.f32 %v3433, %v3452
      %3454 = vdwg.mxu0
      %3455 = vmatpush.msra.mxu0 %v1028
      %3456 = vmatpush.msra.mxu0 %v1026
      %3457 = vmatpush.msra.mxu0 %v1024
      %3458 = vmatpush.msra.mxu0 %v1022
      %3459 = vmatpush.msra.mxu0 %v1020
      %3460 = vmatpush.msra.mxu0 %v1018
      %3461 = vmatpush.msra.mxu0 %v1016
      %3462 = vmatpush.msra.mxu0 %v1014
      %3463 = vmatpush.msra.mxu0 %v1012
      %3464 = vmatpush.msra.mxu0 %v1010
      %3465 = vmatpush.msra.mxu0 %v1008
      %3466 = vmatpush.msra.mxu0 %v1006
      %3467 = vmatpush.msra.mxu0 %v1004
      %3468 = vmatpush.msra.mxu0 %v1002
      %3469 = vmatpush.msra.mxu0 %v1000
      %3470 = vmatpush.msra.mxu0 %v998
      %3471 = vmatmul.f32.gmra.mxu0 %v169
      %v3472 = vpop.f32.mrf.mxu0
      %v3473 = vadd.f32 %v3453, %v3472
      %3474 = vdwg.mxu0
      %3475 = vmatpush.msra.mxu0 %v1060
      %3476 = vmatpush.msra.mxu0 %v1058
      %3477 = vmatpush.msra.mxu0 %v1056
      %3478 = vmatpush.msra.mxu0 %v1054
      %3479 = vmatpush.msra.mxu0 %v1052
      %3480 = vmatpush.msra.mxu0 %v1050
      %3481 = vmatpush.msra.mxu0 %v1048
      %3482 = vmatpush.msra.mxu0 %v1046
      %3483 = vmatpush.msra.mxu0 %v1044
      %3484 = vmatpush.msra.mxu0 %v1042
      %3485 = vmatpush.msra.mxu0 %v1040
      %3486 = vmatpush.msra.mxu0 %v1038
      %3487 = vmatpush.msra.mxu0 %v1036
      %3488 = vmatpush.msra.mxu0 %v1034
      %3489 = vmatpush.msra.mxu0 %v1032
      %3490 = vmatpush.msra.mxu0 %v1030
      %3491 = vmatmul.f32.gmra.mxu0 %v170
      %v3492 = vpop.f32.mrf.mxu0
      %v3493 = vadd.f32 %v3473, %v3492
      %3494 = vdwg.mxu0
      %3495 = vmatpush.msra.mxu0 %v1092
      %3496 = vmatpush.msra.mxu0 %v1090
      %3497 = vmatpush.msra.mxu0 %v1088
      %3498 = vmatpush.msra.mxu0 %v1086
      %3499 = vmatpush.msra.mxu0 %v1084
      %3500 = vmatpush.msra.mxu0 %v1082
      %3501 = vmatpush.msra.mxu0 %v1080
      %3502 = vmatpush.msra.mxu0 %v1078
      %3503 = vmatpush.msra.mxu0 %v1076
      %3504 = vmatpush.msra.mxu0 %v1074
      %3505 = vmatpush.msra.mxu0 %v1072
      %3506 = vmatpush.msra.mxu0 %v1070
      %3507 = vmatpush.msra.mxu0 %v1068
      %3508 = vmatpush.msra.mxu0 %v1066
      %3509 = vmatpush.msra.mxu0 %v1064
      %3510 = vmatpush.msra.mxu0 %v1062
      %3511 = vmatmul.f32.gmra.mxu0 %v171
      %v3512 = vpop.f32.mrf.mxu0
      %v3513 = vadd.f32 %v3493, %v3512
      %3514 = vdwg.mxu0
      %3515 = vmatpush.msra.mxu0 %v1124
      %3516 = vmatpush.msra.mxu0 %v1122
      %3517 = vmatpush.msra.mxu0 %v1120
      %3518 = vmatpush.msra.mxu0 %v1118
      %3519 = vmatpush.msra.mxu0 %v1116
      %3520 = vmatpush.msra.mxu0 %v1114
      %3521 = vmatpush.msra.mxu0 %v1112
      %3522 = vmatpush.msra.mxu0 %v1110
      %3523 = vmatpush.msra.mxu0 %v1108
      %3524 = vmatpush.msra.mxu0 %v1106
      %3525 = vmatpush.msra.mxu0 %v1104
      %3526 = vmatpush.msra.mxu0 %v1102
      %3527 = vmatpush.msra.mxu0 %v1100
      %3528 = vmatpush.msra.mxu0 %v1098
      %3529 = vmatpush.msra.mxu0 %v1096
      %3530 = vmatpush.msra.mxu0 %v1094
      %3531 = vmatmul.f32.gmra.mxu0 %v172
      %v3532 = vpop.f32.mrf.mxu0
      %v3533 = vadd.f32 %v3513, %v3532
      %3534 = vdwg.mxu0
      %3535 = vmatpush.msra.mxu0 %v1156
      %3536 = vmatpush.msra.mxu0 %v1154
      %3537 = vmatpush.msra.mxu0 %v1152
      %3538 = vmatpush.msra.mxu0 %v1150
      %3539 = vmatpush.msra.mxu0 %v1148
      %3540 = vmatpush.msra.mxu0 %v1146
      %3541 = vmatpush.msra.mxu0 %v1144
      %3542 = vmatpush.msra.mxu0 %v1142
      %3543 = vmatpush.msra.mxu0 %v1140
      %3544 = vmatpush.msra.mxu0 %v1138
      %3545 = vmatpush.msra.mxu0 %v1136
      %3546 = vmatpush.msra.mxu0 %v1134
      %3547 = vmatpush.msra.mxu0 %v1132
      %3548 = vmatpush.msra.mxu0 %v1130
      %3549 = vmatpush.msra.mxu0 %v1128
      %3550 = vmatpush.msra.mxu0 %v1126
      %3551 = vmatmul.f32.gmra.mxu0 %v173
      %v3552 = vpop.f32.mrf.mxu0
      %v3553 = vadd.f32 %v3533, %v3552
      %3554 = vdwg.mxu0
      %3555 = vmatpush.msra.mxu0 %v1188
      %3556 = vmatpush.msra.mxu0 %v1186
      %3557 = vmatpush.msra.mxu0 %v1184
      %3558 = vmatpush.msra.mxu0 %v1182
      %3559 = vmatpush.msra.mxu0 %v1180
      %3560 = vmatpush.msra.mxu0 %v1178
      %3561 = vmatpush.msra.mxu0 %v1176
      %3562 = vmatpush.msra.mxu0 %v1174
      %3563 = vmatpush.msra.mxu0 %v1172
      %3564 = vmatpush.msra.mxu0 %v1170
      %3565 = vmatpush.msra.mxu0 %v1168
      %3566 = vmatpush.msra.mxu0 %v1166
      %3567 = vmatpush.msra.mxu0 %v1164
      %3568 = vmatpush.msra.mxu0 %v1162
      %3569 = vmatpush.msra.mxu0 %v1160
      %3570 = vmatpush.msra.mxu0 %v1158
      %3571 = vmatmul.f32.gmra.mxu0 %v174
      %v3572 = vpop.f32.mrf.mxu0
      %v3573 = vadd.f32 %v3553, %v3572
      %3574 = vdwg.mxu0
      %3575 = vmatpush.msra.mxu0 %v1220
      %3576 = vmatpush.msra.mxu0 %v1218
      %3577 = vmatpush.msra.mxu0 %v1216
      %3578 = vmatpush.msra.mxu0 %v1214
      %3579 = vmatpush.msra.mxu0 %v1212
      %3580 = vmatpush.msra.mxu0 %v1210
      %3581 = vmatpush.msra.mxu0 %v1208
      %3582 = vmatpush.msra.mxu0 %v1206
      %3583 = vmatpush.msra.mxu0 %v1204
      %3584 = vmatpush.msra.mxu0 %v1202
      %3585 = vmatpush.msra.mxu0 %v1200
      %3586 = vmatpush.msra.mxu0 %v1198
      %3587 = vmatpush.msra.mxu0 %v1196
      %3588 = vmatpush.msra.mxu0 %v1194
      %3589 = vmatpush.msra.mxu0 %v1192
      %3590 = vmatpush.msra.mxu0 %v1190
      %3591 = vmatmul.f32.gmra.mxu0 %v175
      %v3592 = vpop.f32.mrf.mxu0
      %v3593 = vadd.f32 %v3573, %v3592
      %3594 = vdwg.mxu0
      %3595 = vmatpush.msra.mxu0 %v1252
      %3596 = vmatpush.msra.mxu0 %v1250
      %3597 = vmatpush.msra.mxu0 %v1248
      %3598 = vmatpush.msra.mxu0 %v1246
      %3599 = vmatpush.msra.mxu0 %v1244
      %3600 = vmatpush.msra.mxu0 %v1242
      %3601 = vmatpush.msra.mxu0 %v1240
      %3602 = vmatpush.msra.mxu0 %v1238
      %3603 = vmatpush.msra.mxu0 %v1236
      %3604 = vmatpush.msra.mxu0 %v1234
      %3605 = vmatpush.msra.mxu0 %v1232
      %3606 = vmatpush.msra.mxu0 %v1230
      %3607 = vmatpush.msra.mxu0 %v1228
      %3608 = vmatpush.msra.mxu0 %v1226
      %3609 = vmatpush.msra.mxu0 %v1224
      %3610 = vmatpush.msra.mxu0 %v1222
      %3611 = vmatmul.f32.gmra.mxu0 %v176
      %v3612 = vpop.f32.mrf.mxu0
      %v3613 = vadd.f32 %v3593, %v3612
      %3614 = vdwg.mxu0
      %3615 = vmatpush.msra.mxu0 %v1284
      %3616 = vmatpush.msra.mxu0 %v1282
      %3617 = vmatpush.msra.mxu0 %v1280
      %3618 = vmatpush.msra.mxu0 %v1278
      %3619 = vmatpush.msra.mxu0 %v1276
      %3620 = vmatpush.msra.mxu0 %v1274
      %3621 = vmatpush.msra.mxu0 %v1272
      %3622 = vmatpush.msra.mxu0 %v1270
      %3623 = vmatpush.msra.mxu0 %v1268
      %3624 = vmatpush.msra.mxu0 %v1266
      %3625 = vmatpush.msra.mxu0 %v1264
      %3626 = vmatpush.msra.mxu0 %v1262
      %3627 = vmatpush.msra.mxu0 %v1260
      %3628 = vmatpush.msra.mxu0 %v1258
      %3629 = vmatpush.msra.mxu0 %v1256
      %3630 = vmatpush.msra.mxu0 %v1254
      %3631 = vmatmul.f32.gmra.mxu0 %v177
      %v3632 = vpop.f32.mrf.mxu0
      %v3633 = vadd.f32 %v3613, %v3632
      %3634 = vdwg.mxu0
      %3635 = vmatpush.msra.mxu0 %v1316
      %3636 = vmatpush.msra.mxu0 %v1314
      %3637 = vmatpush.msra.mxu0 %v1312
      %3638 = vmatpush.msra.mxu0 %v1310
      %3639 = vmatpush.msra.mxu0 %v1308
      %3640 = vmatpush.msra.mxu0 %v1306
      %3641 = vmatpush.msra.mxu0 %v1304
      %3642 = vmatpush.msra.mxu0 %v1302
      %3643 = vmatpush.msra.mxu0 %v1300
      %3644 = vmatpush.msra.mxu0 %v1298
      %3645 = vmatpush.msra.mxu0 %v1296
      %3646 = vmatpush.msra.mxu0 %v1294
      %3647 = vmatpush.msra.mxu0 %v1292
      %3648 = vmatpush.msra.mxu0 %v1290
      %3649 = vmatpush.msra.mxu0 %v1288
      %3650 = vmatpush.msra.mxu0 %v1286
      %3651 = vmatmul.f32.gmra.mxu0 %v178
      %v3652 = vpop.f32.mrf.mxu0
      %v3653 = vadd.f32 %v3633, %v3652
      %3654 = vdwg.mxu0
      %3655 = vmatpush.msra.mxu0 %v1348
      %3656 = vmatpush.msra.mxu0 %v1346
      %3657 = vmatpush.msra.mxu0 %v1344
      %3658 = vmatpush.msra.mxu0 %v1342
      %3659 = vmatpush.msra.mxu0 %v1340
      %3660 = vmatpush.msra.mxu0 %v1338
      %3661 = vmatpush.msra.mxu0 %v1336
      %3662 = vmatpush.msra.mxu0 %v1334
      %3663 = vmatpush.msra.mxu0 %v1332
      %3664 = vmatpush.msra.mxu0 %v1330
      %3665 = vmatpush.msra.mxu0 %v1328
      %3666 = vmatpush.msra.mxu0 %v1326
      %3667 = vmatpush.msra.mxu0 %v1324
      %3668 = vmatpush.msra.mxu0 %v1322
      %3669 = vmatpush.msra.mxu0 %v1320
      %3670 = vmatpush.msra.mxu0 %v1318
      %3671 = vmatmul.f32.gmra.mxu0 %v179
      %v3672 = vpop.f32.mrf.mxu0
      %v3673 = vadd.f32 %v3653, %v3672
      %3674 = vdwg.mxu0
      %3675 = vmatpush.msra.mxu0 %v1380
      %3676 = vmatpush.msra.mxu0 %v1378
      %3677 = vmatpush.msra.mxu0 %v1376
      %3678 = vmatpush.msra.mxu0 %v1374
      %3679 = vmatpush.msra.mxu0 %v1372
      %3680 = vmatpush.msra.mxu0 %v1370
      %3681 = vmatpush.msra.mxu0 %v1368
      %3682 = vmatpush.msra.mxu0 %v1366
      %3683 = vmatpush.msra.mxu0 %v1364
      %3684 = vmatpush.msra.mxu0 %v1362
      %3685 = vmatpush.msra.mxu0 %v1360
      %3686 = vmatpush.msra.mxu0 %v1358
      %3687 = vmatpush.msra.mxu0 %v1356
      %3688 = vmatpush.msra.mxu0 %v1354
      %3689 = vmatpush.msra.mxu0 %v1352
      %3690 = vmatpush.msra.mxu0 %v1350
      %3691 = vmatmul.f32.gmra.mxu0 %v180
      %v3692 = vpop.f32.mrf.mxu0
      %v3693 = vadd.f32 %v3673, %v3692
      %3694 = vdwg.mxu0
      %3695 = vmatpush.msra.mxu0 %v1412
      %3696 = vmatpush.msra.mxu0 %v1410
      %3697 = vmatpush.msra.mxu0 %v1408
      %3698 = vmatpush.msra.mxu0 %v1406
      %3699 = vmatpush.msra.mxu0 %v1404
      %3700 = vmatpush.msra.mxu0 %v1402
      %3701 = vmatpush.msra.mxu0 %v1400
      %3702 = vmatpush.msra.mxu0 %v1398
      %3703 = vmatpush.msra.mxu0 %v1396
      %3704 = vmatpush.msra.mxu0 %v1394
      %3705 = vmatpush.msra.mxu0 %v1392
      %3706 = vmatpush.msra.mxu0 %v1390
      %3707 = vmatpush.msra.mxu0 %v1388
      %3708 = vmatpush.msra.mxu0 %v1386
      %3709 = vmatpush.msra.mxu0 %v1384
      %3710 = vmatpush.msra.mxu0 %v1382
      %3711 = vmatmul.f32.gmra.mxu0 %v181
      %v3712 = vpop.f32.mrf.mxu0
      %v3713 = vadd.f32 %v3693, %v3712
      %3714 = vdwg.mxu0
      %3715 = vmatpush.msra.mxu0 %v1444
      %3716 = vmatpush.msra.mxu0 %v1442
      %3717 = vmatpush.msra.mxu0 %v1440
      %3718 = vmatpush.msra.mxu0 %v1438
      %3719 = vmatpush.msra.mxu0 %v1436
      %3720 = vmatpush.msra.mxu0 %v1434
      %3721 = vmatpush.msra.mxu0 %v1432
      %3722 = vmatpush.msra.mxu0 %v1430
      %3723 = vmatpush.msra.mxu0 %v1428
      %3724 = vmatpush.msra.mxu0 %v1426
      %3725 = vmatpush.msra.mxu0 %v1424
      %3726 = vmatpush.msra.mxu0 %v1422
      %3727 = vmatpush.msra.mxu0 %v1420
      %3728 = vmatpush.msra.mxu0 %v1418
      %3729 = vmatpush.msra.mxu0 %v1416
      %3730 = vmatpush.msra.mxu0 %v1414
      %3731 = vmatmul.f32.gmra.mxu0 %v182
      %v3732 = vpop.f32.mrf.mxu0
      %v3733 = vadd.f32 %v3713, %v3732
      %3734 = vdwg.mxu0
      %3735 = vmatpush.msra.mxu0 %v1476
      %3736 = vmatpush.msra.mxu0 %v1474
      %3737 = vmatpush.msra.mxu0 %v1472
      %3738 = vmatpush.msra.mxu0 %v1470
      %3739 = vmatpush.msra.mxu0 %v1468
      %3740 = vmatpush.msra.mxu0 %v1466
      %3741 = vmatpush.msra.mxu0 %v1464
      %3742 = vmatpush.msra.mxu0 %v1462
      %3743 = vmatpush.msra.mxu0 %v1460
      %3744 = vmatpush.msra.mxu0 %v1458
      %3745 = vmatpush.msra.mxu0 %v1456
      %3746 = vmatpush.msra.mxu0 %v1454
      %3747 = vmatpush.msra.mxu0 %v1452
      %3748 = vmatpush.msra.mxu0 %v1450
      %3749 = vmatpush.msra.mxu0 %v1448
      %3750 = vmatpush.msra.mxu0 %v1446
      %3751 = vmatmul.f32.gmra.mxu0 %v183
      %v3752 = vpop.f32.mrf.mxu0
      %v3753 = vadd.f32 %v3733, %v3752
      %3754 = vdwg.mxu0
      %3755 = vmatpush.msra.mxu0 %v1508
      %3756 = vmatpush.msra.mxu0 %v1506
      %3757 = vmatpush.msra.mxu0 %v1504
      %3758 = vmatpush.msra.mxu0 %v1502
      %3759 = vmatpush.msra.mxu0 %v1500
      %3760 = vmatpush.msra.mxu0 %v1498
      %3761 = vmatpush.msra.mxu0 %v1496
      %3762 = vmatpush.msra.mxu0 %v1494
      %3763 = vmatpush.msra.mxu0 %v1492
      %3764 = vmatpush.msra.mxu0 %v1490
      %3765 = vmatpush.msra.mxu0 %v1488
      %3766 = vmatpush.msra.mxu0 %v1486
      %3767 = vmatpush.msra.mxu0 %v1484
      %3768 = vmatpush.msra.mxu0 %v1482
      %3769 = vmatpush.msra.mxu0 %v1480
      %3770 = vmatpush.msra.mxu0 %v1478
      %3771 = vmatmul.f32.gmra.mxu0 %v184
      %v3772 = vpop.f32.mrf.mxu0
      %v3773 = vadd.f32 %v3753, %v3772
      %3774 = vdwg.mxu0
      %3775 = vmatpush.msra.mxu0 %v1540
      %3776 = vmatpush.msra.mxu0 %v1538
      %3777 = vmatpush.msra.mxu0 %v1536
      %3778 = vmatpush.msra.mxu0 %v1534
      %3779 = vmatpush.msra.mxu0 %v1532
      %3780 = vmatpush.msra.mxu0 %v1530
      %3781 = vmatpush.msra.mxu0 %v1528
      %3782 = vmatpush.msra.mxu0 %v1526
      %3783 = vmatpush.msra.mxu0 %v1524
      %3784 = vmatpush.msra.mxu0 %v1522
      %3785 = vmatpush.msra.mxu0 %v1520
      %3786 = vmatpush.msra.mxu0 %v1518
      %3787 = vmatpush.msra.mxu0 %v1516
      %3788 = vmatpush.msra.mxu0 %v1514
      %3789 = vmatpush.msra.mxu0 %v1512
      %3790 = vmatpush.msra.mxu0 %v1510
      %3791 = vmatmul.f32.gmra.mxu0 %v185
      %v3792 = vpop.f32.mrf.mxu0
      %v3793 = vadd.f32 %v3773, %v3792
      %3794 = vdwg.mxu0
      %3795 = vmatpush.msra.mxu0 %v1572
      %3796 = vmatpush.msra.mxu0 %v1570
      %3797 = vmatpush.msra.mxu0 %v1568
      %3798 = vmatpush.msra.mxu0 %v1566
      %3799 = vmatpush.msra.mxu0 %v1564
      %3800 = vmatpush.msra.mxu0 %v1562
      %3801 = vmatpush.msra.mxu0 %v1560
      %3802 = vmatpush.msra.mxu0 %v1558
      %3803 = vmatpush.msra.mxu0 %v1556
      %3804 = vmatpush.msra.mxu0 %v1554
      %3805 = vmatpush.msra.mxu0 %v1552
      %3806 = vmatpush.msra.mxu0 %v1550
      %3807 = vmatpush.msra.mxu0 %v1548
      %3808 = vmatpush.msra.mxu0 %v1546
      %3809 = vmatpush.msra.mxu0 %v1544
      %3810 = vmatpush.msra.mxu0 %v1542
      %3811 = vmatmul.f32.gmra.mxu0 %v186
      %v3812 = vpop.f32.mrf.mxu0
      %v3813 = vadd.f32 %v3793, %v3812
      %3814 = vdwg.mxu0
      %3815 = vmatpush.msra.mxu0 %v1604
      %3816 = vmatpush.msra.mxu0 %v1602
      %3817 = vmatpush.msra.mxu0 %v1600
      %3818 = vmatpush.msra.mxu0 %v1598
      %3819 = vmatpush.msra.mxu0 %v1596
      %3820 = vmatpush.msra.mxu0 %v1594
      %3821 = vmatpush.msra.mxu0 %v1592
      %3822 = vmatpush.msra.mxu0 %v1590
      %3823 = vmatpush.msra.mxu0 %v1588
      %3824 = vmatpush.msra.mxu0 %v1586
      %3825 = vmatpush.msra.mxu0 %v1584
      %3826 = vmatpush.msra.mxu0 %v1582
      %3827 = vmatpush.msra.mxu0 %v1580
      %3828 = vmatpush.msra.mxu0 %v1578
      %3829 = vmatpush.msra.mxu0 %v1576
      %3830 = vmatpush.msra.mxu0 %v1574
      %3831 = vmatmul.f32.gmra.mxu0 %v187
      %v3832 = vpop.f32.mrf.mxu0
      %v3833 = vadd.f32 %v3813, %v3832
      %3834 = vdwg.mxu0
      %3835 = vmatpush.msra.mxu0 %v1636
      %3836 = vmatpush.msra.mxu0 %v1634
      %3837 = vmatpush.msra.mxu0 %v1632
      %3838 = vmatpush.msra.mxu0 %v1630
      %3839 = vmatpush.msra.mxu0 %v1628
      %3840 = vmatpush.msra.mxu0 %v1626
      %3841 = vmatpush.msra.mxu0 %v1624
      %3842 = vmatpush.msra.mxu0 %v1622
      %3843 = vmatpush.msra.mxu0 %v1620
      %3844 = vmatpush.msra.mxu0 %v1618
      %3845 = vmatpush.msra.mxu0 %v1616
      %3846 = vmatpush.msra.mxu0 %v1614
      %3847 = vmatpush.msra.mxu0 %v1612
      %3848 = vmatpush.msra.mxu0 %v1610
      %3849 = vmatpush.msra.mxu0 %v1608
      %3850 = vmatpush.msra.mxu0 %v1606
      %3851 = vmatmul.f32.gmra.mxu0 %v188
      %v3852 = vpop.f32.mrf.mxu0
      %v3853 = vadd.f32 %v3833, %v3852
      %3854 = vdwg.mxu0
      %3855 = vmatpush.msra.mxu0 %v1668
      %3856 = vmatpush.msra.mxu0 %v1666
      %3857 = vmatpush.msra.mxu0 %v1664
      %3858 = vmatpush.msra.mxu0 %v1662
      %3859 = vmatpush.msra.mxu0 %v1660
      %3860 = vmatpush.msra.mxu0 %v1658
      %3861 = vmatpush.msra.mxu0 %v1656
      %3862 = vmatpush.msra.mxu0 %v1654
      %3863 = vmatpush.msra.mxu0 %v1652
      %3864 = vmatpush.msra.mxu0 %v1650
      %3865 = vmatpush.msra.mxu0 %v1648
      %3866 = vmatpush.msra.mxu0 %v1646
      %3867 = vmatpush.msra.mxu0 %v1644
      %3868 = vmatpush.msra.mxu0 %v1642
      %3869 = vmatpush.msra.mxu0 %v1640
      %3870 = vmatpush.msra.mxu0 %v1638
      %3871 = vmatmul.f32.gmra.mxu0 %v189
      %v3872 = vpop.f32.mrf.mxu0
      %v3873 = vadd.f32 %v3853, %v3872
      %3874 = vdwg.mxu0
      %3875 = vmatpush.msra.mxu0 %v1700
      %3876 = vmatpush.msra.mxu0 %v1698
      %3877 = vmatpush.msra.mxu0 %v1696
      %3878 = vmatpush.msra.mxu0 %v1694
      %3879 = vmatpush.msra.mxu0 %v1692
      %3880 = vmatpush.msra.mxu0 %v1690
      %3881 = vmatpush.msra.mxu0 %v1688
      %3882 = vmatpush.msra.mxu0 %v1686
      %3883 = vmatpush.msra.mxu0 %v1684
      %3884 = vmatpush.msra.mxu0 %v1682
      %3885 = vmatpush.msra.mxu0 %v1680
      %3886 = vmatpush.msra.mxu0 %v1678
      %3887 = vmatpush.msra.mxu0 %v1676
      %3888 = vmatpush.msra.mxu0 %v1674
      %3889 = vmatpush.msra.mxu0 %v1672
      %3890 = vmatpush.msra.mxu0 %v1670
      %3891 = vmatmul.f32.gmra.mxu0 %v190
      %v3892 = vpop.f32.mrf.mxu0
      %v3893 = vadd.f32 %v3873, %v3892
      %3894 = vdwg.mxu0
      %3895 = vmatpush.msra.mxu0 %v1732
      %3896 = vmatpush.msra.mxu0 %v1730
      %3897 = vmatpush.msra.mxu0 %v1728
      %3898 = vmatpush.msra.mxu0 %v1726
      %3899 = vmatpush.msra.mxu0 %v1724
      %3900 = vmatpush.msra.mxu0 %v1722
      %3901 = vmatpush.msra.mxu0 %v1720
      %3902 = vmatpush.msra.mxu0 %v1718
      %3903 = vmatpush.msra.mxu0 %v1716
      %3904 = vmatpush.msra.mxu0 %v1714
      %3905 = vmatpush.msra.mxu0 %v1712
      %3906 = vmatpush.msra.mxu0 %v1710
      %3907 = vmatpush.msra.mxu0 %v1708
      %3908 = vmatpush.msra.mxu0 %v1706
      %3909 = vmatpush.msra.mxu0 %v1704
      %3910 = vmatpush.msra.mxu0 %v1702
      %3911 = vmatmul.f32.gmra.mxu0 %v191
      %v3912 = vpop.f32.mrf.mxu0
      %v3913 = vadd.f32 %v3893, %v3912
      %3914 = vdwg.mxu0
      %3915 = vmatpush.msra.mxu0 %v1764
      %3916 = vmatpush.msra.mxu0 %v1762
      %3917 = vmatpush.msra.mxu0 %v1760
      %3918 = vmatpush.msra.mxu0 %v1758
      %3919 = vmatpush.msra.mxu0 %v1756
      %3920 = vmatpush.msra.mxu0 %v1754
      %3921 = vmatpush.msra.mxu0 %v1752
      %3922 = vmatpush.msra.mxu0 %v1750
      %3923 = vmatpush.msra.mxu0 %v1748
      %3924 = vmatpush.msra.mxu0 %v1746
      %3925 = vmatpush.msra.mxu0 %v1744
      %3926 = vmatpush.msra.mxu0 %v1742
      %3927 = vmatpush.msra.mxu0 %v1740
      %3928 = vmatpush.msra.mxu0 %v1738
      %3929 = vmatpush.msra.mxu0 %v1736
      %3930 = vmatpush.msra.mxu0 %v1734
      %3931 = vmatmul.f32.gmra.mxu0 %v192
      %v3932 = vpop.f32.mrf.mxu0
      %v3933 = vadd.f32 %v3913, %v3932
      %3934 = vdwg.mxu0
      %3935 = vmatpush.msra.mxu0 %v1796
      %3936 = vmatpush.msra.mxu0 %v1794
      %3937 = vmatpush.msra.mxu0 %v1792
      %3938 = vmatpush.msra.mxu0 %v1790
      %3939 = vmatpush.msra.mxu0 %v1788
      %3940 = vmatpush.msra.mxu0 %v1786
      %3941 = vmatpush.msra.mxu0 %v1784
      %3942 = vmatpush.msra.mxu0 %v1782
      %3943 = vmatpush.msra.mxu0 %v1780
      %3944 = vmatpush.msra.mxu0 %v1778
      %3945 = vmatpush.msra.mxu0 %v1776
      %3946 = vmatpush.msra.mxu0 %v1774
      %3947 = vmatpush.msra.mxu0 %v1772
      %3948 = vmatpush.msra.mxu0 %v1770
      %3949 = vmatpush.msra.mxu0 %v1768
      %3950 = vmatpush.msra.mxu0 %v1766
      %3951 = vmatmul.f32.gmra.mxu0 %v193
      %v3952 = vpop.f32.mrf.mxu0
      %v3953 = vadd.f32 %v3933, %v3952
      %3954 = vdwg.mxu0
      %3955 = vmatpush.msra.mxu0 %v1828
      %3956 = vmatpush.msra.mxu0 %v1826
      %3957 = vmatpush.msra.mxu0 %v1824
      %3958 = vmatpush.msra.mxu0 %v1822
      %3959 = vmatpush.msra.mxu0 %v1820
      %3960 = vmatpush.msra.mxu0 %v1818
      %3961 = vmatpush.msra.mxu0 %v1816
      %3962 = vmatpush.msra.mxu0 %v1814
      %3963 = vmatpush.msra.mxu0 %v1812
      %3964 = vmatpush.msra.mxu0 %v1810
      %3965 = vmatpush.msra.mxu0 %v1808
      %3966 = vmatpush.msra.mxu0 %v1806
      %3967 = vmatpush.msra.mxu0 %v1804
      %3968 = vmatpush.msra.mxu0 %v1802
      %3969 = vmatpush.msra.mxu0 %v1800
      %3970 = vmatpush.msra.mxu0 %v1798
      %3971 = vmatmul.f32.gmra.mxu0 %v194
      %v3972 = vpop.f32.mrf.mxu0
      %v3973 = vadd.f32 %v3953, %v3972
      %3974 = vdwg.mxu0
      %3975 = vmatpush.msra.mxu0 %v1860
      %3976 = vmatpush.msra.mxu0 %v1858
      %3977 = vmatpush.msra.mxu0 %v1856
      %3978 = vmatpush.msra.mxu0 %v1854
      %3979 = vmatpush.msra.mxu0 %v1852
      %3980 = vmatpush.msra.mxu0 %v1850
      %3981 = vmatpush.msra.mxu0 %v1848
      %3982 = vmatpush.msra.mxu0 %v1846
      %3983 = vmatpush.msra.mxu0 %v1844
      %3984 = vmatpush.msra.mxu0 %v1842
      %3985 = vmatpush.msra.mxu0 %v1840
      %3986 = vmatpush.msra.mxu0 %v1838
      %3987 = vmatpush.msra.mxu0 %v1836
      %3988 = vmatpush.msra.mxu0 %v1834
      %3989 = vmatpush.msra.mxu0 %v1832
      %3990 = vmatpush.msra.mxu0 %v1830
      %3991 = vmatmul.f32.gmra.mxu0 %v195
      %v3992 = vpop.f32.mrf.mxu0
      %v3993 = vadd.f32 %v3973, %v3992
      %3994 = vdwg.mxu0
      %3995 = vmatpush.msra.mxu0 0.0
      %3996 = vmatpush.msra.mxu0 %v1890
      %3997 = vmatpush.msra.mxu0 %v1888
      %3998 = vmatpush.msra.mxu0 %v1886
      %3999 = vmatpush.msra.mxu0 %v1884
      %4000 = vmatpush.msra.mxu0 %v1882
      %4001 = vmatpush.msra.mxu0 %v1880
      %4002 = vmatpush.msra.mxu0 %v1878
      %4003 = vmatpush.msra.mxu0 %v1876
      %4004 = vmatpush.msra.mxu0 %v1874
      %4005 = vmatpush.msra.mxu0 %v1872
      %4006 = vmatpush.msra.mxu0 %v1870
      %4007 = vmatpush.msra.mxu0 %v1868
      %4008 = vmatpush.msra.mxu0 %v1866
      %4009 = vmatpush.msra.mxu0 %v1864
      %4010 = vmatpush.msra.mxu0 %v1862
      %4011 = vmatmul.f32.gmra.mxu0 %v1893
      %v4012 = vpop.f32.mrf.mxu0
      %v4013 = vadd.f32 %v3993, %v4012
      %4014 = vdwg.mxu0
      %v4015 = vxor.u32 %v2953, 2147483648
      %v4016 = vxor.u32 %v4013, 2147483648
      %v4017 = vmul.f32 %v4015, 1.442695
      %v4018 = vpow.pop %v4017
      %v4019 = vmul.f32 %v4016, 1.442695
      %v4020 = vpow.pop %v4019
      %v4021 = vadd.f32 %v4018, 1.0
      %v4022 = vadd.f32 %v4020, 1.0
      %v4023 = vrcp.pop %v4021
      %v4024 = vmul.f32 %v4021, %v4023
      %v4025 = vsub.f32 1.0, %v4024
      %v4026 = vmul.f32 %v4023, %v4025
      %v4027 = vadd.f32 %v4023, %v4026
      %vm4028 = vweird.f32 %v4021
      %vm4029 = vweird.f32 %v4023
      %vm4030 = vmor %vm4028, %vm4029
      %v4031 = vsel %vm4030, %v4023, %v4027
      %v4032 = vand.u32 2147483647, %v4021
      %vm4033 = vcmp.eq.f32.partialorder %v4032, 8.507059e+37
      %v4034 = vand.u32 %v4021, 2147483648
      %v4035 = vor.u32 1.1754944e-38, %v4034
      %v4036 = vsel %vm4033, %v4035, %v4031
      %v4037 = vmul.f32 1.0, %v4036
      %v4038 = vrcp.pop %v4022
      %v4039 = vmul.f32 %v4022, %v4038
      %v4040 = vsub.f32 1.0, %v4039
      %v4041 = vmul.f32 %v4038, %v4040
      %v4042 = vadd.f32 %v4038, %v4041
      %vm4043 = vweird.f32 %v4022
      %vm4044 = vweird.f32 %v4038
      %vm4045 = vmor %vm4043, %vm4044
      %v4046 = vsel %vm4045, %v4038, %v4042
      %v4047 = vand.u32 2147483647, %v4022
      %vm4048 = vcmp.eq.f32.partialorder %v4047, 8.507059e+37
      %v4049 = vand.u32 %v4022, 2147483648
      %v4050 = vor.u32 1.1754944e-38, %v4049
      %v4051 = vsel %vm4048, %v4050, %v4046
      %v4052 = vmul.f32 1.0, %v4051
      %4053 = vst [vmem:[%s143] sm:$0xff] %v4037
      %4054 = vst [vmem:[%s143 + $0x8] sm:$0xff] %v4052
      %p4055 = scmp.lt.s32.totalorder %s13, 1
      %s4056 = scalar_select %p4055, %s13, 1
      %s4057 = smul.addr %s4056, 2
      %s4058 = smul.addr %s4057, 8
      %s4059 = scalar_lea.vmem %s2, %s4058
      // Predicated region
      $region29: #{cbam3d.4} parent=27 // pred_check
        %p4060 = pneg %p78
      $region30: #{cbam3d.4} parent=27 // pred_check_branch
        %4062 = sbr.rel (%p4060) target = $region32
      $region31: #{cbam3d.4} parent=27 // pred_region
        _
      $region32: #{cbam3d.4} parent=27 // pred_fallthru
        _
    $region28: #{cbam3d.4} parent=5 // pred_fallthru
      _
    %p4063 = scmp.le.s32.totalorder 2, %s8
    // Predicated region
    $region33: #{cbam3d.4} parent=5 // pred_check
      %p4064 = pneg %p4063
    $region34: #{cbam3d.4} parent=5 // pred_check_branch
      %4066 = sbr.rel (%p4064) target = $region36
    $region35: #{cbam3d.4} parent=5 // pred_region
      %s4067 = ssub.s32 %s8, 2
      // Predicated region
      $region37: #{cbam3d.4} parent=35 // pred_check
        %p4068 = pneg %p84
      $region38: #{cbam3d.4} parent=35 // pred_check_branch
        %4070 = sbr.rel (%p4068) target = $region40
      $region39: #{cbam3d.4} parent=35 // pred_region
        %p4071 = scmp.lt.s32.totalorder %s14, 1
        %s4072 = scalar_select %p4071, %s14, 1
        %s4073 = smul.addr %s4072, 2
        %s4074 = smul.addr %s4073, 8
        %s4075 = scalar_lea.vmem %s2, %s4074
      $region40: #{cbam3d.4} parent=35 // pred_fallthru
        _
    $region36: #{cbam3d.4} parent=5 // pred_fallthru
      _
  $region6: #{cbam3d.4} parent=0 // loop_footer
    %s12 = sadd.s32 1, %s8
  $region7: #{cbam3d.4} parent=0 // loop_footer_branch
    %7 = sbr.rel target = $region3
  $region8: #{cbam3d.4} parent=0 // loop_exit
    _

</llo_original>
